<compile_context>
chip_gen: v6e
topology: v6e:2x2x1
jax: 0.10.0
libtpu: 0.0.40
codegen_flags: <defaults>
</compile_context>

<pallas_src>
import functools
import math

import jax
import jax.numpy as jnp
from jax.experimental import pallas as pl
from jax.experimental.pallas import tpu as pltpu


# Row indices inside the packed (16, D) vector table.
(BQ1, BK1, BV1, BO1,
 BQ2, BK2, BV2, BO2,
 BFF,
 G1, BE1, G2, BE2, G3, BE3) = range(15)
_N_VEC_ROWS = 16            # padded to a multiple of 8 sublanes
_NEG_INF = -1.0e9           # same fill value as the torch module


# ----------------------------- kernel helpers --------------------------------

def _layernorm(x, g, b, eps=1e-5):
    # x: (..., D) f32; g, b: (1, D) f32   (biased variance, matches nn.LayerNorm)
    mu = jnp.mean(x, axis=-1, keepdims=True)
    var = jnp.mean((x - mu) ** 2, axis=-1, keepdims=True)
    return (x - mu) * jax.lax.rsqrt(var + eps) * g + b


def _split_heads(x2d, bb, t, h, dk):
    # (bb*t, h*dk) -> (bb*h, t, dk)
    return x2d.reshape(bb, t, h, dk).transpose(0, 2, 1, 3).reshape(bb * h, t, dk)


def _merge_heads(x3d, bb, t, h, dk):
    # (bb*h, t, dk) -> (bb*t, h*dk)
    return x3d.reshape(bb, h, t, dk).transpose(0, 2, 1, 3).reshape(bb * t, h * dk)


# ----------------------------- kernel -----------------------------------------

def decoder_layer_kernel(trg_ref, enc_ref, tmask_ref, smask_ref,
                         wq1_ref, wkv1_ref, wo1_ref,
                         wq2_ref, wkv2_ref, wo2_ref,
                         wff_ref, vecs_ref,
                         out_ref,
                         k1_scr, v1_scr, k2_scr, v2_scr,
                         *, n_heads, causal):
    qi = pl.program_id(1)
    bb, T, D = trg_ref.shape
    S = enc_ref.shape[1]
    tq = out_ref.shape[1]
    h = n_heads
    dk = D // h
    cdt = wq1_ref.dtype                       # matmul operand dtype (e.g. bf16)
    inv_scale = 1.0 / math.sqrt(dk)           # folded into Q (equivalent math)

    vecs = vecs_ref[...]                      # (16, D) f32

    def vrow(i):
        return vecs[i:i + 1, :]               # (1, D)

    # ----- per-batch-block K/V precompute (runs once, on the first q tile) -----
    @pl.when(qi == 0)
    def _precompute_kv():
        # self-attn K/V from LayerNorm1 over the FULL target sequence
        z = _layernorm(trg_ref[...], vrow(G1), vrow(BE1)).reshape(bb * T, D)
        kv = jnp.dot(z.astype(cdt), wkv1_ref[...],
                     preferred_element_type=jnp.float32)            # (bb*T, 2D)
        k1_scr[...] = _split_heads(kv[:, 0:D] + vrow(BK1), bb, T, h, dk).astype(cdt)
        v1_scr[...] = _split_heads(kv[:, D:2 * D] + vrow(BV1), bb, T, h, dk).astype(cdt)
        # cross-attn K/V straight from enc_src (no layernorm, as in the module)
        e = enc_ref[...].reshape(bb * S, D)
        kv2 = jnp.dot(e.astype(cdt), wkv2_ref[...],
                      preferred_element_type=jnp.float32)           # (bb*S, 2D)
        k2_scr[...] = _split_heads(kv2[:, 0:D] + vrow(BK2), bb, S, h, dk).astype(cdt)
        v2_scr[...] = _split_heads(kv2[:, D:2 * D] + vrow(BV2), bb, S, h, dk).astype(cdt)

    row0 = pl.multiple_of(qi * tq, tq)
    x = trg_ref[:, pl.ds(row0, tq), :]                # (bb, tq, D) f32 q-tile rows
    tkeep = tmask_ref[...] != 0.0                     # (bb, 1, T) key-padding keep
    skeep = smask_ref[...] != 0.0                     # (bb, 1, S)

    def attend(q2d, k_scr, v_scr, keep, tk, add_causal):
        # q2d: (bb*tq, D) f32, already scaled; keep: (bb, 1, tk) bool
        qh = _split_heads(q2d, bb, tq, h, dk).astype(cdt)           # (bb*h, tq, dk)
        s = jnp.einsum("bqd,bkd->bqk", qh, k_scr[...],
                       preferred_element_type=jnp.float32)          # (bb*h, tq, tk)
        keep4 = keep[:, None, :, :]                                 # (bb,1,1,tk)
        if add_causal:
            rows = row0 + jax.lax.broadcasted_iota(jnp.int32, (tq, tk), 0)
            cols = jax.lax.broadcasted_iota(jnp.int32, (tq, tk), 1)
            keep4 = jnp.logical_and(keep4, (cols <= rows)[None, None, :, :])
        s = jnp.where(keep4, s.reshape(bb, h, tq, tk),
                      _NEG_INF).reshape(bb * h, tq, tk)             # masked_fill
        s = s - jnp.max(s, axis=-1, keepdims=True)
        p = jnp.exp(s)
        denom = jnp.sum(p, axis=-1, keepdims=True)                  # (bb*h, tq, 1)
        ctx = jnp.einsum("bqk,bkd->bqd", p.astype(cdt), v_scr[...],
                         preferred_element_type=jnp.float32)        # (bb*h, tq, dk)
        # normalize AFTER the PV matmul: tq x dk elements instead of tq x tk
        ctx = ctx * pl.reciprocal(denom, approx=True)
        return _merge_heads(ctx, bb, tq, h, dk)                     # (bb*tq, D)

    # ---------------- self attention + residual ----------------
    z = _layernorm(x, vrow(G1), vrow(BE1)).reshape(bb * tq, D)
    q = (jnp.dot(z.astype(cdt), wq1_ref[...],
                 preferred_element_type=jnp.float32) + vrow(BQ1)) * inv_scale
    ctx = attend(q, k1_scr, v1_scr, tkeep, T, causal)
    sa = jnp.dot(ctx.astype(cdt), wo1_ref[...],
                 preferred_element_type=jnp.float32) + vrow(BO1)
    x = x + sa.reshape(bb, tq, D)

    # ---------------- cross attention + residual ----------------
    z = _layernorm(x, vrow(G2), vrow(BE2)).reshape(bb * tq, D)
    q = (jnp.dot(z.astype(cdt), wq2_ref[...],
                 preferred_element_type=jnp.float32) + vrow(BQ2)) * inv_scale
    ctx = attend(q, k2_scr, v2_scr, skeep, S, False)
    ca = jnp.dot(ctx.astype(cdt), wo2_ref[...],
                 preferred_element_type=jnp.float32) + vrow(BO2)
    x = x + ca.reshape(bb, tq, D)

    # ---------------- feed-forward (Linear + ReLU) + residual ----------------
    z = _layernorm(x, vrow(G3), vrow(BE3)).reshape(bb * tq, D)
    ff = jnp.dot(z.astype(cdt), wff_ref[...],
                 preferred_element_type=jnp.float32) + vrow(BFF)
    x = x + jnp.maximum(ff, 0.0).reshape(bb, tq, D)

    out_ref[...] = x


# ----------------------------- wrapper helpers ---------------------------------

def pack_decoder_params(params, matmul_dtype=jnp.bfloat16):
    """One-time packing of the 24 torch-layout params (weights pre-transposed to
    (in, out)) into fused / cast arrays.  Do this ONCE per model, not per call."""
    (wq1, bq1, wk1, bk1, wv1, bv1, wo1, bo1,
     wq2, bq2, wk2, bk2, wv2, bv2, wo2, bo2,
     wff, bff, g1, be1, g2, be2, g3, be3) = params
    D = wq1.shape[0]

    def r(p):
        return jnp.reshape(p, (1, D)).astype(jnp.float32)

    vecs = jnp.concatenate(
        [r(bq1), r(bk1), r(bv1), r(bo1),
         r(bq2), r(bk2), r(bv2), r(bo2),
         r(bff),
         r(g1), r(be1), r(g2), r(be2), r(g3), r(be3),
         jnp.zeros((1, D), jnp.float32)], axis=0)                  # (16, D)

    return dict(
        wq1=wq1.astype(matmul_dtype),
        wkv1=jnp.concatenate([wk1, wv1], axis=1).astype(matmul_dtype),  # (D, 2D)
        wo1=wo1.astype(matmul_dtype),
        wq2=wq2.astype(matmul_dtype),
        wkv2=jnp.concatenate([wk2, wv2], axis=1).astype(matmul_dtype),  # (D, 2D)
        wo2=wo2.astype(matmul_dtype),
        wff=wff.astype(matmul_dtype),
        vecs=vecs,
    )


def _normalize_trg_mask(trg_mask, B, T):
    """Reduce a (causal ∧ key-padding) trg mask to its (B,1,T) key-padding row."""
    if trg_mask is None:
        return jnp.ones((B, 1, T), jnp.float32)
    m = jnp.asarray(trg_mask)
    if m.ndim == 4:                       # (B,1,T,T)
        m = m[:, 0]
    if m.ndim == 3 and m.shape[1] == T:   # (B,T,T): last query row sees every
        m = m[:, T - 1:T, :]              # non-padded key under a causal mask
    elif m.ndim == 2:                     # (B,T)
        m = m[:, None, :]
    return m.astype(jnp.float32).reshape(B, 1, T)


def _normalize_src_mask(src_mask, B, S):
    if src_mask is None:
        return jnp.ones((B, 1, S), jnp.float32)
    m = jnp.asarray(src_mask)
    if m.ndim == 4:                       # (B,1,1,S)
        m = m[:, 0]
    if m.ndim == 2:                       # (B,S)
        m = m[:, None, :]
    return m.astype(jnp.float32).reshape(B, 1, S)


def _vmem_limit_bytes():
    # Generation-aware VMEM budget: ~48 MiB on 64 MiB parts (v7x),
    # ~100 MiB on 128 MiB parts (v5e/v6e).
    try:
        cap = int(pltpu.get_tpu_info().vmem_capacity_bytes)
    except Exception:
        cap = 64 * 1024 * 1024
    return int(min(max(cap - 16 * 1024 * 1024, 32 * 1024 * 1024), 100 * 1024 * 1024))


def _pick_q_tile(T, target=256):
    # >=256 rows keeps the 256-wide MXU on v6e/v7x filled in the M dimension.
    if T <= target:
        return T
    best = None
    for t in range(8, target + 1, 8):
        if T % t == 0:
            best = t
    return best if best is not None else T


# ----------------------------- wrapper ------------------------------------------

def decoder_layer(trg, enc_src, trg_mask, src_mask, params, n_heads, *,
                  packed_params=None, matmul_dtype=jnp.bfloat16,
                  block_b=None, q_tile=None, causal=True):
    """Pre-norm decoder block (inference; dropout = identity).

    trg_mask is interpreted as the usual (causal ∧ key-padding) decoder mask: the
    causal structure is generated in-kernel and only the (B,1,T) key-padding row
    is shipped.  Set causal=False for a pure key-padding trg mask."""
    if packed_params is None:
        packed_params = pack_decoder_params(params, matmul_dtype)
    p = packed_params

    B, T, D = trg.shape
    S = enc_src.shape[1]
    assert D % n_heads == 0
    d_k = D // n_heads

    if q_tile is None:
        q_tile = _pick_q_tile(T)
    assert T % q_tile == 0
    if block_b is None:
        block_b = 1                    # bounded VMEM; >=2 grid steps whenever B>1
    assert B % block_b == 0

    tmask = _normalize_trg_mask(trg_mask, B, T)
    smask = _normalize_src_mask(src_mask, B, S)

    grid = (B // block_b, T // q_tile)
    cdt = p["wq1"].dtype

    def bmap3(b, q):
        return (b, 0, 0)

    def wmap(b, q):
        return (0, 0)

    def omap(b, q):
        return (b, q, 0)

    def build(single_buffer_weights):
        def wspec(shape):
            if single_buffer_weights:
                return pl.BlockSpec(shape, wmap, pipeline_mode=pl.Buffered(1))
            return pl.BlockSpec(shape, wmap)

        in_specs = [
            pl.BlockSpec((block_b, T, D), bmap3),     # trg (full seq, resident)
            pl.BlockSpec((block_b, S, D), bmap3),     # enc_src
            pl.BlockSpec((block_b, 1, T), bmap3),     # trg key-padding keep mask
            pl.BlockSpec((block_b, 1, S), bmap3),     # src keep mask
            wspec(p["wq1"].shape),
            wspec(p["wkv1"].shape),
            wspec(p["wo1"].shape),
            wspec(p["wq2"].shape),
            wspec(p["wkv2"].shape),
            wspec(p["wo2"].shape),
            wspec(p["wff"].shape),
            wspec(p["vecs"].shape),
        ]
        out_spec = pl.BlockSpec((block_b, q_tile, D), omap)

        scratch_shapes = [
            pltpu.VMEM((block_b * n_heads, T, d_k), cdt),   # self-attn K
            pltpu.VMEM((block_b * n_heads, T, d_k), cdt),   # self-attn V
            pltpu.VMEM((block_b * n_heads, S, d_k), cdt),   # cross-attn K
            pltpu.VMEM((block_b * n_heads, S, d_k), cdt),   # cross-attn V
        ]

        kernel = functools.partial(decoder_layer_kernel,
                                   n_heads=n_heads, causal=causal)

        return pl.pallas_call(
            kernel,
            out_shape=jax.ShapeDtypeStruct((B, T, D), jnp.float32),
            grid_spec=pltpu.PrefetchScalarGridSpec(
                num_scalar_prefetch=0,
                grid=grid,
                in_specs=in_specs,
                out_specs=out_spec,
                scratch_shapes=scratch_shapes),
            compiler_params=pltpu.CompilerParams(
                dimension_semantics=("parallel", "arbitrary"),
                vmem_limit_bytes=_vmem_limit_bytes()),
        )

    args = (trg.astype(jnp.float32), enc_src.astype(jnp.float32), tmask, smask,
            p["wq1"], p["wkv1"], p["wo1"], p["wq2"], p["wkv2"], p["wo2"],
            p["wff"], p["vecs"])

    try:
        return build(True)(*args)
    except Exception:
        # pl.Buffered(1) unsupported on this JAX version -> default buffering.
        return build(False)(*args)


# ----------------------------- pure-JAX reference ------------------------------

def decoder_layer_ref(trg, enc_src, trg_mask, src_mask, params, n_heads):
    (wq1, bq1, wk1, bk1, wv1, bv1, wo1, bo1,
     wq2, bq2, wk2, bk2, wv2, bv2, wo2, bo2,
     wff, bff, g1, be1, g2, be2, g3, be3) = params
    D = trg.shape[-1]
    d_k = D // n_heads

    def ln(x, g, b, eps=1e-5):
        mu = jnp.mean(x, axis=-1, keepdims=True)
        var = jnp.mean((x - mu) ** 2, axis=-1, keepdims=True)
        return (x - mu) / jnp.sqrt(var + eps) * g.reshape(1, 1, D) + b.reshape(1, 1, D)

    def mha(q_in, k_in, v_in, mask, wq, bq, wk, bk, wv, bv, wo, bo):
        B, Tq, _ = q_in.shape
        def split(x):
            return x.reshape(B, -1, n_heads, d_k).transpose(0, 2, 1, 3)
        Q = split(q_in @ wq + bq.reshape(1, 1, D))
        K = split(k_in @ wk + bk.reshape(1, 1, D))
        V = split(v_in @ wv + bv.reshape(1, 1, D))
        s = jnp.einsum("bhqd,bhkd->bhqk", Q, K) / math.sqrt(d_k)
        s = jnp.where(mask[:, None] == 0, -1.0e9, s)
        p = jax.nn.softmax(s, axis=-1)
        ctx = jnp.einsum("bhqk,bhkd->bhqd", p, V)
        ctx = ctx.transpose(0, 2, 1, 3).reshape(B, Tq, D)
        return ctx @ wo + bo.reshape(1, 1, D)

    x = trg
    x = x + mha(ln(x, g1, be1), ln(x, g1, be1), ln(x, g1, be1), trg_mask,
                wq1, bq1, wk1, bk1, wv1, bv1, wo1, bo1)
    z = ln(x, g2, be2)
    x = x + mha(z, enc_src, enc_src, src_mask,
                wq2, bq2, wk2, bk2, wv2, bv2, wo2, bo2)
    z = ln(x, g3, be3)
    x = x + jax.nn.relu(z @ wff + bff.reshape(1, 1, D))
    return x


# ----------------------------- main --------------------------------------------

def make_params(key, d):
    ks = jax.random.split(key, 18)
    ki = iter(ks)

    def w(shape, scale=0.1):
        return (scale * jax.random.normal(next(ki), shape)).astype(jnp.float32)

    ones = jnp.ones((d,), jnp.float32)
    zeros = jnp.zeros((d,), jnp.float32)
    return [
        w((d, d)), w((d,)), w((d, d)), w((d,)),     # self-attn Wq,bq,Wk,bk
        w((d, d)), w((d,)), w((d, d)), w((d,)),     # self-attn Wv,bv,Wo,bo
        w((d, d)), w((d,)), w((d, d)), w((d,)),     # cross-attn Wq,bq,Wk,bk
        w((d, d)), w((d,)), w((d, d)), w((d,)),     # cross-attn Wv,bv,Wo,bo
        w((d, d)), w((d,)),                         # ff W,b
        ones, zeros, ones, zeros, ones, zeros,      # norm1..3 gamma/beta
    ]


if __name__ == "__main__":
    key = jax.random.PRNGKey(0)
    kp, kt, ke, kp2, kt2, ke2 = jax.random.split(key, 6)

    # ---- small shapes (spec-scale demo) ----
    B, T, S, D, H = 2, 8, 16, 32, 4
    params = make_params(kp, D)
    trg = jax.random.normal(kt, (B, T, D), jnp.float32)
    enc_src = jax.random.normal(ke, (B, S, D), jnp.float32)
    causal_m = jnp.tril(jnp.ones((T, T), jnp.float32))
    trg_kpad = jnp.ones((B, T), jnp.float32).at[1, T - 2:].set(0.0)
    trg_mask = causal_m[None, :, :] * trg_kpad[:, None, :]            # causal ∧ pad
    src_mask = jnp.ones((B, 1, S), jnp.float32).at[1, 0, S - 4:].set(0.0)

    ref = decoder_layer_ref(trg, enc_src, trg_mask, src_mask, params, H)

    # f32-matmul path: validates structure tightly (only approx-reciprocal differs)
    packed_f32 = pack_decoder_params(params, jnp.float32)     # pack once per model
    out_f32 = decoder_layer(trg, enc_src, trg_mask, src_mask, None, H,
                            packed_params=packed_f32)
    out_f32 = jax.block_until_ready(out_f32)
    assert out_f32.shape == (B, T, D)
    assert jnp.allclose(out_f32, ref, atol=2e-2, rtol=2e-2), "f32 path mismatch"

    # bf16-matmul path (performance configuration): looser tolerance
    packed_bf16 = pack_decoder_params(params, jnp.bfloat16)
    out_bf16 = decoder_layer(trg, enc_src, trg_mask, src_mask, None, H,
                             packed_params=packed_bf16)
    out_bf16 = jax.block_until_ready(out_bf16)
    assert jnp.allclose(out_bf16, ref, atol=7.5e-2, rtol=7.5e-2), "bf16 path mismatch"

    # ---- tile-aligned shapes (T=S=D=128), multi q-tile grid (q_tile=64) ----
    B2, T2, S2, D2, H2 = 2, 128, 128, 128, 4
    params2 = make_params(kp2, D2)
    trg2 = jax.random.normal(kt2, (B2, T2, D2), jnp.float32)
    enc2 = jax.random.normal(ke2, (B2, S2, D2), jnp.float32)
    tmask2 = jnp.broadcast_to(jnp.tril(jnp.ones((T2, T2), jnp.float32)), (B2, T2, T2))
    smask2 = jnp.ones((B2, 1, S2), jnp.float32).at[1, 0, S2 - 32:].set(0.0)

    packed2 = pack_decoder_params(params2, jnp.bfloat16)
    out2 = decoder_layer(trg2, enc2, tmask2, smask2, None, H2,
                         packed_params=packed2, q_tile=64)
    out2 = jax.block_until_ready(out2)
    ref2 = decoder_layer_ref(trg2, enc2, tmask2, smask2, params2, H2)
    assert jnp.allclose(out2, ref2, atol=1e-1, rtol=1e-1), "128-shape mismatch"

    print("KERNEL_OK")
</pallas_src>

<mosaic_0001>
module attributes {stable_mosaic.version = 11 : i64} {
  func.func @decoder_layer_kernel(%arg0: i32, %arg1: i32, %arg2: memref<1x8x32xf32, #tpu.memory_space<vmem>>, %arg3: memref<1x16x32xf32, #tpu.memory_space<vmem>>, %arg4: memref<1x1x8xf32, #tpu.memory_space<vmem>>, %arg5: memref<1x1x16xf32, #tpu.memory_space<vmem>>, %arg6: memref<32x32xf32, #tpu.memory_space<vmem>>, %arg7: memref<32x64xf32, #tpu.memory_space<vmem>>, %arg8: memref<32x32xf32, #tpu.memory_space<vmem>>, %arg9: memref<32x32xf32, #tpu.memory_space<vmem>>, %arg10: memref<32x64xf32, #tpu.memory_space<vmem>>, %arg11: memref<32x32xf32, #tpu.memory_space<vmem>>, %arg12: memref<32x32xf32, #tpu.memory_space<vmem>>, %arg13: memref<16x32xf32, #tpu.memory_space<vmem>>, %arg14: memref<1x8x32xf32, #tpu.memory_space<vmem>>, %arg15: memref<4x8x8xf32, #tpu.memory_space<vmem>>, %arg16: memref<4x8x8xf32, #tpu.memory_space<vmem>>, %arg17: memref<4x16x8xf32, #tpu.memory_space<vmem>>, %arg18: memref<4x16x8xf32, #tpu.memory_space<vmem>>) attributes {dimension_semantics = [#tpu.dimension_semantics<parallel>, #tpu.dimension_semantics<arbitrary>], iteration_bounds = array<i64: 2, 1>, scalar_prefetch = 0 : i64, scratch_operands = 4 : i64, tpu.core_type = #tpu.core_type<tc>, window_params = [{transform_indices = @transform_0, window_bounds = array<i64: 1, 8, 32>}, {transform_indices = @transform_1, window_bounds = array<i64: 1, 16, 32>}, {transform_indices = @transform_2, window_bounds = array<i64: 1, 1, 8>}, {transform_indices = @transform_3, window_bounds = array<i64: 1, 1, 16>}, {pipeline_mode = #tpu.pipeline_mode<synchronous>, transform_indices = @transform_4, window_bounds = array<i64: 32, 32>}, {pipeline_mode = #tpu.pipeline_mode<synchronous>, transform_indices = @transform_5, window_bounds = array<i64: 32, 64>}, {pipeline_mode = #tpu.pipeline_mode<synchronous>, transform_indices = @transform_6, window_bounds = array<i64: 32, 32>}, {pipeline_mode = #tpu.pipeline_mode<synchronous>, transform_indices = @transform_7, window_bounds = array<i64: 32, 32>}, {pipeline_mode = #tpu.pipeline_mode<synchronous>, transform_indices = @transform_8, window_bounds = array<i64: 32, 64>}, {pipeline_mode = #tpu.pipeline_mode<synchronous>, transform_indices = @transform_9, window_bounds = array<i64: 32, 32>}, {pipeline_mode = #tpu.pipeline_mode<synchronous>, transform_indices = @transform_10, window_bounds = array<i64: 32, 32>}, {pipeline_mode = #tpu.pipeline_mode<synchronous>, transform_indices = @transform_11, window_bounds = array<i64: 16, 32>}, {transform_indices = @transform_12, window_bounds = array<i64: 1, 8, 32>}]} {
    %c0 = arith.constant 0 : index
    %c0_0 = arith.constant 0 : index
    %0 = vector.load %arg13[%c0, %c0_0] : memref<16x32xf32, #tpu.memory_space<vmem>>, vector<16x32xf32>
    %c0_i32 = arith.constant 0 : i32
    %1 = arith.cmpi eq, %arg1, %c0_i32 : i32
    %2 = arith.extui %1 : i1 to i32
    %c0_i32_1 = arith.constant 0 : i32
    %3 = arith.cmpi ne, %2, %c0_i32_1 : i32
    scf.if %3 {
      %c0_69 = arith.constant 0 : index
      %c0_70 = arith.constant 0 : index
      %c0_71 = arith.constant 0 : index
      %195 = vector.load %arg2[%c0_69, %c0_70, %c0_71] : memref<1x8x32xf32, #tpu.memory_space<vmem>>, vector<1x8x32xf32>
      %196 = vector.extract_strided_slice %0 {offsets = [9, 0], sizes = [1, 32], strides = [1, 1]} : vector<16x32xf32> to vector<1x32xf32>
      %197 = vector.extract_strided_slice %0 {offsets = [10, 0], sizes = [1, 32], strides = [1, 1]} : vector<16x32xf32> to vector<1x32xf32>
      %cst_72 = arith.constant dense<0.000000e+00> : vector<1x8xf32>
      %198 = vector.multi_reduction <add>, %195, %cst_72 [2] : vector<1x8x32xf32> to vector<1x8xf32>
      %199 = vector.shape_cast %198 : vector<1x8xf32> to vector<1x8x1xf32>
      %cst_73 = arith.constant 3.200000e+01 : f32
      %200 = vector.broadcast %cst_73 : f32 to vector<1x8x1xf32>
      %201 = arith.divf %199, %200 : vector<1x8x1xf32>
      %202 = vector.broadcast %201 : vector<1x8x1xf32> to vector<1x8x32xf32>
      %203 = arith.subf %195, %202 : vector<1x8x32xf32>
      %204 = arith.mulf %203, %203 : vector<1x8x32xf32>
      %cst_74 = arith.constant dense<0.000000e+00> : vector<1x8xf32>
      %205 = vector.multi_reduction <add>, %204, %cst_74 [2] : vector<1x8x32xf32> to vector<1x8xf32>
      %206 = vector.shape_cast %205 : vector<1x8xf32> to vector<1x8x1xf32>
      %cst_75 = arith.constant 3.200000e+01 : f32
      %207 = vector.broadcast %cst_75 : f32 to vector<1x8x1xf32>
      %208 = arith.divf %206, %207 : vector<1x8x1xf32>
      %209 = vector.broadcast %201 : vector<1x8x1xf32> to vector<1x8x32xf32>
      %210 = arith.subf %195, %209 : vector<1x8x32xf32>
      %cst_76 = arith.constant 9.99999974E-6 : f32
      %211 = vector.broadcast %cst_76 : f32 to vector<1x8x1xf32>
      %212 = arith.addf %208, %211 : vector<1x8x1xf32>
      %213 = math.rsqrt %212 : vector<1x8x1xf32>
      %214 = vector.broadcast %213 : vector<1x8x1xf32> to vector<1x8x32xf32>
      %215 = arith.mulf %210, %214 : vector<1x8x32xf32>
      %216 = vector.shape_cast %196 : vector<1x32xf32> to vector<1x1x32xf32>
      %217 = vector.broadcast %216 : vector<1x1x32xf32> to vector<1x8x32xf32>
      %218 = arith.mulf %215, %217 : vector<1x8x32xf32>
      %219 = vector.shape_cast %197 : vector<1x32xf32> to vector<1x1x32xf32>
      %220 = vector.broadcast %219 : vector<1x1x32xf32> to vector<1x8x32xf32>
      %221 = arith.addf %218, %220 : vector<1x8x32xf32>
      %222 = vector.shape_cast %221 : vector<1x8x32xf32> to vector<8x32xf32>
      %c0_77 = arith.constant 0 : index
      %c0_78 = arith.constant 0 : index
      %223 = vector.load %arg7[%c0_77, %c0_78] : memref<32x64xf32, #tpu.memory_space<vmem>>, vector<32x64xf32>
      %cst_79 = arith.constant dense<0.000000e+00> : vector<8x64xf32>
      %224 = tpu.matmul %222, %223, %cst_79 {dimension_numbers = #tpu.dot_dimension_numbers<[1], [0], [0], [1], [0, 0, 1, 1], [], []>} : vector<8x32xf32>, vector<32x64xf32>, vector<8x64xf32> -> vector<8x64xf32>
      %225 = vector.extract_strided_slice %224 {offsets = [0, 0], sizes = [8, 32], strides = [1, 1]} : vector<8x64xf32> to vector<8x32xf32>
      %226 = vector.extract_strided_slice %0 {offsets = [1, 0], sizes = [1, 32], strides = [1, 1]} : vector<16x32xf32> to vector<1x32xf32>
      %227 = vector.broadcast %226 : vector<1x32xf32> to vector<8x32xf32>
      %228 = arith.addf %225, %227 : vector<8x32xf32>
      %229 = vector.shape_cast %228 : vector<8x32xf32> to vector<1x8x4x8xf32>
      %230 = tpu.transpose %229, [0, 2, 1, 3] : vector<1x8x4x8xf32> -> vector<1x4x8x8xf32>
      %231 = vector.shape_cast %230 : vector<1x4x8x8xf32> to vector<4x8x8xf32>
      %c0_80 = arith.constant 0 : index
      %c0_81 = arith.constant 0 : index
      %c0_82 = arith.constant 0 : index
      %232 = vector.load %arg15[%c0_80, %c0_81, %c0_82] : memref<4x8x8xf32, #tpu.memory_space<vmem>>, vector<4x8x8xf32>
      tpu.vector_store %arg15[%c0_80, %c0_81, %c0_82], %231 {strides = array<i32>} : memref<4x8x8xf32, #tpu.memory_space<vmem>>, vector<4x8x8xf32>,
      %233 = vector.extract_strided_slice %224 {offsets = [0, 32], sizes = [8, 32], strides = [1, 1]} : vector<8x64xf32> to vector<8x32xf32>
      %234 = vector.extract_strided_slice %0 {offsets = [2, 0], sizes = [1, 32], strides = [1, 1]} : vector<16x32xf32> to vector<1x32xf32>
      %235 = vector.broadcast %234 : vector<1x32xf32> to vector<8x32xf32>
      %236 = arith.addf %233, %235 : vector<8x32xf32>
      %237 = vector.shape_cast %236 : vector<8x32xf32> to vector<1x8x4x8xf32>
      %238 = tpu.transpose %237, [0, 2, 1, 3] : vector<1x8x4x8xf32> -> vector<1x4x8x8xf32>
      %239 = vector.shape_cast %238 : vector<1x4x8x8xf32> to vector<4x8x8xf32>
      %c0_83 = arith.constant 0 : index
      %c0_84 = arith.constant 0 : index
      %c0_85 = arith.constant 0 : index
      %240 = vector.load %arg16[%c0_83, %c0_84, %c0_85] : memref<4x8x8xf32, #tpu.memory_space<vmem>>, vector<4x8x8xf32>
      tpu.vector_store %arg16[%c0_83, %c0_84, %c0_85], %239 {strides = array<i32>} : memref<4x8x8xf32, #tpu.memory_space<vmem>>, vector<4x8x8xf32>,
      %c0_86 = arith.constant 0 : index
      %c0_87 = arith.constant 0 : index
      %c0_88 = arith.constant 0 : index
      %241 = vector.load %arg3[%c0_86, %c0_87, %c0_88] : memref<1x16x32xf32, #tpu.memory_space<vmem>>, vector<1x16x32xf32>
      %242 = vector.shape_cast %241 : vector<1x16x32xf32> to vector<16x32xf32>
      %c0_89 = arith.constant 0 : index
      %c0_90 = arith.constant 0 : index
      %243 = vector.load %arg10[%c0_89, %c0_90] : memref<32x64xf32, #tpu.memory_space<vmem>>, vector<32x64xf32>
      %cst_91 = arith.constant dense<0.000000e+00> : vector<16x64xf32>
      %244 = tpu.matmul %242, %243, %cst_91 {dimension_numbers = #tpu.dot_dimension_numbers<[1], [0], [0], [1], [0, 0, 1, 1], [], []>} : vector<16x32xf32>, vector<32x64xf32>, vector<16x64xf32> -> vector<16x64xf32>
      %245 = vector.extract_strided_slice %244 {offsets = [0, 0], sizes = [16, 32], strides = [1, 1]} : vector<16x64xf32> to vector<16x32xf32>
      %246 = vector.extract_strided_slice %0 {offsets = [5, 0], sizes = [1, 32], strides = [1, 1]} : vector<16x32xf32> to vector<1x32xf32>
      %247 = vector.broadcast %246 : vector<1x32xf32> to vector<16x32xf32>
      %248 = arith.addf %245, %247 : vector<16x32xf32>
      %249 = vector.shape_cast %248 : vector<16x32xf32> to vector<1x16x4x8xf32>
      %250 = tpu.transpose %249, [0, 2, 1, 3] : vector<1x16x4x8xf32> -> vector<1x4x16x8xf32>
      %251 = vector.shape_cast %250 : vector<1x4x16x8xf32> to vector<4x16x8xf32>
      %c0_92 = arith.constant 0 : index
      %c0_93 = arith.constant 0 : index
      %c0_94 = arith.constant 0 : index
      %252 = vector.load %arg17[%c0_92, %c0_93, %c0_94] : memref<4x16x8xf32, #tpu.memory_space<vmem>>, vector<4x16x8xf32>
      tpu.vector_store %arg17[%c0_92, %c0_93, %c0_94], %251 {strides = array<i32>} : memref<4x16x8xf32, #tpu.memory_space<vmem>>, vector<4x16x8xf32>,
      %253 = vector.extract_strided_slice %244 {offsets = [0, 32], sizes = [16, 32], strides = [1, 1]} : vector<16x64xf32> to vector<16x32xf32>
      %254 = vector.extract_strided_slice %0 {offsets = [6, 0], sizes = [1, 32], strides = [1, 1]} : vector<16x32xf32> to vector<1x32xf32>
      %255 = vector.broadcast %254 : vector<1x32xf32> to vector<16x32xf32>
      %256 = arith.addf %253, %255 : vector<16x32xf32>
      %257 = vector.shape_cast %256 : vector<16x32xf32> to vector<1x16x4x8xf32>
      %258 = tpu.transpose %257, [0, 2, 1, 3] : vector<1x16x4x8xf32> -> vector<1x4x16x8xf32>
      %259 = vector.shape_cast %258 : vector<1x4x16x8xf32> to vector<4x16x8xf32>
      %c0_95 = arith.constant 0 : index
      %c0_96 = arith.constant 0 : index
      %c0_97 = arith.constant 0 : index
      %260 = vector.load %arg18[%c0_95, %c0_96, %c0_97] : memref<4x16x8xf32, #tpu.memory_space<vmem>>, vector<4x16x8xf32>
      tpu.vector_store %arg18[%c0_95, %c0_96, %c0_97], %259 {strides = array<i32>} : memref<4x16x8xf32, #tpu.memory_space<vmem>>, vector<4x16x8xf32>,
    } else {
    }
    %c8_i32 = arith.constant 8 : i32
    %4 = arith.muli %arg1, %c8_i32 : i32
    %5 = tpu.assume_multiple %4, 8 : i32
    %c0_2 = arith.constant 0 : index
    %6 = arith.index_cast %5 : i32 to index
    %c0_3 = arith.constant 0 : index
    %7 = vector.load %arg2[%c0_2, %6, %c0_3] : memref<1x8x32xf32, #tpu.memory_space<vmem>>, vector<1x8x32xf32>
    %c0_4 = arith.constant 0 : index
    %c0_5 = arith.constant 0 : index
    %c0_6 = arith.constant 0 : index
    %8 = vector.load %arg4[%c0_4, %c0_5, %c0_6] : memref<1x1x8xf32, #tpu.memory_space<vmem>>, vector<1x1x8xf32>
    %cst = arith.constant 0.000000e+00 : f32
    %9 = vector.broadcast %cst : f32 to vector<1x1x8xf32>
    %10 = arith.cmpf one, %8, %9 : vector<1x1x8xf32>
    %c0_7 = arith.constant 0 : index
    %c0_8 = arith.constant 0 : index
    %c0_9 = arith.constant 0 : index
    %11 = vector.load %arg5[%c0_7, %c0_8, %c0_9] : memref<1x1x16xf32, #tpu.memory_space<vmem>>, vector<1x1x16xf32>
    %cst_10 = arith.constant 0.000000e+00 : f32
    %12 = vector.broadcast %cst_10 : f32 to vector<1x1x16xf32>
    %13 = arith.cmpf one, %11, %12 : vector<1x1x16xf32>
    %14 = vector.extract_strided_slice %0 {offsets = [9, 0], sizes = [1, 32], strides = [1, 1]} : vector<16x32xf32> to vector<1x32xf32>
    %15 = vector.extract_strided_slice %0 {offsets = [10, 0], sizes = [1, 32], strides = [1, 1]} : vector<16x32xf32> to vector<1x32xf32>
    %cst_11 = arith.constant dense<0.000000e+00> : vector<1x8xf32>
    %16 = vector.multi_reduction <add>, %7, %cst_11 [2] : vector<1x8x32xf32> to vector<1x8xf32>
    %17 = vector.shape_cast %16 : vector<1x8xf32> to vector<1x8x1xf32>
    %cst_12 = arith.constant 3.200000e+01 : f32
    %18 = vector.broadcast %cst_12 : f32 to vector<1x8x1xf32>
    %19 = arith.divf %17, %18 : vector<1x8x1xf32>
    %20 = vector.broadcast %19 : vector<1x8x1xf32> to vector<1x8x32xf32>
    %21 = arith.subf %7, %20 : vector<1x8x32xf32>
    %22 = arith.mulf %21, %21 : vector<1x8x32xf32>
    %cst_13 = arith.constant dense<0.000000e+00> : vector<1x8xf32>
    %23 = vector.multi_reduction <add>, %22, %cst_13 [2] : vector<1x8x32xf32> to vector<1x8xf32>
    %24 = vector.shape_cast %23 : vector<1x8xf32> to vector<1x8x1xf32>
    %cst_14 = arith.constant 3.200000e+01 : f32
    %25 = vector.broadcast %cst_14 : f32 to vector<1x8x1xf32>
    %26 = arith.divf %24, %25 : vector<1x8x1xf32>
    %27 = vector.broadcast %19 : vector<1x8x1xf32> to vector<1x8x32xf32>
    %28 = arith.subf %7, %27 : vector<1x8x32xf32>
    %cst_15 = arith.constant 9.99999974E-6 : f32
    %29 = vector.broadcast %cst_15 : f32 to vector<1x8x1xf32>
    %30 = arith.addf %26, %29 : vector<1x8x1xf32>
    %31 = math.rsqrt %30 : vector<1x8x1xf32>
    %32 = vector.broadcast %31 : vector<1x8x1xf32> to vector<1x8x32xf32>
    %33 = arith.mulf %28, %32 : vector<1x8x32xf32>
    %34 = vector.shape_cast %14 : vector<1x32xf32> to vector<1x1x32xf32>
    %35 = vector.broadcast %34 : vector<1x1x32xf32> to vector<1x8x32xf32>
    %36 = arith.mulf %33, %35 : vector<1x8x32xf32>
    %37 = vector.shape_cast %15 : vector<1x32xf32> to vector<1x1x32xf32>
    %38 = vector.broadcast %37 : vector<1x1x32xf32> to vector<1x8x32xf32>
    %39 = arith.addf %36, %38 : vector<1x8x32xf32>
    %40 = vector.shape_cast %39 : vector<1x8x32xf32> to vector<8x32xf32>
    %c0_16 = arith.constant 0 : index
    %c0_17 = arith.constant 0 : index
    %41 = vector.load %arg6[%c0_16, %c0_17] : memref<32x32xf32, #tpu.memory_space<vmem>>, vector<32x32xf32>
    %cst_18 = arith.constant dense<0.000000e+00> : vector<8x32xf32>
    %42 = tpu.matmul %40, %41, %cst_18 {dimension_numbers = #tpu.dot_dimension_numbers<[1], [0], [0], [1], [0, 0, 1, 1], [], []>} : vector<8x32xf32>, vector<32x32xf32>, vector<8x32xf32> -> vector<8x32xf32>
    %43 = vector.extract_strided_slice %0 {offsets = [0, 0], sizes = [1, 32], strides = [1, 1]} : vector<16x32xf32> to vector<1x32xf32>
    %44 = vector.broadcast %43 : vector<1x32xf32> to vector<8x32xf32>
    %45 = arith.addf %42, %44 : vector<8x32xf32>
    %cst_19 = arith.constant 0.353553385 : f32
    %46 = vector.broadcast %cst_19 : f32 to vector<8x32xf32>
    %47 = arith.mulf %45, %46 : vector<8x32xf32>
    %48 = vector.shape_cast %47 : vector<8x32xf32> to vector<1x8x4x8xf32>
    %49 = tpu.transpose %48, [0, 2, 1, 3] : vector<1x8x4x8xf32> -> vector<1x4x8x8xf32>
    %50 = vector.shape_cast %49 : vector<1x4x8x8xf32> to vector<4x8x8xf32>
    %c0_20 = arith.constant 0 : index
    %c0_21 = arith.constant 0 : index
    %c0_22 = arith.constant 0 : index
    %51 = vector.load %arg15[%c0_20, %c0_21, %c0_22] : memref<4x8x8xf32, #tpu.memory_space<vmem>>, vector<4x8x8xf32>
    "tpu.trace_start"() <{level = 10 : i32, message = "bqd,bkd->bqk"}> : () -> ()
    %cst_23 = arith.constant dense<0.000000e+00> : vector<4x8x8xf32>
    %52 = tpu.matmul %50, %51, %cst_23 {dimension_numbers = #tpu.dot_dimension_numbers<[2], [2], [1], [1], [0, 0, 0, 1, 1, 1], [0], [0]>} : vector<4x8x8xf32>, vector<4x8x8xf32>, vector<4x8x8xf32> -> vector<4x8x8xf32>
    "tpu.trace_stop"() : () -> ()
    %53 = vector.shape_cast %10 : vector<1x1x8xi1> to vector<1x1x1x8xi1>
    %54 = tpu.iota {dimensions = array<i32: 0>} : vector<8x8xi32>
    %55 = vector.broadcast %5 : i32 to vector<8x8xi32>
    %56 = arith.addi %55, %54 : vector<8x8xi32>
    %57 = tpu.iota {dimensions = array<i32: 1>} : vector<8x8xi32>
    %58 = arith.cmpi sle, %57, %56 : vector<8x8xi32>
    %59 = vector.shape_cast %58 : vector<8x8xi1> to vector<1x1x8x8xi1>
    %60 = vector.broadcast %53 : vector<1x1x1x8xi1> to vector<1x1x8x8xi1>
    %61 = arith.andi %60, %59 : vector<1x1x8x8xi1>
    %62 = vector.shape_cast %52 : vector<4x8x8xf32> to vector<1x4x8x8xf32>
    %cst_24 = arith.constant -1.000000e+09 : f32
    %63 = vector.shape_cast %61 : vector<1x1x8x8xi1> to vector<1x1x8x8xi1>
    %64 = vector.broadcast %63 : vector<1x1x8x8xi1> to vector<1x4x8x8xi1>
    %65 = vector.broadcast %cst_24 : f32 to vector<1x4x8x8xf32>
    %66 = arith.select %64, %62, %65 : vector<1x4x8x8xi1>, vector<1x4x8x8xf32>
    %67 = vector.shape_cast %66 : vector<1x4x8x8xf32> to vector<4x8x8xf32>
    %cst_25 = arith.constant dense<0xFF800000> : vector<4x8xf32>
    %68 = vector.multi_reduction <maximumf>, %67, %cst_25 [2] : vector<4x8x8xf32> to vector<4x8xf32>
    %69 = vector.shape_cast %68 : vector<4x8xf32> to vector<4x8x1xf32>
    %70 = vector.broadcast %69 : vector<4x8x1xf32> to vector<4x8x8xf32>
    %71 = arith.subf %67, %70 : vector<4x8x8xf32>
    %72 = math.exp %71 : vector<4x8x8xf32>
    %cst_26 = arith.constant dense<0.000000e+00> : vector<4x8xf32>
    %73 = vector.multi_reduction <add>, %72, %cst_26 [2] : vector<4x8x8xf32> to vector<4x8xf32>
    %74 = vector.shape_cast %73 : vector<4x8xf32> to vector<4x8x1xf32>
    %c0_27 = arith.constant 0 : index
    %c0_28 = arith.constant 0 : index
    %c0_29 = arith.constant 0 : index
    %75 = vector.load %arg16[%c0_27, %c0_28, %c0_29] : memref<4x8x8xf32, #tpu.memory_space<vmem>>, vector<4x8x8xf32>
    "tpu.trace_start"() <{level = 10 : i32, message = "bqk,bkd->bqd"}> : () -> ()
    %cst_30 = arith.constant dense<0.000000e+00> : vector<4x8x8xf32>
    %76 = tpu.matmul %72, %75, %cst_30 {dimension_numbers = #tpu.dot_dimension_numbers<[2], [1], [1], [2], [0, 0, 0, 1, 1, 2], [0], [0]>} : vector<4x8x8xf32>, vector<4x8x8xf32>, vector<4x8x8xf32> -> vector<4x8x8xf32>
    "tpu.trace_stop"() : () -> ()
    %77 = tpu.reciprocal %74 {approx = true} : vector<4x8x1xf32> -> vector<4x8x1xf32>
    %78 = vector.broadcast %77 : vector<4x8x1xf32> to vector<4x8x8xf32>
    %79 = arith.mulf %76, %78 : vector<4x8x8xf32>
    %80 = vector.shape_cast %79 : vector<4x8x8xf32> to vector<1x4x8x8xf32>
    %81 = tpu.transpose %80, [0, 2, 1, 3] : vector<1x4x8x8xf32> -> vector<1x8x4x8xf32>
    %82 = vector.shape_cast %81 : vector<1x8x4x8xf32> to vector<8x32xf32>
    %c0_31 = arith.constant 0 : index
    %c0_32 = arith.constant 0 : index
    %83 = vector.load %arg8[%c0_31, %c0_32] : memref<32x32xf32, #tpu.memory_space<vmem>>, vector<32x32xf32>
    %cst_33 = arith.constant dense<0.000000e+00> : vector<8x32xf32>
    %84 = tpu.matmul %82, %83, %cst_33 {dimension_numbers = #tpu.dot_dimension_numbers<[1], [0], [0], [1], [0, 0, 1, 1], [], []>} : vector<8x32xf32>, vector<32x32xf32>, vector<8x32xf32> -> vector<8x32xf32>
    %85 = vector.extract_strided_slice %0 {offsets = [3, 0], sizes = [1, 32], strides = [1, 1]} : vector<16x32xf32> to vector<1x32xf32>
    %86 = vector.broadcast %85 : vector<1x32xf32> to vector<8x32xf32>
    %87 = arith.addf %84, %86 : vector<8x32xf32>
    %88 = vector.shape_cast %87 : vector<8x32xf32> to vector<1x8x32xf32>
    %89 = arith.addf %7, %88 : vector<1x8x32xf32>
    %90 = vector.extract_strided_slice %0 {offsets = [11, 0], sizes = [1, 32], strides = [1, 1]} : vector<16x32xf32> to vector<1x32xf32>
    %91 = vector.extract_strided_slice %0 {offsets = [12, 0], sizes = [1, 32], strides = [1, 1]} : vector<16x32xf32> to vector<1x32xf32>
    %cst_34 = arith.constant dense<0.000000e+00> : vector<1x8xf32>
    %92 = vector.multi_reduction <add>, %89, %cst_34 [2] : vector<1x8x32xf32> to vector<1x8xf32>
    %93 = vector.shape_cast %92 : vector<1x8xf32> to vector<1x8x1xf32>
    %cst_35 = arith.constant 3.200000e+01 : f32
    %94 = vector.broadcast %cst_35 : f32 to vector<1x8x1xf32>
    %95 = arith.divf %93, %94 : vector<1x8x1xf32>
    %96 = vector.broadcast %95 : vector<1x8x1xf32> to vector<1x8x32xf32>
    %97 = arith.subf %89, %96 : vector<1x8x32xf32>
    %98 = arith.mulf %97, %97 : vector<1x8x32xf32>
    %cst_36 = arith.constant dense<0.000000e+00> : vector<1x8xf32>
    %99 = vector.multi_reduction <add>, %98, %cst_36 [2] : vector<1x8x32xf32> to vector<1x8xf32>
    %100 = vector.shape_cast %99 : vector<1x8xf32> to vector<1x8x1xf32>
    %cst_37 = arith.constant 3.200000e+01 : f32
    %101 = vector.broadcast %cst_37 : f32 to vector<1x8x1xf32>
    %102 = arith.divf %100, %101 : vector<1x8x1xf32>
    %103 = vector.broadcast %95 : vector<1x8x1xf32> to vector<1x8x32xf32>
    %104 = arith.subf %89, %103 : vector<1x8x32xf32>
    %cst_38 = arith.constant 9.99999974E-6 : f32
    %105 = vector.broadcast %cst_38 : f32 to vector<1x8x1xf32>
    %106 = arith.addf %102, %105 : vector<1x8x1xf32>
    %107 = math.rsqrt %106 : vector<1x8x1xf32>
    %108 = vector.broadcast %107 : vector<1x8x1xf32> to vector<1x8x32xf32>
    %109 = arith.mulf %104, %108 : vector<1x8x32xf32>
    %110 = vector.shape_cast %90 : vector<1x32xf32> to vector<1x1x32xf32>
    %111 = vector.broadcast %110 : vector<1x1x32xf32> to vector<1x8x32xf32>
    %112 = arith.mulf %109, %111 : vector<1x8x32xf32>
    %113 = vector.shape_cast %91 : vector<1x32xf32> to vector<1x1x32xf32>
    %114 = vector.broadcast %113 : vector<1x1x32xf32> to vector<1x8x32xf32>
    %115 = arith.addf %112, %114 : vector<1x8x32xf32>
    %116 = vector.shape_cast %115 : vector<1x8x32xf32> to vector<8x32xf32>
    %c0_39 = arith.constant 0 : index
    %c0_40 = arith.constant 0 : index
    %117 = vector.load %arg9[%c0_39, %c0_40] : memref<32x32xf32, #tpu.memory_space<vmem>>, vector<32x32xf32>
    %cst_41 = arith.constant dense<0.000000e+00> : vector<8x32xf32>
    %118 = tpu.matmul %116, %117, %cst_41 {dimension_numbers = #tpu.dot_dimension_numbers<[1], [0], [0], [1], [0, 0, 1, 1], [], []>} : vector<8x32xf32>, vector<32x32xf32>, vector<8x32xf32> -> vector<8x32xf32>
    %119 = vector.extract_strided_slice %0 {offsets = [4, 0], sizes = [1, 32], strides = [1, 1]} : vector<16x32xf32> to vector<1x32xf32>
    %120 = vector.broadcast %119 : vector<1x32xf32> to vector<8x32xf32>
    %121 = arith.addf %118, %120 : vector<8x32xf32>
    %cst_42 = arith.constant 0.353553385 : f32
    %122 = vector.broadcast %cst_42 : f32 to vector<8x32xf32>
    %123 = arith.mulf %121, %122 : vector<8x32xf32>
    %124 = vector.shape_cast %123 : vector<8x32xf32> to vector<1x8x4x8xf32>
    %125 = tpu.transpose %124, [0, 2, 1, 3] : vector<1x8x4x8xf32> -> vector<1x4x8x8xf32>
    %126 = vector.shape_cast %125 : vector<1x4x8x8xf32> to vector<4x8x8xf32>
    %c0_43 = arith.constant 0 : index
    %c0_44 = arith.constant 0 : index
    %c0_45 = arith.constant 0 : index
    %127 = vector.load %arg17[%c0_43, %c0_44, %c0_45] : memref<4x16x8xf32, #tpu.memory_space<vmem>>, vector<4x16x8xf32>
    "tpu.trace_start"() <{level = 10 : i32, message = "bqd,bkd->bqk"}> : () -> ()
    %cst_46 = arith.constant dense<0.000000e+00> : vector<4x8x16xf32>
    %128 = tpu.matmul %126, %127, %cst_46 {dimension_numbers = #tpu.dot_dimension_numbers<[2], [2], [1], [1], [0, 0, 0, 1, 1, 1], [0], [0]>} : vector<4x8x8xf32>, vector<4x16x8xf32>, vector<4x8x16xf32> -> vector<4x8x16xf32>
    "tpu.trace_stop"() : () -> ()
    %129 = vector.shape_cast %13 : vector<1x1x16xi1> to vector<1x1x1x16xi1>
    %130 = vector.shape_cast %128 : vector<4x8x16xf32> to vector<1x4x8x16xf32>
    %cst_47 = arith.constant -1.000000e+09 : f32
    %131 = vector.shape_cast %129 : vector<1x1x1x16xi1> to vector<1x1x1x16xi1>
    %132 = vector.broadcast %131 : vector<1x1x1x16xi1> to vector<1x4x8x16xi1>
    %133 = vector.broadcast %cst_47 : f32 to vector<1x4x8x16xf32>
    %134 = arith.select %132, %130, %133 : vector<1x4x8x16xi1>, vector<1x4x8x16xf32>
    %135 = vector.shape_cast %134 : vector<1x4x8x16xf32> to vector<4x8x16xf32>
    %cst_48 = arith.constant dense<0xFF800000> : vector<4x8xf32>
    %136 = vector.multi_reduction <maximumf>, %135, %cst_48 [2] : vector<4x8x16xf32> to vector<4x8xf32>
    %137 = vector.shape_cast %136 : vector<4x8xf32> to vector<4x8x1xf32>
    %138 = vector.broadcast %137 : vector<4x8x1xf32> to vector<4x8x16xf32>
    %139 = arith.subf %135, %138 : vector<4x8x16xf32>
    %140 = math.exp %139 : vector<4x8x16xf32>
    %cst_49 = arith.constant dense<0.000000e+00> : vector<4x8xf32>
    %141 = vector.multi_reduction <add>, %140, %cst_49 [2] : vector<4x8x16xf32> to vector<4x8xf32>
    %142 = vector.shape_cast %141 : vector<4x8xf32> to vector<4x8x1xf32>
    %c0_50 = arith.constant 0 : index
    %c0_51 = arith.constant 0 : index
    %c0_52 = arith.constant 0 : index
    %143 = vector.load %arg18[%c0_50, %c0_51, %c0_52] : memref<4x16x8xf32, #tpu.memory_space<vmem>>, vector<4x16x8xf32>
    "tpu.trace_start"() <{level = 10 : i32, message = "bqk,bkd->bqd"}> : () -> ()
    %cst_53 = arith.constant dense<0.000000e+00> : vector<4x8x8xf32>
    %144 = tpu.matmul %140, %143, %cst_53 {dimension_numbers = #tpu.dot_dimension_numbers<[2], [1], [1], [2], [0, 0, 0, 1, 1, 2], [0], [0]>} : vector<4x8x16xf32>, vector<4x16x8xf32>, vector<4x8x8xf32> -> vector<4x8x8xf32>
    "tpu.trace_stop"() : () -> ()
    %145 = tpu.reciprocal %142 {approx = true} : vector<4x8x1xf32> -> vector<4x8x1xf32>
    %146 = vector.broadcast %145 : vector<4x8x1xf32> to vector<4x8x8xf32>
    %147 = arith.mulf %144, %146 : vector<4x8x8xf32>
    %148 = vector.shape_cast %147 : vector<4x8x8xf32> to vector<1x4x8x8xf32>
    %149 = tpu.transpose %148, [0, 2, 1, 3] : vector<1x4x8x8xf32> -> vector<1x8x4x8xf32>
    %150 = vector.shape_cast %149 : vector<1x8x4x8xf32> to vector<8x32xf32>
    %c0_54 = arith.constant 0 : index
    %c0_55 = arith.constant 0 : index
    %151 = vector.load %arg11[%c0_54, %c0_55] : memref<32x32xf32, #tpu.memory_space<vmem>>, vector<32x32xf32>
    %cst_56 = arith.constant dense<0.000000e+00> : vector<8x32xf32>
    %152 = tpu.matmul %150, %151, %cst_56 {dimension_numbers = #tpu.dot_dimension_numbers<[1], [0], [0], [1], [0, 0, 1, 1], [], []>} : vector<8x32xf32>, vector<32x32xf32>, vector<8x32xf32> -> vector<8x32xf32>
    %153 = vector.extract_strided_slice %0 {offsets = [7, 0], sizes = [1, 32], strides = [1, 1]} : vector<16x32xf32> to vector<1x32xf32>
    %154 = vector.broadcast %153 : vector<1x32xf32> to vector<8x32xf32>
    %155 = arith.addf %152, %154 : vector<8x32xf32>
    %156 = vector.shape_cast %155 : vector<8x32xf32> to vector<1x8x32xf32>
    %157 = arith.addf %89, %156 : vector<1x8x32xf32>
    %158 = vector.extract_strided_slice %0 {offsets = [13, 0], sizes = [1, 32], strides = [1, 1]} : vector<16x32xf32> to vector<1x32xf32>
    %159 = vector.extract_strided_slice %0 {offsets = [14, 0], sizes = [1, 32], strides = [1, 1]} : vector<16x32xf32> to vector<1x32xf32>
    %cst_57 = arith.constant dense<0.000000e+00> : vector<1x8xf32>
    %160 = vector.multi_reduction <add>, %157, %cst_57 [2] : vector<1x8x32xf32> to vector<1x8xf32>
    %161 = vector.shape_cast %160 : vector<1x8xf32> to vector<1x8x1xf32>
    %cst_58 = arith.constant 3.200000e+01 : f32
    %162 = vector.broadcast %cst_58 : f32 to vector<1x8x1xf32>
    %163 = arith.divf %161, %162 : vector<1x8x1xf32>
    %164 = vector.broadcast %163 : vector<1x8x1xf32> to vector<1x8x32xf32>
    %165 = arith.subf %157, %164 : vector<1x8x32xf32>
    %166 = arith.mulf %165, %165 : vector<1x8x32xf32>
    %cst_59 = arith.constant dense<0.000000e+00> : vector<1x8xf32>
    %167 = vector.multi_reduction <add>, %166, %cst_59 [2] : vector<1x8x32xf32> to vector<1x8xf32>
    %168 = vector.shape_cast %167 : vector<1x8xf32> to vector<1x8x1xf32>
    %cst_60 = arith.constant 3.200000e+01 : f32
    %169 = vector.broadcast %cst_60 : f32 to vector<1x8x1xf32>
    %170 = arith.divf %168, %169 : vector<1x8x1xf32>
    %171 = vector.broadcast %163 : vector<1x8x1xf32> to vector<1x8x32xf32>
    %172 = arith.subf %157, %171 : vector<1x8x32xf32>
    %cst_61 = arith.constant 9.99999974E-6 : f32
    %173 = vector.broadcast %cst_61 : f32 to vector<1x8x1xf32>
    %174 = arith.addf %170, %173 : vector<1x8x1xf32>
    %175 = math.rsqrt %174 : vector<1x8x1xf32>
    %176 = vector.broadcast %175 : vector<1x8x1xf32> to vector<1x8x32xf32>
    %177 = arith.mulf %172, %176 : vector<1x8x32xf32>
    %178 = vector.shape_cast %158 : vector<1x32xf32> to vector<1x1x32xf32>
    %179 = vector.broadcast %178 : vector<1x1x32xf32> to vector<1x8x32xf32>
    %180 = arith.mulf %177, %179 : vector<1x8x32xf32>
    %181 = vector.shape_cast %159 : vector<1x32xf32> to vector<1x1x32xf32>
    %182 = vector.broadcast %181 : vector<1x1x32xf32> to vector<1x8x32xf32>
    %183 = arith.addf %180, %182 : vector<1x8x32xf32>
    %184 = vector.shape_cast %183 : vector<1x8x32xf32> to vector<8x32xf32>
    %c0_62 = arith.constant 0 : index
    %c0_63 = arith.constant 0 : index
    %185 = vector.load %arg12[%c0_62, %c0_63] : memref<32x32xf32, #tpu.memory_space<vmem>>, vector<32x32xf32>
    %cst_64 = arith.constant dense<0.000000e+00> : vector<8x32xf32>
    %186 = tpu.matmul %184, %185, %cst_64 {dimension_numbers = #tpu.dot_dimension_numbers<[1], [0], [0], [1], [0, 0, 1, 1], [], []>} : vector<8x32xf32>, vector<32x32xf32>, vector<8x32xf32> -> vector<8x32xf32>
    %187 = vector.extract_strided_slice %0 {offsets = [8, 0], sizes = [1, 32], strides = [1, 1]} : vector<16x32xf32> to vector<1x32xf32>
    %188 = vector.broadcast %187 : vector<1x32xf32> to vector<8x32xf32>
    %189 = arith.addf %186, %188 : vector<8x32xf32>
    %cst_65 = arith.constant 0.000000e+00 : f32
    %190 = vector.broadcast %cst_65 : f32 to vector<8x32xf32>
    %191 = arith.maximumf %189, %190 : vector<8x32xf32>
    %192 = vector.shape_cast %191 : vector<8x32xf32> to vector<1x8x32xf32>
    %193 = arith.addf %157, %192 : vector<1x8x32xf32>
    %c0_66 = arith.constant 0 : index
    %c0_67 = arith.constant 0 : index
    %c0_68 = arith.constant 0 : index
    %194 = vector.load %arg14[%c0_66, %c0_67, %c0_68] : memref<1x8x32xf32, #tpu.memory_space<vmem>>, vector<1x8x32xf32>
    tpu.vector_store %arg14[%c0_66, %c0_67, %c0_68], %193 {strides = array<i32>} : memref<1x8x32xf32, #tpu.memory_space<vmem>>, vector<1x8x32xf32>,
    return
  }
  func.func @transform_0(%arg0: i32, %arg1: i32) -> (i32, i32, i32) {
    %c0_i32 = arith.constant 0 : i32
    %c0_i32_0 = arith.constant 0 : i32
    %c0_i32_1 = arith.constant 0 : i32
    return %arg0, %c0_i32, %c0_i32_0 : i32, i32, i32
  }
  func.func @transform_1(%arg0: i32, %arg1: i32) -> (i32, i32, i32) {
    %c0_i32 = arith.constant 0 : i32
    %c0_i32_0 = arith.constant 0 : i32
    %c0_i32_1 = arith.constant 0 : i32
    return %arg0, %c0_i32, %c0_i32_0 : i32, i32, i32
  }
  func.func @transform_2(%arg0: i32, %arg1: i32) -> (i32, i32, i32) {
    %c0_i32 = arith.constant 0 : i32
    %c0_i32_0 = arith.constant 0 : i32
    %c0_i32_1 = arith.constant 0 : i32
    return %arg0, %c0_i32, %c0_i32_0 : i32, i32, i32
  }
  func.func @transform_3(%arg0: i32, %arg1: i32) -> (i32, i32, i32) {
    %c0_i32 = arith.constant 0 : i32
    %c0_i32_0 = arith.constant 0 : i32
    %c0_i32_1 = arith.constant 0 : i32
    return %arg0, %c0_i32, %c0_i32_0 : i32, i32, i32
  }
  func.func @transform_4(%arg0: i32, %arg1: i32) -> (i32, i32) {
    %c0_i32 = arith.constant 0 : i32
    %c0_i32_0 = arith.constant 0 : i32
    %c0_i32_1 = arith.constant 0 : i32
    return %c0_i32, %c0_i32_0 : i32, i32
  }
  func.func @transform_5(%arg0: i32, %arg1: i32) -> (i32, i32) {
    %c0_i32 = arith.constant 0 : i32
    %c0_i32_0 = arith.constant 0 : i32
    %c0_i32_1 = arith.constant 0 : i32
    return %c0_i32, %c0_i32_0 : i32, i32
  }
  func.func @transform_6(%arg0: i32, %arg1: i32) -> (i32, i32) {
    %c0_i32 = arith.constant 0 : i32
    %c0_i32_0 = arith.constant 0 : i32
    %c0_i32_1 = arith.constant 0 : i32
    return %c0_i32, %c0_i32_0 : i32, i32
  }
  func.func @transform_7(%arg0: i32, %arg1: i32) -> (i32, i32) {
    %c0_i32 = arith.constant 0 : i32
    %c0_i32_0 = arith.constant 0 : i32
    %c0_i32_1 = arith.constant 0 : i32
    return %c0_i32, %c0_i32_0 : i32, i32
  }
  func.func @transform_8(%arg0: i32, %arg1: i32) -> (i32, i32) {
    %c0_i32 = arith.constant 0 : i32
    %c0_i32_0 = arith.constant 0 : i32
    %c0_i32_1 = arith.constant 0 : i32
    return %c0_i32, %c0_i32_0 : i32, i32
  }
  func.func @transform_9(%arg0: i32, %arg1: i32) -> (i32, i32) {
    %c0_i32 = arith.constant 0 : i32
    %c0_i32_0 = arith.constant 0 : i32
    %c0_i32_1 = arith.constant 0 : i32
    return %c0_i32, %c0_i32_0 : i32, i32
  }
  func.func @transform_10(%arg0: i32, %arg1: i32) -> (i32, i32) {
    %c0_i32 = arith.constant 0 : i32
    %c0_i32_0 = arith.constant 0 : i32
    %c0_i32_1 = arith.constant 0 : i32
    return %c0_i32, %c0_i32_0 : i32, i32
  }
  func.func @transform_11(%arg0: i32, %arg1: i32) -> (i32, i32) {
    %c0_i32 = arith.constant 0 : i32
    %c0_i32_0 = arith.constant 0 : i32
    %c0_i32_1 = arith.constant 0 : i32
    return %c0_i32, %c0_i32_0 : i32, i32
  }
  func.func @transform_12(%arg0: i32, %arg1: i32) -> (i32, i32, i32) {
    %c0_i32 = arith.constant 0 : i32
    %c0_i32_0 = arith.constant 0 : i32
    return %arg0, %arg1, %c0_i32 : i32, i32, i32
  }
}

module attributes {stable_mosaic.version = 11 : i64} {
  func.func @decoder_layer_kernel(%arg0: i32, %arg1: i32, %arg2: memref<1x8x32xf32, #tpu.memory_space<vmem>>, %arg3: memref<1x16x32xf32, #tpu.memory_space<vmem>>, %arg4: memref<1x1x8xf32, #tpu.memory_space<vmem>>, %arg5: memref<1x1x16xf32, #tpu.memory_space<vmem>>, %arg6: memref<32x32xf32, #tpu.memory_space<vmem>>, %arg7: memref<32x64xf32, #tpu.memory_space<vmem>>, %arg8: memref<32x32xf32, #tpu.memory_space<vmem>>, %arg9: memref<32x32xf32, #tpu.memory_space<vmem>>, %arg10: memref<32x64xf32, #tpu.memory_space<vmem>>, %arg11: memref<32x32xf32, #tpu.memory_space<vmem>>, %arg12: memref<32x32xf32, #tpu.memory_space<vmem>>, %arg13: memref<16x32xf32, #tpu.memory_space<vmem>>, %arg14: memref<1x8x32xf32, #tpu.memory_space<vmem>>, %arg15: memref<4x8x8xf32, #tpu.memory_space<vmem>>, %arg16: memref<4x8x8xf32, #tpu.memory_space<vmem>>, %arg17: memref<4x16x8xf32, #tpu.memory_space<vmem>>, %arg18: memref<4x16x8xf32, #tpu.memory_space<vmem>>) attributes {dimension_semantics = [#tpu.dimension_semantics<parallel>, #tpu.dimension_semantics<arbitrary>], iteration_bounds = array<i64: 2, 1>, scalar_prefetch = 0 : i64, scratch_operands = 4 : i64, tpu.core_type = #tpu.core_type<tc>, window_params = [{transform_indices = @transform_0, window_bounds = array<i64: 1, 8, 32>}, {transform_indices = @transform_1, window_bounds = array<i64: 1, 16, 32>}, {transform_indices = @transform_2, window_bounds = array<i64: 1, 1, 8>}, {transform_indices = @transform_3, window_bounds = array<i64: 1, 1, 16>}, {pipeline_mode = #tpu.pipeline_mode<synchronous>, transform_indices = @transform_4, window_bounds = array<i64: 32, 32>}, {pipeline_mode = #tpu.pipeline_mode<synchronous>, transform_indices = @transform_5, window_bounds = array<i64: 32, 64>}, {pipeline_mode = #tpu.pipeline_mode<synchronous>, transform_indices = @transform_6, window_bounds = array<i64: 32, 32>}, {pipeline_mode = #tpu.pipeline_mode<synchronous>, transform_indices = @transform_7, window_bounds = array<i64: 32, 32>}, {pipeline_mode = #tpu.pipeline_mode<synchronous>, transform_indices = @transform_8, window_bounds = array<i64: 32, 64>}, {pipeline_mode = #tpu.pipeline_mode<synchronous>, transform_indices = @transform_9, window_bounds = array<i64: 32, 32>}, {pipeline_mode = #tpu.pipeline_mode<synchronous>, transform_indices = @transform_10, window_bounds = array<i64: 32, 32>}, {pipeline_mode = #tpu.pipeline_mode<synchronous>, transform_indices = @transform_11, window_bounds = array<i64: 16, 32>}, {transform_indices = @transform_12, window_bounds = array<i64: 1, 8, 32>}]} {
    %c0 = arith.constant 0 : index
    %c0_0 = arith.constant 0 : index
    %0 = vector.load %arg13[%c0, %c0_0] : memref<16x32xf32, #tpu.memory_space<vmem>>, vector<16x32xf32>
    %c0_i32 = arith.constant 0 : i32
    %1 = arith.cmpi eq, %arg1, %c0_i32 : i32
    %2 = arith.extui %1 : i1 to i32
    %c0_i32_1 = arith.constant 0 : i32
    %3 = arith.cmpi ne, %2, %c0_i32_1 : i32
    scf.if %3 {
      %c0_69 = arith.constant 0 : index
      %c0_70 = arith.constant 0 : index
      %c0_71 = arith.constant 0 : index
      %195 = vector.load %arg2[%c0_69, %c0_70, %c0_71] : memref<1x8x32xf32, #tpu.memory_space<vmem>>, vector<1x8x32xf32>
      %196 = vector.extract_strided_slice %0 {offsets = [9, 0], sizes = [1, 32], strides = [1, 1]} : vector<16x32xf32> to vector<1x32xf32>
      %197 = vector.extract_strided_slice %0 {offsets = [10, 0], sizes = [1, 32], strides = [1, 1]} : vector<16x32xf32> to vector<1x32xf32>
      %cst_72 = arith.constant dense<0.000000e+00> : vector<1x8xf32>
      %198 = vector.multi_reduction <add>, %195, %cst_72 [2] : vector<1x8x32xf32> to vector<1x8xf32>
      %199 = vector.shape_cast %198 : vector<1x8xf32> to vector<1x8x1xf32>
      %cst_73 = arith.constant 3.200000e+01 : f32
      %200 = vector.broadcast %cst_73 : f32 to vector<1x8x1xf32>
      %201 = arith.divf %199, %200 : vector<1x8x1xf32>
      %202 = vector.broadcast %201 : vector<1x8x1xf32> to vector<1x8x32xf32>
      %203 = arith.subf %195, %202 : vector<1x8x32xf32>
      %204 = arith.mulf %203, %203 : vector<1x8x32xf32>
      %cst_74 = arith.constant dense<0.000000e+00> : vector<1x8xf32>
      %205 = vector.multi_reduction <add>, %204, %cst_74 [2] : vector<1x8x32xf32> to vector<1x8xf32>
      %206 = vector.shape_cast %205 : vector<1x8xf32> to vector<1x8x1xf32>
      %cst_75 = arith.constant 3.200000e+01 : f32
      %207 = vector.broadcast %cst_75 : f32 to vector<1x8x1xf32>
      %208 = arith.divf %206, %207 : vector<1x8x1xf32>
      %209 = vector.broadcast %201 : vector<1x8x1xf32> to vector<1x8x32xf32>
      %210 = arith.subf %195, %209 : vector<1x8x32xf32>
      %cst_76 = arith.constant 9.99999974E-6 : f32
      %211 = vector.broadcast %cst_76 : f32 to vector<1x8x1xf32>
      %212 = arith.addf %208, %211 : vector<1x8x1xf32>
      %213 = math.rsqrt %212 : vector<1x8x1xf32>
      %214 = vector.broadcast %213 : vector<1x8x1xf32> to vector<1x8x32xf32>
      %215 = arith.mulf %210, %214 : vector<1x8x32xf32>
      %216 = vector.shape_cast %196 : vector<1x32xf32> to vector<1x1x32xf32>
      %217 = vector.broadcast %216 : vector<1x1x32xf32> to vector<1x8x32xf32>
      %218 = arith.mulf %215, %217 : vector<1x8x32xf32>
      %219 = vector.shape_cast %197 : vector<1x32xf32> to vector<1x1x32xf32>
      %220 = vector.broadcast %219 : vector<1x1x32xf32> to vector<1x8x32xf32>
      %221 = arith.addf %218, %220 : vector<1x8x32xf32>
      %222 = vector.shape_cast %221 : vector<1x8x32xf32> to vector<8x32xf32>
      %c0_77 = arith.constant 0 : index
      %c0_78 = arith.constant 0 : index
      %223 = vector.load %arg7[%c0_77, %c0_78] : memref<32x64xf32, #tpu.memory_space<vmem>>, vector<32x64xf32>
      %cst_79 = arith.constant dense<0.000000e+00> : vector<8x64xf32>
      %224 = tpu.matmul %222, %223, %cst_79 {dimension_numbers = #tpu.dot_dimension_numbers<[1], [0], [0], [1], [0, 0, 1, 1], [], []>} : vector<8x32xf32>, vector<32x64xf32>, vector<8x64xf32> -> vector<8x64xf32>
      %225 = vector.extract_strided_slice %224 {offsets = [0, 0], sizes = [8, 32], strides = [1, 1]} : vector<8x64xf32> to vector<8x32xf32>
      %226 = vector.extract_strided_slice %0 {offsets = [1, 0], sizes = [1, 32], strides = [1, 1]} : vector<16x32xf32> to vector<1x32xf32>
      %227 = vector.broadcast %226 : vector<1x32xf32> to vector<8x32xf32>
      %228 = arith.addf %225, %227 : vector<8x32xf32>
      %229 = vector.shape_cast %228 : vector<8x32xf32> to vector<1x8x4x8xf32>
      %230 = tpu.transpose %229, [0, 2, 1, 3] : vector<1x8x4x8xf32> -> vector<1x4x8x8xf32>
      %231 = vector.shape_cast %230 : vector<1x4x8x8xf32> to vector<4x8x8xf32>
      %c0_80 = arith.constant 0 : index
      %c0_81 = arith.constant 0 : index
      %c0_82 = arith.constant 0 : index
      %232 = vector.load %arg15[%c0_80, %c0_81, %c0_82] : memref<4x8x8xf32, #tpu.memory_space<vmem>>, vector<4x8x8xf32>
      tpu.vector_store %arg15[%c0_80, %c0_81, %c0_82], %231 {strides = array<i32>} : memref<4x8x8xf32, #tpu.memory_space<vmem>>, vector<4x8x8xf32>,
      %233 = vector.extract_strided_slice %224 {offsets = [0, 32], sizes = [8, 32], strides = [1, 1]} : vector<8x64xf32> to vector<8x32xf32>
      %234 = vector.extract_strided_slice %0 {offsets = [2, 0], sizes = [1, 32], strides = [1, 1]} : vector<16x32xf32> to vector<1x32xf32>
      %235 = vector.broadcast %234 : vector<1x32xf32> to vector<8x32xf32>
      %236 = arith.addf %233, %235 : vector<8x32xf32>
      %237 = vector.shape_cast %236 : vector<8x32xf32> to vector<1x8x4x8xf32>
      %238 = tpu.transpose %237, [0, 2, 1, 3] : vector<1x8x4x8xf32> -> vector<1x4x8x8xf32>
      %239 = vector.shape_cast %238 : vector<1x4x8x8xf32> to vector<4x8x8xf32>
      %c0_83 = arith.constant 0 : index
      %c0_84 = arith.constant 0 : index
      %c0_85 = arith.constant 0 : index
      %240 = vector.load %arg16[%c0_83, %c0_84, %c0_85] : memref<4x8x8xf32, #tpu.memory_space<vmem>>, vector<4x8x8xf32>
      tpu.vector_store %arg16[%c0_83, %c0_84, %c0_85], %239 {strides = array<i32>} : memref<4x8x8xf32, #tpu.memory_space<vmem>>, vector<4x8x8xf32>,
      %c0_86 = arith.constant 0 : index
      %c0_87 = arith.constant 0 : index
      %c0_88 = arith.constant 0 : index
      %241 = vector.load %arg3[%c0_86, %c0_87, %c0_88] : memref<1x16x32xf32, #tpu.memory_space<vmem>>, vector<1x16x32xf32>
      %242 = vector.shape_cast %241 : vector<1x16x32xf32> to vector<16x32xf32>
      %c0_89 = arith.constant 0 : index
      %c0_90 = arith.constant 0 : index
      %243 = vector.load %arg10[%c0_89, %c0_90] : memref<32x64xf32, #tpu.memory_space<vmem>>, vector<32x64xf32>
      %cst_91 = arith.constant dense<0.000000e+00> : vector<16x64xf32>
      %244 = tpu.matmul %242, %243, %cst_91 {dimension_numbers = #tpu.dot_dimension_numbers<[1], [0], [0], [1], [0, 0, 1, 1], [], []>} : vector<16x32xf32>, vector<32x64xf32>, vector<16x64xf32> -> vector<16x64xf32>
      %245 = vector.extract_strided_slice %244 {offsets = [0, 0], sizes = [16, 32], strides = [1, 1]} : vector<16x64xf32> to vector<16x32xf32>
      %246 = vector.extract_strided_slice %0 {offsets = [5, 0], sizes = [1, 32], strides = [1, 1]} : vector<16x32xf32> to vector<1x32xf32>
      %247 = vector.broadcast %246 : vector<1x32xf32> to vector<16x32xf32>
      %248 = arith.addf %245, %247 : vector<16x32xf32>
      %249 = vector.shape_cast %248 : vector<16x32xf32> to vector<1x16x4x8xf32>
      %250 = tpu.transpose %249, [0, 2, 1, 3] : vector<1x16x4x8xf32> -> vector<1x4x16x8xf32>
      %251 = vector.shape_cast %250 : vector<1x4x16x8xf32> to vector<4x16x8xf32>
      %c0_92 = arith.constant 0 : index
      %c0_93 = arith.constant 0 : index
      %c0_94 = arith.constant 0 : index
      %252 = vector.load %arg17[%c0_92, %c0_93, %c0_94] : memref<4x16x8xf32, #tpu.memory_space<vmem>>, vector<4x16x8xf32>
      tpu.vector_store %arg17[%c0_92, %c0_93, %c0_94], %251 {strides = array<i32>} : memref<4x16x8xf32, #tpu.memory_space<vmem>>, vector<4x16x8xf32>,
      %253 = vector.extract_strided_slice %244 {offsets = [0, 32], sizes = [16, 32], strides = [1, 1]} : vector<16x64xf32> to vector<16x32xf32>
      %254 = vector.extract_strided_slice %0 {offsets = [6, 0], sizes = [1, 32], strides = [1, 1]} : vector<16x32xf32> to vector<1x32xf32>
      %255 = vector.broadcast %254 : vector<1x32xf32> to vector<16x32xf32>
      %256 = arith.addf %253, %255 : vector<16x32xf32>
      %257 = vector.shape_cast %256 : vector<16x32xf32> to vector<1x16x4x8xf32>
      %258 = tpu.transpose %257, [0, 2, 1, 3] : vector<1x16x4x8xf32> -> vector<1x4x16x8xf32>
      %259 = vector.shape_cast %258 : vector<1x4x16x8xf32> to vector<4x16x8xf32>
      %c0_95 = arith.constant 0 : index
      %c0_96 = arith.constant 0 : index
      %c0_97 = arith.constant 0 : index
      %260 = vector.load %arg18[%c0_95, %c0_96, %c0_97] : memref<4x16x8xf32, #tpu.memory_space<vmem>>, vector<4x16x8xf32>
      tpu.vector_store %arg18[%c0_95, %c0_96, %c0_97], %259 {strides = array<i32>} : memref<4x16x8xf32, #tpu.memory_space<vmem>>, vector<4x16x8xf32>,
    } else {
    }
    %c8_i32 = arith.constant 8 : i32
    %4 = arith.muli %arg1, %c8_i32 : i32
    %5 = tpu.assume_multiple %4, 8 : i32
    %c0_2 = arith.constant 0 : index
    %6 = arith.index_cast %5 : i32 to index
    %c0_3 = arith.constant 0 : index
    %7 = vector.load %arg2[%c0_2, %6, %c0_3] : memref<1x8x32xf32, #tpu.memory_space<vmem>>, vector<1x8x32xf32>
    %c0_4 = arith.constant 0 : index
    %c0_5 = arith.constant 0 : index
    %c0_6 = arith.constant 0 : index
    %8 = vector.load %arg4[%c0_4, %c0_5, %c0_6] : memref<1x1x8xf32, #tpu.memory_space<vmem>>, vector<1x1x8xf32>
    %cst = arith.constant 0.000000e+00 : f32
    %9 = vector.broadcast %cst : f32 to vector<1x1x8xf32>
    %10 = arith.cmpf one, %8, %9 : vector<1x1x8xf32>
    %c0_7 = arith.constant 0 : index
    %c0_8 = arith.constant 0 : index
    %c0_9 = arith.constant 0 : index
    %11 = vector.load %arg5[%c0_7, %c0_8, %c0_9] : memref<1x1x16xf32, #tpu.memory_space<vmem>>, vector<1x1x16xf32>
    %cst_10 = arith.constant 0.000000e+00 : f32
    %12 = vector.broadcast %cst_10 : f32 to vector<1x1x16xf32>
    %13 = arith.cmpf one, %11, %12 : vector<1x1x16xf32>
    %14 = vector.extract_strided_slice %0 {offsets = [9, 0], sizes = [1, 32], strides = [1, 1]} : vector<16x32xf32> to vector<1x32xf32>
    %15 = vector.extract_strided_slice %0 {offsets = [10, 0], sizes = [1, 32], strides = [1, 1]} : vector<16x32xf32> to vector<1x32xf32>
    %cst_11 = arith.constant dense<0.000000e+00> : vector<1x8xf32>
    %16 = vector.multi_reduction <add>, %7, %cst_11 [2] : vector<1x8x32xf32> to vector<1x8xf32>
    %17 = vector.shape_cast %16 : vector<1x8xf32> to vector<1x8x1xf32>
    %cst_12 = arith.constant 3.200000e+01 : f32
    %18 = vector.broadcast %cst_12 : f32 to vector<1x8x1xf32>
    %19 = arith.divf %17, %18 : vector<1x8x1xf32>
    %20 = vector.broadcast %19 : vector<1x8x1xf32> to vector<1x8x32xf32>
    %21 = arith.subf %7, %20 : vector<1x8x32xf32>
    %22 = arith.mulf %21, %21 : vector<1x8x32xf32>
    %cst_13 = arith.constant dense<0.000000e+00> : vector<1x8xf32>
    %23 = vector.multi_reduction <add>, %22, %cst_13 [2] : vector<1x8x32xf32> to vector<1x8xf32>
    %24 = vector.shape_cast %23 : vector<1x8xf32> to vector<1x8x1xf32>
    %cst_14 = arith.constant 3.200000e+01 : f32
    %25 = vector.broadcast %cst_14 : f32 to vector<1x8x1xf32>
    %26 = arith.divf %24, %25 : vector<1x8x1xf32>
    %27 = vector.broadcast %19 : vector<1x8x1xf32> to vector<1x8x32xf32>
    %28 = arith.subf %7, %27 : vector<1x8x32xf32>
    %cst_15 = arith.constant 9.99999974E-6 : f32
    %29 = vector.broadcast %cst_15 : f32 to vector<1x8x1xf32>
    %30 = arith.addf %26, %29 : vector<1x8x1xf32>
    %31 = math.rsqrt %30 : vector<1x8x1xf32>
    %32 = vector.broadcast %31 : vector<1x8x1xf32> to vector<1x8x32xf32>
    %33 = arith.mulf %28, %32 : vector<1x8x32xf32>
    %34 = vector.shape_cast %14 : vector<1x32xf32> to vector<1x1x32xf32>
    %35 = vector.broadcast %34 : vector<1x1x32xf32> to vector<1x8x32xf32>
    %36 = arith.mulf %33, %35 : vector<1x8x32xf32>
    %37 = vector.shape_cast %15 : vector<1x32xf32> to vector<1x1x32xf32>
    %38 = vector.broadcast %37 : vector<1x1x32xf32> to vector<1x8x32xf32>
    %39 = arith.addf %36, %38 : vector<1x8x32xf32>
    %40 = vector.shape_cast %39 : vector<1x8x32xf32> to vector<8x32xf32>
    %c0_16 = arith.constant 0 : index
    %c0_17 = arith.constant 0 : index
    %41 = vector.load %arg6[%c0_16, %c0_17] : memref<32x32xf32, #tpu.memory_space<vmem>>, vector<32x32xf32>
    %cst_18 = arith.constant dense<0.000000e+00> : vector<8x32xf32>
    %42 = tpu.matmul %40, %41, %cst_18 {dimension_numbers = #tpu.dot_dimension_numbers<[1], [0], [0], [1], [0, 0, 1, 1], [], []>} : vector<8x32xf32>, vector<32x32xf32>, vector<8x32xf32> -> vector<8x32xf32>
    %43 = vector.extract_strided_slice %0 {offsets = [0, 0], sizes = [1, 32], strides = [1, 1]} : vector<16x32xf32> to vector<1x32xf32>
    %44 = vector.broadcast %43 : vector<1x32xf32> to vector<8x32xf32>
    %45 = arith.addf %42, %44 : vector<8x32xf32>
    %cst_19 = arith.constant 0.353553385 : f32
    %46 = vector.broadcast %cst_19 : f32 to vector<8x32xf32>
    %47 = arith.mulf %45, %46 : vector<8x32xf32>
    %48 = vector.shape_cast %47 : vector<8x32xf32> to vector<1x8x4x8xf32>
    %49 = tpu.transpose %48, [0, 2, 1, 3] : vector<1x8x4x8xf32> -> vector<1x4x8x8xf32>
    %50 = vector.shape_cast %49 : vector<1x4x8x8xf32> to vector<4x8x8xf32>
    %c0_20 = arith.constant 0 : index
    %c0_21 = arith.constant 0 : index
    %c0_22 = arith.constant 0 : index
    %51 = vector.load %arg15[%c0_20, %c0_21, %c0_22] : memref<4x8x8xf32, #tpu.memory_space<vmem>>, vector<4x8x8xf32>
    "tpu.trace_start"() <{level = 10 : i32, message = "bqd,bkd->bqk"}> : () -> ()
    %cst_23 = arith.constant dense<0.000000e+00> : vector<4x8x8xf32>
    %52 = tpu.matmul %50, %51, %cst_23 {dimension_numbers = #tpu.dot_dimension_numbers<[2], [2], [1], [1], [0, 0, 0, 1, 1, 1], [0], [0]>} : vector<4x8x8xf32>, vector<4x8x8xf32>, vector<4x8x8xf32> -> vector<4x8x8xf32>
    "tpu.trace_stop"() : () -> ()
    %53 = vector.shape_cast %10 : vector<1x1x8xi1> to vector<1x1x1x8xi1>
    %54 = tpu.iota {dimensions = array<i32: 0>} : vector<8x8xi32>
    %55 = vector.broadcast %5 : i32 to vector<8x8xi32>
    %56 = arith.addi %55, %54 : vector<8x8xi32>
    %57 = tpu.iota {dimensions = array<i32: 1>} : vector<8x8xi32>
    %58 = arith.cmpi sle, %57, %56 : vector<8x8xi32>
    %59 = vector.shape_cast %58 : vector<8x8xi1> to vector<1x1x8x8xi1>
    %60 = vector.broadcast %53 : vector<1x1x1x8xi1> to vector<1x1x8x8xi1>
    %61 = arith.andi %60, %59 : vector<1x1x8x8xi1>
    %62 = vector.shape_cast %52 : vector<4x8x8xf32> to vector<1x4x8x8xf32>
    %cst_24 = arith.constant -1.000000e+09 : f32
    %63 = vector.shape_cast %61 : vector<1x1x8x8xi1> to vector<1x1x8x8xi1>
    %64 = vector.broadcast %63 : vector<1x1x8x8xi1> to vector<1x4x8x8xi1>
    %65 = vector.broadcast %cst_24 : f32 to vector<1x4x8x8xf32>
    %66 = arith.select %64, %62, %65 : vector<1x4x8x8xi1>, vector<1x4x8x8xf32>
    %67 = vector.shape_cast %66 : vector<1x4x8x8xf32> to vector<4x8x8xf32>
    %cst_25 = arith.constant dense<0xFF800000> : vector<4x8xf32>
    %68 = vector.multi_reduction <maximumf>, %67, %cst_25 [2] : vector<4x8x8xf32> to vector<4x8xf32>
    %69 = vector.shape_cast %68 : vector<4x8xf32> to vector<4x8x1xf32>
    %70 = vector.broadcast %69 : vector<4x8x1xf32> to vector<4x8x8xf32>
    %71 = arith.subf %67, %70 : vector<4x8x8xf32>
    %72 = math.exp %71 : vector<4x8x8xf32>
    %cst_26 = arith.constant dense<0.000000e+00> : vector<4x8xf32>
    %73 = vector.multi_reduction <add>, %72, %cst_26 [2] : vector<4x8x8xf32> to vector<4x8xf32>
    %74 = vector.shape_cast %73 : vector<4x8xf32> to vector<4x8x1xf32>
    %c0_27 = arith.constant 0 : index
    %c0_28 = arith.constant 0 : index
    %c0_29 = arith.constant 0 : index
    %75 = vector.load %arg16[%c0_27, %c0_28, %c0_29] : memref<4x8x8xf32, #tpu.memory_space<vmem>>, vector<4x8x8xf32>
    "tpu.trace_start"() <{level = 10 : i32, message = "bqk,bkd->bqd"}> : () -> ()
    %cst_30 = arith.constant dense<0.000000e+00> : vector<4x8x8xf32>
    %76 = tpu.matmul %72, %75, %cst_30 {dimension_numbers = #tpu.dot_dimension_numbers<[2], [1], [1], [2], [0, 0, 0, 1, 1, 2], [0], [0]>} : vector<4x8x8xf32>, vector<4x8x8xf32>, vector<4x8x8xf32> -> vector<4x8x8xf32>
    "tpu.trace_stop"() : () -> ()
    %77 = tpu.reciprocal %74 {approx = true} : vector<4x8x1xf32> -> vector<4x8x1xf32>
    %78 = vector.broadcast %77 : vector<4x8x1xf32> to vector<4x8x8xf32>
    %79 = arith.mulf %76, %78 : vector<4x8x8xf32>
    %80 = vector.shape_cast %79 : vector<4x8x8xf32> to vector<1x4x8x8xf32>
    %81 = tpu.transpose %80, [0, 2, 1, 3] : vector<1x4x8x8xf32> -> vector<1x8x4x8xf32>
    %82 = vector.shape_cast %81 : vector<1x8x4x8xf32> to vector<8x32xf32>
    %c0_31 = arith.constant 0 : index
    %c0_32 = arith.constant 0 : index
    %83 = vector.load %arg8[%c0_31, %c0_32] : memref<32x32xf32, #tpu.memory_space<vmem>>, vector<32x32xf32>
    %cst_33 = arith.constant dense<0.000000e+00> : vector<8x32xf32>
    %84 = tpu.matmul %82, %83, %cst_33 {dimension_numbers = #tpu.dot_dimension_numbers<[1], [0], [0], [1], [0, 0, 1, 1], [], []>} : vector<8x32xf32>, vector<32x32xf32>, vector<8x32xf32> -> vector<8x32xf32>
    %85 = vector.extract_strided_slice %0 {offsets = [3, 0], sizes = [1, 32], strides = [1, 1]} : vector<16x32xf32> to vector<1x32xf32>
    %86 = vector.broadcast %85 : vector<1x32xf32> to vector<8x32xf32>
    %87 = arith.addf %84, %86 : vector<8x32xf32>
    %88 = vector.shape_cast %87 : vector<8x32xf32> to vector<1x8x32xf32>
    %89 = arith.addf %7, %88 : vector<1x8x32xf32>
    %90 = vector.extract_strided_slice %0 {offsets = [11, 0], sizes = [1, 32], strides = [1, 1]} : vector<16x32xf32> to vector<1x32xf32>
    %91 = vector.extract_strided_slice %0 {offsets = [12, 0], sizes = [1, 32], strides = [1, 1]} : vector<16x32xf32> to vector<1x32xf32>
    %cst_34 = arith.constant dense<0.000000e+00> : vector<1x8xf32>
    %92 = vector.multi_reduction <add>, %89, %cst_34 [2] : vector<1x8x32xf32> to vector<1x8xf32>
    %93 = vector.shape_cast %92 : vector<1x8xf32> to vector<1x8x1xf32>
    %cst_35 = arith.constant 3.200000e+01 : f32
    %94 = vector.broadcast %cst_35 : f32 to vector<1x8x1xf32>
    %95 = arith.divf %93, %94 : vector<1x8x1xf32>
    %96 = vector.broadcast %95 : vector<1x8x1xf32> to vector<1x8x32xf32>
    %97 = arith.subf %89, %96 : vector<1x8x32xf32>
    %98 = arith.mulf %97, %97 : vector<1x8x32xf32>
    %cst_36 = arith.constant dense<0.000000e+00> : vector<1x8xf32>
    %99 = vector.multi_reduction <add>, %98, %cst_36 [2] : vector<1x8x32xf32> to vector<1x8xf32>
    %100 = vector.shape_cast %99 : vector<1x8xf32> to vector<1x8x1xf32>
    %cst_37 = arith.constant 3.200000e+01 : f32
    %101 = vector.broadcast %cst_37 : f32 to vector<1x8x1xf32>
    %102 = arith.divf %100, %101 : vector<1x8x1xf32>
    %103 = vector.broadcast %95 : vector<1x8x1xf32> to vector<1x8x32xf32>
    %104 = arith.subf %89, %103 : vector<1x8x32xf32>
    %cst_38 = arith.constant 9.99999974E-6 : f32
    %105 = vector.broadcast %cst_38 : f32 to vector<1x8x1xf32>
    %106 = arith.addf %102, %105 : vector<1x8x1xf32>
    %107 = math.rsqrt %106 : vector<1x8x1xf32>
    %108 = vector.broadcast %107 : vector<1x8x1xf32> to vector<1x8x32xf32>
    %109 = arith.mulf %104, %108 : vector<1x8x32xf32>
    %110 = vector.shape_cast %90 : vector<1x32xf32> to vector<1x1x32xf32>
    %111 = vector.broadcast %110 : vector<1x1x32xf32> to vector<1x8x32xf32>
    %112 = arith.mulf %109, %111 : vector<1x8x32xf32>
    %113 = vector.shape_cast %91 : vector<1x32xf32> to vector<1x1x32xf32>
    %114 = vector.broadcast %113 : vector<1x1x32xf32> to vector<1x8x32xf32>
    %115 = arith.addf %112, %114 : vector<1x8x32xf32>
    %116 = vector.shape_cast %115 : vector<1x8x32xf32> to vector<8x32xf32>
    %c0_39 = arith.constant 0 : index
    %c0_40 = arith.constant 0 : index
    %117 = vector.load %arg9[%c0_39, %c0_40] : memref<32x32xf32, #tpu.memory_space<vmem>>, vector<32x32xf32>
    %cst_41 = arith.constant dense<0.000000e+00> : vector<8x32xf32>
    %118 = tpu.matmul %116, %117, %cst_41 {dimension_numbers = #tpu.dot_dimension_numbers<[1], [0], [0], [1], [0, 0, 1, 1], [], []>} : vector<8x32xf32>, vector<32x32xf32>, vector<8x32xf32> -> vector<8x32xf32>
    %119 = vector.extract_strided_slice %0 {offsets = [4, 0], sizes = [1, 32], strides = [1, 1]} : vector<16x32xf32> to vector<1x32xf32>
    %120 = vector.broadcast %119 : vector<1x32xf32> to vector<8x32xf32>
    %121 = arith.addf %118, %120 : vector<8x32xf32>
    %cst_42 = arith.constant 0.353553385 : f32
    %122 = vector.broadcast %cst_42 : f32 to vector<8x32xf32>
    %123 = arith.mulf %121, %122 : vector<8x32xf32>
    %124 = vector.shape_cast %123 : vector<8x32xf32> to vector<1x8x4x8xf32>
    %125 = tpu.transpose %124, [0, 2, 1, 3] : vector<1x8x4x8xf32> -> vector<1x4x8x8xf32>
    %126 = vector.shape_cast %125 : vector<1x4x8x8xf32> to vector<4x8x8xf32>
    %c0_43 = arith.constant 0 : index
    %c0_44 = arith.constant 0 : index
    %c0_45 = arith.constant 0 : index
    %127 = vector.load %arg17[%c0_43, %c0_44, %c0_45] : memref<4x16x8xf32, #tpu.memory_space<vmem>>, vector<4x16x8xf32>
    "tpu.trace_start"() <{level = 10 : i32, message = "bqd,bkd->bqk"}> : () -> ()
    %cst_46 = arith.constant dense<0.000000e+00> : vector<4x8x16xf32>
    %128 = tpu.matmul %126, %127, %cst_46 {dimension_numbers = #tpu.dot_dimension_numbers<[2], [2], [1], [1], [0, 0, 0, 1, 1, 1], [0], [0]>} : vector<4x8x8xf32>, vector<4x16x8xf32>, vector<4x8x16xf32> -> vector<4x8x16xf32>
    "tpu.trace_stop"() : () -> ()
    %129 = vector.shape_cast %13 : vector<1x1x16xi1> to vector<1x1x1x16xi1>
    %130 = vector.shape_cast %128 : vector<4x8x16xf32> to vector<1x4x8x16xf32>
    %cst_47 = arith.constant -1.000000e+09 : f32
    %131 = vector.shape_cast %129 : vector<1x1x1x16xi1> to vector<1x1x1x16xi1>
    %132 = vector.broadcast %131 : vector<1x1x1x16xi1> to vector<1x4x8x16xi1>
    %133 = vector.broadcast %cst_47 : f32 to vector<1x4x8x16xf32>
    %134 = arith.select %132, %130, %133 : vector<1x4x8x16xi1>, vector<1x4x8x16xf32>
    %135 = vector.shape_cast %134 : vector<1x4x8x16xf32> to vector<4x8x16xf32>
    %cst_48 = arith.constant dense<0xFF800000> : vector<4x8xf32>
    %136 = vector.multi_reduction <maximumf>, %135, %cst_48 [2] : vector<4x8x16xf32> to vector<4x8xf32>
    %137 = vector.shape_cast %136 : vector<4x8xf32> to vector<4x8x1xf32>
    %138 = vector.broadcast %137 : vector<4x8x1xf32> to vector<4x8x16xf32>
    %139 = arith.subf %135, %138 : vector<4x8x16xf32>
    %140 = math.exp %139 : vector<4x8x16xf32>
    %cst_49 = arith.constant dense<0.000000e+00> : vector<4x8xf32>
    %141 = vector.multi_reduction <add>, %140, %cst_49 [2] : vector<4x8x16xf32> to vector<4x8xf32>
    %142 = vector.shape_cast %141 : vector<4x8xf32> to vector<4x8x1xf32>
    %c0_50 = arith.constant 0 : index
    %c0_51 = arith.constant 0 : index
    %c0_52 = arith.constant 0 : index
    %143 = vector.load %arg18[%c0_50, %c0_51, %c0_52] : memref<4x16x8xf32, #tpu.memory_space<vmem>>, vector<4x16x8xf32>
    "tpu.trace_start"() <{level = 10 : i32, message = "bqk,bkd->bqd"}> : () -> ()
    %cst_53 = arith.constant dense<0.000000e+00> : vector<4x8x8xf32>
    %144 = tpu.matmul %140, %143, %cst_53 {dimension_numbers = #tpu.dot_dimension_numbers<[2], [1], [1], [2], [0, 0, 0, 1, 1, 2], [0], [0]>} : vector<4x8x16xf32>, vector<4x16x8xf32>, vector<4x8x8xf32> -> vector<4x8x8xf32>
    "tpu.trace_stop"() : () -> ()
    %145 = tpu.reciprocal %142 {approx = true} : vector<4x8x1xf32> -> vector<4x8x1xf32>
    %146 = vector.broadcast %145 : vector<4x8x1xf32> to vector<4x8x8xf32>
    %147 = arith.mulf %144, %146 : vector<4x8x8xf32>
    %148 = vector.shape_cast %147 : vector<4x8x8xf32> to vector<1x4x8x8xf32>
    %149 = tpu.transpose %148, [0, 2, 1, 3] : vector<1x4x8x8xf32> -> vector<1x8x4x8xf32>
    %150 = vector.shape_cast %149 : vector<1x8x4x8xf32> to vector<8x32xf32>
    %c0_54 = arith.constant 0 : index
    %c0_55 = arith.constant 0 : index
    %151 = vector.load %arg11[%c0_54, %c0_55] : memref<32x32xf32, #tpu.memory_space<vmem>>, vector<32x32xf32>
    %cst_56 = arith.constant dense<0.000000e+00> : vector<8x32xf32>
    %152 = tpu.matmul %150, %151, %cst_56 {dimension_numbers = #tpu.dot_dimension_numbers<[1], [0], [0], [1], [0, 0, 1, 1], [], []>} : vector<8x32xf32>, vector<32x32xf32>, vector<8x32xf32> -> vector<8x32xf32>
    %153 = vector.extract_strided_slice %0 {offsets = [7, 0], sizes = [1, 32], strides = [1, 1]} : vector<16x32xf32> to vector<1x32xf32>
    %154 = vector.broadcast %153 : vector<1x32xf32> to vector<8x32xf32>
    %155 = arith.addf %152, %154 : vector<8x32xf32>
    %156 = vector.shape_cast %155 : vector<8x32xf32> to vector<1x8x32xf32>
    %157 = arith.addf %89, %156 : vector<1x8x32xf32>
    %158 = vector.extract_strided_slice %0 {offsets = [13, 0], sizes = [1, 32], strides = [1, 1]} : vector<16x32xf32> to vector<1x32xf32>
    %159 = vector.extract_strided_slice %0 {offsets = [14, 0], sizes = [1, 32], strides = [1, 1]} : vector<16x32xf32> to vector<1x32xf32>
    %cst_57 = arith.constant dense<0.000000e+00> : vector<1x8xf32>
    %160 = vector.multi_reduction <add>, %157, %cst_57 [2] : vector<1x8x32xf32> to vector<1x8xf32>
    %161 = vector.shape_cast %160 : vector<1x8xf32> to vector<1x8x1xf32>
    %cst_58 = arith.constant 3.200000e+01 : f32
    %162 = vector.broadcast %cst_58 : f32 to vector<1x8x1xf32>
    %163 = arith.divf %161, %162 : vector<1x8x1xf32>
    %164 = vector.broadcast %163 : vector<1x8x1xf32> to vector<1x8x32xf32>
    %165 = arith.subf %157, %164 : vector<1x8x32xf32>
    %166 = arith.mulf %165, %165 : vector<1x8x32xf32>
    %cst_59 = arith.constant dense<0.000000e+00> : vector<1x8xf32>
    %167 = vector.multi_reduction <add>, %166, %cst_59 [2] : vector<1x8x32xf32> to vector<1x8xf32>
    %168 = vector.shape_cast %167 : vector<1x8xf32> to vector<1x8x1xf32>
    %cst_60 = arith.constant 3.200000e+01 : f32
    %169 = vector.broadcast %cst_60 : f32 to vector<1x8x1xf32>
    %170 = arith.divf %168, %169 : vector<1x8x1xf32>
    %171 = vector.broadcast %163 : vector<1x8x1xf32> to vector<1x8x32xf32>
    %172 = arith.subf %157, %171 : vector<1x8x32xf32>
    %cst_61 = arith.constant 9.99999974E-6 : f32
    %173 = vector.broadcast %cst_61 : f32 to vector<1x8x1xf32>
    %174 = arith.addf %170, %173 : vector<1x8x1xf32>
    %175 = math.rsqrt %174 : vector<1x8x1xf32>
    %176 = vector.broadcast %175 : vector<1x8x1xf32> to vector<1x8x32xf32>
    %177 = arith.mulf %172, %176 : vector<1x8x32xf32>
    %178 = vector.shape_cast %158 : vector<1x32xf32> to vector<1x1x32xf32>
    %179 = vector.broadcast %178 : vector<1x1x32xf32> to vector<1x8x32xf32>
    %180 = arith.mulf %177, %179 : vector<1x8x32xf32>
    %181 = vector.shape_cast %159 : vector<1x32xf32> to vector<1x1x32xf32>
    %182 = vector.broadcast %181 : vector<1x1x32xf32> to vector<1x8x32xf32>
    %183 = arith.addf %180, %182 : vector<1x8x32xf32>
    %184 = vector.shape_cast %183 : vector<1x8x32xf32> to vector<8x32xf32>
    %c0_62 = arith.constant 0 : index
    %c0_63 = arith.constant 0 : index
    %185 = vector.load %arg12[%c0_62, %c0_63] : memref<32x32xf32, #tpu.memory_space<vmem>>, vector<32x32xf32>
    %cst_64 = arith.constant dense<0.000000e+00> : vector<8x32xf32>
    %186 = tpu.matmul %184, %185, %cst_64 {dimension_numbers = #tpu.dot_dimension_numbers<[1], [0], [0], [1], [0, 0, 1, 1], [], []>} : vector<8x32xf32>, vector<32x32xf32>, vector<8x32xf32> -> vector<8x32xf32>
    %187 = vector.extract_strided_slice %0 {offsets = [8, 0], sizes = [1, 32], strides = [1, 1]} : vector<16x32xf32> to vector<1x32xf32>
    %188 = vector.broadcast %187 : vector<1x32xf32> to vector<8x32xf32>
    %189 = arith.addf %186, %188 : vector<8x32xf32>
    %cst_65 = arith.constant 0.000000e+00 : f32
    %190 = vector.broadcast %cst_65 : f32 to vector<8x32xf32>
    %191 = arith.maximumf %189, %190 : vector<8x32xf32>
    %192 = vector.shape_cast %191 : vector<8x32xf32> to vector<1x8x32xf32>
    %193 = arith.addf %157, %192 : vector<1x8x32xf32>
    %c0_66 = arith.constant 0 : index
    %c0_67 = arith.constant 0 : index
    %c0_68 = arith.constant 0 : index
    %194 = vector.load %arg14[%c0_66, %c0_67, %c0_68] : memref<1x8x32xf32, #tpu.memory_space<vmem>>, vector<1x8x32xf32>
    tpu.vector_store %arg14[%c0_66, %c0_67, %c0_68], %193 {strides = array<i32>} : memref<1x8x32xf32, #tpu.memory_space<vmem>>, vector<1x8x32xf32>,
    return
  }
  func.func @transform_0(%arg0: i32, %arg1: i32) -> (i32, i32, i32) {
    %c0_i32 = arith.constant 0 : i32
    %c0_i32_0 = arith.constant 0 : i32
    %c0_i32_1 = arith.constant 0 : i32
    return %arg0, %c0_i32, %c0_i32_0 : i32, i32, i32
  }
  func.func @transform_1(%arg0: i32, %arg1: i32) -> (i32, i32, i32) {
    %c0_i32 = arith.constant 0 : i32
    %c0_i32_0 = arith.constant 0 : i32
    %c0_i32_1 = arith.constant 0 : i32
    return %arg0, %c0_i32, %c0_i32_0 : i32, i32, i32
  }
  func.func @transform_2(%arg0: i32, %arg1: i32) -> (i32, i32, i32) {
    %c0_i32 = arith.constant 0 : i32
    %c0_i32_0 = arith.constant 0 : i32
    %c0_i32_1 = arith.constant 0 : i32
    return %arg0, %c0_i32, %c0_i32_0 : i32, i32, i32
  }
  func.func @transform_3(%arg0: i32, %arg1: i32) -> (i32, i32, i32) {
    %c0_i32 = arith.constant 0 : i32
    %c0_i32_0 = arith.constant 0 : i32
    %c0_i32_1 = arith.constant 0 : i32
    return %arg0, %c0_i32, %c0_i32_0 : i32, i32, i32
  }
  func.func @transform_4(%arg0: i32, %arg1: i32) -> (i32, i32) {
    %c0_i32 = arith.constant 0 : i32
    %c0_i32_0 = arith.constant 0 : i32
    %c0_i32_1 = arith.constant 0 : i32
    return %c0_i32, %c0_i32_0 : i32, i32
  }
  func.func @transform_5(%arg0: i32, %arg1: i32) -> (i32, i32) {
    %c0_i32 = arith.constant 0 : i32
    %c0_i32_0 = arith.constant 0 : i32
    %c0_i32_1 = arith.constant 0 : i32
    return %c0_i32, %c0_i32_0 : i32, i32
  }
  func.func @transform_6(%arg0: i32, %arg1: i32) -> (i32, i32) {
    %c0_i32 = arith.constant 0 : i32
    %c0_i32_0 = arith.constant 0 : i32
    %c0_i32_1 = arith.constant 0 : i32
    return %c0_i32, %c0_i32_0 : i32, i32
  }
  func.func @transform_7(%arg0: i32, %arg1: i32) -> (i32, i32) {
    %c0_i32 = arith.constant 0 : i32
    %c0_i32_0 = arith.constant 0 : i32
    %c0_i32_1 = arith.constant 0 : i32
    return %c0_i32, %c0_i32_0 : i32, i32
  }
  func.func @transform_8(%arg0: i32, %arg1: i32) -> (i32, i32) {
    %c0_i32 = arith.constant 0 : i32
    %c0_i32_0 = arith.constant 0 : i32
    %c0_i32_1 = arith.constant 0 : i32
    return %c0_i32, %c0_i32_0 : i32, i32
  }
  func.func @transform_9(%arg0: i32, %arg1: i32) -> (i32, i32) {
    %c0_i32 = arith.constant 0 : i32
    %c0_i32_0 = arith.constant 0 : i32
    %c0_i32_1 = arith.constant 0 : i32
    return %c0_i32, %c0_i32_0 : i32, i32
  }
  func.func @transform_10(%arg0: i32, %arg1: i32) -> (i32, i32) {
    %c0_i32 = arith.constant 0 : i32
    %c0_i32_0 = arith.constant 0 : i32
    %c0_i32_1 = arith.constant 0 : i32
    return %c0_i32, %c0_i32_0 : i32, i32
  }
  func.func @transform_11(%arg0: i32, %arg1: i32) -> (i32, i32) {
    %c0_i32 = arith.constant 0 : i32
    %c0_i32_0 = arith.constant 0 : i32
    %c0_i32_1 = arith.constant 0 : i32
    return %c0_i32, %c0_i32_0 : i32, i32
  }
  func.func @transform_12(%arg0: i32, %arg1: i32) -> (i32, i32, i32) {
    %c0_i32 = arith.constant 0 : i32
    %c0_i32_0 = arith.constant 0 : i32
    return %arg0, %arg1, %c0_i32 : i32, i32, i32
  }
}

</mosaic_0001>

<llo_original>
// kernel: tpu_custom_call.1
$region0: #{tpu_custom_call.1}
  #allocation0 [shape = 'u32[]', space=smem, size = 0x4, offset = 0x4, fixed_abs, tag = 'smem constant byte address 0x4 - core index']
  #allocation1 [shape = 'u32[144,128]{1,0:T(1,128)}', space=vmem, size = 0x12000, scoped, tag = 'internal scratch']
  #allocation2 [shape = 'f32[4,8,8]{2,1,0:T(8,128)}', space=vmem, size = 0x4000, scoped, tag = 'scratch operand']
  #allocation3 [shape = 'f32[4,8,8]{2,1,0:T(8,128)}', space=vmem, size = 0x4000, scoped, tag = 'scratch operand']
  #allocation4 [shape = 'f32[4,16,8]{2,1,0:T(8,128)}', space=vmem, size = 0x8000, scoped, tag = 'scratch operand']
  #allocation5 [shape = 'f32[4,16,8]{2,1,0:T(8,128)}', space=vmem, size = 0x8000, scoped, tag = 'scratch operand']
  %s0 = inlined_call_operand.hbm [shape: f32[2,8,32], index: 0, kind: input, shape index: {}]
  %s1 = inlined_call_operand.hbm [shape: f32[2,16,32], index: 1, kind: input, shape index: {}]
  %s2 = inlined_call_operand.vmem [shape: f32[2,1,8], index: 2, kind: input, shape index: {}]
  %s3 = inlined_call_operand.vmem [shape: f32[2,1,16], index: 3, kind: input, shape index: {}]
  %s4 = inlined_call_operand.hbm [shape: f32[32,32], index: 4, kind: input, shape index: {}]
  %s5 = inlined_call_operand.hbm [shape: f32[32,64], index: 5, kind: input, shape index: {}]
  %s6 = inlined_call_operand.hbm [shape: f32[32,32], index: 6, kind: input, shape index: {}]
  %s7 = inlined_call_operand.hbm [shape: f32[32,32], index: 7, kind: input, shape index: {}]
  %s8 = inlined_call_operand.hbm [shape: f32[32,64], index: 8, kind: input, shape index: {}]
  %s9 = inlined_call_operand.hbm [shape: f32[32,32], index: 9, kind: input, shape index: {}]
  %s10 = inlined_call_operand.hbm [shape: f32[32,32], index: 10, kind: input, shape index: {}]
  %s11 = inlined_call_operand.vmem [shape: f32[16,32], index: 11, kind: input, shape index: {}]
  %s12 = inlined_call_operand.hbm [shape: f32[2,8,32], index: 12, kind: output, shape index: {}]
  %s13 = sld [smem:[#allocation0]]
  $region121: #{tpu_custom_call.1} parent=0
    _
  %s15 = ssub.s32 1, %s13
  %s16 = scalar_select 0, %s15, %s13
  $region1: #{tpu_custom_call.1} parent=0
    #allocation6 [shape = 'u8[8192]{0}', space=vmem, size = 0x2000, scoped, tag = 'input window, operand 0']
    #allocation7 [shape = 's32[2]{0}', space=sflag, size = 0x8, scoped, tag = 'scoped memory for tpu_custom_call.1']
    #allocation8 [shape = 's32[2]{0}', space=sflag, size = 0x8, scoped, tag = 'scoped memory for tpu_custom_call.1']
    #allocation9 [shape = 'u8[16384]{0}', space=vmem, size = 0x4000, scoped, tag = 'input window, operand 1']
    #allocation10 [shape = 's32[2]{0}', space=sflag, size = 0x8, scoped, tag = 'scoped memory for tpu_custom_call.1']
    #allocation11 [shape = 'u8[16384]{0}', space=vmem, size = 0x4000, scoped, tag = 'input window, operand 4, single buffered']
    #allocation12 [shape = 'u8[16384]{0}', space=vmem, size = 0x4000, scoped, tag = 'input window, operand 5, single buffered']
    #allocation13 [shape = 's32[1]{0}', space=sflag, size = 0x4, scoped, tag = 'scoped memory for tpu_custom_call.1']
    #allocation14 [shape = 'u8[16384]{0}', space=vmem, size = 0x4000, scoped, tag = 'input window, operand 6, single buffered']
    #allocation15 [shape = 'u8[16384]{0}', space=vmem, size = 0x4000, scoped, tag = 'input window, operand 7, single buffered']
    #allocation16 [shape = 's32[1]{0}', space=sflag, size = 0x4, scoped, tag = 'scoped memory for tpu_custom_call.1']
    #allocation17 [shape = 'u8[16384]{0}', space=vmem, size = 0x4000, scoped, tag = 'input window, operand 8, single buffered']
    #allocation18 [shape = 'u8[16384]{0}', space=vmem, size = 0x4000, scoped, tag = 'input window, operand 9, single buffered']
    #allocation19 [shape = 's32[1]{0}', space=sflag, size = 0x4, scoped, tag = 'scoped memory for tpu_custom_call.1']
    #allocation20 [shape = 'u8[16384]{0}', space=vmem, size = 0x4000, scoped, tag = 'input window, operand 10, single buffered']
    #allocation21 [shape = 'u8[8192]{0}', space=vmem, size = 0x2000, scoped, tag = 'output window, operand 0']
    %17 = vsyncpa [#allocation7], 0
    %s18 = scalar_lea.sflag [#allocation7], 1
    %19 = vsyncpa %s18, 0
    %20 = vsyncpa [#allocation10], 0
    %s21 = scalar_lea.sflag [#allocation10], 1
    %22 = vsyncpa %s21, 0
    %23 = vsyncpa [#allocation13], 0
    %24 = vsyncpa [#allocation16], 0
    %25 = vsyncpa [#allocation19], 0
    %26 = vsyncpa [#allocation8], 0
    %s27 = scalar_lea.sflag [#allocation8], 1
    %28 = vsyncpa %s27, 0
    loop: start=0, step=1, limit=4
    $region2: #{tpu_custom_call.1} parent=1 // loop_pre_header
      _
    $region3: #{tpu_custom_call.1} parent=1 // loop_header
      %s30 = sphi 0, %s34
      %p31 = scmp.ge.s32.totalorder %s30, 4
      %s37 = sphi 0, %s49
      %s38 = sphi 0, %s45
      %s39 = sphi 0, %s37
      %s40 = sphi 0, %s38
      %s41 = sphi 0, %s39
      %s42 = sphi 0, %s40
      %s52 = sphi 0, %s54
      %s55 = sphi 0, %s52
      %s56 = sphi 0, %s55
      %s72 = sphi 0, %s56
      %s78 = sphi 0, %s80
      %s81 = sphi 0, %s78
      %s82 = sphi 0, %s81
      %s98 = sphi 0, %s82
      %s104 = sphi 0, %s106
      %s107 = sphi 0, %s104
      %s108 = sphi 0, %s107
      %s124 = sphi 0, %s108
      %s130 = sphi 0, %s132
      %s133 = sphi 0, %s130
      %s134 = sphi 0, %s133
      %s150 = sphi 0, %s134
      %s154 = sphi 0, %s154
      %s156 = sphi 0, %s154
      %s157 = sphi 0, %s156
      %s171 = sphi 0, %s157
      %s175 = sphi 0, %s175
      %s177 = sphi 0, %s175
      %s178 = sphi 0, %s177
      %s192 = sphi 0, %s178
      %s196 = sphi 0, %s196
      %s198 = sphi 0, %s196
      %s199 = sphi 0, %s198
      %s213 = sphi 0, %s199
      %s217 = sphi 0, %s217
      %s219 = sphi 0, %s217
      %s220 = sphi 0, %s219
      %s234 = sphi 0, %s220
      %s238 = sphi 0, %s238
      %s240 = sphi 0, %s238
      %s241 = sphi 0, %s240
      %s255 = sphi 0, %s241
      %s259 = sphi 0, %s259
      %s261 = sphi 0, %s259
      %s262 = sphi 0, %s261
      %s276 = sphi 0, %s262
      %s280 = sphi 0, %s280
      %s282 = sphi 0, %s280
      %s283 = sphi 0, %s282
      %s297 = sphi 0, %s283
      %s301 = sphi 0, %s301
      %s303 = sphi 0, %s301
      %s304 = sphi 0, %s303
      %s318 = sphi 0, %s304
      %s326 = sphi 0, %s328
      %s329 = sphi 0, %s326
      %s330 = sphi 0, %s329
      %s346 = sphi 0, %s330
    $region4: #{tpu_custom_call.1} parent=1 // loop_header_branch
      %33 = sbr.rel (%p31) target = $region8
    $region5: #{tpu_custom_call.1} parent=1 // loop_body
      %s35 = ssub.s32 %s30, 1
      %s36 = ssub.s32 %s30, 2
      %s43 = sadd.s32 1, %s38
      %p44 = scmp.ge.s32.totalorder %s43, 1
      %s45 = scalar_select %p44, 0, %s43
      %s46 = sadd.s32 1, %s37
      %s47 = scalar_select %p44, %s46, %s37
      %p48 = scmp.ge.s32.totalorder %s47, 2
      %s49 = scalar_select %p48, 0, %s47
      %s50 = ssub.s32 %s37, %s49
      %p51 = scmp.eq.s32.totalorder %s50, 0
      %s53 = sadd.s32 %s52, 1
      %s54 = scalar_select %p51, %s52, %s53
      %p57 = pneg %p51
      %p58 = scmp.eq.s32.totalorder %s30, 1
      %p59 = por %p57, %p58
      %p60 = scmp.ne.s32.totalorder %s52, %s55
      %p61 = scmp.eq.s32.totalorder %s30, 0
      %p62 = por %p60, %p61
      %p63 = scmp.ne.s32.totalorder %s52, %s55
      %p64 = scmp.eq.s32.totalorder %s35, 1
      %p65 = por %p63, %p64
      %p66 = scmp.ne.s32.totalorder %s55, %s56
      %p67 = scmp.eq.s32.totalorder %s35, 0
      %p68 = por %p66, %p67
      %p69 = scmp.ne.s32.totalorder %s55, %s56
      %p70 = scmp.eq.s32.totalorder %s36, 1
      %p71 = por %p69, %p70
      %p73 = scmp.ne.s32.totalorder %s56, %s72
      %p74 = scmp.eq.s32.totalorder %s36, 0
      %p75 = por %p73, %p74
      %s76 = ssub.s32 %s37, %s49
      %p77 = scmp.eq.s32.totalorder %s76, 0
      %s79 = sadd.s32 %s78, 1
      %s80 = scalar_select %p77, %s78, %s79
      %p83 = pneg %p77
      %p84 = scmp.eq.s32.totalorder %s30, 1
      %p85 = por %p83, %p84
      %p86 = scmp.ne.s32.totalorder %s78, %s81
      %p87 = scmp.eq.s32.totalorder %s30, 0
      %p88 = por %p86, %p87
      %p89 = scmp.ne.s32.totalorder %s78, %s81
      %p90 = scmp.eq.s32.totalorder %s35, 1
      %p91 = por %p89, %p90
      %p92 = scmp.ne.s32.totalorder %s81, %s82
      %p93 = scmp.eq.s32.totalorder %s35, 0
      %p94 = por %p92, %p93
      %p95 = scmp.ne.s32.totalorder %s81, %s82
      %p96 = scmp.eq.s32.totalorder %s36, 1
      %p97 = por %p95, %p96
      %p99 = scmp.ne.s32.totalorder %s82, %s98
      %p100 = scmp.eq.s32.totalorder %s36, 0
      %p101 = por %p99, %p100
      %s102 = ssub.s32 %s37, %s49
      %p103 = scmp.eq.s32.totalorder %s102, 0
      %s105 = sadd.s32 %s104, 1
      %s106 = scalar_select %p103, %s104, %s105
      %p109 = pneg %p103
      %p110 = scmp.eq.s32.totalorder %s30, 1
      %p111 = por %p109, %p110
      %p112 = scmp.ne.s32.totalorder %s104, %s107
      %p113 = scmp.eq.s32.totalorder %s30, 0
      %p114 = por %p112, %p113
      %p115 = scmp.ne.s32.totalorder %s104, %s107
      %p116 = scmp.eq.s32.totalorder %s35, 1
      %p117 = por %p115, %p116
      %p118 = scmp.ne.s32.totalorder %s107, %s108
      %p119 = scmp.eq.s32.totalorder %s35, 0
      %p120 = por %p118, %p119
      %p121 = scmp.ne.s32.totalorder %s107, %s108
      %p122 = scmp.eq.s32.totalorder %s36, 1
      %p123 = por %p121, %p122
      %p125 = scmp.ne.s32.totalorder %s108, %s124
      %p126 = scmp.eq.s32.totalorder %s36, 0
      %p127 = por %p125, %p126
      %s128 = ssub.s32 %s37, %s49
      %p129 = scmp.eq.s32.totalorder %s128, 0
      %s131 = sadd.s32 %s130, 1
      %s132 = scalar_select %p129, %s130, %s131
      %p135 = pneg %p129
      %p136 = scmp.eq.s32.totalorder %s30, 1
      %p137 = por %p135, %p136
      %p138 = scmp.ne.s32.totalorder %s130, %s133
      %p139 = scmp.eq.s32.totalorder %s30, 0
      %p140 = por %p138, %p139
      %p141 = scmp.ne.s32.totalorder %s130, %s133
      %p142 = scmp.eq.s32.totalorder %s35, 1
      %p143 = por %p141, %p142
      %p144 = scmp.ne.s32.totalorder %s133, %s134
      %p145 = scmp.eq.s32.totalorder %s35, 0
      %p146 = por %p144, %p145
      %p147 = scmp.ne.s32.totalorder %s133, %s134
      %p148 = scmp.eq.s32.totalorder %s36, 1
      %p149 = por %p147, %p148
      %p151 = scmp.ne.s32.totalorder %s134, %s150
      %p152 = scmp.eq.s32.totalorder %s36, 0
      %p153 = por %p151, %p152
      %s155 = sadd.s32 %s154, 1
      %p158 = scmp.eq.s32.totalorder %s30, 1
      %p159 = scmp.ne.s32.totalorder %s154, %s156
      %p160 = scmp.eq.s32.totalorder %s30, 0
      %p161 = por %p159, %p160
      %p162 = scmp.ne.s32.totalorder %s154, %s156
      %p163 = scmp.eq.s32.totalorder %s35, 1
      %p164 = por %p162, %p163
      %p165 = scmp.ne.s32.totalorder %s156, %s157
      %p166 = scmp.eq.s32.totalorder %s35, 0
      %p167 = por %p165, %p166
      %p168 = scmp.ne.s32.totalorder %s156, %s157
      %p169 = scmp.eq.s32.totalorder %s36, 1
      %p170 = por %p168, %p169
      %p172 = scmp.ne.s32.totalorder %s157, %s171
      %p173 = scmp.eq.s32.totalorder %s36, 0
      %p174 = por %p172, %p173
      %s176 = sadd.s32 %s175, 1
      %p179 = scmp.eq.s32.totalorder %s30, 1
      %p180 = scmp.ne.s32.totalorder %s175, %s177
      %p181 = scmp.eq.s32.totalorder %s30, 0
      %p182 = por %p180, %p181
      %p183 = scmp.ne.s32.totalorder %s175, %s177
      %p184 = scmp.eq.s32.totalorder %s35, 1
      %p185 = por %p183, %p184
      %p186 = scmp.ne.s32.totalorder %s177, %s178
      %p187 = scmp.eq.s32.totalorder %s35, 0
      %p188 = por %p186, %p187
      %p189 = scmp.ne.s32.totalorder %s177, %s178
      %p190 = scmp.eq.s32.totalorder %s36, 1
      %p191 = por %p189, %p190
      %p193 = scmp.ne.s32.totalorder %s178, %s192
      %p194 = scmp.eq.s32.totalorder %s36, 0
      %p195 = por %p193, %p194
      %s197 = sadd.s32 %s196, 1
      %p200 = scmp.eq.s32.totalorder %s30, 1
      %p201 = scmp.ne.s32.totalorder %s196, %s198
      %p202 = scmp.eq.s32.totalorder %s30, 0
      %p203 = por %p201, %p202
      %p204 = scmp.ne.s32.totalorder %s196, %s198
      %p205 = scmp.eq.s32.totalorder %s35, 1
      %p206 = por %p204, %p205
      %p207 = scmp.ne.s32.totalorder %s198, %s199
      %p208 = scmp.eq.s32.totalorder %s35, 0
      %p209 = por %p207, %p208
      %p210 = scmp.ne.s32.totalorder %s198, %s199
      %p211 = scmp.eq.s32.totalorder %s36, 1
      %p212 = por %p210, %p211
      %p214 = scmp.ne.s32.totalorder %s199, %s213
      %p215 = scmp.eq.s32.totalorder %s36, 0
      %p216 = por %p214, %p215
      %s218 = sadd.s32 %s217, 1
      %p221 = scmp.eq.s32.totalorder %s30, 1
      %p222 = scmp.ne.s32.totalorder %s217, %s219
      %p223 = scmp.eq.s32.totalorder %s30, 0
      %p224 = por %p222, %p223
      %p225 = scmp.ne.s32.totalorder %s217, %s219
      %p226 = scmp.eq.s32.totalorder %s35, 1
      %p227 = por %p225, %p226
      %p228 = scmp.ne.s32.totalorder %s219, %s220
      %p229 = scmp.eq.s32.totalorder %s35, 0
      %p230 = por %p228, %p229
      %p231 = scmp.ne.s32.totalorder %s219, %s220
      %p232 = scmp.eq.s32.totalorder %s36, 1
      %p233 = por %p231, %p232
      %p235 = scmp.ne.s32.totalorder %s220, %s234
      %p236 = scmp.eq.s32.totalorder %s36, 0
      %p237 = por %p235, %p236
      %s239 = sadd.s32 %s238, 1
      %p242 = scmp.eq.s32.totalorder %s30, 1
      %p243 = scmp.ne.s32.totalorder %s238, %s240
      %p244 = scmp.eq.s32.totalorder %s30, 0
      %p245 = por %p243, %p244
      %p246 = scmp.ne.s32.totalorder %s238, %s240
      %p247 = scmp.eq.s32.totalorder %s35, 1
      %p248 = por %p246, %p247
      %p249 = scmp.ne.s32.totalorder %s240, %s241
      %p250 = scmp.eq.s32.totalorder %s35, 0
      %p251 = por %p249, %p250
      %p252 = scmp.ne.s32.totalorder %s240, %s241
      %p253 = scmp.eq.s32.totalorder %s36, 1
      %p254 = por %p252, %p253
      %p256 = scmp.ne.s32.totalorder %s241, %s255
      %p257 = scmp.eq.s32.totalorder %s36, 0
      %p258 = por %p256, %p257
      %s260 = sadd.s32 %s259, 1
      %p263 = scmp.eq.s32.totalorder %s30, 1
      %p264 = scmp.ne.s32.totalorder %s259, %s261
      %p265 = scmp.eq.s32.totalorder %s30, 0
      %p266 = por %p264, %p265
      %p267 = scmp.ne.s32.totalorder %s259, %s261
      %p268 = scmp.eq.s32.totalorder %s35, 1
      %p269 = por %p267, %p268
      %p270 = scmp.ne.s32.totalorder %s261, %s262
      %p271 = scmp.eq.s32.totalorder %s35, 0
      %p272 = por %p270, %p271
      %p273 = scmp.ne.s32.totalorder %s261, %s262
      %p274 = scmp.eq.s32.totalorder %s36, 1
      %p275 = por %p273, %p274
      %p277 = scmp.ne.s32.totalorder %s262, %s276
      %p278 = scmp.eq.s32.totalorder %s36, 0
      %p279 = por %p277, %p278
      %s281 = sadd.s32 %s280, 1
      %p284 = scmp.eq.s32.totalorder %s30, 1
      %p285 = scmp.ne.s32.totalorder %s280, %s282
      %p286 = scmp.eq.s32.totalorder %s30, 0
      %p287 = por %p285, %p286
      %p288 = scmp.ne.s32.totalorder %s280, %s282
      %p289 = scmp.eq.s32.totalorder %s35, 1
      %p290 = por %p288, %p289
      %p291 = scmp.ne.s32.totalorder %s282, %s283
      %p292 = scmp.eq.s32.totalorder %s35, 0
      %p293 = por %p291, %p292
      %p294 = scmp.ne.s32.totalorder %s282, %s283
      %p295 = scmp.eq.s32.totalorder %s36, 1
      %p296 = por %p294, %p295
      %p298 = scmp.ne.s32.totalorder %s283, %s297
      %p299 = scmp.eq.s32.totalorder %s36, 0
      %p300 = por %p298, %p299
      %s302 = sadd.s32 %s301, 1
      %p305 = scmp.eq.s32.totalorder %s30, 1
      %p306 = scmp.ne.s32.totalorder %s301, %s303
      %p307 = scmp.eq.s32.totalorder %s30, 0
      %p308 = por %p306, %p307
      %p309 = scmp.ne.s32.totalorder %s301, %s303
      %p310 = scmp.eq.s32.totalorder %s35, 1
      %p311 = por %p309, %p310
      %p312 = scmp.ne.s32.totalorder %s303, %s304
      %p313 = scmp.eq.s32.totalorder %s35, 0
      %p314 = por %p312, %p313
      %p315 = scmp.ne.s32.totalorder %s303, %s304
      %p316 = scmp.eq.s32.totalorder %s36, 1
      %p317 = por %p315, %p316
      %p319 = scmp.ne.s32.totalorder %s304, %s318
      %p320 = scmp.eq.s32.totalorder %s36, 0
      %p321 = por %p319, %p320
      %s322 = ssub.s32 %s37, %s49
      %s323 = ssub.s32 %s38, %s45
      %s324 = sor.u32 %s322, %s323
      %p325 = scmp.eq.s32.totalorder %s324, 0
      %s327 = sadd.s32 %s326, 1
      %s328 = scalar_select %p325, %s326, %s327
      %p331 = pneg %p325
      %p332 = scmp.eq.s32.totalorder %s30, 1
      %p333 = por %p331, %p332
      %p334 = scmp.ne.s32.totalorder %s326, %s329
      %p335 = scmp.eq.s32.totalorder %s30, 0
      %p336 = por %p334, %p335
      %p337 = scmp.ne.s32.totalorder %s326, %s329
      %p338 = scmp.eq.s32.totalorder %s35, 1
      %p339 = por %p337, %p338
      %p340 = scmp.ne.s32.totalorder %s329, %s330
      %p341 = scmp.eq.s32.totalorder %s35, 0
      %p342 = por %p340, %p341
      %p343 = scmp.ne.s32.totalorder %s329, %s330
      %p344 = scmp.eq.s32.totalorder %s36, 1
      %p345 = por %p343, %p344
      %p347 = scmp.ne.s32.totalorder %s330, %s346
      %p348 = scmp.eq.s32.totalorder %s36, 0
      %p349 = por %p347, %p348
      %p350 = scmp.le.s32.totalorder 1, %s30
      %p351 = scmp.lt.s32.totalorder %s30, 3
      %p352 = pnand %p350, %p351
      %p353 = pneg %p352
      // Predicated region
      $region9: #{tpu_custom_call.1} parent=5 // pred_check
        _
      $region10: #{tpu_custom_call.1} parent=5 // pred_check_branch
        %355 = sbr.rel (%p352) target = $region12
      $region11: #{tpu_custom_call.1} parent=5 // pred_region
        %s356 = ssub.s32 %s30, 1
        // Predicated region
        $region13: #{tpu_custom_call.1} parent=11 // pred_check
          %p357 = pneg %p167
        $region14: #{tpu_custom_call.1} parent=11 // pred_check_branch
          %359 = sbr.rel (%p357) target = $region16
        $region15: #{tpu_custom_call.1} parent=11 // pred_region
          %s361 = ssub.s32 512, 512
          %362 = vsyncadd [#allocation10], %s361
          %s363 = sshll.u32 [#allocation11], 4
          %s364 = int_to_ptr.vmem [resolvable:$true] %s363
          %369 = dma.hbm_to_vmem [thread:$0]  %s4, 512, %s364, [#allocation10], 128, 128, 8
        $region16: #{tpu_custom_call.1} parent=11 // pred_fallthru
          _
        // Predicated region
        $region17: #{tpu_custom_call.1} parent=11 // pred_check
          %p370 = pneg %p188
        $region18: #{tpu_custom_call.1} parent=11 // pred_check_branch
          %372 = sbr.rel (%p370) target = $region20
        $region19: #{tpu_custom_call.1} parent=11 // pred_region
          %s374 = ssub.s32 512, 512
          %375 = vsyncadd [#allocation13], %s374
          %s376 = sshll.u32 [#allocation12], 4
          %s377 = int_to_ptr.vmem [resolvable:$true] %s376
          %382 = dma.hbm_to_vmem [thread:$0]  %s5, 512, %s377, [#allocation13], 128, 128, 8
        $region20: #{tpu_custom_call.1} parent=11 // pred_fallthru
          _
        // Predicated region
        $region21: #{tpu_custom_call.1} parent=11 // pred_check
          %p383 = pneg %p209
        $region22: #{tpu_custom_call.1} parent=11 // pred_check_branch
          %385 = sbr.rel (%p383) target = $region24
        $region23: #{tpu_custom_call.1} parent=11 // pred_region
          %s387 = ssub.s32 512, 512
          %388 = vsyncadd [#allocation13], %s387
          %s389 = sshll.u32 [#allocation14], 4
          %s390 = int_to_ptr.vmem [resolvable:$true] %s389
          %395 = dma.hbm_to_vmem [thread:$0]  %s6, 512, %s390, [#allocation13], 128, 128, 8
        $region24: #{tpu_custom_call.1} parent=11 // pred_fallthru
          _
        // Predicated region
        $region25: #{tpu_custom_call.1} parent=11 // pred_check
          %p396 = pneg %p230
        $region26: #{tpu_custom_call.1} parent=11 // pred_check_branch
          %398 = sbr.rel (%p396) target = $region28
        $region27: #{tpu_custom_call.1} parent=11 // pred_region
          %s400 = ssub.s32 512, 512
          %401 = vsyncadd [#allocation16], %s400
          %s402 = sshll.u32 [#allocation15], 4
          %s403 = int_to_ptr.vmem [resolvable:$true] %s402
          %408 = dma.hbm_to_vmem [thread:$0]  %s7, 512, %s403, [#allocation16], 128, 128, 8
        $region28: #{tpu_custom_call.1} parent=11 // pred_fallthru
          _
        // Predicated region
        $region29: #{tpu_custom_call.1} parent=11 // pred_check
          %p409 = pneg %p251
        $region30: #{tpu_custom_call.1} parent=11 // pred_check_branch
          %411 = sbr.rel (%p409) target = $region32
        $region31: #{tpu_custom_call.1} parent=11 // pred_region
          %s413 = ssub.s32 512, 512
          %414 = vsyncadd [#allocation16], %s413
          %s415 = sshll.u32 [#allocation17], 4
          %s416 = int_to_ptr.vmem [resolvable:$true] %s415
          %421 = dma.hbm_to_vmem [thread:$0]  %s8, 512, %s416, [#allocation16], 128, 128, 8
        $region32: #{tpu_custom_call.1} parent=11 // pred_fallthru
          _
        // Predicated region
        $region33: #{tpu_custom_call.1} parent=11 // pred_check
          %p422 = pneg %p272
        $region34: #{tpu_custom_call.1} parent=11 // pred_check_branch
          %424 = sbr.rel (%p422) target = $region36
        $region35: #{tpu_custom_call.1} parent=11 // pred_region
          %s426 = ssub.s32 512, 512
          %427 = vsyncadd [#allocation19], %s426
          %s428 = sshll.u32 [#allocation18], 4
          %s429 = int_to_ptr.vmem [resolvable:$true] %s428
          %434 = dma.hbm_to_vmem [thread:$0]  %s9, 512, %s429, [#allocation19], 128, 128, 8
        $region36: #{tpu_custom_call.1} parent=11 // pred_fallthru
          _
        // Predicated region
        $region37: #{tpu_custom_call.1} parent=11 // pred_check
          %p435 = pneg %p293
        $region38: #{tpu_custom_call.1} parent=11 // pred_check_branch
          %437 = sbr.rel (%p435) target = $region40
        $region39: #{tpu_custom_call.1} parent=11 // pred_region
          %s439 = ssub.s32 512, 512
          %440 = vsyncadd [#allocation19], %s439
          %s441 = sshll.u32 [#allocation20], 4
          %s442 = int_to_ptr.vmem [resolvable:$true] %s441
          %447 = dma.hbm_to_vmem [thread:$0]  %s10, 512, %s442, [#allocation19], 128, 128, 8
        $region40: #{tpu_custom_call.1} parent=11 // pred_fallthru
          _
        // Predicated region
        $region41: #{tpu_custom_call.1} parent=11 // pred_check
          %p448 = pneg %p314
        $region42: #{tpu_custom_call.1} parent=11 // pred_check_branch
          %450 = sbr.rel (%p448) target = $region44
        $region43: #{tpu_custom_call.1} parent=11 // pred_region
          _
        $region44: #{tpu_custom_call.1} parent=11 // pred_fallthru
          _
      $region12: #{tpu_custom_call.1} parent=5 // pred_fallthru
        _
      %p451 = scmp.lt.s32.totalorder %s30, 2
      // Predicated region
      $region45: #{tpu_custom_call.1} parent=5 // pred_check
        %p452 = pneg %p451
      $region46: #{tpu_custom_call.1} parent=5 // pred_check_branch
        %454 = sbr.rel (%p452) target = $region48
      $region47: #{tpu_custom_call.1} parent=5 // pred_region
        // Predicated region
        $region49: #{tpu_custom_call.1} parent=47 // pred_check
          %p455 = pneg %p62
        $region50: #{tpu_custom_call.1} parent=47 // pred_check_branch
          %457 = sbr.rel (%p455) target = $region52
        $region51: #{tpu_custom_call.1} parent=47 // pred_region
          %s458 = sand.u32 %s52, 1
          %s459 = scalar_lea.sflag [#allocation7], %s458
          %s460 = sand.u32 %s52, 1
          %s461 = smul.addr %s460, 8
          %s462 = scalar_lea.vmem [#allocation6], %s461
          %s464 = ssub.s32 128, 128
          %465 = vsyncadd %s459, %s464
          %s466 = smul.addr %s37, 128
          %s467 = scalar_lea.hbm %s0, %s466
          %s469 = sshll.u32 %s462, 4
          %s470 = int_to_ptr.vmem [resolvable:$true] %s469
          %472 = dma.hbm_to_vmem [thread:$0]  %s467, 128, %s470, %s459
        $region52: #{tpu_custom_call.1} parent=47 // pred_fallthru
          _
        // Predicated region
        $region53: #{tpu_custom_call.1} parent=47 // pred_check
          %p473 = pneg %p88
        $region54: #{tpu_custom_call.1} parent=47 // pred_check_branch
          %475 = sbr.rel (%p473) target = $region56
        $region55: #{tpu_custom_call.1} parent=47 // pred_region
          %s476 = sand.u32 %s30, 1
          %s477 = scalar_lea.sflag [#allocation10], %s476
          %s478 = sand.u32 %s78, 1
          %s479 = smul.addr %s478, 16
          %s480 = scalar_lea.vmem [#allocation9], %s479
          %s482 = ssub.s32 256, 256
          %483 = vsyncadd %s477, %s482
          %s484 = smul.addr %s37, 2
          %s485 = smul.addr %s484, 128
          %s486 = scalar_lea.hbm %s1, %s485
          %s487 = sshll.u32 %s480, 4
          %s488 = int_to_ptr.vmem [resolvable:$true] %s487
          %493 = dma.hbm_to_vmem [thread:$0]  %s486, 256, %s488, %s477, 128, 128, 8
        $region56: #{tpu_custom_call.1} parent=47 // pred_fallthru
          _
        // Predicated region
        $region57: #{tpu_custom_call.1} parent=47 // pred_check
          %p494 = pneg %p114
        $region58: #{tpu_custom_call.1} parent=47 // pred_check_branch
          %496 = sbr.rel (%p494) target = $region60
        $region59: #{tpu_custom_call.1} parent=47 // pred_region
          %p497 = scmp.lt.s32.totalorder %s37, 1
          %s498 = scalar_select %p497, %s37, 1
          %s499 = scalar_lea.vmem %s2, %s498
        $region60: #{tpu_custom_call.1} parent=47 // pred_fallthru
          _
        // Predicated region
        $region61: #{tpu_custom_call.1} parent=47 // pred_check
          %p500 = pneg %p140
        $region62: #{tpu_custom_call.1} parent=47 // pred_check_branch
          %502 = sbr.rel (%p500) target = $region64
        $region63: #{tpu_custom_call.1} parent=47 // pred_region
          %p503 = scmp.lt.s32.totalorder %s37, 1
          %s504 = scalar_select %p503, %s37, 1
          %s505 = scalar_lea.vmem %s3, %s504
        $region64: #{tpu_custom_call.1} parent=47 // pred_fallthru
          _
      $region48: #{tpu_custom_call.1} parent=5 // pred_fallthru
        _
      %p506 = scmp.le.s32.totalorder 1, %s30
      %p507 = scmp.lt.s32.totalorder %s30, 3
      %p508 = pnand %p506, %p507
      %p509 = pneg %p508
      // Predicated region
      $region65: #{tpu_custom_call.1} parent=5 // pred_check
        _
      $region66: #{tpu_custom_call.1} parent=5 // pred_check_branch
        %511 = sbr.rel (%p508) target = $region68
      $region67: #{tpu_custom_call.1} parent=5 // pred_region
        %s512 = ssub.s32 %s30, 1
        %s513 = sand.u32 %s55, 1
        %s514 = scalar_lea.sflag [#allocation7], %s513
        %s515 = sand.u32 %s55, 1
        %s516 = smul.addr %s515, 8
        %s517 = scalar_lea.vmem [#allocation6], %s516
        // Predicated region
        $region69: #{tpu_custom_call.1} parent=67 // pred_check
          %p518 = pneg %p68
        $region70: #{tpu_custom_call.1} parent=67 // pred_check_branch
          %520 = sbr.rel (%p518) target = $region72
        $region71: #{tpu_custom_call.1} parent=67 // pred_region
          %521 = dma.done %s514, 128
        $region72: #{tpu_custom_call.1} parent=67 // pred_fallthru
          _
        %s522 = sand.u32 %s35, 1
        %s523 = scalar_lea.sflag [#allocation10], %s522
        %s524 = sand.u32 %s81, 1
        %s525 = smul.addr %s524, 16
        %s526 = scalar_lea.vmem [#allocation9], %s525
        // Predicated region
        $region73: #{tpu_custom_call.1} parent=67 // pred_check
          %p527 = pneg %p94
        $region74: #{tpu_custom_call.1} parent=67 // pred_check_branch
          %529 = sbr.rel (%p527) target = $region76
        $region75: #{tpu_custom_call.1} parent=67 // pred_region
          %530 = dma.done %s523, 256
        $region76: #{tpu_custom_call.1} parent=67 // pred_fallthru
          _
        // Predicated region
        $region77: #{tpu_custom_call.1} parent=67 // pred_check
          %p531 = pneg %p167
        $region78: #{tpu_custom_call.1} parent=67 // pred_check_branch
          %533 = sbr.rel (%p531) target = $region80
        $region79: #{tpu_custom_call.1} parent=67 // pred_region
          %534 = dma.done [#allocation10], 512
        $region80: #{tpu_custom_call.1} parent=67 // pred_fallthru
          _
        // Predicated region
        $region81: #{tpu_custom_call.1} parent=67 // pred_check
          %p535 = pneg %p188
        $region82: #{tpu_custom_call.1} parent=67 // pred_check_branch
          %537 = sbr.rel (%p535) target = $region84
        $region83: #{tpu_custom_call.1} parent=67 // pred_region
          %538 = dma.done [#allocation13], 512
        $region84: #{tpu_custom_call.1} parent=67 // pred_fallthru
          _
        // Predicated region
        $region85: #{tpu_custom_call.1} parent=67 // pred_check
          %p539 = pneg %p209
        $region86: #{tpu_custom_call.1} parent=67 // pred_check_branch
          %541 = sbr.rel (%p539) target = $region88
        $region87: #{tpu_custom_call.1} parent=67 // pred_region
          %542 = dma.done [#allocation13], 512
        $region88: #{tpu_custom_call.1} parent=67 // pred_fallthru
          _
        // Predicated region
        $region89: #{tpu_custom_call.1} parent=67 // pred_check
          %p543 = pneg %p230
        $region90: #{tpu_custom_call.1} parent=67 // pred_check_branch
          %545 = sbr.rel (%p543) target = $region92
        $region91: #{tpu_custom_call.1} parent=67 // pred_region
          %546 = dma.done [#allocation16], 512
        $region92: #{tpu_custom_call.1} parent=67 // pred_fallthru
          _
        // Predicated region
        $region93: #{tpu_custom_call.1} parent=67 // pred_check
          %p547 = pneg %p251
        $region94: #{tpu_custom_call.1} parent=67 // pred_check_branch
          %549 = sbr.rel (%p547) target = $region96
        $region95: #{tpu_custom_call.1} parent=67 // pred_region
          %550 = dma.done [#allocation16], 512
        $region96: #{tpu_custom_call.1} parent=67 // pred_fallthru
          _
        // Predicated region
        $region97: #{tpu_custom_call.1} parent=67 // pred_check
          %p551 = pneg %p272
        $region98: #{tpu_custom_call.1} parent=67 // pred_check_branch
          %553 = sbr.rel (%p551) target = $region100
        $region99: #{tpu_custom_call.1} parent=67 // pred_region
          %554 = dma.done [#allocation19], 512
        $region100: #{tpu_custom_call.1} parent=67 // pred_fallthru
          _
        // Predicated region
        $region101: #{tpu_custom_call.1} parent=67 // pred_check
          %p555 = pneg %p293
        $region102: #{tpu_custom_call.1} parent=67 // pred_check_branch
          %557 = sbr.rel (%p555) target = $region104
        $region103: #{tpu_custom_call.1} parent=67 // pred_region
          %558 = dma.done [#allocation19], 512
        $region104: #{tpu_custom_call.1} parent=67 // pred_fallthru
          _
        %s559 = sand.u32 %s55, 1
        %s560 = scalar_lea.sflag [#allocation7], %s559
        %s561 = sand.u32 %s55, 1
        %s562 = smul.addr %s561, 8
        %s563 = scalar_lea.vmem [#allocation6], %s562
        %p564 = pneg %p68
        %p565 = pneg %p65
        %s566 = sand.u32 %s35, 1
        %s567 = scalar_lea.sflag [#allocation10], %s566
        %s568 = sand.u32 %s81, 1
        %s569 = smul.addr %s568, 16
        %s570 = scalar_lea.vmem [#allocation9], %s569
        %p571 = pneg %p94
        %p572 = pneg %p91
        %p573 = scmp.lt.s32.totalorder %s39, 1
        %s574 = scalar_select %p573, %s39, 1
        %s575 = scalar_lea.vmem %s2, %s574
        %p576 = pneg %p120
        %p577 = pneg %p117
        %p578 = scmp.lt.s32.totalorder %s39, 1
        %s579 = scalar_select %p578, %s39, 1
        %s580 = scalar_lea.vmem %s3, %s579
        %p581 = pneg %p146
        %p582 = pneg %p143
        %p583 = pneg %p167
        %p584 = pneg %p164
        %p585 = pneg %p188
        %p586 = pneg %p185
        %p587 = pneg %p209
        %p588 = pneg %p206
        %p589 = pneg %p230
        %p590 = pneg %p227
        %p591 = pneg %p251
        %p592 = pneg %p248
        %p593 = pneg %p272
        %p594 = pneg %p269
        %p595 = pneg %p293
        %p596 = pneg %p290
        %p597 = pneg %p314
        %p598 = pneg %p311
        %p599 = pneg %p342
        %p600 = pneg %p339
        %s601 = sand.u32 %s329, 1
        %s602 = scalar_lea.sflag [#allocation8], %s601
        %s603 = sand.u32 %s329, 1
        %s604 = smul.addr %s603, 8
        %s605 = scalar_lea.vmem [#allocation21], %s604
        %p606 = scmp.lt.s32.totalorder %s39, 1
        %s607 = scalar_select %p606, %s39, 1
        %s608 = scalar_lea.vmem %s2, %s607
        %p609 = scmp.lt.s32.totalorder %s39, 1
        %s610 = scalar_select %p609, %s39, 1
        %s611 = scalar_lea.vmem %s3, %s610
        %v612 = vld [vmem:[%s11] sm:$0xff]
        %v613 = vld [vmem:[%s11 + $0x8] sm:$0xff]
        %p614 = scmp.eq.s32.totalorder %s40, 0
        // Predicated region
        $region105: #{tpu_custom_call.1} parent=67 // pred_check
          %p615 = pneg %p614
        $region106: #{tpu_custom_call.1} parent=67 // pred_check_branch
          %617 = sbr.rel (%p615) target = $region108
        $region107: #{tpu_custom_call.1} parent=67 // pred_region
          %v618 = vld [vmem:[%s517] sm:$0xff]
          %vm619 = vcmask 261120
          %v620 = vsel %vm619, %v618, 0.0
          %621 = vadd.xlane.f32.xlu0 %v620
          %v622 = vpop.xlane.xlu0 %621
          %v623 = vrcp.pop 32.0
          %v624 = vmul.f32 %v622, %v623
          %v625 = vsub.f32 %v618, %v624
          %v626 = vmul.f32 %v625, %v625
          %v627 = vsel %vm619, %v626, 0.0
          %628 = vadd.xlane.f32.xlu0 %v627
          %v629 = vpop.xlane.xlu0 %628
          %v630 = vmul.f32 %v629, %v623
          %v631 = vadd.f32 %v630, 1e-05
          %v632 = vrsqrt.pop %v631
          %v633 = vmul.f32 %v625, %v632
          %v634 = vlaneseq
          %v635 = vshrl.u32 %v634, 7
          %v636 = vsub.s32 1, %v635
          %v637 = vrot.slane %v613, %v636
          %v638 = vmul.f32 %v633, %v637
          %v639 = vlaneseq
          %v640 = vshrl.u32 %v639, 7
          %v641 = vsub.s32 2, %v640
          %v642 = vrot.slane %v613, %v641
          %v643 = vadd.f32 %v638, %v642
          %v644 = vld [vmem:[#allocation12] sm:$0xff]
          %v645 = vld [vmem:[#allocation12 + $0x8] sm:$0xff]
          %v646 = vld [vmem:[#allocation12 + $0x10] sm:$0xff]
          %v647 = vld [vmem:[#allocation12 + $0x18] sm:$0xff]
          %v649 = vsel %vm619, %v643, 0
          %651 = vmatprep.subr.mxu0 0.0
          %652 = vmatpush1.msra.mxu0 0.0
          %653 = vmatprep.subr.mxu0 0.0
          %654 = vmatpush1.msra.mxu0 0.0
          %655 = vmatprep.subr.mxu0 0.0
          %656 = vmatpush1.msra.mxu0 0.0
          %657 = vmatprep.subr.mxu0 0.0
          %658 = vmatpush1.msra.mxu0 0.0
          %659 = vmatprep.subr.mxu0 0.0
          %660 = vmatpush1.msra.mxu0 0.0
          %661 = vmatprep.subr.mxu0 0.0
          %662 = vmatpush1.msra.mxu0 0.0
          %663 = vmatprep.subr.mxu0 0.0
          %664 = vmatpush1.msra.mxu0 0.0
          %665 = vmatprep.subr.mxu0 0.0
          %666 = vmatpush1.msra.mxu0 0.0
          %667 = vmatprep.subr.mxu0 0.0
          %668 = vmatpush1.msra.mxu0 0.0
          %669 = vmatprep.subr.mxu0 0.0
          %670 = vmatpush1.msra.mxu0 0.0
          %671 = vmatprep.subr.mxu0 0.0
          %672 = vmatpush1.msra.mxu0 0.0
          %673 = vmatprep.subr.mxu0 0.0
          %674 = vmatpush1.msra.mxu0 0.0
          %675 = vmatprep.subr.mxu0 0.0
          %676 = vmatpush1.msra.mxu0 %v647
          %677 = vmatprep.subr.mxu0 0.0
          %678 = vmatpush1.msra.mxu0 %v646
          %679 = vmatprep.subr.mxu0 0.0
          %680 = vmatpush1.msra.mxu0 %v645
          %681 = vmatprep.subr.mxu0 0.0
          %682 = vmatpush1.msra.mxu0 %v644
          %683 = vmatprep.subr.mxu0 0.0
          %684 = vmatpush2.msra.mxu0 0.0
          %685 = vmatprep.subr.mxu0 0.0
          %686 = vmatpush2.msra.mxu0 0.0
          %687 = vmatprep.subr.mxu0 0.0
          %688 = vmatpush2.msra.mxu0 0.0
          %689 = vmatprep.subr.mxu0 0.0
          %690 = vmatpush2.msra.mxu0 0.0
          %691 = vmatprep.subr.mxu0 0.0
          %692 = vmatpush2.msra.mxu0 0.0
          %693 = vmatprep.subr.mxu0 0.0
          %694 = vmatpush2.msra.mxu0 0.0
          %695 = vmatprep.subr.mxu0 0.0
          %696 = vmatpush2.msra.mxu0 0.0
          %697 = vmatprep.subr.mxu0 0.0
          %698 = vmatpush2.msra.mxu0 0.0
          %699 = vmatprep.subr.mxu0 0.0
          %700 = vmatpush2.msra.mxu0 0.0
          %701 = vmatprep.subr.mxu0 0.0
          %702 = vmatpush2.msra.mxu0 0.0
          %703 = vmatprep.subr.mxu0 0.0
          %704 = vmatpush2.msra.mxu0 0.0
          %705 = vmatprep.subr.mxu0 0.0
          %706 = vmatpush2.msra.mxu0 0.0
          %707 = vmatprep.subr.mxu0 0.0
          %708 = vmatpush2.msra.mxu0 0.0
          %709 = vmatprep.subr.mxu0 0.0
          %710 = vmatpush2.msra.mxu0 0.0
          %711 = vmatprep.subr.mxu0 0.0
          %712 = vmatpush2.msra.mxu0 0.0
          %713 = vmatprep.subr.mxu0 0.0
          %714 = vmatpush2.msra.mxu0 0.0
          %715 = vmatprep.mubr.f32.mxu0 0.0
          %716 = vmatmul.mubr.f32.gmra.mxu0 %v649
          %v717 = vpop.f32.mrf.mxu0
          %v718 = vadd.f32 0.0, %v717
          %v719 = vpop.f32.mrf.mxu0
          %720 = vdwg.mxu0
          %v721 = vlaneseq
          %v722 = vshrl.u32 %v721, 7
          %v723 = vsub.s32 1, %v722
          %v724 = vrot.slane %v612, %v723
          %v725 = vadd.f32 %v718, %v724
          %727 = vrot.lane.b32.xlu0 %v725, 120
          %v728 = vpop.permute.xlu0 %727
          %730 = vrot.lane.b32.xlu0 %v725, 112
          %v731 = vpop.permute.xlu0 %730
          %733 = vrot.lane.b32.xlu0 %v725, 104
          %v734 = vpop.permute.xlu0 %733
          %v736 = vcombine.low %v725, %v731
          %v737 = vcombine.high %v725, %v731
          %v739 = vunpack.c.l.s4 1983009808
          %v740 = vunpack.c.0.s8 %v739
          %v741 = vlaneseq
          %v742 = vshrl.u32 %v741, 7
          %v743 = vsub.s32 %v740, %v742
          %v744 = vrot.slane %v736, %v743
          %v746 = vunpack.c.l.s4 1983009808
          %v747 = vunpack.c.0.s8 %v746
          %v748 = vlaneseq
          %v749 = vshrl.u32 %v748, 7
          %v750 = vsub.s32 %v747, %v749
          %v751 = vrot.slane %v737, %v750
          %v752 = vcombine.low %v728, %v734
          %v753 = vcombine.high %v728, %v734
          %v755 = vunpack.c.l.s4 1983009808
          %v756 = vunpack.c.0.s8 %v755
          %v757 = vlaneseq
          %v758 = vshrl.u32 %v757, 7
          %v759 = vsub.s32 %v756, %v758
          %v760 = vrot.slane %v752, %v759
          %v762 = vunpack.c.l.s4 1983009808
          %v763 = vunpack.c.0.s8 %v762
          %v764 = vlaneseq
          %v765 = vshrl.u32 %v764, 7
          %v766 = vsub.s32 %v763, %v765
          %v767 = vrot.slane %v753, %v766
          %v768 = vcombine.low %v744, %v760
          %v769 = vcombine.high %v744, %v760
          %v771 = vunpack.c.l.s4 1934713408
          %v772 = vunpack.c.0.s8 %v771
          %v773 = vlaneseq
          %v774 = vshrl.u32 %v773, 7
          %v775 = vsub.s32 %v772, %v774
          %v776 = vrot.slane %v768, %v775
          %v778 = vunpack.c.l.s4 1934713408
          %v779 = vunpack.c.0.s8 %v778
          %v780 = vlaneseq
          %v781 = vshrl.u32 %v780, 7
          %v782 = vsub.s32 %v779, %v781
          %v783 = vrot.slane %v769, %v782
          %v784 = vcombine.low %v751, %v767
          %v785 = vcombine.high %v751, %v767
          %v787 = vunpack.c.l.s4 1934713408
          %v788 = vunpack.c.0.s8 %v787
          %v789 = vlaneseq
          %v790 = vshrl.u32 %v789, 7
          %v791 = vsub.s32 %v788, %v790
          %v792 = vrot.slane %v784, %v791
          %v794 = vunpack.c.l.s4 1934713408
          %v795 = vunpack.c.0.s8 %v794
          %v796 = vlaneseq
          %v797 = vshrl.u32 %v796, 7
          %v798 = vsub.s32 %v795, %v797
          %v799 = vrot.slane %v785, %v798
          %v800 = vcombine.high %v776, 0.0
          %v801 = vcombine.high %v783, 0.0
          %v802 = vcombine.high %v792, 0.0
          %v803 = vcombine.high %v799, 0.0
          %v804 = vcombine.low %v776, %v783
          %v806 = vunpack.c.l.s4 1983009808
          %v807 = vunpack.c.0.s8 %v806
          %v808 = vlaneseq
          %v809 = vshrl.u32 %v808, 7
          %v810 = vsub.s32 %v807, %v809
          %v811 = vrot.slane %v804, %v810
          %v812 = vcombine.low %v800, %v801
          %v814 = vunpack.c.l.s4 1983009808
          %v815 = vunpack.c.0.s8 %v814
          %v816 = vlaneseq
          %v817 = vshrl.u32 %v816, 7
          %v818 = vsub.s32 %v815, %v817
          %v819 = vrot.slane %v812, %v818
          %v820 = vcombine.low %v792, %v799
          %v822 = vunpack.c.l.s4 1983009808
          %v823 = vunpack.c.0.s8 %v822
          %v824 = vlaneseq
          %v825 = vshrl.u32 %v824, 7
          %v826 = vsub.s32 %v823, %v825
          %v827 = vrot.slane %v820, %v826
          %v828 = vcombine.low %v802, %v803
          %v830 = vunpack.c.l.s4 1983009808
          %v831 = vunpack.c.0.s8 %v830
          %v832 = vlaneseq
          %v833 = vshrl.u32 %v832, 7
          %v834 = vsub.s32 %v831, %v833
          %v835 = vrot.slane %v828, %v834
          %v836 = vcombine.low %v811, %v819
          %v837 = vcombine.high %v811, %v819
          %v839 = vunpack.c.l.s4 1934713408
          %v840 = vunpack.c.0.s8 %v839
          %v841 = vlaneseq
          %v842 = vshrl.u32 %v841, 7
          %v843 = vsub.s32 %v840, %v842
          %v844 = vrot.slane %v836, %v843
          %v846 = vunpack.c.l.s4 1934713408
          %v847 = vunpack.c.0.s8 %v846
          %v848 = vlaneseq
          %v849 = vshrl.u32 %v848, 7
          %v850 = vsub.s32 %v847, %v849
          %v851 = vrot.slane %v837, %v850
          %v852 = vcombine.low %v827, %v835
          %v853 = vcombine.high %v827, %v835
          %v855 = vunpack.c.l.s4 1934713408
          %v856 = vunpack.c.0.s8 %v855
          %v857 = vlaneseq
          %v858 = vshrl.u32 %v857, 7
          %v859 = vsub.s32 %v856, %v858
          %v860 = vrot.slane %v852, %v859
          %v862 = vunpack.c.l.s4 1934713408
          %v863 = vunpack.c.0.s8 %v862
          %v864 = vlaneseq
          %v865 = vshrl.u32 %v864, 7
          %v866 = vsub.s32 %v863, %v865
          %v867 = vrot.slane %v853, %v866
          %v868 = vcombine.low %v844, %v860
          %v869 = vcombine.high %v844, %v860
          %v870 = vcombine.low %v851, %v867
          %v871 = vcombine.high %v851, %v867
          %vm872 = vcmask 64512
          %873 = vst.msk [vmem:[#allocation2] sm:$0xff] %vm872, %v868
          %874 = vst.msk [vmem:[#allocation2 + $0x8] sm:$0xff] %vm872, %v869
          %875 = vst.msk [vmem:[#allocation2 + $0x10] sm:$0xff] %vm872, %v870
          %876 = vst.msk [vmem:[#allocation2 + $0x18] sm:$0xff] %vm872, %v871
          %v877 = vlaneseq
          %v878 = vshrl.u32 %v877, 7
          %v879 = vsub.s32 2, %v878
          %v880 = vrot.slane %v612, %v879
          %882 = vrot.lane.b32.xlu0 %v880, 32
          %v883 = vpop.permute.xlu0 %882
          %v885 = vadd.f32 %v718, %v883
          %887 = vrot.lane.b32.xlu0 %v885, 120
          %v888 = vpop.permute.xlu0 %887
          %889 = vrot.lane.b32.xlu0 %v885, 112
          %v890 = vpop.permute.xlu0 %889
          %891 = vrot.lane.b32.xlu0 %v885, 104
          %v892 = vpop.permute.xlu0 %891
          %893 = vrot.lane.b32.xlu0 %v885, 96
          %v894 = vpop.permute.xlu0 %893
          %895 = vrot.lane.b32.xlu0 %v888, 96
          %v896 = vpop.permute.xlu0 %895
          %897 = vrot.lane.b32.xlu0 %v890, 96
          %v898 = vpop.permute.xlu0 %897
          %899 = vrot.lane.b32.xlu0 %v892, 96
          %v900 = vpop.permute.xlu0 %899
          %v905 = vcombine.low %v894, %v898
          %v906 = vcombine.high %v894, %v898
          %v908 = vunpack.c.l.s4 1983009808
          %v909 = vunpack.c.0.s8 %v908
          %v910 = vlaneseq
          %v911 = vshrl.u32 %v910, 7
          %v912 = vsub.s32 %v909, %v911
          %v913 = vrot.slane %v905, %v912
          %v915 = vunpack.c.l.s4 1983009808
          %v916 = vunpack.c.0.s8 %v915
          %v917 = vlaneseq
          %v918 = vshrl.u32 %v917, 7
          %v919 = vsub.s32 %v916, %v918
          %v920 = vrot.slane %v906, %v919
          %v921 = vcombine.low %v896, %v900
          %v922 = vcombine.high %v896, %v900
          %v924 = vunpack.c.l.s4 1983009808
          %v925 = vunpack.c.0.s8 %v924
          %v926 = vlaneseq
          %v927 = vshrl.u32 %v926, 7
          %v928 = vsub.s32 %v925, %v927
          %v929 = vrot.slane %v921, %v928
          %v931 = vunpack.c.l.s4 1983009808
          %v932 = vunpack.c.0.s8 %v931
          %v933 = vlaneseq
          %v934 = vshrl.u32 %v933, 7
          %v935 = vsub.s32 %v932, %v934
          %v936 = vrot.slane %v922, %v935
          %v937 = vcombine.low %v913, %v929
          %v938 = vcombine.high %v913, %v929
          %v940 = vunpack.c.l.s4 1934713408
          %v941 = vunpack.c.0.s8 %v940
          %v942 = vlaneseq
          %v943 = vshrl.u32 %v942, 7
          %v944 = vsub.s32 %v941, %v943
          %v945 = vrot.slane %v937, %v944
          %v947 = vunpack.c.l.s4 1934713408
          %v948 = vunpack.c.0.s8 %v947
          %v949 = vlaneseq
          %v950 = vshrl.u32 %v949, 7
          %v951 = vsub.s32 %v948, %v950
          %v952 = vrot.slane %v938, %v951
          %v953 = vcombine.low %v920, %v936
          %v954 = vcombine.high %v920, %v936
          %v956 = vunpack.c.l.s4 1934713408
          %v957 = vunpack.c.0.s8 %v956
          %v958 = vlaneseq
          %v959 = vshrl.u32 %v958, 7
          %v960 = vsub.s32 %v957, %v959
          %v961 = vrot.slane %v953, %v960
          %v963 = vunpack.c.l.s4 1934713408
          %v964 = vunpack.c.0.s8 %v963
          %v965 = vlaneseq
          %v966 = vshrl.u32 %v965, 7
          %v967 = vsub.s32 %v964, %v966
          %v968 = vrot.slane %v954, %v967
          %v969 = vcombine.high %v945, 0.0
          %v970 = vcombine.high %v952, 0.0
          %v971 = vcombine.high %v961, 0.0
          %v972 = vcombine.high %v968, 0.0
          %v973 = vcombine.low %v945, %v952
          %v975 = vunpack.c.l.s4 1983009808
          %v976 = vunpack.c.0.s8 %v975
          %v977 = vlaneseq
          %v978 = vshrl.u32 %v977, 7
          %v979 = vsub.s32 %v976, %v978
          %v980 = vrot.slane %v973, %v979
          %v981 = vcombine.low %v969, %v970
          %v983 = vunpack.c.l.s4 1983009808
          %v984 = vunpack.c.0.s8 %v983
          %v985 = vlaneseq
          %v986 = vshrl.u32 %v985, 7
          %v987 = vsub.s32 %v984, %v986
          %v988 = vrot.slane %v981, %v987
          %v989 = vcombine.low %v961, %v968
          %v991 = vunpack.c.l.s4 1983009808
          %v992 = vunpack.c.0.s8 %v991
          %v993 = vlaneseq
          %v994 = vshrl.u32 %v993, 7
          %v995 = vsub.s32 %v992, %v994
          %v996 = vrot.slane %v989, %v995
          %v997 = vcombine.low %v971, %v972
          %v999 = vunpack.c.l.s4 1983009808
          %v1000 = vunpack.c.0.s8 %v999
          %v1001 = vlaneseq
          %v1002 = vshrl.u32 %v1001, 7
          %v1003 = vsub.s32 %v1000, %v1002
          %v1004 = vrot.slane %v997, %v1003
          %v1005 = vcombine.low %v980, %v988
          %v1006 = vcombine.high %v980, %v988
          %v1008 = vunpack.c.l.s4 1934713408
          %v1009 = vunpack.c.0.s8 %v1008
          %v1010 = vlaneseq
          %v1011 = vshrl.u32 %v1010, 7
          %v1012 = vsub.s32 %v1009, %v1011
          %v1013 = vrot.slane %v1005, %v1012
          %v1015 = vunpack.c.l.s4 1934713408
          %v1016 = vunpack.c.0.s8 %v1015
          %v1017 = vlaneseq
          %v1018 = vshrl.u32 %v1017, 7
          %v1019 = vsub.s32 %v1016, %v1018
          %v1020 = vrot.slane %v1006, %v1019
          %v1021 = vcombine.low %v996, %v1004
          %v1022 = vcombine.high %v996, %v1004
          %v1024 = vunpack.c.l.s4 1934713408
          %v1025 = vunpack.c.0.s8 %v1024
          %v1026 = vlaneseq
          %v1027 = vshrl.u32 %v1026, 7
          %v1028 = vsub.s32 %v1025, %v1027
          %v1029 = vrot.slane %v1021, %v1028
          %v1031 = vunpack.c.l.s4 1934713408
          %v1032 = vunpack.c.0.s8 %v1031
          %v1033 = vlaneseq
          %v1034 = vshrl.u32 %v1033, 7
          %v1035 = vsub.s32 %v1032, %v1034
          %v1036 = vrot.slane %v1022, %v1035
          %v1037 = vcombine.low %v1013, %v1029
          %v1038 = vcombine.high %v1013, %v1029
          %v1039 = vcombine.low %v1020, %v1036
          %v1040 = vcombine.high %v1020, %v1036
          %1041 = vst.msk [vmem:[#allocation3] sm:$0xff] %vm872, %v1037
          %1042 = vst.msk [vmem:[#allocation3 + $0x8] sm:$0xff] %vm872, %v1038
          %1043 = vst.msk [vmem:[#allocation3 + $0x10] sm:$0xff] %vm872, %v1039
          %1044 = vst.msk [vmem:[#allocation3 + $0x18] sm:$0xff] %vm872, %v1040
          %v1045 = vld [vmem:[%s526] sm:$0xff]
          %v1046 = vld [vmem:[%s526 + $0x8] sm:$0xff]
          %v1047 = vld [vmem:[#allocation17] sm:$0xff]
          %v1048 = vld [vmem:[#allocation17 + $0x8] sm:$0xff]
          %v1049 = vld [vmem:[#allocation17 + $0x10] sm:$0xff]
          %v1050 = vld [vmem:[#allocation17 + $0x18] sm:$0xff]
          %v1052 = vsel %vm619, %v1045, 0
          %v1055 = vsel %vm619, %v1046, 0
          %1057 = vmatprep.subr.mxu0 0.0
          %1058 = vmatpush1.msra.mxu0 0.0
          %1059 = vmatprep.subr.mxu0 0.0
          %1060 = vmatpush1.msra.mxu0 0.0
          %1061 = vmatprep.subr.mxu0 0.0
          %1062 = vmatpush1.msra.mxu0 0.0
          %1063 = vmatprep.subr.mxu0 0.0
          %1064 = vmatpush1.msra.mxu0 0.0
          %1065 = vmatprep.subr.mxu0 0.0
          %1066 = vmatpush1.msra.mxu0 0.0
          %1067 = vmatprep.subr.mxu0 0.0
          %1068 = vmatpush1.msra.mxu0 0.0
          %1069 = vmatprep.subr.mxu0 0.0
          %1070 = vmatpush1.msra.mxu0 0.0
          %1071 = vmatprep.subr.mxu0 0.0
          %1072 = vmatpush1.msra.mxu0 0.0
          %1073 = vmatprep.subr.mxu0 0.0
          %1074 = vmatpush1.msra.mxu0 0.0
          %1075 = vmatprep.subr.mxu0 0.0
          %1076 = vmatpush1.msra.mxu0 0.0
          %1077 = vmatprep.subr.mxu0 0.0
          %1078 = vmatpush1.msra.mxu0 0.0
          %1079 = vmatprep.subr.mxu0 0.0
          %1080 = vmatpush1.msra.mxu0 0.0
          %1081 = vmatprep.subr.mxu0 0.0
          %1082 = vmatpush1.msra.mxu0 %v1050
          %1083 = vmatprep.subr.mxu0 0.0
          %1084 = vmatpush1.msra.mxu0 %v1049
          %1085 = vmatprep.subr.mxu0 0.0
          %1086 = vmatpush1.msra.mxu0 %v1048
          %1087 = vmatprep.subr.mxu0 0.0
          %1088 = vmatpush1.msra.mxu0 %v1047
          %1089 = vmatprep.subr.mxu0 0.0
          %1090 = vmatpush2.msra.mxu0 0.0
          %1091 = vmatprep.subr.mxu0 0.0
          %1092 = vmatpush2.msra.mxu0 0.0
          %1093 = vmatprep.subr.mxu0 0.0
          %1094 = vmatpush2.msra.mxu0 0.0
          %1095 = vmatprep.subr.mxu0 0.0
          %1096 = vmatpush2.msra.mxu0 0.0
          %1097 = vmatprep.subr.mxu0 0.0
          %1098 = vmatpush2.msra.mxu0 0.0
          %1099 = vmatprep.subr.mxu0 0.0
          %1100 = vmatpush2.msra.mxu0 0.0
          %1101 = vmatprep.subr.mxu0 0.0
          %1102 = vmatpush2.msra.mxu0 0.0
          %1103 = vmatprep.subr.mxu0 0.0
          %1104 = vmatpush2.msra.mxu0 0.0
          %1105 = vmatprep.subr.mxu0 0.0
          %1106 = vmatpush2.msra.mxu0 0.0
          %1107 = vmatprep.subr.mxu0 0.0
          %1108 = vmatpush2.msra.mxu0 0.0
          %1109 = vmatprep.subr.mxu0 0.0
          %1110 = vmatpush2.msra.mxu0 0.0
          %1111 = vmatprep.subr.mxu0 0.0
          %1112 = vmatpush2.msra.mxu0 0.0
          %1113 = vmatprep.subr.mxu0 0.0
          %1114 = vmatpush2.msra.mxu0 0.0
          %1115 = vmatprep.subr.mxu0 0.0
          %1116 = vmatpush2.msra.mxu0 0.0
          %1117 = vmatprep.subr.mxu0 0.0
          %1118 = vmatpush2.msra.mxu0 0.0
          %1119 = vmatprep.subr.mxu0 0.0
          %1120 = vmatpush2.msra.mxu0 0.0
          %1121 = vmatprep.mubr.f32.mxu0 0.0
          %1122 = vmatmul.mubr.f32.gmra.mxu0 %v1052
          %v1123 = vpop.f32.mrf.mxu0
          %v1124 = vadd.f32 0.0, %v1123
          %v1125 = vpop.f32.mrf.mxu0
          %1126 = vmatprep.mubr.f32.mxu0 0.0
          %1127 = vmatmul.mubr.f32.gmra.mxu0 %v1055
          %v1128 = vpop.f32.mrf.mxu0
          %v1129 = vadd.f32 0.0, %v1128
          %v1130 = vpop.f32.mrf.mxu0
          %1131 = vdwg.mxu0
          %v1132 = vlaneseq
          %v1133 = vshrl.u32 %v1132, 7
          %v1134 = vsub.s32 5, %v1133
          %v1135 = vrot.slane %v612, %v1134
          %v1136 = vadd.f32 %v1124, %v1135
          %v1137 = vadd.f32 %v1129, %v1135
          %1140 = vrot.lane.b32.xlu0 %v1136, 120
          %v1141 = vpop.permute.xlu0 %1140
          %1142 = vrot.lane.b32.xlu0 %v1137, 120
          %v1143 = vpop.permute.xlu0 %1142
          %1146 = vrot.lane.b32.xlu0 %v1136, 112
          %v1147 = vpop.permute.xlu0 %1146
          %1148 = vrot.lane.b32.xlu0 %v1137, 112
          %v1149 = vpop.permute.xlu0 %1148
          %1152 = vrot.lane.b32.xlu0 %v1136, 104
          %v1153 = vpop.permute.xlu0 %1152
          %1154 = vrot.lane.b32.xlu0 %v1137, 104
          %v1155 = vpop.permute.xlu0 %1154
          %v1158 = vcombine.low %v1136, %v1147
          %v1159 = vcombine.high %v1136, %v1147
          %v1161 = vunpack.c.l.s4 1983009808
          %v1162 = vunpack.c.0.s8 %v1161
          %v1163 = vlaneseq
          %v1164 = vshrl.u32 %v1163, 7
          %v1165 = vsub.s32 %v1162, %v1164
          %v1166 = vrot.slane %v1158, %v1165
          %v1168 = vunpack.c.l.s4 1983009808
          %v1169 = vunpack.c.0.s8 %v1168
          %v1170 = vlaneseq
          %v1171 = vshrl.u32 %v1170, 7
          %v1172 = vsub.s32 %v1169, %v1171
          %v1173 = vrot.slane %v1159, %v1172
          %v1174 = vcombine.low %v1141, %v1153
          %v1175 = vcombine.high %v1141, %v1153
          %v1177 = vunpack.c.l.s4 1983009808
          %v1178 = vunpack.c.0.s8 %v1177
          %v1179 = vlaneseq
          %v1180 = vshrl.u32 %v1179, 7
          %v1181 = vsub.s32 %v1178, %v1180
          %v1182 = vrot.slane %v1174, %v1181
          %v1184 = vunpack.c.l.s4 1983009808
          %v1185 = vunpack.c.0.s8 %v1184
          %v1186 = vlaneseq
          %v1187 = vshrl.u32 %v1186, 7
          %v1188 = vsub.s32 %v1185, %v1187
          %v1189 = vrot.slane %v1175, %v1188
          %v1190 = vcombine.low %v1166, %v1182
          %v1191 = vcombine.high %v1166, %v1182
          %v1193 = vunpack.c.l.s4 1934713408
          %v1194 = vunpack.c.0.s8 %v1193
          %v1195 = vlaneseq
          %v1196 = vshrl.u32 %v1195, 7
          %v1197 = vsub.s32 %v1194, %v1196
          %v1198 = vrot.slane %v1190, %v1197
          %v1200 = vunpack.c.l.s4 1934713408
          %v1201 = vunpack.c.0.s8 %v1200
          %v1202 = vlaneseq
          %v1203 = vshrl.u32 %v1202, 7
          %v1204 = vsub.s32 %v1201, %v1203
          %v1205 = vrot.slane %v1191, %v1204
          %v1206 = vcombine.low %v1173, %v1189
          %v1207 = vcombine.high %v1173, %v1189
          %v1209 = vunpack.c.l.s4 1934713408
          %v1210 = vunpack.c.0.s8 %v1209
          %v1211 = vlaneseq
          %v1212 = vshrl.u32 %v1211, 7
          %v1213 = vsub.s32 %v1210, %v1212
          %v1214 = vrot.slane %v1206, %v1213
          %v1216 = vunpack.c.l.s4 1934713408
          %v1217 = vunpack.c.0.s8 %v1216
          %v1218 = vlaneseq
          %v1219 = vshrl.u32 %v1218, 7
          %v1220 = vsub.s32 %v1217, %v1219
          %v1221 = vrot.slane %v1207, %v1220
          %v1222 = vcombine.high %v1198, 0.0
          %v1223 = vcombine.high %v1205, 0.0
          %v1224 = vcombine.high %v1214, 0.0
          %v1225 = vcombine.high %v1221, 0.0
          %v1226 = vcombine.low %v1137, %v1149
          %v1227 = vcombine.high %v1137, %v1149
          %v1229 = vunpack.c.l.s4 1983009808
          %v1230 = vunpack.c.0.s8 %v1229
          %v1231 = vlaneseq
          %v1232 = vshrl.u32 %v1231, 7
          %v1233 = vsub.s32 %v1230, %v1232
          %v1234 = vrot.slane %v1226, %v1233
          %v1236 = vunpack.c.l.s4 1983009808
          %v1237 = vunpack.c.0.s8 %v1236
          %v1238 = vlaneseq
          %v1239 = vshrl.u32 %v1238, 7
          %v1240 = vsub.s32 %v1237, %v1239
          %v1241 = vrot.slane %v1227, %v1240
          %v1242 = vcombine.low %v1143, %v1155
          %v1243 = vcombine.high %v1143, %v1155
          %v1245 = vunpack.c.l.s4 1983009808
          %v1246 = vunpack.c.0.s8 %v1245
          %v1247 = vlaneseq
          %v1248 = vshrl.u32 %v1247, 7
          %v1249 = vsub.s32 %v1246, %v1248
          %v1250 = vrot.slane %v1242, %v1249
          %v1252 = vunpack.c.l.s4 1983009808
          %v1253 = vunpack.c.0.s8 %v1252
          %v1254 = vlaneseq
          %v1255 = vshrl.u32 %v1254, 7
          %v1256 = vsub.s32 %v1253, %v1255
          %v1257 = vrot.slane %v1243, %v1256
          %v1258 = vcombine.low %v1234, %v1250
          %v1259 = vcombine.high %v1234, %v1250
          %v1261 = vunpack.c.l.s4 1934713408
          %v1262 = vunpack.c.0.s8 %v1261
          %v1263 = vlaneseq
          %v1264 = vshrl.u32 %v1263, 7
          %v1265 = vsub.s32 %v1262, %v1264
          %v1266 = vrot.slane %v1258, %v1265
          %v1268 = vunpack.c.l.s4 1934713408
          %v1269 = vunpack.c.0.s8 %v1268
          %v1270 = vlaneseq
          %v1271 = vshrl.u32 %v1270, 7
          %v1272 = vsub.s32 %v1269, %v1271
          %v1273 = vrot.slane %v1259, %v1272
          %v1274 = vcombine.low %v1241, %v1257
          %v1275 = vcombine.high %v1241, %v1257
          %v1277 = vunpack.c.l.s4 1934713408
          %v1278 = vunpack.c.0.s8 %v1277
          %v1279 = vlaneseq
          %v1280 = vshrl.u32 %v1279, 7
          %v1281 = vsub.s32 %v1278, %v1280
          %v1282 = vrot.slane %v1274, %v1281
          %v1284 = vunpack.c.l.s4 1934713408
          %v1285 = vunpack.c.0.s8 %v1284
          %v1286 = vlaneseq
          %v1287 = vshrl.u32 %v1286, 7
          %v1288 = vsub.s32 %v1285, %v1287
          %v1289 = vrot.slane %v1275, %v1288
          %v1290 = vcombine.high %v1266, 0.0
          %v1291 = vcombine.high %v1273, 0.0
          %v1292 = vcombine.high %v1282, 0.0
          %v1293 = vcombine.high %v1289, 0.0
          %v1294 = vcombine.low %v1198, %v1205
          %v1296 = vunpack.c.l.s4 1983009808
          %v1297 = vunpack.c.0.s8 %v1296
          %v1298 = vlaneseq
          %v1299 = vshrl.u32 %v1298, 7
          %v1300 = vsub.s32 %v1297, %v1299
          %v1301 = vrot.slane %v1294, %v1300
          %v1302 = vcombine.low %v1222, %v1223
          %v1304 = vunpack.c.l.s4 1983009808
          %v1305 = vunpack.c.0.s8 %v1304
          %v1306 = vlaneseq
          %v1307 = vshrl.u32 %v1306, 7
          %v1308 = vsub.s32 %v1305, %v1307
          %v1309 = vrot.slane %v1302, %v1308
          %v1310 = vcombine.low %v1214, %v1221
          %v1312 = vunpack.c.l.s4 1983009808
          %v1313 = vunpack.c.0.s8 %v1312
          %v1314 = vlaneseq
          %v1315 = vshrl.u32 %v1314, 7
          %v1316 = vsub.s32 %v1313, %v1315
          %v1317 = vrot.slane %v1310, %v1316
          %v1318 = vcombine.low %v1224, %v1225
          %v1320 = vunpack.c.l.s4 1983009808
          %v1321 = vunpack.c.0.s8 %v1320
          %v1322 = vlaneseq
          %v1323 = vshrl.u32 %v1322, 7
          %v1324 = vsub.s32 %v1321, %v1323
          %v1325 = vrot.slane %v1318, %v1324
          %v1326 = vcombine.low %v1301, %v1309
          %v1327 = vcombine.high %v1301, %v1309
          %v1329 = vunpack.c.l.s4 1934713408
          %v1330 = vunpack.c.0.s8 %v1329
          %v1331 = vlaneseq
          %v1332 = vshrl.u32 %v1331, 7
          %v1333 = vsub.s32 %v1330, %v1332
          %v1334 = vrot.slane %v1326, %v1333
          %v1336 = vunpack.c.l.s4 1934713408
          %v1337 = vunpack.c.0.s8 %v1336
          %v1338 = vlaneseq
          %v1339 = vshrl.u32 %v1338, 7
          %v1340 = vsub.s32 %v1337, %v1339
          %v1341 = vrot.slane %v1327, %v1340
          %v1342 = vcombine.low %v1317, %v1325
          %v1343 = vcombine.high %v1317, %v1325
          %v1345 = vunpack.c.l.s4 1934713408
          %v1346 = vunpack.c.0.s8 %v1345
          %v1347 = vlaneseq
          %v1348 = vshrl.u32 %v1347, 7
          %v1349 = vsub.s32 %v1346, %v1348
          %v1350 = vrot.slane %v1342, %v1349
          %v1352 = vunpack.c.l.s4 1934713408
          %v1353 = vunpack.c.0.s8 %v1352
          %v1354 = vlaneseq
          %v1355 = vshrl.u32 %v1354, 7
          %v1356 = vsub.s32 %v1353, %v1355
          %v1357 = vrot.slane %v1343, %v1356
          %v1358 = vcombine.low %v1334, %v1350
          %v1359 = vcombine.high %v1334, %v1350
          %v1360 = vcombine.low %v1341, %v1357
          %v1361 = vcombine.high %v1341, %v1357
          %v1362 = vcombine.low %v1266, %v1273
          %v1364 = vunpack.c.l.s4 1983009808
          %v1365 = vunpack.c.0.s8 %v1364
          %v1366 = vlaneseq
          %v1367 = vshrl.u32 %v1366, 7
          %v1368 = vsub.s32 %v1365, %v1367
          %v1369 = vrot.slane %v1362, %v1368
          %v1370 = vcombine.low %v1290, %v1291
          %v1372 = vunpack.c.l.s4 1983009808
          %v1373 = vunpack.c.0.s8 %v1372
          %v1374 = vlaneseq
          %v1375 = vshrl.u32 %v1374, 7
          %v1376 = vsub.s32 %v1373, %v1375
          %v1377 = vrot.slane %v1370, %v1376
          %v1378 = vcombine.low %v1282, %v1289
          %v1380 = vunpack.c.l.s4 1983009808
          %v1381 = vunpack.c.0.s8 %v1380
          %v1382 = vlaneseq
          %v1383 = vshrl.u32 %v1382, 7
          %v1384 = vsub.s32 %v1381, %v1383
          %v1385 = vrot.slane %v1378, %v1384
          %v1386 = vcombine.low %v1292, %v1293
          %v1388 = vunpack.c.l.s4 1983009808
          %v1389 = vunpack.c.0.s8 %v1388
          %v1390 = vlaneseq
          %v1391 = vshrl.u32 %v1390, 7
          %v1392 = vsub.s32 %v1389, %v1391
          %v1393 = vrot.slane %v1386, %v1392
          %v1394 = vcombine.low %v1369, %v1377
          %v1395 = vcombine.high %v1369, %v1377
          %v1397 = vunpack.c.l.s4 1934713408
          %v1398 = vunpack.c.0.s8 %v1397
          %v1399 = vlaneseq
          %v1400 = vshrl.u32 %v1399, 7
          %v1401 = vsub.s32 %v1398, %v1400
          %v1402 = vrot.slane %v1394, %v1401
          %v1404 = vunpack.c.l.s4 1934713408
          %v1405 = vunpack.c.0.s8 %v1404
          %v1406 = vlaneseq
          %v1407 = vshrl.u32 %v1406, 7
          %v1408 = vsub.s32 %v1405, %v1407
          %v1409 = vrot.slane %v1395, %v1408
          %v1410 = vcombine.low %v1385, %v1393
          %v1411 = vcombine.high %v1385, %v1393
          %v1413 = vunpack.c.l.s4 1934713408
          %v1414 = vunpack.c.0.s8 %v1413
          %v1415 = vlaneseq
          %v1416 = vshrl.u32 %v1415, 7
          %v1417 = vsub.s32 %v1414, %v1416
          %v1418 = vrot.slane %v1410, %v1417
          %v1420 = vunpack.c.l.s4 1934713408
          %v1421 = vunpack.c.0.s8 %v1420
          %v1422 = vlaneseq
          %v1423 = vshrl.u32 %v1422, 7
          %v1424 = vsub.s32 %v1421, %v1423
          %v1425 = vrot.slane %v1411, %v1424
          %v1426 = vcombine.low %v1402, %v1418
          %v1427 = vcombine.high %v1402, %v1418
          %v1428 = vcombine.low %v1409, %v1425
          %v1429 = vcombine.high %v1409, %v1425
          %1430 = vst.msk [vmem:[#allocation4] sm:$0xff] %vm872, %v1358
          %1431 = vst.msk [vmem:[#allocation4 + $0x8] sm:$0xff] %vm872, %v1426
          %1432 = vst.msk [vmem:[#allocation4 + $0x10] sm:$0xff] %vm872, %v1359
          %1433 = vst.msk [vmem:[#allocation4 + $0x18] sm:$0xff] %vm872, %v1427
          %1434 = vst.msk [vmem:[#allocation4 + $0x20] sm:$0xff] %vm872, %v1360
          %1435 = vst.msk [vmem:[#allocation4 + $0x28] sm:$0xff] %vm872, %v1428
          %1436 = vst.msk [vmem:[#allocation4 + $0x30] sm:$0xff] %vm872, %v1361
          %1437 = vst.msk [vmem:[#allocation4 + $0x38] sm:$0xff] %vm872, %v1429
          %v1438 = vlaneseq
          %v1439 = vshrl.u32 %v1438, 7
          %v1440 = vsub.s32 6, %v1439
          %v1441 = vrot.slane %v612, %v1440
          %1443 = vrot.lane.b32.xlu0 %v1441, 32
          %v1444 = vpop.permute.xlu0 %1443
          %v1446 = vadd.f32 %v1124, %v1444
          %v1447 = vadd.f32 %v1129, %v1444
          %1450 = vrot.lane.b32.xlu0 %v1446, 120
          %v1451 = vpop.permute.xlu0 %1450
          %1452 = vrot.lane.b32.xlu0 %v1447, 120
          %v1453 = vpop.permute.xlu0 %1452
          %1454 = vrot.lane.b32.xlu0 %v1446, 112
          %v1455 = vpop.permute.xlu0 %1454
          %1456 = vrot.lane.b32.xlu0 %v1447, 112
          %v1457 = vpop.permute.xlu0 %1456
          %1458 = vrot.lane.b32.xlu0 %v1446, 104
          %v1459 = vpop.permute.xlu0 %1458
          %1460 = vrot.lane.b32.xlu0 %v1447, 104
          %v1461 = vpop.permute.xlu0 %1460
          %1462 = vrot.lane.b32.xlu0 %v1446, 96
          %v1463 = vpop.permute.xlu0 %1462
          %1464 = vrot.lane.b32.xlu0 %v1447, 96
          %v1465 = vpop.permute.xlu0 %1464
          %1466 = vrot.lane.b32.xlu0 %v1451, 96
          %v1467 = vpop.permute.xlu0 %1466
          %1468 = vrot.lane.b32.xlu0 %v1453, 96
          %v1469 = vpop.permute.xlu0 %1468
          %1470 = vrot.lane.b32.xlu0 %v1455, 96
          %v1471 = vpop.permute.xlu0 %1470
          %1472 = vrot.lane.b32.xlu0 %v1457, 96
          %v1473 = vpop.permute.xlu0 %1472
          %1474 = vrot.lane.b32.xlu0 %v1459, 96
          %v1475 = vpop.permute.xlu0 %1474
          %1476 = vrot.lane.b32.xlu0 %v1461, 96
          %v1477 = vpop.permute.xlu0 %1476
          %v1486 = vcombine.low %v1463, %v1471
          %v1487 = vcombine.high %v1463, %v1471
          %v1489 = vunpack.c.l.s4 1983009808
          %v1490 = vunpack.c.0.s8 %v1489
          %v1491 = vlaneseq
          %v1492 = vshrl.u32 %v1491, 7
          %v1493 = vsub.s32 %v1490, %v1492
          %v1494 = vrot.slane %v1486, %v1493
          %v1496 = vunpack.c.l.s4 1983009808
          %v1497 = vunpack.c.0.s8 %v1496
          %v1498 = vlaneseq
          %v1499 = vshrl.u32 %v1498, 7
          %v1500 = vsub.s32 %v1497, %v1499
          %v1501 = vrot.slane %v1487, %v1500
          %v1502 = vcombine.low %v1467, %v1475
          %v1503 = vcombine.high %v1467, %v1475
          %v1505 = vunpack.c.l.s4 1983009808
          %v1506 = vunpack.c.0.s8 %v1505
          %v1507 = vlaneseq
          %v1508 = vshrl.u32 %v1507, 7
          %v1509 = vsub.s32 %v1506, %v1508
          %v1510 = vrot.slane %v1502, %v1509
          %v1512 = vunpack.c.l.s4 1983009808
          %v1513 = vunpack.c.0.s8 %v1512
          %v1514 = vlaneseq
          %v1515 = vshrl.u32 %v1514, 7
          %v1516 = vsub.s32 %v1513, %v1515
          %v1517 = vrot.slane %v1503, %v1516
          %v1518 = vcombine.low %v1494, %v1510
          %v1519 = vcombine.high %v1494, %v1510
          %v1521 = vunpack.c.l.s4 1934713408
          %v1522 = vunpack.c.0.s8 %v1521
          %v1523 = vlaneseq
          %v1524 = vshrl.u32 %v1523, 7
          %v1525 = vsub.s32 %v1522, %v1524
          %v1526 = vrot.slane %v1518, %v1525
          %v1528 = vunpack.c.l.s4 1934713408
          %v1529 = vunpack.c.0.s8 %v1528
          %v1530 = vlaneseq
          %v1531 = vshrl.u32 %v1530, 7
          %v1532 = vsub.s32 %v1529, %v1531
          %v1533 = vrot.slane %v1519, %v1532
          %v1534 = vcombine.low %v1501, %v1517
          %v1535 = vcombine.high %v1501, %v1517
          %v1537 = vunpack.c.l.s4 1934713408
          %v1538 = vunpack.c.0.s8 %v1537
          %v1539 = vlaneseq
          %v1540 = vshrl.u32 %v1539, 7
          %v1541 = vsub.s32 %v1538, %v1540
          %v1542 = vrot.slane %v1534, %v1541
          %v1544 = vunpack.c.l.s4 1934713408
          %v1545 = vunpack.c.0.s8 %v1544
          %v1546 = vlaneseq
          %v1547 = vshrl.u32 %v1546, 7
          %v1548 = vsub.s32 %v1545, %v1547
          %v1549 = vrot.slane %v1535, %v1548
          %v1550 = vcombine.high %v1526, 0.0
          %v1551 = vcombine.high %v1533, 0.0
          %v1552 = vcombine.high %v1542, 0.0
          %v1553 = vcombine.high %v1549, 0.0
          %v1554 = vcombine.low %v1465, %v1473
          %v1555 = vcombine.high %v1465, %v1473
          %v1557 = vunpack.c.l.s4 1983009808
          %v1558 = vunpack.c.0.s8 %v1557
          %v1559 = vlaneseq
          %v1560 = vshrl.u32 %v1559, 7
          %v1561 = vsub.s32 %v1558, %v1560
          %v1562 = vrot.slane %v1554, %v1561
          %v1564 = vunpack.c.l.s4 1983009808
          %v1565 = vunpack.c.0.s8 %v1564
          %v1566 = vlaneseq
          %v1567 = vshrl.u32 %v1566, 7
          %v1568 = vsub.s32 %v1565, %v1567
          %v1569 = vrot.slane %v1555, %v1568
          %v1570 = vcombine.low %v1469, %v1477
          %v1571 = vcombine.high %v1469, %v1477
          %v1573 = vunpack.c.l.s4 1983009808
          %v1574 = vunpack.c.0.s8 %v1573
          %v1575 = vlaneseq
          %v1576 = vshrl.u32 %v1575, 7
          %v1577 = vsub.s32 %v1574, %v1576
          %v1578 = vrot.slane %v1570, %v1577
          %v1580 = vunpack.c.l.s4 1983009808
          %v1581 = vunpack.c.0.s8 %v1580
          %v1582 = vlaneseq
          %v1583 = vshrl.u32 %v1582, 7
          %v1584 = vsub.s32 %v1581, %v1583
          %v1585 = vrot.slane %v1571, %v1584
          %v1586 = vcombine.low %v1562, %v1578
          %v1587 = vcombine.high %v1562, %v1578
          %v1589 = vunpack.c.l.s4 1934713408
          %v1590 = vunpack.c.0.s8 %v1589
          %v1591 = vlaneseq
          %v1592 = vshrl.u32 %v1591, 7
          %v1593 = vsub.s32 %v1590, %v1592
          %v1594 = vrot.slane %v1586, %v1593
          %v1596 = vunpack.c.l.s4 1934713408
          %v1597 = vunpack.c.0.s8 %v1596
          %v1598 = vlaneseq
          %v1599 = vshrl.u32 %v1598, 7
          %v1600 = vsub.s32 %v1597, %v1599
          %v1601 = vrot.slane %v1587, %v1600
          %v1602 = vcombine.low %v1569, %v1585
          %v1603 = vcombine.high %v1569, %v1585
          %v1605 = vunpack.c.l.s4 1934713408
          %v1606 = vunpack.c.0.s8 %v1605
          %v1607 = vlaneseq
          %v1608 = vshrl.u32 %v1607, 7
          %v1609 = vsub.s32 %v1606, %v1608
          %v1610 = vrot.slane %v1602, %v1609
          %v1612 = vunpack.c.l.s4 1934713408
          %v1613 = vunpack.c.0.s8 %v1612
          %v1614 = vlaneseq
          %v1615 = vshrl.u32 %v1614, 7
          %v1616 = vsub.s32 %v1613, %v1615
          %v1617 = vrot.slane %v1603, %v1616
          %v1618 = vcombine.high %v1594, 0.0
          %v1619 = vcombine.high %v1601, 0.0
          %v1620 = vcombine.high %v1610, 0.0
          %v1621 = vcombine.high %v1617, 0.0
          %v1622 = vcombine.low %v1526, %v1533
          %v1624 = vunpack.c.l.s4 1983009808
          %v1625 = vunpack.c.0.s8 %v1624
          %v1626 = vlaneseq
          %v1627 = vshrl.u32 %v1626, 7
          %v1628 = vsub.s32 %v1625, %v1627
          %v1629 = vrot.slane %v1622, %v1628
          %v1630 = vcombine.low %v1550, %v1551
          %v1632 = vunpack.c.l.s4 1983009808
          %v1633 = vunpack.c.0.s8 %v1632
          %v1634 = vlaneseq
          %v1635 = vshrl.u32 %v1634, 7
          %v1636 = vsub.s32 %v1633, %v1635
          %v1637 = vrot.slane %v1630, %v1636
          %v1638 = vcombine.low %v1542, %v1549
          %v1640 = vunpack.c.l.s4 1983009808
          %v1641 = vunpack.c.0.s8 %v1640
          %v1642 = vlaneseq
          %v1643 = vshrl.u32 %v1642, 7
          %v1644 = vsub.s32 %v1641, %v1643
          %v1645 = vrot.slane %v1638, %v1644
          %v1646 = vcombine.low %v1552, %v1553
          %v1648 = vunpack.c.l.s4 1983009808
          %v1649 = vunpack.c.0.s8 %v1648
          %v1650 = vlaneseq
          %v1651 = vshrl.u32 %v1650, 7
          %v1652 = vsub.s32 %v1649, %v1651
          %v1653 = vrot.slane %v1646, %v1652
          %v1654 = vcombine.low %v1629, %v1637
          %v1655 = vcombine.high %v1629, %v1637
          %v1657 = vunpack.c.l.s4 1934713408
          %v1658 = vunpack.c.0.s8 %v1657
          %v1659 = vlaneseq
          %v1660 = vshrl.u32 %v1659, 7
          %v1661 = vsub.s32 %v1658, %v1660
          %v1662 = vrot.slane %v1654, %v1661
          %v1664 = vunpack.c.l.s4 1934713408
          %v1665 = vunpack.c.0.s8 %v1664
          %v1666 = vlaneseq
          %v1667 = vshrl.u32 %v1666, 7
          %v1668 = vsub.s32 %v1665, %v1667
          %v1669 = vrot.slane %v1655, %v1668
          %v1670 = vcombine.low %v1645, %v1653
          %v1671 = vcombine.high %v1645, %v1653
          %v1673 = vunpack.c.l.s4 1934713408
          %v1674 = vunpack.c.0.s8 %v1673
          %v1675 = vlaneseq
          %v1676 = vshrl.u32 %v1675, 7
          %v1677 = vsub.s32 %v1674, %v1676
          %v1678 = vrot.slane %v1670, %v1677
          %v1680 = vunpack.c.l.s4 1934713408
          %v1681 = vunpack.c.0.s8 %v1680
          %v1682 = vlaneseq
          %v1683 = vshrl.u32 %v1682, 7
          %v1684 = vsub.s32 %v1681, %v1683
          %v1685 = vrot.slane %v1671, %v1684
          %v1686 = vcombine.low %v1662, %v1678
          %v1687 = vcombine.high %v1662, %v1678
          %v1688 = vcombine.low %v1669, %v1685
          %v1689 = vcombine.high %v1669, %v1685
          %v1690 = vcombine.low %v1594, %v1601
          %v1692 = vunpack.c.l.s4 1983009808
          %v1693 = vunpack.c.0.s8 %v1692
          %v1694 = vlaneseq
          %v1695 = vshrl.u32 %v1694, 7
          %v1696 = vsub.s32 %v1693, %v1695
          %v1697 = vrot.slane %v1690, %v1696
          %v1698 = vcombine.low %v1618, %v1619
          %v1700 = vunpack.c.l.s4 1983009808
          %v1701 = vunpack.c.0.s8 %v1700
          %v1702 = vlaneseq
          %v1703 = vshrl.u32 %v1702, 7
          %v1704 = vsub.s32 %v1701, %v1703
          %v1705 = vrot.slane %v1698, %v1704
          %v1706 = vcombine.low %v1610, %v1617
          %v1708 = vunpack.c.l.s4 1983009808
          %v1709 = vunpack.c.0.s8 %v1708
          %v1710 = vlaneseq
          %v1711 = vshrl.u32 %v1710, 7
          %v1712 = vsub.s32 %v1709, %v1711
          %v1713 = vrot.slane %v1706, %v1712
          %v1714 = vcombine.low %v1620, %v1621
          %v1716 = vunpack.c.l.s4 1983009808
          %v1717 = vunpack.c.0.s8 %v1716
          %v1718 = vlaneseq
          %v1719 = vshrl.u32 %v1718, 7
          %v1720 = vsub.s32 %v1717, %v1719
          %v1721 = vrot.slane %v1714, %v1720
          %v1722 = vcombine.low %v1697, %v1705
          %v1723 = vcombine.high %v1697, %v1705
          %v1725 = vunpack.c.l.s4 1934713408
          %v1726 = vunpack.c.0.s8 %v1725
          %v1727 = vlaneseq
          %v1728 = vshrl.u32 %v1727, 7
          %v1729 = vsub.s32 %v1726, %v1728
          %v1730 = vrot.slane %v1722, %v1729
          %v1732 = vunpack.c.l.s4 1934713408
          %v1733 = vunpack.c.0.s8 %v1732
          %v1734 = vlaneseq
          %v1735 = vshrl.u32 %v1734, 7
          %v1736 = vsub.s32 %v1733, %v1735
          %v1737 = vrot.slane %v1723, %v1736
          %v1738 = vcombine.low %v1713, %v1721
          %v1739 = vcombine.high %v1713, %v1721
          %v1741 = vunpack.c.l.s4 1934713408
          %v1742 = vunpack.c.0.s8 %v1741
          %v1743 = vlaneseq
          %v1744 = vshrl.u32 %v1743, 7
          %v1745 = vsub.s32 %v1742, %v1744
          %v1746 = vrot.slane %v1738, %v1745
          %v1748 = vunpack.c.l.s4 1934713408
          %v1749 = vunpack.c.0.s8 %v1748
          %v1750 = vlaneseq
          %v1751 = vshrl.u32 %v1750, 7
          %v1752 = vsub.s32 %v1749, %v1751
          %v1753 = vrot.slane %v1739, %v1752
          %v1754 = vcombine.low %v1730, %v1746
          %v1755 = vcombine.high %v1730, %v1746
          %v1756 = vcombine.low %v1737, %v1753
          %v1757 = vcombine.high %v1737, %v1753
          %1758 = vst.msk [vmem:[#allocation5] sm:$0xff] %vm872, %v1686
          %1759 = vst.msk [vmem:[#allocation5 + $0x8] sm:$0xff] %vm872, %v1754
          %1760 = vst.msk [vmem:[#allocation5 + $0x10] sm:$0xff] %vm872, %v1687
          %1761 = vst.msk [vmem:[#allocation5 + $0x18] sm:$0xff] %vm872, %v1755
          %1762 = vst.msk [vmem:[#allocation5 + $0x20] sm:$0xff] %vm872, %v1688
          %1763 = vst.msk [vmem:[#allocation5 + $0x28] sm:$0xff] %vm872, %v1756
          %1764 = vst.msk [vmem:[#allocation5 + $0x30] sm:$0xff] %vm872, %v1689
          %1765 = vst.msk [vmem:[#allocation5 + $0x38] sm:$0xff] %vm872, %v1757
        $region108: #{tpu_custom_call.1} parent=67 // pred_fallthru
          _
        %s1766 = smul.u32 %s40, 8
        %s1767 = scalar_lea.vmem %s517, %s1766 [#allocation6]
        %v1768 = vld [vmem:[%s1767] sm:$0xff]
        %v1769 = vld [vmem:[%s608] sm:$0x1]
        %vm1770 = vcmp.ne.f32.partialorder %v1769, 0.0
        %v1771 = vld [vmem:[%s611] sm:$0x1]
        %vm1772 = vcmp.ne.f32.partialorder %v1771, 0.0
        %vm1773 = vcmask 261120
        %v1774 = vsel %vm1773, %v1768, 0.0
        %1775 = vadd.xlane.f32.xlu0 %v1774
        %v1776 = vpop.xlane.xlu0 %1775
        %v1777 = vrcp.pop 32.0
        %v1778 = vmul.f32 %v1776, %v1777
        %v1779 = vsub.f32 %v1768, %v1778
        %v1780 = vmul.f32 %v1779, %v1779
        %v1781 = vsel %vm1773, %v1780, 0.0
        %1782 = vadd.xlane.f32.xlu0 %v1781
        %v1783 = vpop.xlane.xlu0 %1782
        %v1784 = vmul.f32 %v1783, %v1777
        %v1785 = vadd.f32 %v1784, 1e-05
        %v1786 = vrsqrt.pop %v1785
        %v1787 = vmul.f32 %v1779, %v1786
        %v1788 = vlaneseq
        %v1789 = vshrl.u32 %v1788, 7
        %v1790 = vsub.s32 1, %v1789
        %v1791 = vrot.slane %v613, %v1790
        %v1792 = vmul.f32 %v1787, %v1791
        %v1793 = vlaneseq
        %v1794 = vshrl.u32 %v1793, 7
        %v1795 = vsub.s32 2, %v1794
        %v1796 = vrot.slane %v613, %v1795
        %v1797 = vadd.f32 %v1792, %v1796
        %v1798 = vld [vmem:[#allocation11] sm:$0xff]
        %v1799 = vld [vmem:[#allocation11 + $0x8] sm:$0xff]
        %v1800 = vld [vmem:[#allocation11 + $0x10] sm:$0xff]
        %v1801 = vld [vmem:[#allocation11 + $0x18] sm:$0xff]
        %v1802 = vlaneseq
        %v1803 = vshrl.u32 %v1802, 7
        %v1804 = vsub.s32 0, %v1803
        %v1805 = vrot.slane %v612, %v1804
        %v1807 = vsel %vm1773, %v1797, 0
        %1809 = vmatprep.subr.mxu0 0.0
        %1810 = vmatpush1.msra.mxu0 0.0
        %1811 = vmatprep.subr.mxu0 0.0
        %1812 = vmatpush1.msra.mxu0 0.0
        %1813 = vmatprep.subr.mxu0 0.0
        %1814 = vmatpush1.msra.mxu0 0.0
        %1815 = vmatprep.subr.mxu0 0.0
        %1816 = vmatpush1.msra.mxu0 0.0
        %1817 = vmatprep.subr.mxu0 0.0
        %1818 = vmatpush1.msra.mxu0 0.0
        %1819 = vmatprep.subr.mxu0 0.0
        %1820 = vmatpush1.msra.mxu0 0.0
        %1821 = vmatprep.subr.mxu0 0.0
        %1822 = vmatpush1.msra.mxu0 0.0
        %1823 = vmatprep.subr.mxu0 0.0
        %1824 = vmatpush1.msra.mxu0 0.0
        %1825 = vmatprep.subr.mxu0 0.0
        %1826 = vmatpush1.msra.mxu0 0.0
        %1827 = vmatprep.subr.mxu0 0.0
        %1828 = vmatpush1.msra.mxu0 0.0
        %1829 = vmatprep.subr.mxu0 0.0
        %1830 = vmatpush1.msra.mxu0 0.0
        %1831 = vmatprep.subr.mxu0 0.0
        %1832 = vmatpush1.msra.mxu0 0.0
        %1833 = vmatprep.subr.mxu0 0.0
        %1834 = vmatpush1.msra.mxu0 %v1801
        %1835 = vmatprep.subr.mxu0 0.0
        %1836 = vmatpush1.msra.mxu0 %v1800
        %1837 = vmatprep.subr.mxu0 0.0
        %1838 = vmatpush1.msra.mxu0 %v1799
        %1839 = vmatprep.subr.mxu0 0.0
        %1840 = vmatpush1.msra.mxu0 %v1798
        %1841 = vmatprep.subr.mxu0 0.0
        %1842 = vmatpush2.msra.mxu0 0.0
        %1843 = vmatprep.subr.mxu0 0.0
        %1844 = vmatpush2.msra.mxu0 0.0
        %1845 = vmatprep.subr.mxu0 0.0
        %1846 = vmatpush2.msra.mxu0 0.0
        %1847 = vmatprep.subr.mxu0 0.0
        %1848 = vmatpush2.msra.mxu0 0.0
        %1849 = vmatprep.subr.mxu0 0.0
        %1850 = vmatpush2.msra.mxu0 0.0
        %1851 = vmatprep.subr.mxu0 0.0
        %1852 = vmatpush2.msra.mxu0 0.0
        %1853 = vmatprep.subr.mxu0 0.0
        %1854 = vmatpush2.msra.mxu0 0.0
        %1855 = vmatprep.subr.mxu0 0.0
        %1856 = vmatpush2.msra.mxu0 0.0
        %1857 = vmatprep.subr.mxu0 0.0
        %1858 = vmatpush2.msra.mxu0 0.0
        %1859 = vmatprep.subr.mxu0 0.0
        %1860 = vmatpush2.msra.mxu0 0.0
        %1861 = vmatprep.subr.mxu0 0.0
        %1862 = vmatpush2.msra.mxu0 0.0
        %1863 = vmatprep.subr.mxu0 0.0
        %1864 = vmatpush2.msra.mxu0 0.0
        %1865 = vmatprep.subr.mxu0 0.0
        %1866 = vmatpush2.msra.mxu0 0.0
        %1867 = vmatprep.subr.mxu0 0.0
        %1868 = vmatpush2.msra.mxu0 0.0
        %1869 = vmatprep.subr.mxu0 0.0
        %1870 = vmatpush2.msra.mxu0 0.0
        %1871 = vmatprep.subr.mxu0 0.0
        %1872 = vmatpush2.msra.mxu0 0.0
        %1873 = vmatprep.mubr.f32.mxu0 0.0
        %1874 = vmatmul.mubr.f32.gmra.mxu0 %v1807
        %v1875 = vpop.f32.mrf.mxu0
        %v1876 = vadd.f32 %v1805, %v1875
        %v1877 = vpop.f32.mrf.mxu0
        %1878 = vdwg.mxu0
        %v1879 = vmul.f32 %v1876, 0.35355338
        %1881 = vrot.lane.b32.xlu0 %v1879, 120
        %v1882 = vpop.permute.xlu0 %1881
        %1884 = vrot.lane.b32.xlu0 %v1879, 112
        %v1885 = vpop.permute.xlu0 %1884
        %1887 = vrot.lane.b32.xlu0 %v1879, 104
        %v1888 = vpop.permute.xlu0 %1887
        %v1890 = vcombine.low %v1879, %v1885
        %v1891 = vcombine.high %v1879, %v1885
        %v1893 = vunpack.c.l.s4 1983009808
        %v1894 = vunpack.c.0.s8 %v1893
        %v1895 = vlaneseq
        %v1896 = vshrl.u32 %v1895, 7
        %v1897 = vsub.s32 %v1894, %v1896
        %v1898 = vrot.slane %v1890, %v1897
        %v1900 = vunpack.c.l.s4 1983009808
        %v1901 = vunpack.c.0.s8 %v1900
        %v1902 = vlaneseq
        %v1903 = vshrl.u32 %v1902, 7
        %v1904 = vsub.s32 %v1901, %v1903
        %v1905 = vrot.slane %v1891, %v1904
        %v1906 = vcombine.low %v1882, %v1888
        %v1907 = vcombine.high %v1882, %v1888
        %v1909 = vunpack.c.l.s4 1983009808
        %v1910 = vunpack.c.0.s8 %v1909
        %v1911 = vlaneseq
        %v1912 = vshrl.u32 %v1911, 7
        %v1913 = vsub.s32 %v1910, %v1912
        %v1914 = vrot.slane %v1906, %v1913
        %v1916 = vunpack.c.l.s4 1983009808
        %v1917 = vunpack.c.0.s8 %v1916
        %v1918 = vlaneseq
        %v1919 = vshrl.u32 %v1918, 7
        %v1920 = vsub.s32 %v1917, %v1919
        %v1921 = vrot.slane %v1907, %v1920
        %v1922 = vcombine.low %v1898, %v1914
        %v1923 = vcombine.high %v1898, %v1914
        %v1925 = vunpack.c.l.s4 1934713408
        %v1926 = vunpack.c.0.s8 %v1925
        %v1927 = vlaneseq
        %v1928 = vshrl.u32 %v1927, 7
        %v1929 = vsub.s32 %v1926, %v1928
        %v1930 = vrot.slane %v1922, %v1929
        %v1932 = vunpack.c.l.s4 1934713408
        %v1933 = vunpack.c.0.s8 %v1932
        %v1934 = vlaneseq
        %v1935 = vshrl.u32 %v1934, 7
        %v1936 = vsub.s32 %v1933, %v1935
        %v1937 = vrot.slane %v1923, %v1936
        %v1938 = vcombine.low %v1905, %v1921
        %v1939 = vcombine.high %v1905, %v1921
        %v1941 = vunpack.c.l.s4 1934713408
        %v1942 = vunpack.c.0.s8 %v1941
        %v1943 = vlaneseq
        %v1944 = vshrl.u32 %v1943, 7
        %v1945 = vsub.s32 %v1942, %v1944
        %v1946 = vrot.slane %v1938, %v1945
        %v1948 = vunpack.c.l.s4 1934713408
        %v1949 = vunpack.c.0.s8 %v1948
        %v1950 = vlaneseq
        %v1951 = vshrl.u32 %v1950, 7
        %v1952 = vsub.s32 %v1949, %v1951
        %v1953 = vrot.slane %v1939, %v1952
        %v1954 = vcombine.high %v1930, 0.0
        %v1955 = vcombine.high %v1937, 0.0
        %v1956 = vcombine.high %v1946, 0.0
        %v1957 = vcombine.high %v1953, 0.0
        %v1958 = vcombine.low %v1930, %v1937
        %v1960 = vunpack.c.l.s4 1983009808
        %v1961 = vunpack.c.0.s8 %v1960
        %v1962 = vlaneseq
        %v1963 = vshrl.u32 %v1962, 7
        %v1964 = vsub.s32 %v1961, %v1963
        %v1965 = vrot.slane %v1958, %v1964
        %v1966 = vcombine.low %v1954, %v1955
        %v1968 = vunpack.c.l.s4 1983009808
        %v1969 = vunpack.c.0.s8 %v1968
        %v1970 = vlaneseq
        %v1971 = vshrl.u32 %v1970, 7
        %v1972 = vsub.s32 %v1969, %v1971
        %v1973 = vrot.slane %v1966, %v1972
        %v1974 = vcombine.low %v1946, %v1953
        %v1976 = vunpack.c.l.s4 1983009808
        %v1977 = vunpack.c.0.s8 %v1976
        %v1978 = vlaneseq
        %v1979 = vshrl.u32 %v1978, 7
        %v1980 = vsub.s32 %v1977, %v1979
        %v1981 = vrot.slane %v1974, %v1980
        %v1982 = vcombine.low %v1956, %v1957
        %v1984 = vunpack.c.l.s4 1983009808
        %v1985 = vunpack.c.0.s8 %v1984
        %v1986 = vlaneseq
        %v1987 = vshrl.u32 %v1986, 7
        %v1988 = vsub.s32 %v1985, %v1987
        %v1989 = vrot.slane %v1982, %v1988
        %v1990 = vcombine.low %v1965, %v1973
        %v1991 = vcombine.high %v1965, %v1973
        %v1993 = vunpack.c.l.s4 1934713408
        %v1994 = vunpack.c.0.s8 %v1993
        %v1995 = vlaneseq
        %v1996 = vshrl.u32 %v1995, 7
        %v1997 = vsub.s32 %v1994, %v1996
        %v1998 = vrot.slane %v1990, %v1997
        %v2000 = vunpack.c.l.s4 1934713408
        %v2001 = vunpack.c.0.s8 %v2000
        %v2002 = vlaneseq
        %v2003 = vshrl.u32 %v2002, 7
        %v2004 = vsub.s32 %v2001, %v2003
        %v2005 = vrot.slane %v1991, %v2004
        %v2006 = vcombine.low %v1981, %v1989
        %v2007 = vcombine.high %v1981, %v1989
        %v2009 = vunpack.c.l.s4 1934713408
        %v2010 = vunpack.c.0.s8 %v2009
        %v2011 = vlaneseq
        %v2012 = vshrl.u32 %v2011, 7
        %v2013 = vsub.s32 %v2010, %v2012
        %v2014 = vrot.slane %v2006, %v2013
        %v2016 = vunpack.c.l.s4 1934713408
        %v2017 = vunpack.c.0.s8 %v2016
        %v2018 = vlaneseq
        %v2019 = vshrl.u32 %v2018, 7
        %v2020 = vsub.s32 %v2017, %v2019
        %v2021 = vrot.slane %v2007, %v2020
        %v2022 = vcombine.low %v1998, %v2014
        %v2023 = vcombine.high %v1998, %v2014
        %v2024 = vcombine.low %v2005, %v2021
        %v2025 = vcombine.high %v2005, %v2021
        %v2026 = vld [vmem:[#allocation2] sm:$0xff]
        %v2027 = vld [vmem:[#allocation2 + $0x8] sm:$0xff]
        %v2028 = vld [vmem:[#allocation2 + $0x10] sm:$0xff]
        %v2029 = vld [vmem:[#allocation2 + $0x18] sm:$0xff]
        %vm2030 = vcmask 64512
        %v2032 = vsel %vm2030, %v2022, 0
        %v2035 = vsel %vm2030, %v2026, 0
        %2037 = vmatprep.subr.mxu0 0.0
        %2038 = vmatpush1.xpose.msra.mxu0 0.0
        %2039 = vmatprep.subr.mxu0 0.0
        %2040 = vmatpush1.xpose.msra.mxu0 0.0
        %2041 = vmatprep.subr.mxu0 0.0
        %2042 = vmatpush1.xpose.msra.mxu0 0.0
        %2043 = vmatprep.subr.mxu0 0.0
        %2044 = vmatpush1.xpose.msra.mxu0 0.0
        %2045 = vmatprep.subr.mxu0 0.0
        %2046 = vmatpush1.xpose.msra.mxu0 0.0
        %2047 = vmatprep.subr.mxu0 0.0
        %2048 = vmatpush1.xpose.msra.mxu0 0.0
        %2049 = vmatprep.subr.mxu0 0.0
        %2050 = vmatpush1.xpose.msra.mxu0 0.0
        %2051 = vmatprep.subr.mxu0 0.0
        %2052 = vmatpush1.xpose.msra.mxu0 0.0
        %2053 = vmatprep.subr.mxu0 0.0
        %2054 = vmatpush1.xpose.msra.mxu0 0.0
        %2055 = vmatprep.subr.mxu0 0.0
        %2056 = vmatpush1.xpose.msra.mxu0 0.0
        %2057 = vmatprep.subr.mxu0 0.0
        %2058 = vmatpush1.xpose.msra.mxu0 0.0
        %2059 = vmatprep.subr.mxu0 0.0
        %2060 = vmatpush1.xpose.msra.mxu0 0.0
        %2061 = vmatprep.subr.mxu0 0.0
        %2062 = vmatpush1.xpose.msra.mxu0 0.0
        %2063 = vmatprep.subr.mxu0 0.0
        %2064 = vmatpush1.xpose.msra.mxu0 0.0
        %2065 = vmatprep.subr.mxu0 0.0
        %2066 = vmatpush1.xpose.msra.mxu0 0.0
        %2067 = vmatprep.subr.mxu0 0.0
        %2068 = vmatpush1.xpose.msra.mxu0 %v2035
        %2069 = vmatprep.subr.mxu0 0.0
        %2070 = vmatpush2.xpose.msra.mxu0 0.0
        %2071 = vmatprep.subr.mxu0 0.0
        %2072 = vmatpush2.xpose.msra.mxu0 0.0
        %2073 = vmatprep.subr.mxu0 0.0
        %2074 = vmatpush2.xpose.msra.mxu0 0.0
        %2075 = vmatprep.subr.mxu0 0.0
        %2076 = vmatpush2.xpose.msra.mxu0 0.0
        %2077 = vmatprep.subr.mxu0 0.0
        %2078 = vmatpush2.xpose.msra.mxu0 0.0
        %2079 = vmatprep.subr.mxu0 0.0
        %2080 = vmatpush2.xpose.msra.mxu0 0.0
        %2081 = vmatprep.subr.mxu0 0.0
        %2082 = vmatpush2.xpose.msra.mxu0 0.0
        %2083 = vmatprep.subr.mxu0 0.0
        %2084 = vmatpush2.xpose.msra.mxu0 0.0
        %2085 = vmatprep.subr.mxu0 0.0
        %2086 = vmatpush2.xpose.msra.mxu0 0.0
        %2087 = vmatprep.subr.mxu0 0.0
        %2088 = vmatpush2.xpose.msra.mxu0 0.0
        %2089 = vmatprep.subr.mxu0 0.0
        %2090 = vmatpush2.xpose.msra.mxu0 0.0
        %2091 = vmatprep.subr.mxu0 0.0
        %2092 = vmatpush2.xpose.msra.mxu0 0.0
        %2093 = vmatprep.subr.mxu0 0.0
        %2094 = vmatpush2.xpose.msra.mxu0 0.0
        %2095 = vmatprep.subr.mxu0 0.0
        %2096 = vmatpush2.xpose.msra.mxu0 0.0
        %2097 = vmatprep.subr.mxu0 0.0
        %2098 = vmatpush2.xpose.msra.mxu0 0.0
        %2099 = vmatprep.subr.mxu0 0.0
        %2100 = vmatpush2.xpose.msra.mxu0 0.0
        %2101 = vmatprep.mubr.f32.mxu0 0.0
        %2102 = vmatmul.mubr.f32.gmra.mxu0 %v2032
        %v2103 = vpop.f32.mrf.mxu0
        %v2104 = vadd.f32 0.0, %v2103
        %v2105 = vpop.f32.mrf.mxu0
        %2106 = vdwg.mxu0
        %v2108 = vsel %vm2030, %v2023, 0
        %v2111 = vsel %vm2030, %v2027, 0
        %2113 = vmatprep.subr.mxu0 0.0
        %2114 = vmatpush1.xpose.msra.mxu0 0.0
        %2115 = vmatprep.subr.mxu0 0.0
        %2116 = vmatpush1.xpose.msra.mxu0 0.0
        %2117 = vmatprep.subr.mxu0 0.0
        %2118 = vmatpush1.xpose.msra.mxu0 0.0
        %2119 = vmatprep.subr.mxu0 0.0
        %2120 = vmatpush1.xpose.msra.mxu0 0.0
        %2121 = vmatprep.subr.mxu0 0.0
        %2122 = vmatpush1.xpose.msra.mxu0 0.0
        %2123 = vmatprep.subr.mxu0 0.0
        %2124 = vmatpush1.xpose.msra.mxu0 0.0
        %2125 = vmatprep.subr.mxu0 0.0
        %2126 = vmatpush1.xpose.msra.mxu0 0.0
        %2127 = vmatprep.subr.mxu0 0.0
        %2128 = vmatpush1.xpose.msra.mxu0 0.0
        %2129 = vmatprep.subr.mxu0 0.0
        %2130 = vmatpush1.xpose.msra.mxu0 0.0
        %2131 = vmatprep.subr.mxu0 0.0
        %2132 = vmatpush1.xpose.msra.mxu0 0.0
        %2133 = vmatprep.subr.mxu0 0.0
        %2134 = vmatpush1.xpose.msra.mxu0 0.0
        %2135 = vmatprep.subr.mxu0 0.0
        %2136 = vmatpush1.xpose.msra.mxu0 0.0
        %2137 = vmatprep.subr.mxu0 0.0
        %2138 = vmatpush1.xpose.msra.mxu0 0.0
        %2139 = vmatprep.subr.mxu0 0.0
        %2140 = vmatpush1.xpose.msra.mxu0 0.0
        %2141 = vmatprep.subr.mxu0 0.0
        %2142 = vmatpush1.xpose.msra.mxu0 0.0
        %2143 = vmatprep.subr.mxu0 0.0
        %2144 = vmatpush1.xpose.msra.mxu0 %v2111
        %2145 = vmatprep.subr.mxu0 0.0
        %2146 = vmatpush2.xpose.msra.mxu0 0.0
        %2147 = vmatprep.subr.mxu0 0.0
        %2148 = vmatpush2.xpose.msra.mxu0 0.0
        %2149 = vmatprep.subr.mxu0 0.0
        %2150 = vmatpush2.xpose.msra.mxu0 0.0
        %2151 = vmatprep.subr.mxu0 0.0
        %2152 = vmatpush2.xpose.msra.mxu0 0.0
        %2153 = vmatprep.subr.mxu0 0.0
        %2154 = vmatpush2.xpose.msra.mxu0 0.0
        %2155 = vmatprep.subr.mxu0 0.0
        %2156 = vmatpush2.xpose.msra.mxu0 0.0
        %2157 = vmatprep.subr.mxu0 0.0
        %2158 = vmatpush2.xpose.msra.mxu0 0.0
        %2159 = vmatprep.subr.mxu0 0.0
        %2160 = vmatpush2.xpose.msra.mxu0 0.0
        %2161 = vmatprep.subr.mxu0 0.0
        %2162 = vmatpush2.xpose.msra.mxu0 0.0
        %2163 = vmatprep.subr.mxu0 0.0
        %2164 = vmatpush2.xpose.msra.mxu0 0.0
        %2165 = vmatprep.subr.mxu0 0.0
        %2166 = vmatpush2.xpose.msra.mxu0 0.0
        %2167 = vmatprep.subr.mxu0 0.0
        %2168 = vmatpush2.xpose.msra.mxu0 0.0
        %2169 = vmatprep.subr.mxu0 0.0
        %2170 = vmatpush2.xpose.msra.mxu0 0.0
        %2171 = vmatprep.subr.mxu0 0.0
        %2172 = vmatpush2.xpose.msra.mxu0 0.0
        %2173 = vmatprep.subr.mxu0 0.0
        %2174 = vmatpush2.xpose.msra.mxu0 0.0
        %2175 = vmatprep.subr.mxu0 0.0
        %2176 = vmatpush2.xpose.msra.mxu0 0.0
        %2177 = vmatprep.mubr.f32.mxu0 0.0
        %2178 = vmatmul.mubr.f32.gmra.mxu0 %v2108
        %v2179 = vpop.f32.mrf.mxu0
        %v2180 = vadd.f32 0.0, %v2179
        %v2181 = vpop.f32.mrf.mxu0
        %2182 = vdwg.mxu0
        %v2184 = vsel %vm2030, %v2024, 0
        %v2187 = vsel %vm2030, %v2028, 0
        %2189 = vmatprep.subr.mxu0 0.0
        %2190 = vmatpush1.xpose.msra.mxu0 0.0
        %2191 = vmatprep.subr.mxu0 0.0
        %2192 = vmatpush1.xpose.msra.mxu0 0.0
        %2193 = vmatprep.subr.mxu0 0.0
        %2194 = vmatpush1.xpose.msra.mxu0 0.0
        %2195 = vmatprep.subr.mxu0 0.0
        %2196 = vmatpush1.xpose.msra.mxu0 0.0
        %2197 = vmatprep.subr.mxu0 0.0
        %2198 = vmatpush1.xpose.msra.mxu0 0.0
        %2199 = vmatprep.subr.mxu0 0.0
        %2200 = vmatpush1.xpose.msra.mxu0 0.0
        %2201 = vmatprep.subr.mxu0 0.0
        %2202 = vmatpush1.xpose.msra.mxu0 0.0
        %2203 = vmatprep.subr.mxu0 0.0
        %2204 = vmatpush1.xpose.msra.mxu0 0.0
        %2205 = vmatprep.subr.mxu0 0.0
        %2206 = vmatpush1.xpose.msra.mxu0 0.0
        %2207 = vmatprep.subr.mxu0 0.0
        %2208 = vmatpush1.xpose.msra.mxu0 0.0
        %2209 = vmatprep.subr.mxu0 0.0
        %2210 = vmatpush1.xpose.msra.mxu0 0.0
        %2211 = vmatprep.subr.mxu0 0.0
        %2212 = vmatpush1.xpose.msra.mxu0 0.0
        %2213 = vmatprep.subr.mxu0 0.0
        %2214 = vmatpush1.xpose.msra.mxu0 0.0
        %2215 = vmatprep.subr.mxu0 0.0
        %2216 = vmatpush1.xpose.msra.mxu0 0.0
        %2217 = vmatprep.subr.mxu0 0.0
        %2218 = vmatpush1.xpose.msra.mxu0 0.0
        %2219 = vmatprep.subr.mxu0 0.0
        %2220 = vmatpush1.xpose.msra.mxu0 %v2187
        %2221 = vmatprep.subr.mxu0 0.0
        %2222 = vmatpush2.xpose.msra.mxu0 0.0
        %2223 = vmatprep.subr.mxu0 0.0
        %2224 = vmatpush2.xpose.msra.mxu0 0.0
        %2225 = vmatprep.subr.mxu0 0.0
        %2226 = vmatpush2.xpose.msra.mxu0 0.0
        %2227 = vmatprep.subr.mxu0 0.0
        %2228 = vmatpush2.xpose.msra.mxu0 0.0
        %2229 = vmatprep.subr.mxu0 0.0
        %2230 = vmatpush2.xpose.msra.mxu0 0.0
        %2231 = vmatprep.subr.mxu0 0.0
        %2232 = vmatpush2.xpose.msra.mxu0 0.0
        %2233 = vmatprep.subr.mxu0 0.0
        %2234 = vmatpush2.xpose.msra.mxu0 0.0
        %2235 = vmatprep.subr.mxu0 0.0
        %2236 = vmatpush2.xpose.msra.mxu0 0.0
        %2237 = vmatprep.subr.mxu0 0.0
        %2238 = vmatpush2.xpose.msra.mxu0 0.0
        %2239 = vmatprep.subr.mxu0 0.0
        %2240 = vmatpush2.xpose.msra.mxu0 0.0
        %2241 = vmatprep.subr.mxu0 0.0
        %2242 = vmatpush2.xpose.msra.mxu0 0.0
        %2243 = vmatprep.subr.mxu0 0.0
        %2244 = vmatpush2.xpose.msra.mxu0 0.0
        %2245 = vmatprep.subr.mxu0 0.0
        %2246 = vmatpush2.xpose.msra.mxu0 0.0
        %2247 = vmatprep.subr.mxu0 0.0
        %2248 = vmatpush2.xpose.msra.mxu0 0.0
        %2249 = vmatprep.subr.mxu0 0.0
        %2250 = vmatpush2.xpose.msra.mxu0 0.0
        %2251 = vmatprep.subr.mxu0 0.0
        %2252 = vmatpush2.xpose.msra.mxu0 0.0
        %2253 = vmatprep.mubr.f32.mxu0 0.0
        %2254 = vmatmul.mubr.f32.gmra.mxu0 %v2184
        %v2255 = vpop.f32.mrf.mxu0
        %v2256 = vadd.f32 0.0, %v2255
        %v2257 = vpop.f32.mrf.mxu0
        %2258 = vdwg.mxu0
        %v2260 = vsel %vm2030, %v2025, 0
        %v2263 = vsel %vm2030, %v2029, 0
        %2265 = vmatprep.subr.mxu0 0.0
        %2266 = vmatpush1.xpose.msra.mxu0 0.0
        %2267 = vmatprep.subr.mxu0 0.0
        %2268 = vmatpush1.xpose.msra.mxu0 0.0
        %2269 = vmatprep.subr.mxu0 0.0
        %2270 = vmatpush1.xpose.msra.mxu0 0.0
        %2271 = vmatprep.subr.mxu0 0.0
        %2272 = vmatpush1.xpose.msra.mxu0 0.0
        %2273 = vmatprep.subr.mxu0 0.0
        %2274 = vmatpush1.xpose.msra.mxu0 0.0
        %2275 = vmatprep.subr.mxu0 0.0
        %2276 = vmatpush1.xpose.msra.mxu0 0.0
        %2277 = vmatprep.subr.mxu0 0.0
        %2278 = vmatpush1.xpose.msra.mxu0 0.0
        %2279 = vmatprep.subr.mxu0 0.0
        %2280 = vmatpush1.xpose.msra.mxu0 0.0
        %2281 = vmatprep.subr.mxu0 0.0
        %2282 = vmatpush1.xpose.msra.mxu0 0.0
        %2283 = vmatprep.subr.mxu0 0.0
        %2284 = vmatpush1.xpose.msra.mxu0 0.0
        %2285 = vmatprep.subr.mxu0 0.0
        %2286 = vmatpush1.xpose.msra.mxu0 0.0
        %2287 = vmatprep.subr.mxu0 0.0
        %2288 = vmatpush1.xpose.msra.mxu0 0.0
        %2289 = vmatprep.subr.mxu0 0.0
        %2290 = vmatpush1.xpose.msra.mxu0 0.0
        %2291 = vmatprep.subr.mxu0 0.0
        %2292 = vmatpush1.xpose.msra.mxu0 0.0
        %2293 = vmatprep.subr.mxu0 0.0
        %2294 = vmatpush1.xpose.msra.mxu0 0.0
        %2295 = vmatprep.subr.mxu0 0.0
        %2296 = vmatpush1.xpose.msra.mxu0 %v2263
        %2297 = vmatprep.subr.mxu0 0.0
        %2298 = vmatpush2.xpose.msra.mxu0 0.0
        %2299 = vmatprep.subr.mxu0 0.0
        %2300 = vmatpush2.xpose.msra.mxu0 0.0
        %2301 = vmatprep.subr.mxu0 0.0
        %2302 = vmatpush2.xpose.msra.mxu0 0.0
        %2303 = vmatprep.subr.mxu0 0.0
        %2304 = vmatpush2.xpose.msra.mxu0 0.0
        %2305 = vmatprep.subr.mxu0 0.0
        %2306 = vmatpush2.xpose.msra.mxu0 0.0
        %2307 = vmatprep.subr.mxu0 0.0
        %2308 = vmatpush2.xpose.msra.mxu0 0.0
        %2309 = vmatprep.subr.mxu0 0.0
        %2310 = vmatpush2.xpose.msra.mxu0 0.0
        %2311 = vmatprep.subr.mxu0 0.0
        %2312 = vmatpush2.xpose.msra.mxu0 0.0
        %2313 = vmatprep.subr.mxu0 0.0
        %2314 = vmatpush2.xpose.msra.mxu0 0.0
        %2315 = vmatprep.subr.mxu0 0.0
        %2316 = vmatpush2.xpose.msra.mxu0 0.0
        %2317 = vmatprep.subr.mxu0 0.0
        %2318 = vmatpush2.xpose.msra.mxu0 0.0
        %2319 = vmatprep.subr.mxu0 0.0
        %2320 = vmatpush2.xpose.msra.mxu0 0.0
        %2321 = vmatprep.subr.mxu0 0.0
        %2322 = vmatpush2.xpose.msra.mxu0 0.0
        %2323 = vmatprep.subr.mxu0 0.0
        %2324 = vmatpush2.xpose.msra.mxu0 0.0
        %2325 = vmatprep.subr.mxu0 0.0
        %2326 = vmatpush2.xpose.msra.mxu0 0.0
        %2327 = vmatprep.subr.mxu0 0.0
        %2328 = vmatpush2.xpose.msra.mxu0 0.0
        %2329 = vmatprep.mubr.f32.mxu0 0.0
        %2330 = vmatmul.mubr.f32.gmra.mxu0 %v2260
        %v2331 = vpop.f32.mrf.mxu0
        %v2332 = vadd.f32 0.0, %v2331
        %v2333 = vpop.f32.mrf.mxu0
        %2334 = vdwg.mxu0
        %v2335 = vlaneseq
        %v2336 = vshrl.u32 %v2335, 7
        %v2337 = vstv %s1766
        %v2338 = vadd.s32 %v2337, %v2336
        %v2339 = vlaneseq
        %v2340 = vand.u32 %v2339, 127
        %vm2341 = vcmp.le.s32.totalorder %v2340, %v2338
        %v2342 = vsel %vm1770, 1, 0
        %v2343 = vlaneseq
        %v2344 = vshrl.u32 %v2343, 7
        %v2345 = vsub.s32 0, %v2344
        %v2346 = vrot.slane %v2342, %v2345
        %vm2347 = vcmp.eq.s32.totalorder %v2346, 1
        %vm2348 = vmand %vm2347, %vm2341
        %v2349 = vsel %vm2348, 1, 0
        %vm2350 = vcmp.eq.s32.totalorder %v2349, 1
        %v2351 = vsel %vm2350, %v2104, -1e+09
        %v2352 = vsel %vm2350, %v2180, -1e+09
        %v2353 = vsel %vm2350, %v2256, -1e+09
        %v2354 = vsel %vm2350, %v2332, -1e+09
        %v2355 = vsel %vm2030, %v2351, -inf
        %2356 = vmax.xlane.f32.xlu0 %v2355
        %v2357 = vpop.xlane.xlu0 %2356
        %v2358 = vsel %vm2030, %v2352, -inf
        %2359 = vmax.xlane.f32.xlu0 %v2358
        %v2360 = vpop.xlane.xlu0 %2359
        %v2361 = vsel %vm2030, %v2353, -inf
        %2362 = vmax.xlane.f32.xlu0 %v2361
        %v2363 = vpop.xlane.xlu0 %2362
        %v2364 = vsel %vm2030, %v2354, -inf
        %2365 = vmax.xlane.f32.xlu0 %v2364
        %v2366 = vpop.xlane.xlu0 %2365
        %v2367 = vsub.f32 %v2351, %v2357
        %v2368 = vsub.f32 %v2352, %v2360
        %v2369 = vsub.f32 %v2353, %v2363
        %v2370 = vsub.f32 %v2354, %v2366
        %v2371 = vmul.f32 %v2367, 1.442695
        %v2372 = vpow.pop %v2371
        %v2373 = vmul.f32 %v2368, 1.442695
        %v2374 = vpow.pop %v2373
        %v2375 = vmul.f32 %v2369, 1.442695
        %v2376 = vpow.pop %v2375
        %v2377 = vmul.f32 %v2370, 1.442695
        %v2378 = vpow.pop %v2377
        %v2379 = vsel %vm2030, %v2372, 0.0
        %2380 = vadd.xlane.f32.xlu0 %v2379
        %v2381 = vpop.xlane.xlu0 %2380
        %v2382 = vsel %vm2030, %v2374, 0.0
        %2383 = vadd.xlane.f32.xlu0 %v2382
        %v2384 = vpop.xlane.xlu0 %2383
        %v2385 = vsel %vm2030, %v2376, 0.0
        %2386 = vadd.xlane.f32.xlu0 %v2385
        %v2387 = vpop.xlane.xlu0 %2386
        %v2388 = vsel %vm2030, %v2378, 0.0
        %2389 = vadd.xlane.f32.xlu0 %v2388
        %v2390 = vpop.xlane.xlu0 %2389
        %v2391 = vld [vmem:[#allocation3] sm:$0xff]
        %v2392 = vld [vmem:[#allocation3 + $0x8] sm:$0xff]
        %v2393 = vld [vmem:[#allocation3 + $0x10] sm:$0xff]
        %v2394 = vld [vmem:[#allocation3 + $0x18] sm:$0xff]
        %v2396 = vsel %vm2030, %v2372, 0
        %2398 = vmatprep.subr.mxu0 0.0
        %2399 = vmatpush1.msra.mxu0 0.0
        %2400 = vmatprep.subr.mxu0 0.0
        %2401 = vmatpush1.msra.mxu0 0.0
        %2402 = vmatprep.subr.mxu0 0.0
        %2403 = vmatpush1.msra.mxu0 0.0
        %2404 = vmatprep.subr.mxu0 0.0
        %2405 = vmatpush1.msra.mxu0 0.0
        %2406 = vmatprep.subr.mxu0 0.0
        %2407 = vmatpush1.msra.mxu0 0.0
        %2408 = vmatprep.subr.mxu0 0.0
        %2409 = vmatpush1.msra.mxu0 0.0
        %2410 = vmatprep.subr.mxu0 0.0
        %2411 = vmatpush1.msra.mxu0 0.0
        %2412 = vmatprep.subr.mxu0 0.0
        %2413 = vmatpush1.msra.mxu0 0.0
        %2414 = vmatprep.subr.mxu0 0.0
        %2415 = vmatpush1.msra.mxu0 0.0
        %2416 = vmatprep.subr.mxu0 0.0
        %2417 = vmatpush1.msra.mxu0 0.0
        %2418 = vmatprep.subr.mxu0 0.0
        %2419 = vmatpush1.msra.mxu0 0.0
        %2420 = vmatprep.subr.mxu0 0.0
        %2421 = vmatpush1.msra.mxu0 0.0
        %2422 = vmatprep.subr.mxu0 0.0
        %2423 = vmatpush1.msra.mxu0 0.0
        %2424 = vmatprep.subr.mxu0 0.0
        %2425 = vmatpush1.msra.mxu0 0.0
        %2426 = vmatprep.subr.mxu0 0.0
        %2427 = vmatpush1.msra.mxu0 0.0
        %2428 = vmatprep.subr.mxu0 0.0
        %2429 = vmatpush1.msra.mxu0 %v2391
        %2430 = vmatprep.subr.mxu0 0.0
        %2431 = vmatpush2.msra.mxu0 0.0
        %2432 = vmatprep.subr.mxu0 0.0
        %2433 = vmatpush2.msra.mxu0 0.0
        %2434 = vmatprep.subr.mxu0 0.0
        %2435 = vmatpush2.msra.mxu0 0.0
        %2436 = vmatprep.subr.mxu0 0.0
        %2437 = vmatpush2.msra.mxu0 0.0
        %2438 = vmatprep.subr.mxu0 0.0
        %2439 = vmatpush2.msra.mxu0 0.0
        %2440 = vmatprep.subr.mxu0 0.0
        %2441 = vmatpush2.msra.mxu0 0.0
        %2442 = vmatprep.subr.mxu0 0.0
        %2443 = vmatpush2.msra.mxu0 0.0
        %2444 = vmatprep.subr.mxu0 0.0
        %2445 = vmatpush2.msra.mxu0 0.0
        %2446 = vmatprep.subr.mxu0 0.0
        %2447 = vmatpush2.msra.mxu0 0.0
        %2448 = vmatprep.subr.mxu0 0.0
        %2449 = vmatpush2.msra.mxu0 0.0
        %2450 = vmatprep.subr.mxu0 0.0
        %2451 = vmatpush2.msra.mxu0 0.0
        %2452 = vmatprep.subr.mxu0 0.0
        %2453 = vmatpush2.msra.mxu0 0.0
        %2454 = vmatprep.subr.mxu0 0.0
        %2455 = vmatpush2.msra.mxu0 0.0
        %2456 = vmatprep.subr.mxu0 0.0
        %2457 = vmatpush2.msra.mxu0 0.0
        %2458 = vmatprep.subr.mxu0 0.0
        %2459 = vmatpush2.msra.mxu0 0.0
        %2460 = vmatprep.subr.mxu0 0.0
        %2461 = vmatpush2.msra.mxu0 0.0
        %2462 = vmatprep.mubr.f32.mxu0 0.0
        %2463 = vmatmul.mubr.f32.gmra.mxu0 %v2396
        %v2464 = vpop.f32.mrf.mxu0
        %v2465 = vadd.f32 0.0, %v2464
        %v2466 = vpop.f32.mrf.mxu0
        %2467 = vdwg.mxu0
        %v2469 = vsel %vm2030, %v2374, 0
        %2471 = vmatprep.subr.mxu0 0.0
        %2472 = vmatpush1.msra.mxu0 0.0
        %2473 = vmatprep.subr.mxu0 0.0
        %2474 = vmatpush1.msra.mxu0 0.0
        %2475 = vmatprep.subr.mxu0 0.0
        %2476 = vmatpush1.msra.mxu0 0.0
        %2477 = vmatprep.subr.mxu0 0.0
        %2478 = vmatpush1.msra.mxu0 0.0
        %2479 = vmatprep.subr.mxu0 0.0
        %2480 = vmatpush1.msra.mxu0 0.0
        %2481 = vmatprep.subr.mxu0 0.0
        %2482 = vmatpush1.msra.mxu0 0.0
        %2483 = vmatprep.subr.mxu0 0.0
        %2484 = vmatpush1.msra.mxu0 0.0
        %2485 = vmatprep.subr.mxu0 0.0
        %2486 = vmatpush1.msra.mxu0 0.0
        %2487 = vmatprep.subr.mxu0 0.0
        %2488 = vmatpush1.msra.mxu0 0.0
        %2489 = vmatprep.subr.mxu0 0.0
        %2490 = vmatpush1.msra.mxu0 0.0
        %2491 = vmatprep.subr.mxu0 0.0
        %2492 = vmatpush1.msra.mxu0 0.0
        %2493 = vmatprep.subr.mxu0 0.0
        %2494 = vmatpush1.msra.mxu0 0.0
        %2495 = vmatprep.subr.mxu0 0.0
        %2496 = vmatpush1.msra.mxu0 0.0
        %2497 = vmatprep.subr.mxu0 0.0
        %2498 = vmatpush1.msra.mxu0 0.0
        %2499 = vmatprep.subr.mxu0 0.0
        %2500 = vmatpush1.msra.mxu0 0.0
        %2501 = vmatprep.subr.mxu0 0.0
        %2502 = vmatpush1.msra.mxu0 %v2392
        %2503 = vmatprep.subr.mxu0 0.0
        %2504 = vmatpush2.msra.mxu0 0.0
        %2505 = vmatprep.subr.mxu0 0.0
        %2506 = vmatpush2.msra.mxu0 0.0
        %2507 = vmatprep.subr.mxu0 0.0
        %2508 = vmatpush2.msra.mxu0 0.0
        %2509 = vmatprep.subr.mxu0 0.0
        %2510 = vmatpush2.msra.mxu0 0.0
        %2511 = vmatprep.subr.mxu0 0.0
        %2512 = vmatpush2.msra.mxu0 0.0
        %2513 = vmatprep.subr.mxu0 0.0
        %2514 = vmatpush2.msra.mxu0 0.0
        %2515 = vmatprep.subr.mxu0 0.0
        %2516 = vmatpush2.msra.mxu0 0.0
        %2517 = vmatprep.subr.mxu0 0.0
        %2518 = vmatpush2.msra.mxu0 0.0
        %2519 = vmatprep.subr.mxu0 0.0
        %2520 = vmatpush2.msra.mxu0 0.0
        %2521 = vmatprep.subr.mxu0 0.0
        %2522 = vmatpush2.msra.mxu0 0.0
        %2523 = vmatprep.subr.mxu0 0.0
        %2524 = vmatpush2.msra.mxu0 0.0
        %2525 = vmatprep.subr.mxu0 0.0
        %2526 = vmatpush2.msra.mxu0 0.0
        %2527 = vmatprep.subr.mxu0 0.0
        %2528 = vmatpush2.msra.mxu0 0.0
        %2529 = vmatprep.subr.mxu0 0.0
        %2530 = vmatpush2.msra.mxu0 0.0
        %2531 = vmatprep.subr.mxu0 0.0
        %2532 = vmatpush2.msra.mxu0 0.0
        %2533 = vmatprep.subr.mxu0 0.0
        %2534 = vmatpush2.msra.mxu0 0.0
        %2535 = vmatprep.mubr.f32.mxu0 0.0
        %2536 = vmatmul.mubr.f32.gmra.mxu0 %v2469
        %v2537 = vpop.f32.mrf.mxu0
        %v2538 = vadd.f32 0.0, %v2537
        %v2539 = vpop.f32.mrf.mxu0
        %2540 = vdwg.mxu0
        %v2542 = vsel %vm2030, %v2376, 0
        %2544 = vmatprep.subr.mxu0 0.0
        %2545 = vmatpush1.msra.mxu0 0.0
        %2546 = vmatprep.subr.mxu0 0.0
        %2547 = vmatpush1.msra.mxu0 0.0
        %2548 = vmatprep.subr.mxu0 0.0
        %2549 = vmatpush1.msra.mxu0 0.0
        %2550 = vmatprep.subr.mxu0 0.0
        %2551 = vmatpush1.msra.mxu0 0.0
        %2552 = vmatprep.subr.mxu0 0.0
        %2553 = vmatpush1.msra.mxu0 0.0
        %2554 = vmatprep.subr.mxu0 0.0
        %2555 = vmatpush1.msra.mxu0 0.0
        %2556 = vmatprep.subr.mxu0 0.0
        %2557 = vmatpush1.msra.mxu0 0.0
        %2558 = vmatprep.subr.mxu0 0.0
        %2559 = vmatpush1.msra.mxu0 0.0
        %2560 = vmatprep.subr.mxu0 0.0
        %2561 = vmatpush1.msra.mxu0 0.0
        %2562 = vmatprep.subr.mxu0 0.0
        %2563 = vmatpush1.msra.mxu0 0.0
        %2564 = vmatprep.subr.mxu0 0.0
        %2565 = vmatpush1.msra.mxu0 0.0
        %2566 = vmatprep.subr.mxu0 0.0
        %2567 = vmatpush1.msra.mxu0 0.0
        %2568 = vmatprep.subr.mxu0 0.0
        %2569 = vmatpush1.msra.mxu0 0.0
        %2570 = vmatprep.subr.mxu0 0.0
        %2571 = vmatpush1.msra.mxu0 0.0
        %2572 = vmatprep.subr.mxu0 0.0
        %2573 = vmatpush1.msra.mxu0 0.0
        %2574 = vmatprep.subr.mxu0 0.0
        %2575 = vmatpush1.msra.mxu0 %v2393
        %2576 = vmatprep.subr.mxu0 0.0
        %2577 = vmatpush2.msra.mxu0 0.0
        %2578 = vmatprep.subr.mxu0 0.0
        %2579 = vmatpush2.msra.mxu0 0.0
        %2580 = vmatprep.subr.mxu0 0.0
        %2581 = vmatpush2.msra.mxu0 0.0
        %2582 = vmatprep.subr.mxu0 0.0
        %2583 = vmatpush2.msra.mxu0 0.0
        %2584 = vmatprep.subr.mxu0 0.0
        %2585 = vmatpush2.msra.mxu0 0.0
        %2586 = vmatprep.subr.mxu0 0.0
        %2587 = vmatpush2.msra.mxu0 0.0
        %2588 = vmatprep.subr.mxu0 0.0
        %2589 = vmatpush2.msra.mxu0 0.0
        %2590 = vmatprep.subr.mxu0 0.0
        %2591 = vmatpush2.msra.mxu0 0.0
        %2592 = vmatprep.subr.mxu0 0.0
        %2593 = vmatpush2.msra.mxu0 0.0
        %2594 = vmatprep.subr.mxu0 0.0
        %2595 = vmatpush2.msra.mxu0 0.0
        %2596 = vmatprep.subr.mxu0 0.0
        %2597 = vmatpush2.msra.mxu0 0.0
        %2598 = vmatprep.subr.mxu0 0.0
        %2599 = vmatpush2.msra.mxu0 0.0
        %2600 = vmatprep.subr.mxu0 0.0
        %2601 = vmatpush2.msra.mxu0 0.0
        %2602 = vmatprep.subr.mxu0 0.0
        %2603 = vmatpush2.msra.mxu0 0.0
        %2604 = vmatprep.subr.mxu0 0.0
        %2605 = vmatpush2.msra.mxu0 0.0
        %2606 = vmatprep.subr.mxu0 0.0
        %2607 = vmatpush2.msra.mxu0 0.0
        %2608 = vmatprep.mubr.f32.mxu0 0.0
        %2609 = vmatmul.mubr.f32.gmra.mxu0 %v2542
        %v2610 = vpop.f32.mrf.mxu0
        %v2611 = vadd.f32 0.0, %v2610
        %v2612 = vpop.f32.mrf.mxu0
        %2613 = vdwg.mxu0
        %v2615 = vsel %vm2030, %v2378, 0
        %2617 = vmatprep.subr.mxu0 0.0
        %2618 = vmatpush1.msra.mxu0 0.0
        %2619 = vmatprep.subr.mxu0 0.0
        %2620 = vmatpush1.msra.mxu0 0.0
        %2621 = vmatprep.subr.mxu0 0.0
        %2622 = vmatpush1.msra.mxu0 0.0
        %2623 = vmatprep.subr.mxu0 0.0
        %2624 = vmatpush1.msra.mxu0 0.0
        %2625 = vmatprep.subr.mxu0 0.0
        %2626 = vmatpush1.msra.mxu0 0.0
        %2627 = vmatprep.subr.mxu0 0.0
        %2628 = vmatpush1.msra.mxu0 0.0
        %2629 = vmatprep.subr.mxu0 0.0
        %2630 = vmatpush1.msra.mxu0 0.0
        %2631 = vmatprep.subr.mxu0 0.0
        %2632 = vmatpush1.msra.mxu0 0.0
        %2633 = vmatprep.subr.mxu0 0.0
        %2634 = vmatpush1.msra.mxu0 0.0
        %2635 = vmatprep.subr.mxu0 0.0
        %2636 = vmatpush1.msra.mxu0 0.0
        %2637 = vmatprep.subr.mxu0 0.0
        %2638 = vmatpush1.msra.mxu0 0.0
        %2639 = vmatprep.subr.mxu0 0.0
        %2640 = vmatpush1.msra.mxu0 0.0
        %2641 = vmatprep.subr.mxu0 0.0
        %2642 = vmatpush1.msra.mxu0 0.0
        %2643 = vmatprep.subr.mxu0 0.0
        %2644 = vmatpush1.msra.mxu0 0.0
        %2645 = vmatprep.subr.mxu0 0.0
        %2646 = vmatpush1.msra.mxu0 0.0
        %2647 = vmatprep.subr.mxu0 0.0
        %2648 = vmatpush1.msra.mxu0 %v2394
        %2649 = vmatprep.subr.mxu0 0.0
        %2650 = vmatpush2.msra.mxu0 0.0
        %2651 = vmatprep.subr.mxu0 0.0
        %2652 = vmatpush2.msra.mxu0 0.0
        %2653 = vmatprep.subr.mxu0 0.0
        %2654 = vmatpush2.msra.mxu0 0.0
        %2655 = vmatprep.subr.mxu0 0.0
        %2656 = vmatpush2.msra.mxu0 0.0
        %2657 = vmatprep.subr.mxu0 0.0
        %2658 = vmatpush2.msra.mxu0 0.0
        %2659 = vmatprep.subr.mxu0 0.0
        %2660 = vmatpush2.msra.mxu0 0.0
        %2661 = vmatprep.subr.mxu0 0.0
        %2662 = vmatpush2.msra.mxu0 0.0
        %2663 = vmatprep.subr.mxu0 0.0
        %2664 = vmatpush2.msra.mxu0 0.0
        %2665 = vmatprep.subr.mxu0 0.0
        %2666 = vmatpush2.msra.mxu0 0.0
        %2667 = vmatprep.subr.mxu0 0.0
        %2668 = vmatpush2.msra.mxu0 0.0
        %2669 = vmatprep.subr.mxu0 0.0
        %2670 = vmatpush2.msra.mxu0 0.0
        %2671 = vmatprep.subr.mxu0 0.0
        %2672 = vmatpush2.msra.mxu0 0.0
        %2673 = vmatprep.subr.mxu0 0.0
        %2674 = vmatpush2.msra.mxu0 0.0
        %2675 = vmatprep.subr.mxu0 0.0
        %2676 = vmatpush2.msra.mxu0 0.0
        %2677 = vmatprep.subr.mxu0 0.0
        %2678 = vmatpush2.msra.mxu0 0.0
        %2679 = vmatprep.subr.mxu0 0.0
        %2680 = vmatpush2.msra.mxu0 0.0
        %2681 = vmatprep.mubr.f32.mxu0 0.0
        %2682 = vmatmul.mubr.f32.gmra.mxu0 %v2615
        %v2683 = vpop.f32.mrf.mxu0
        %v2684 = vadd.f32 0.0, %v2683
        %v2685 = vpop.f32.mrf.mxu0
        %2686 = vdwg.mxu0
        %v2687 = vrcp.pop %v2381
        %v2688 = vrcp.pop %v2384
        %v2689 = vrcp.pop %v2387
        %v2690 = vrcp.pop %v2390
        %v2691 = vmul.f32 %v2465, %v2687
        %v2692 = vmul.f32 %v2538, %v2688
        %v2693 = vmul.f32 %v2611, %v2689
        %v2694 = vmul.f32 %v2684, %v2690
        %v2695 = vcombine.low %v2691, %v2693
        %v2696 = vcombine.high %v2691, %v2693
        %v2698 = vunpack.c.l.s4 1983009808
        %v2699 = vunpack.c.0.s8 %v2698
        %v2700 = vlaneseq
        %v2701 = vshrl.u32 %v2700, 7
        %v2702 = vsub.s32 %v2699, %v2701
        %v2703 = vrot.slane %v2695, %v2702
        %v2705 = vunpack.c.l.s4 1983009808
        %v2706 = vunpack.c.0.s8 %v2705
        %v2707 = vlaneseq
        %v2708 = vshrl.u32 %v2707, 7
        %v2709 = vsub.s32 %v2706, %v2708
        %v2710 = vrot.slane %v2696, %v2709
        %v2711 = vcombine.low %v2692, %v2694
        %v2712 = vcombine.high %v2692, %v2694
        %v2714 = vunpack.c.l.s4 1983009808
        %v2715 = vunpack.c.0.s8 %v2714
        %v2716 = vlaneseq
        %v2717 = vshrl.u32 %v2716, 7
        %v2718 = vsub.s32 %v2715, %v2717
        %v2719 = vrot.slane %v2711, %v2718
        %v2721 = vunpack.c.l.s4 1983009808
        %v2722 = vunpack.c.0.s8 %v2721
        %v2723 = vlaneseq
        %v2724 = vshrl.u32 %v2723, 7
        %v2725 = vsub.s32 %v2722, %v2724
        %v2726 = vrot.slane %v2712, %v2725
        %v2727 = vcombine.low %v2703, %v2719
        %v2728 = vcombine.high %v2703, %v2719
        %v2730 = vunpack.c.l.s4 1934713408
        %v2731 = vunpack.c.0.s8 %v2730
        %v2732 = vlaneseq
        %v2733 = vshrl.u32 %v2732, 7
        %v2734 = vsub.s32 %v2731, %v2733
        %v2735 = vrot.slane %v2727, %v2734
        %v2737 = vunpack.c.l.s4 1934713408
        %v2738 = vunpack.c.0.s8 %v2737
        %v2739 = vlaneseq
        %v2740 = vshrl.u32 %v2739, 7
        %v2741 = vsub.s32 %v2738, %v2740
        %v2742 = vrot.slane %v2728, %v2741
        %v2743 = vcombine.low %v2710, %v2726
        %v2744 = vcombine.high %v2710, %v2726
        %v2746 = vunpack.c.l.s4 1934713408
        %v2747 = vunpack.c.0.s8 %v2746
        %v2748 = vlaneseq
        %v2749 = vshrl.u32 %v2748, 7
        %v2750 = vsub.s32 %v2747, %v2749
        %v2751 = vrot.slane %v2743, %v2750
        %v2753 = vunpack.c.l.s4 1934713408
        %v2754 = vunpack.c.0.s8 %v2753
        %v2755 = vlaneseq
        %v2756 = vshrl.u32 %v2755, 7
        %v2757 = vsub.s32 %v2754, %v2756
        %v2758 = vrot.slane %v2744, %v2757
        %v2759 = vcombine.high %v2735, 0.0
        %v2760 = vcombine.high %v2742, 0.0
        %v2761 = vcombine.high %v2751, 0.0
        %v2762 = vcombine.high %v2758, 0.0
        %v2763 = vcombine.low %v2735, %v2742
        %v2765 = vunpack.c.l.s4 1983009808
        %v2766 = vunpack.c.0.s8 %v2765
        %v2767 = vlaneseq
        %v2768 = vshrl.u32 %v2767, 7
        %v2769 = vsub.s32 %v2766, %v2768
        %v2770 = vrot.slane %v2763, %v2769
        %v2771 = vcombine.low %v2759, %v2760
        %v2773 = vunpack.c.l.s4 1983009808
        %v2774 = vunpack.c.0.s8 %v2773
        %v2775 = vlaneseq
        %v2776 = vshrl.u32 %v2775, 7
        %v2777 = vsub.s32 %v2774, %v2776
        %v2778 = vrot.slane %v2771, %v2777
        %v2779 = vcombine.low %v2751, %v2758
        %v2781 = vunpack.c.l.s4 1983009808
        %v2782 = vunpack.c.0.s8 %v2781
        %v2783 = vlaneseq
        %v2784 = vshrl.u32 %v2783, 7
        %v2785 = vsub.s32 %v2782, %v2784
        %v2786 = vrot.slane %v2779, %v2785
        %v2787 = vcombine.low %v2761, %v2762
        %v2789 = vunpack.c.l.s4 1983009808
        %v2790 = vunpack.c.0.s8 %v2789
        %v2791 = vlaneseq
        %v2792 = vshrl.u32 %v2791, 7
        %v2793 = vsub.s32 %v2790, %v2792
        %v2794 = vrot.slane %v2787, %v2793
        %v2795 = vcombine.low %v2770, %v2778
        %v2796 = vcombine.high %v2770, %v2778
        %v2798 = vunpack.c.l.s4 1934713408
        %v2799 = vunpack.c.0.s8 %v2798
        %v2800 = vlaneseq
        %v2801 = vshrl.u32 %v2800, 7
        %v2802 = vsub.s32 %v2799, %v2801
        %v2803 = vrot.slane %v2795, %v2802
        %v2805 = vunpack.c.l.s4 1934713408
        %v2806 = vunpack.c.0.s8 %v2805
        %v2807 = vlaneseq
        %v2808 = vshrl.u32 %v2807, 7
        %v2809 = vsub.s32 %v2806, %v2808
        %v2810 = vrot.slane %v2796, %v2809
        %v2811 = vcombine.low %v2786, %v2794
        %v2812 = vcombine.high %v2786, %v2794
        %v2814 = vunpack.c.l.s4 1934713408
        %v2815 = vunpack.c.0.s8 %v2814
        %v2816 = vlaneseq
        %v2817 = vshrl.u32 %v2816, 7
        %v2818 = vsub.s32 %v2815, %v2817
        %v2819 = vrot.slane %v2811, %v2818
        %v2821 = vunpack.c.l.s4 1934713408
        %v2822 = vunpack.c.0.s8 %v2821
        %v2823 = vlaneseq
        %v2824 = vshrl.u32 %v2823, 7
        %v2825 = vsub.s32 %v2822, %v2824
        %v2826 = vrot.slane %v2812, %v2825
        %v2827 = vcombine.low %v2803, %v2819
        %v2828 = vcombine.high %v2803, %v2819
        %v2829 = vcombine.low %v2810, %v2826
        %v2830 = vcombine.high %v2810, %v2826
        %2832 = vrot.lane.b32.xlu0 %v2828, 8
        %v2833 = vpop.permute.xlu0 %2832
        %2836 = vrot.lane.b32.xlu0 %v2829, 16
        %v2837 = vpop.permute.xlu0 %2836
        %2840 = vrot.lane.b32.xlu0 %v2830, 24
        %v2841 = vpop.permute.xlu0 %2840
        %v2843 = vsel %vm2030, %v2827, %v2833
        %vm2844 = vcmask 130048
        %v2845 = vsel %vm2844, %v2843, %v2837
        %vm2846 = vcmask 195584
        %v2847 = vsel %vm2846, %v2845, %v2841
        %v2848 = vld [vmem:[#allocation14] sm:$0xff]
        %v2849 = vld [vmem:[#allocation14 + $0x8] sm:$0xff]
        %v2850 = vld [vmem:[#allocation14 + $0x10] sm:$0xff]
        %v2851 = vld [vmem:[#allocation14 + $0x18] sm:$0xff]
        %v2852 = vlaneseq
        %v2853 = vshrl.u32 %v2852, 7
        %v2854 = vsub.s32 3, %v2853
        %v2855 = vrot.slane %v612, %v2854
        %v2857 = vsel %vm1773, %v2847, 0
        %2859 = vmatprep.subr.mxu0 0.0
        %2860 = vmatpush1.msra.mxu0 0.0
        %2861 = vmatprep.subr.mxu0 0.0
        %2862 = vmatpush1.msra.mxu0 0.0
        %2863 = vmatprep.subr.mxu0 0.0
        %2864 = vmatpush1.msra.mxu0 0.0
        %2865 = vmatprep.subr.mxu0 0.0
        %2866 = vmatpush1.msra.mxu0 0.0
        %2867 = vmatprep.subr.mxu0 0.0
        %2868 = vmatpush1.msra.mxu0 0.0
        %2869 = vmatprep.subr.mxu0 0.0
        %2870 = vmatpush1.msra.mxu0 0.0
        %2871 = vmatprep.subr.mxu0 0.0
        %2872 = vmatpush1.msra.mxu0 0.0
        %2873 = vmatprep.subr.mxu0 0.0
        %2874 = vmatpush1.msra.mxu0 0.0
        %2875 = vmatprep.subr.mxu0 0.0
        %2876 = vmatpush1.msra.mxu0 0.0
        %2877 = vmatprep.subr.mxu0 0.0
        %2878 = vmatpush1.msra.mxu0 0.0
        %2879 = vmatprep.subr.mxu0 0.0
        %2880 = vmatpush1.msra.mxu0 0.0
        %2881 = vmatprep.subr.mxu0 0.0
        %2882 = vmatpush1.msra.mxu0 0.0
        %2883 = vmatprep.subr.mxu0 0.0
        %2884 = vmatpush1.msra.mxu0 %v2851
        %2885 = vmatprep.subr.mxu0 0.0
        %2886 = vmatpush1.msra.mxu0 %v2850
        %2887 = vmatprep.subr.mxu0 0.0
        %2888 = vmatpush1.msra.mxu0 %v2849
        %2889 = vmatprep.subr.mxu0 0.0
        %2890 = vmatpush1.msra.mxu0 %v2848
        %2891 = vmatprep.subr.mxu0 0.0
        %2892 = vmatpush2.msra.mxu0 0.0
        %2893 = vmatprep.subr.mxu0 0.0
        %2894 = vmatpush2.msra.mxu0 0.0
        %2895 = vmatprep.subr.mxu0 0.0
        %2896 = vmatpush2.msra.mxu0 0.0
        %2897 = vmatprep.subr.mxu0 0.0
        %2898 = vmatpush2.msra.mxu0 0.0
        %2899 = vmatprep.subr.mxu0 0.0
        %2900 = vmatpush2.msra.mxu0 0.0
        %2901 = vmatprep.subr.mxu0 0.0
        %2902 = vmatpush2.msra.mxu0 0.0
        %2903 = vmatprep.subr.mxu0 0.0
        %2904 = vmatpush2.msra.mxu0 0.0
        %2905 = vmatprep.subr.mxu0 0.0
        %2906 = vmatpush2.msra.mxu0 0.0
        %2907 = vmatprep.subr.mxu0 0.0
        %2908 = vmatpush2.msra.mxu0 0.0
        %2909 = vmatprep.subr.mxu0 0.0
        %2910 = vmatpush2.msra.mxu0 0.0
        %2911 = vmatprep.subr.mxu0 0.0
        %2912 = vmatpush2.msra.mxu0 0.0
        %2913 = vmatprep.subr.mxu0 0.0
        %2914 = vmatpush2.msra.mxu0 0.0
        %2915 = vmatprep.subr.mxu0 0.0
        %2916 = vmatpush2.msra.mxu0 0.0
        %2917 = vmatprep.subr.mxu0 0.0
        %2918 = vmatpush2.msra.mxu0 0.0
        %2919 = vmatprep.subr.mxu0 0.0
        %2920 = vmatpush2.msra.mxu0 0.0
        %2921 = vmatprep.subr.mxu0 0.0
        %2922 = vmatpush2.msra.mxu0 0.0
        %2923 = vmatprep.mubr.f32.mxu0 0.0
        %2924 = vmatmul.mubr.f32.gmra.mxu0 %v2857
        %v2925 = vpop.f32.mrf.mxu0
        %v2926 = vadd.f32 %v2855, %v2925
        %v2927 = vpop.f32.mrf.mxu0
        %2928 = vdwg.mxu0
        %v2929 = vadd.f32 %v1768, %v2926
        %v2930 = vsel %vm1773, %v2929, 0.0
        %2931 = vadd.xlane.f32.xlu0 %v2930
        %v2932 = vpop.xlane.xlu0 %2931
        %v2933 = vmul.f32 %v2932, %v1777
        %v2934 = vsub.f32 %v2929, %v2933
        %v2935 = vmul.f32 %v2934, %v2934
        %v2936 = vsel %vm1773, %v2935, 0.0
        %2937 = vadd.xlane.f32.xlu0 %v2936
        %v2938 = vpop.xlane.xlu0 %2937
        %v2939 = vmul.f32 %v2938, %v1777
        %v2940 = vadd.f32 %v2939, 1e-05
        %v2941 = vrsqrt.pop %v2940
        %v2942 = vmul.f32 %v2934, %v2941
        %v2943 = vlaneseq
        %v2944 = vshrl.u32 %v2943, 7
        %v2945 = vsub.s32 3, %v2944
        %v2946 = vrot.slane %v613, %v2945
        %v2947 = vmul.f32 %v2942, %v2946
        %v2948 = vlaneseq
        %v2949 = vshrl.u32 %v2948, 7
        %v2950 = vsub.s32 4, %v2949
        %v2951 = vrot.slane %v613, %v2950
        %v2952 = vadd.f32 %v2947, %v2951
        %v2953 = vld [vmem:[#allocation15] sm:$0xff]
        %v2954 = vld [vmem:[#allocation15 + $0x8] sm:$0xff]
        %v2955 = vld [vmem:[#allocation15 + $0x10] sm:$0xff]
        %v2956 = vld [vmem:[#allocation15 + $0x18] sm:$0xff]
        %v2957 = vlaneseq
        %v2958 = vshrl.u32 %v2957, 7
        %v2959 = vsub.s32 4, %v2958
        %v2960 = vrot.slane %v612, %v2959
        %v2962 = vsel %vm1773, %v2952, 0
        %2964 = vmatprep.subr.mxu0 0.0
        %2965 = vmatpush1.msra.mxu0 0.0
        %2966 = vmatprep.subr.mxu0 0.0
        %2967 = vmatpush1.msra.mxu0 0.0
        %2968 = vmatprep.subr.mxu0 0.0
        %2969 = vmatpush1.msra.mxu0 0.0
        %2970 = vmatprep.subr.mxu0 0.0
        %2971 = vmatpush1.msra.mxu0 0.0
        %2972 = vmatprep.subr.mxu0 0.0
        %2973 = vmatpush1.msra.mxu0 0.0
        %2974 = vmatprep.subr.mxu0 0.0
        %2975 = vmatpush1.msra.mxu0 0.0
        %2976 = vmatprep.subr.mxu0 0.0
        %2977 = vmatpush1.msra.mxu0 0.0
        %2978 = vmatprep.subr.mxu0 0.0
        %2979 = vmatpush1.msra.mxu0 0.0
        %2980 = vmatprep.subr.mxu0 0.0
        %2981 = vmatpush1.msra.mxu0 0.0
        %2982 = vmatprep.subr.mxu0 0.0
        %2983 = vmatpush1.msra.mxu0 0.0
        %2984 = vmatprep.subr.mxu0 0.0
        %2985 = vmatpush1.msra.mxu0 0.0
        %2986 = vmatprep.subr.mxu0 0.0
        %2987 = vmatpush1.msra.mxu0 0.0
        %2988 = vmatprep.subr.mxu0 0.0
        %2989 = vmatpush1.msra.mxu0 %v2956
        %2990 = vmatprep.subr.mxu0 0.0
        %2991 = vmatpush1.msra.mxu0 %v2955
        %2992 = vmatprep.subr.mxu0 0.0
        %2993 = vmatpush1.msra.mxu0 %v2954
        %2994 = vmatprep.subr.mxu0 0.0
        %2995 = vmatpush1.msra.mxu0 %v2953
        %2996 = vmatprep.subr.mxu0 0.0
        %2997 = vmatpush2.msra.mxu0 0.0
        %2998 = vmatprep.subr.mxu0 0.0
        %2999 = vmatpush2.msra.mxu0 0.0
        %3000 = vmatprep.subr.mxu0 0.0
        %3001 = vmatpush2.msra.mxu0 0.0
        %3002 = vmatprep.subr.mxu0 0.0
        %3003 = vmatpush2.msra.mxu0 0.0
        %3004 = vmatprep.subr.mxu0 0.0
        %3005 = vmatpush2.msra.mxu0 0.0
        %3006 = vmatprep.subr.mxu0 0.0
        %3007 = vmatpush2.msra.mxu0 0.0
        %3008 = vmatprep.subr.mxu0 0.0
        %3009 = vmatpush2.msra.mxu0 0.0
        %3010 = vmatprep.subr.mxu0 0.0
        %3011 = vmatpush2.msra.mxu0 0.0
        %3012 = vmatprep.subr.mxu0 0.0
        %3013 = vmatpush2.msra.mxu0 0.0
        %3014 = vmatprep.subr.mxu0 0.0
        %3015 = vmatpush2.msra.mxu0 0.0
        %3016 = vmatprep.subr.mxu0 0.0
        %3017 = vmatpush2.msra.mxu0 0.0
        %3018 = vmatprep.subr.mxu0 0.0
        %3019 = vmatpush2.msra.mxu0 0.0
        %3020 = vmatprep.subr.mxu0 0.0
        %3021 = vmatpush2.msra.mxu0 0.0
        %3022 = vmatprep.subr.mxu0 0.0
        %3023 = vmatpush2.msra.mxu0 0.0
        %3024 = vmatprep.subr.mxu0 0.0
        %3025 = vmatpush2.msra.mxu0 0.0
        %3026 = vmatprep.subr.mxu0 0.0
        %3027 = vmatpush2.msra.mxu0 0.0
        %3028 = vmatprep.mubr.f32.mxu0 0.0
        %3029 = vmatmul.mubr.f32.gmra.mxu0 %v2962
        %v3030 = vpop.f32.mrf.mxu0
        %v3031 = vadd.f32 %v2960, %v3030
        %v3032 = vpop.f32.mrf.mxu0
        %3033 = vdwg.mxu0
        %v3034 = vmul.f32 %v3031, 0.35355338
        %3036 = vrot.lane.b32.xlu0 %v3034, 120
        %v3037 = vpop.permute.xlu0 %3036
        %3039 = vrot.lane.b32.xlu0 %v3034, 112
        %v3040 = vpop.permute.xlu0 %3039
        %3042 = vrot.lane.b32.xlu0 %v3034, 104
        %v3043 = vpop.permute.xlu0 %3042
        %v3045 = vcombine.low %v3034, %v3040
        %v3046 = vcombine.high %v3034, %v3040
        %v3048 = vunpack.c.l.s4 1983009808
        %v3049 = vunpack.c.0.s8 %v3048
        %v3050 = vlaneseq
        %v3051 = vshrl.u32 %v3050, 7
        %v3052 = vsub.s32 %v3049, %v3051
        %v3053 = vrot.slane %v3045, %v3052
        %v3055 = vunpack.c.l.s4 1983009808
        %v3056 = vunpack.c.0.s8 %v3055
        %v3057 = vlaneseq
        %v3058 = vshrl.u32 %v3057, 7
        %v3059 = vsub.s32 %v3056, %v3058
        %v3060 = vrot.slane %v3046, %v3059
        %v3061 = vcombine.low %v3037, %v3043
        %v3062 = vcombine.high %v3037, %v3043
        %v3064 = vunpack.c.l.s4 1983009808
        %v3065 = vunpack.c.0.s8 %v3064
        %v3066 = vlaneseq
        %v3067 = vshrl.u32 %v3066, 7
        %v3068 = vsub.s32 %v3065, %v3067
        %v3069 = vrot.slane %v3061, %v3068
        %v3071 = vunpack.c.l.s4 1983009808
        %v3072 = vunpack.c.0.s8 %v3071
        %v3073 = vlaneseq
        %v3074 = vshrl.u32 %v3073, 7
        %v3075 = vsub.s32 %v3072, %v3074
        %v3076 = vrot.slane %v3062, %v3075
        %v3077 = vcombine.low %v3053, %v3069
        %v3078 = vcombine.high %v3053, %v3069
        %v3080 = vunpack.c.l.s4 1934713408
        %v3081 = vunpack.c.0.s8 %v3080
        %v3082 = vlaneseq
        %v3083 = vshrl.u32 %v3082, 7
        %v3084 = vsub.s32 %v3081, %v3083
        %v3085 = vrot.slane %v3077, %v3084
        %v3087 = vunpack.c.l.s4 1934713408
        %v3088 = vunpack.c.0.s8 %v3087
        %v3089 = vlaneseq
        %v3090 = vshrl.u32 %v3089, 7
        %v3091 = vsub.s32 %v3088, %v3090
        %v3092 = vrot.slane %v3078, %v3091
        %v3093 = vcombine.low %v3060, %v3076
        %v3094 = vcombine.high %v3060, %v3076
        %v3096 = vunpack.c.l.s4 1934713408
        %v3097 = vunpack.c.0.s8 %v3096
        %v3098 = vlaneseq
        %v3099 = vshrl.u32 %v3098, 7
        %v3100 = vsub.s32 %v3097, %v3099
        %v3101 = vrot.slane %v3093, %v3100
        %v3103 = vunpack.c.l.s4 1934713408
        %v3104 = vunpack.c.0.s8 %v3103
        %v3105 = vlaneseq
        %v3106 = vshrl.u32 %v3105, 7
        %v3107 = vsub.s32 %v3104, %v3106
        %v3108 = vrot.slane %v3094, %v3107
        %v3109 = vcombine.high %v3085, 0.0
        %v3110 = vcombine.high %v3092, 0.0
        %v3111 = vcombine.high %v3101, 0.0
        %v3112 = vcombine.high %v3108, 0.0
        %v3113 = vcombine.low %v3085, %v3092
        %v3115 = vunpack.c.l.s4 1983009808
        %v3116 = vunpack.c.0.s8 %v3115
        %v3117 = vlaneseq
        %v3118 = vshrl.u32 %v3117, 7
        %v3119 = vsub.s32 %v3116, %v3118
        %v3120 = vrot.slane %v3113, %v3119
        %v3121 = vcombine.low %v3109, %v3110
        %v3123 = vunpack.c.l.s4 1983009808
        %v3124 = vunpack.c.0.s8 %v3123
        %v3125 = vlaneseq
        %v3126 = vshrl.u32 %v3125, 7
        %v3127 = vsub.s32 %v3124, %v3126
        %v3128 = vrot.slane %v3121, %v3127
        %v3129 = vcombine.low %v3101, %v3108
        %v3131 = vunpack.c.l.s4 1983009808
        %v3132 = vunpack.c.0.s8 %v3131
        %v3133 = vlaneseq
        %v3134 = vshrl.u32 %v3133, 7
        %v3135 = vsub.s32 %v3132, %v3134
        %v3136 = vrot.slane %v3129, %v3135
        %v3137 = vcombine.low %v3111, %v3112
        %v3139 = vunpack.c.l.s4 1983009808
        %v3140 = vunpack.c.0.s8 %v3139
        %v3141 = vlaneseq
        %v3142 = vshrl.u32 %v3141, 7
        %v3143 = vsub.s32 %v3140, %v3142
        %v3144 = vrot.slane %v3137, %v3143
        %v3145 = vcombine.low %v3120, %v3128
        %v3146 = vcombine.high %v3120, %v3128
        %v3148 = vunpack.c.l.s4 1934713408
        %v3149 = vunpack.c.0.s8 %v3148
        %v3150 = vlaneseq
        %v3151 = vshrl.u32 %v3150, 7
        %v3152 = vsub.s32 %v3149, %v3151
        %v3153 = vrot.slane %v3145, %v3152
        %v3155 = vunpack.c.l.s4 1934713408
        %v3156 = vunpack.c.0.s8 %v3155
        %v3157 = vlaneseq
        %v3158 = vshrl.u32 %v3157, 7
        %v3159 = vsub.s32 %v3156, %v3158
        %v3160 = vrot.slane %v3146, %v3159
        %v3161 = vcombine.low %v3136, %v3144
        %v3162 = vcombine.high %v3136, %v3144
        %v3164 = vunpack.c.l.s4 1934713408
        %v3165 = vunpack.c.0.s8 %v3164
        %v3166 = vlaneseq
        %v3167 = vshrl.u32 %v3166, 7
        %v3168 = vsub.s32 %v3165, %v3167
        %v3169 = vrot.slane %v3161, %v3168
        %v3171 = vunpack.c.l.s4 1934713408
        %v3172 = vunpack.c.0.s8 %v3171
        %v3173 = vlaneseq
        %v3174 = vshrl.u32 %v3173, 7
        %v3175 = vsub.s32 %v3172, %v3174
        %v3176 = vrot.slane %v3162, %v3175
        %v3177 = vcombine.low %v3153, %v3169
        %v3178 = vcombine.high %v3153, %v3169
        %v3179 = vcombine.low %v3160, %v3176
        %v3180 = vcombine.high %v3160, %v3176
        %v3181 = vld [vmem:[#allocation4] sm:$0xff]
        %v3182 = vld [vmem:[#allocation4 + $0x8] sm:$0xff]
        %v3183 = vld [vmem:[#allocation4 + $0x10] sm:$0xff]
        %v3184 = vld [vmem:[#allocation4 + $0x18] sm:$0xff]
        %v3185 = vld [vmem:[#allocation4 + $0x20] sm:$0xff]
        %v3186 = vld [vmem:[#allocation4 + $0x28] sm:$0xff]
        %v3187 = vld [vmem:[#allocation4 + $0x30] sm:$0xff]
        %v3188 = vld [vmem:[#allocation4 + $0x38] sm:$0xff]
        %v3190 = vsel %vm2030, %v3177, 0
        %v3193 = vsel %vm2030, %v3181, 0
        %v3196 = vsel %vm2030, %v3182, 0
        %3198 = vmatprep.subr.mxu0 0.0
        %3199 = vmatpush1.xpose.msra.mxu0 0.0
        %3200 = vmatprep.subr.mxu0 0.0
        %3201 = vmatpush1.xpose.msra.mxu0 0.0
        %3202 = vmatprep.subr.mxu0 0.0
        %3203 = vmatpush1.xpose.msra.mxu0 0.0
        %3204 = vmatprep.subr.mxu0 0.0
        %3205 = vmatpush1.xpose.msra.mxu0 0.0
        %3206 = vmatprep.subr.mxu0 0.0
        %3207 = vmatpush1.xpose.msra.mxu0 0.0
        %3208 = vmatprep.subr.mxu0 0.0
        %3209 = vmatpush1.xpose.msra.mxu0 0.0
        %3210 = vmatprep.subr.mxu0 0.0
        %3211 = vmatpush1.xpose.msra.mxu0 0.0
        %3212 = vmatprep.subr.mxu0 0.0
        %3213 = vmatpush1.xpose.msra.mxu0 0.0
        %3214 = vmatprep.subr.mxu0 0.0
        %3215 = vmatpush1.xpose.msra.mxu0 0.0
        %3216 = vmatprep.subr.mxu0 0.0
        %3217 = vmatpush1.xpose.msra.mxu0 0.0
        %3218 = vmatprep.subr.mxu0 0.0
        %3219 = vmatpush1.xpose.msra.mxu0 0.0
        %3220 = vmatprep.subr.mxu0 0.0
        %3221 = vmatpush1.xpose.msra.mxu0 0.0
        %3222 = vmatprep.subr.mxu0 0.0
        %3223 = vmatpush1.xpose.msra.mxu0 0.0
        %3224 = vmatprep.subr.mxu0 0.0
        %3225 = vmatpush1.xpose.msra.mxu0 0.0
        %3226 = vmatprep.subr.mxu0 0.0
        %3227 = vmatpush1.xpose.msra.mxu0 %v3196
        %3228 = vmatprep.subr.mxu0 0.0
        %3229 = vmatpush1.xpose.msra.mxu0 %v3193
        %3230 = vmatprep.subr.mxu0 0.0
        %3231 = vmatpush2.xpose.msra.mxu0 0.0
        %3232 = vmatprep.subr.mxu0 0.0
        %3233 = vmatpush2.xpose.msra.mxu0 0.0
        %3234 = vmatprep.subr.mxu0 0.0
        %3235 = vmatpush2.xpose.msra.mxu0 0.0
        %3236 = vmatprep.subr.mxu0 0.0
        %3237 = vmatpush2.xpose.msra.mxu0 0.0
        %3238 = vmatprep.subr.mxu0 0.0
        %3239 = vmatpush2.xpose.msra.mxu0 0.0
        %3240 = vmatprep.subr.mxu0 0.0
        %3241 = vmatpush2.xpose.msra.mxu0 0.0
        %3242 = vmatprep.subr.mxu0 0.0
        %3243 = vmatpush2.xpose.msra.mxu0 0.0
        %3244 = vmatprep.subr.mxu0 0.0
        %3245 = vmatpush2.xpose.msra.mxu0 0.0
        %3246 = vmatprep.subr.mxu0 0.0
        %3247 = vmatpush2.xpose.msra.mxu0 0.0
        %3248 = vmatprep.subr.mxu0 0.0
        %3249 = vmatpush2.xpose.msra.mxu0 0.0
        %3250 = vmatprep.subr.mxu0 0.0
        %3251 = vmatpush2.xpose.msra.mxu0 0.0
        %3252 = vmatprep.subr.mxu0 0.0
        %3253 = vmatpush2.xpose.msra.mxu0 0.0
        %3254 = vmatprep.subr.mxu0 0.0
        %3255 = vmatpush2.xpose.msra.mxu0 0.0
        %3256 = vmatprep.subr.mxu0 0.0
        %3257 = vmatpush2.xpose.msra.mxu0 0.0
        %3258 = vmatprep.subr.mxu0 0.0
        %3259 = vmatpush2.xpose.msra.mxu0 0.0
        %3260 = vmatprep.subr.mxu0 0.0
        %3261 = vmatpush2.xpose.msra.mxu0 0.0
        %3262 = vmatprep.mubr.f32.mxu0 0.0
        %3263 = vmatmul.mubr.f32.gmra.mxu0 %v3190
        %v3264 = vpop.f32.mrf.mxu0
        %v3265 = vadd.f32 0.0, %v3264
        %v3266 = vpop.f32.mrf.mxu0
        %3267 = vdwg.mxu0
        %v3269 = vsel %vm2030, %v3178, 0
        %v3272 = vsel %vm2030, %v3183, 0
        %v3275 = vsel %vm2030, %v3184, 0
        %3277 = vmatprep.subr.mxu0 0.0
        %3278 = vmatpush1.xpose.msra.mxu0 0.0
        %3279 = vmatprep.subr.mxu0 0.0
        %3280 = vmatpush1.xpose.msra.mxu0 0.0
        %3281 = vmatprep.subr.mxu0 0.0
        %3282 = vmatpush1.xpose.msra.mxu0 0.0
        %3283 = vmatprep.subr.mxu0 0.0
        %3284 = vmatpush1.xpose.msra.mxu0 0.0
        %3285 = vmatprep.subr.mxu0 0.0
        %3286 = vmatpush1.xpose.msra.mxu0 0.0
        %3287 = vmatprep.subr.mxu0 0.0
        %3288 = vmatpush1.xpose.msra.mxu0 0.0
        %3289 = vmatprep.subr.mxu0 0.0
        %3290 = vmatpush1.xpose.msra.mxu0 0.0
        %3291 = vmatprep.subr.mxu0 0.0
        %3292 = vmatpush1.xpose.msra.mxu0 0.0
        %3293 = vmatprep.subr.mxu0 0.0
        %3294 = vmatpush1.xpose.msra.mxu0 0.0
        %3295 = vmatprep.subr.mxu0 0.0
        %3296 = vmatpush1.xpose.msra.mxu0 0.0
        %3297 = vmatprep.subr.mxu0 0.0
        %3298 = vmatpush1.xpose.msra.mxu0 0.0
        %3299 = vmatprep.subr.mxu0 0.0
        %3300 = vmatpush1.xpose.msra.mxu0 0.0
        %3301 = vmatprep.subr.mxu0 0.0
        %3302 = vmatpush1.xpose.msra.mxu0 0.0
        %3303 = vmatprep.subr.mxu0 0.0
        %3304 = vmatpush1.xpose.msra.mxu0 0.0
        %3305 = vmatprep.subr.mxu0 0.0
        %3306 = vmatpush1.xpose.msra.mxu0 %v3275
        %3307 = vmatprep.subr.mxu0 0.0
        %3308 = vmatpush1.xpose.msra.mxu0 %v3272
        %3309 = vmatprep.subr.mxu0 0.0
        %3310 = vmatpush2.xpose.msra.mxu0 0.0
        %3311 = vmatprep.subr.mxu0 0.0
        %3312 = vmatpush2.xpose.msra.mxu0 0.0
        %3313 = vmatprep.subr.mxu0 0.0
        %3314 = vmatpush2.xpose.msra.mxu0 0.0
        %3315 = vmatprep.subr.mxu0 0.0
        %3316 = vmatpush2.xpose.msra.mxu0 0.0
        %3317 = vmatprep.subr.mxu0 0.0
        %3318 = vmatpush2.xpose.msra.mxu0 0.0
        %3319 = vmatprep.subr.mxu0 0.0
        %3320 = vmatpush2.xpose.msra.mxu0 0.0
        %3321 = vmatprep.subr.mxu0 0.0
        %3322 = vmatpush2.xpose.msra.mxu0 0.0
        %3323 = vmatprep.subr.mxu0 0.0
        %3324 = vmatpush2.xpose.msra.mxu0 0.0
        %3325 = vmatprep.subr.mxu0 0.0
        %3326 = vmatpush2.xpose.msra.mxu0 0.0
        %3327 = vmatprep.subr.mxu0 0.0
        %3328 = vmatpush2.xpose.msra.mxu0 0.0
        %3329 = vmatprep.subr.mxu0 0.0
        %3330 = vmatpush2.xpose.msra.mxu0 0.0
        %3331 = vmatprep.subr.mxu0 0.0
        %3332 = vmatpush2.xpose.msra.mxu0 0.0
        %3333 = vmatprep.subr.mxu0 0.0
        %3334 = vmatpush2.xpose.msra.mxu0 0.0
        %3335 = vmatprep.subr.mxu0 0.0
        %3336 = vmatpush2.xpose.msra.mxu0 0.0
        %3337 = vmatprep.subr.mxu0 0.0
        %3338 = vmatpush2.xpose.msra.mxu0 0.0
        %3339 = vmatprep.subr.mxu0 0.0
        %3340 = vmatpush2.xpose.msra.mxu0 0.0
        %3341 = vmatprep.mubr.f32.mxu0 0.0
        %3342 = vmatmul.mubr.f32.gmra.mxu0 %v3269
        %v3343 = vpop.f32.mrf.mxu0
        %v3344 = vadd.f32 0.0, %v3343
        %v3345 = vpop.f32.mrf.mxu0
        %3346 = vdwg.mxu0
        %v3348 = vsel %vm2030, %v3179, 0
        %v3351 = vsel %vm2030, %v3185, 0
        %v3354 = vsel %vm2030, %v3186, 0
        %3356 = vmatprep.subr.mxu0 0.0
        %3357 = vmatpush1.xpose.msra.mxu0 0.0
        %3358 = vmatprep.subr.mxu0 0.0
        %3359 = vmatpush1.xpose.msra.mxu0 0.0
        %3360 = vmatprep.subr.mxu0 0.0
        %3361 = vmatpush1.xpose.msra.mxu0 0.0
        %3362 = vmatprep.subr.mxu0 0.0
        %3363 = vmatpush1.xpose.msra.mxu0 0.0
        %3364 = vmatprep.subr.mxu0 0.0
        %3365 = vmatpush1.xpose.msra.mxu0 0.0
        %3366 = vmatprep.subr.mxu0 0.0
        %3367 = vmatpush1.xpose.msra.mxu0 0.0
        %3368 = vmatprep.subr.mxu0 0.0
        %3369 = vmatpush1.xpose.msra.mxu0 0.0
        %3370 = vmatprep.subr.mxu0 0.0
        %3371 = vmatpush1.xpose.msra.mxu0 0.0
        %3372 = vmatprep.subr.mxu0 0.0
        %3373 = vmatpush1.xpose.msra.mxu0 0.0
        %3374 = vmatprep.subr.mxu0 0.0
        %3375 = vmatpush1.xpose.msra.mxu0 0.0
        %3376 = vmatprep.subr.mxu0 0.0
        %3377 = vmatpush1.xpose.msra.mxu0 0.0
        %3378 = vmatprep.subr.mxu0 0.0
        %3379 = vmatpush1.xpose.msra.mxu0 0.0
        %3380 = vmatprep.subr.mxu0 0.0
        %3381 = vmatpush1.xpose.msra.mxu0 0.0
        %3382 = vmatprep.subr.mxu0 0.0
        %3383 = vmatpush1.xpose.msra.mxu0 0.0
        %3384 = vmatprep.subr.mxu0 0.0
        %3385 = vmatpush1.xpose.msra.mxu0 %v3354
        %3386 = vmatprep.subr.mxu0 0.0
        %3387 = vmatpush1.xpose.msra.mxu0 %v3351
        %3388 = vmatprep.subr.mxu0 0.0
        %3389 = vmatpush2.xpose.msra.mxu0 0.0
        %3390 = vmatprep.subr.mxu0 0.0
        %3391 = vmatpush2.xpose.msra.mxu0 0.0
        %3392 = vmatprep.subr.mxu0 0.0
        %3393 = vmatpush2.xpose.msra.mxu0 0.0
        %3394 = vmatprep.subr.mxu0 0.0
        %3395 = vmatpush2.xpose.msra.mxu0 0.0
        %3396 = vmatprep.subr.mxu0 0.0
        %3397 = vmatpush2.xpose.msra.mxu0 0.0
        %3398 = vmatprep.subr.mxu0 0.0
        %3399 = vmatpush2.xpose.msra.mxu0 0.0
        %3400 = vmatprep.subr.mxu0 0.0
        %3401 = vmatpush2.xpose.msra.mxu0 0.0
        %3402 = vmatprep.subr.mxu0 0.0
        %3403 = vmatpush2.xpose.msra.mxu0 0.0
        %3404 = vmatprep.subr.mxu0 0.0
        %3405 = vmatpush2.xpose.msra.mxu0 0.0
        %3406 = vmatprep.subr.mxu0 0.0
        %3407 = vmatpush2.xpose.msra.mxu0 0.0
        %3408 = vmatprep.subr.mxu0 0.0
        %3409 = vmatpush2.xpose.msra.mxu0 0.0
        %3410 = vmatprep.subr.mxu0 0.0
        %3411 = vmatpush2.xpose.msra.mxu0 0.0
        %3412 = vmatprep.subr.mxu0 0.0
        %3413 = vmatpush2.xpose.msra.mxu0 0.0
        %3414 = vmatprep.subr.mxu0 0.0
        %3415 = vmatpush2.xpose.msra.mxu0 0.0
        %3416 = vmatprep.subr.mxu0 0.0
        %3417 = vmatpush2.xpose.msra.mxu0 0.0
        %3418 = vmatprep.subr.mxu0 0.0
        %3419 = vmatpush2.xpose.msra.mxu0 0.0
        %3420 = vmatprep.mubr.f32.mxu0 0.0
        %3421 = vmatmul.mubr.f32.gmra.mxu0 %v3348
        %v3422 = vpop.f32.mrf.mxu0
        %v3423 = vadd.f32 0.0, %v3422
        %v3424 = vpop.f32.mrf.mxu0
        %3425 = vdwg.mxu0
        %v3427 = vsel %vm2030, %v3180, 0
        %v3430 = vsel %vm2030, %v3187, 0
        %v3433 = vsel %vm2030, %v3188, 0
        %3435 = vmatprep.subr.mxu0 0.0
        %3436 = vmatpush1.xpose.msra.mxu0 0.0
        %3437 = vmatprep.subr.mxu0 0.0
        %3438 = vmatpush1.xpose.msra.mxu0 0.0
        %3439 = vmatprep.subr.mxu0 0.0
        %3440 = vmatpush1.xpose.msra.mxu0 0.0
        %3441 = vmatprep.subr.mxu0 0.0
        %3442 = vmatpush1.xpose.msra.mxu0 0.0
        %3443 = vmatprep.subr.mxu0 0.0
        %3444 = vmatpush1.xpose.msra.mxu0 0.0
        %3445 = vmatprep.subr.mxu0 0.0
        %3446 = vmatpush1.xpose.msra.mxu0 0.0
        %3447 = vmatprep.subr.mxu0 0.0
        %3448 = vmatpush1.xpose.msra.mxu0 0.0
        %3449 = vmatprep.subr.mxu0 0.0
        %3450 = vmatpush1.xpose.msra.mxu0 0.0
        %3451 = vmatprep.subr.mxu0 0.0
        %3452 = vmatpush1.xpose.msra.mxu0 0.0
        %3453 = vmatprep.subr.mxu0 0.0
        %3454 = vmatpush1.xpose.msra.mxu0 0.0
        %3455 = vmatprep.subr.mxu0 0.0
        %3456 = vmatpush1.xpose.msra.mxu0 0.0
        %3457 = vmatprep.subr.mxu0 0.0
        %3458 = vmatpush1.xpose.msra.mxu0 0.0
        %3459 = vmatprep.subr.mxu0 0.0
        %3460 = vmatpush1.xpose.msra.mxu0 0.0
        %3461 = vmatprep.subr.mxu0 0.0
        %3462 = vmatpush1.xpose.msra.mxu0 0.0
        %3463 = vmatprep.subr.mxu0 0.0
        %3464 = vmatpush1.xpose.msra.mxu0 %v3433
        %3465 = vmatprep.subr.mxu0 0.0
        %3466 = vmatpush1.xpose.msra.mxu0 %v3430
        %3467 = vmatprep.subr.mxu0 0.0
        %3468 = vmatpush2.xpose.msra.mxu0 0.0
        %3469 = vmatprep.subr.mxu0 0.0
        %3470 = vmatpush2.xpose.msra.mxu0 0.0
        %3471 = vmatprep.subr.mxu0 0.0
        %3472 = vmatpush2.xpose.msra.mxu0 0.0
        %3473 = vmatprep.subr.mxu0 0.0
        %3474 = vmatpush2.xpose.msra.mxu0 0.0
        %3475 = vmatprep.subr.mxu0 0.0
        %3476 = vmatpush2.xpose.msra.mxu0 0.0
        %3477 = vmatprep.subr.mxu0 0.0
        %3478 = vmatpush2.xpose.msra.mxu0 0.0
        %3479 = vmatprep.subr.mxu0 0.0
        %3480 = vmatpush2.xpose.msra.mxu0 0.0
        %3481 = vmatprep.subr.mxu0 0.0
        %3482 = vmatpush2.xpose.msra.mxu0 0.0
        %3483 = vmatprep.subr.mxu0 0.0
        %3484 = vmatpush2.xpose.msra.mxu0 0.0
        %3485 = vmatprep.subr.mxu0 0.0
        %3486 = vmatpush2.xpose.msra.mxu0 0.0
        %3487 = vmatprep.subr.mxu0 0.0
        %3488 = vmatpush2.xpose.msra.mxu0 0.0
        %3489 = vmatprep.subr.mxu0 0.0
        %3490 = vmatpush2.xpose.msra.mxu0 0.0
        %3491 = vmatprep.subr.mxu0 0.0
        %3492 = vmatpush2.xpose.msra.mxu0 0.0
        %3493 = vmatprep.subr.mxu0 0.0
        %3494 = vmatpush2.xpose.msra.mxu0 0.0
        %3495 = vmatprep.subr.mxu0 0.0
        %3496 = vmatpush2.xpose.msra.mxu0 0.0
        %3497 = vmatprep.subr.mxu0 0.0
        %3498 = vmatpush2.xpose.msra.mxu0 0.0
        %3499 = vmatprep.mubr.f32.mxu0 0.0
        %3500 = vmatmul.mubr.f32.gmra.mxu0 %v3427
        %v3501 = vpop.f32.mrf.mxu0
        %v3502 = vadd.f32 0.0, %v3501
        %v3503 = vpop.f32.mrf.mxu0
        %3504 = vdwg.mxu0
        %v3505 = vsel %vm1772, 1, 0
        %v3506 = vlaneseq
        %v3507 = vshrl.u32 %v3506, 7
        %v3508 = vsub.s32 0, %v3507
        %v3509 = vrot.slane %v3505, %v3508
        %vm3510 = vcmp.eq.s32.totalorder %v3509, 1
        %v3511 = vsel %vm3510, %v3265, -1e+09
        %v3512 = vsel %vm3510, %v3344, -1e+09
        %v3513 = vsel %vm3510, %v3423, -1e+09
        %v3514 = vsel %vm3510, %v3502, -1e+09
        %v3515 = vsel %vm2844, %v3511, -inf
        %3516 = vmax.xlane.f32.xlu0 %v3515
        %v3517 = vpop.xlane.xlu0 %3516
        %v3518 = vsel %vm2844, %v3512, -inf
        %3519 = vmax.xlane.f32.xlu0 %v3518
        %v3520 = vpop.xlane.xlu0 %3519
        %v3521 = vsel %vm2844, %v3513, -inf
        %3522 = vmax.xlane.f32.xlu0 %v3521
        %v3523 = vpop.xlane.xlu0 %3522
        %v3524 = vsel %vm2844, %v3514, -inf
        %3525 = vmax.xlane.f32.xlu0 %v3524
        %v3526 = vpop.xlane.xlu0 %3525
        %v3527 = vsub.f32 %v3511, %v3517
        %v3528 = vsub.f32 %v3512, %v3520
        %v3529 = vsub.f32 %v3513, %v3523
        %v3530 = vsub.f32 %v3514, %v3526
        %v3531 = vmul.f32 %v3527, 1.442695
        %v3532 = vpow.pop %v3531
        %v3533 = vmul.f32 %v3528, 1.442695
        %v3534 = vpow.pop %v3533
        %v3535 = vmul.f32 %v3529, 1.442695
        %v3536 = vpow.pop %v3535
        %v3537 = vmul.f32 %v3530, 1.442695
        %v3538 = vpow.pop %v3537
        %v3539 = vsel %vm2844, %v3532, 0.0
        %3540 = vadd.xlane.f32.xlu0 %v3539
        %v3541 = vpop.xlane.xlu0 %3540
        %v3542 = vsel %vm2844, %v3534, 0.0
        %3543 = vadd.xlane.f32.xlu0 %v3542
        %v3544 = vpop.xlane.xlu0 %3543
        %v3545 = vsel %vm2844, %v3536, 0.0
        %3546 = vadd.xlane.f32.xlu0 %v3545
        %v3547 = vpop.xlane.xlu0 %3546
        %v3548 = vsel %vm2844, %v3538, 0.0
        %3549 = vadd.xlane.f32.xlu0 %v3548
        %v3550 = vpop.xlane.xlu0 %3549
        %v3551 = vld [vmem:[#allocation5] sm:$0xff]
        %v3552 = vld [vmem:[#allocation5 + $0x8] sm:$0xff]
        %v3553 = vld [vmem:[#allocation5 + $0x10] sm:$0xff]
        %v3554 = vld [vmem:[#allocation5 + $0x18] sm:$0xff]
        %v3555 = vld [vmem:[#allocation5 + $0x20] sm:$0xff]
        %v3556 = vld [vmem:[#allocation5 + $0x28] sm:$0xff]
        %v3557 = vld [vmem:[#allocation5 + $0x30] sm:$0xff]
        %v3558 = vld [vmem:[#allocation5 + $0x38] sm:$0xff]
        %v3560 = vsel %vm2844, %v3532, 0
        %3562 = vmatprep.subr.mxu0 0.0
        %3563 = vmatpush1.msra.mxu0 0.0
        %3564 = vmatprep.subr.mxu0 0.0
        %3565 = vmatpush1.msra.mxu0 0.0
        %3566 = vmatprep.subr.mxu0 0.0
        %3567 = vmatpush1.msra.mxu0 0.0
        %3568 = vmatprep.subr.mxu0 0.0
        %3569 = vmatpush1.msra.mxu0 0.0
        %3570 = vmatprep.subr.mxu0 0.0
        %3571 = vmatpush1.msra.mxu0 0.0
        %3572 = vmatprep.subr.mxu0 0.0
        %3573 = vmatpush1.msra.mxu0 0.0
        %3574 = vmatprep.subr.mxu0 0.0
        %3575 = vmatpush1.msra.mxu0 0.0
        %3576 = vmatprep.subr.mxu0 0.0
        %3577 = vmatpush1.msra.mxu0 0.0
        %3578 = vmatprep.subr.mxu0 0.0
        %3579 = vmatpush1.msra.mxu0 0.0
        %3580 = vmatprep.subr.mxu0 0.0
        %3581 = vmatpush1.msra.mxu0 0.0
        %3582 = vmatprep.subr.mxu0 0.0
        %3583 = vmatpush1.msra.mxu0 0.0
        %3584 = vmatprep.subr.mxu0 0.0
        %3585 = vmatpush1.msra.mxu0 0.0
        %3586 = vmatprep.subr.mxu0 0.0
        %3587 = vmatpush1.msra.mxu0 0.0
        %3588 = vmatprep.subr.mxu0 0.0
        %3589 = vmatpush1.msra.mxu0 0.0
        %3590 = vmatprep.subr.mxu0 0.0
        %3591 = vmatpush1.msra.mxu0 %v3552
        %3592 = vmatprep.subr.mxu0 0.0
        %3593 = vmatpush1.msra.mxu0 %v3551
        %3594 = vmatprep.subr.mxu0 0.0
        %3595 = vmatpush2.msra.mxu0 0.0
        %3596 = vmatprep.subr.mxu0 0.0
        %3597 = vmatpush2.msra.mxu0 0.0
        %3598 = vmatprep.subr.mxu0 0.0
        %3599 = vmatpush2.msra.mxu0 0.0
        %3600 = vmatprep.subr.mxu0 0.0
        %3601 = vmatpush2.msra.mxu0 0.0
        %3602 = vmatprep.subr.mxu0 0.0
        %3603 = vmatpush2.msra.mxu0 0.0
        %3604 = vmatprep.subr.mxu0 0.0
        %3605 = vmatpush2.msra.mxu0 0.0
        %3606 = vmatprep.subr.mxu0 0.0
        %3607 = vmatpush2.msra.mxu0 0.0
        %3608 = vmatprep.subr.mxu0 0.0
        %3609 = vmatpush2.msra.mxu0 0.0
        %3610 = vmatprep.subr.mxu0 0.0
        %3611 = vmatpush2.msra.mxu0 0.0
        %3612 = vmatprep.subr.mxu0 0.0
        %3613 = vmatpush2.msra.mxu0 0.0
        %3614 = vmatprep.subr.mxu0 0.0
        %3615 = vmatpush2.msra.mxu0 0.0
        %3616 = vmatprep.subr.mxu0 0.0
        %3617 = vmatpush2.msra.mxu0 0.0
        %3618 = vmatprep.subr.mxu0 0.0
        %3619 = vmatpush2.msra.mxu0 0.0
        %3620 = vmatprep.subr.mxu0 0.0
        %3621 = vmatpush2.msra.mxu0 0.0
        %3622 = vmatprep.subr.mxu0 0.0
        %3623 = vmatpush2.msra.mxu0 0.0
        %3624 = vmatprep.subr.mxu0 0.0
        %3625 = vmatpush2.msra.mxu0 0.0
        %3626 = vmatprep.mubr.f32.mxu0 0.0
        %3627 = vmatmul.mubr.f32.gmra.mxu0 %v3560
        %v3628 = vpop.f32.mrf.mxu0
        %v3629 = vadd.f32 0.0, %v3628
        %v3630 = vpop.f32.mrf.mxu0
        %3631 = vdwg.mxu0
        %v3633 = vsel %vm2844, %v3534, 0
        %3635 = vmatprep.subr.mxu0 0.0
        %3636 = vmatpush1.msra.mxu0 0.0
        %3637 = vmatprep.subr.mxu0 0.0
        %3638 = vmatpush1.msra.mxu0 0.0
        %3639 = vmatprep.subr.mxu0 0.0
        %3640 = vmatpush1.msra.mxu0 0.0
        %3641 = vmatprep.subr.mxu0 0.0
        %3642 = vmatpush1.msra.mxu0 0.0
        %3643 = vmatprep.subr.mxu0 0.0
        %3644 = vmatpush1.msra.mxu0 0.0
        %3645 = vmatprep.subr.mxu0 0.0
        %3646 = vmatpush1.msra.mxu0 0.0
        %3647 = vmatprep.subr.mxu0 0.0
        %3648 = vmatpush1.msra.mxu0 0.0
        %3649 = vmatprep.subr.mxu0 0.0
        %3650 = vmatpush1.msra.mxu0 0.0
        %3651 = vmatprep.subr.mxu0 0.0
        %3652 = vmatpush1.msra.mxu0 0.0
        %3653 = vmatprep.subr.mxu0 0.0
        %3654 = vmatpush1.msra.mxu0 0.0
        %3655 = vmatprep.subr.mxu0 0.0
        %3656 = vmatpush1.msra.mxu0 0.0
        %3657 = vmatprep.subr.mxu0 0.0
        %3658 = vmatpush1.msra.mxu0 0.0
        %3659 = vmatprep.subr.mxu0 0.0
        %3660 = vmatpush1.msra.mxu0 0.0
        %3661 = vmatprep.subr.mxu0 0.0
        %3662 = vmatpush1.msra.mxu0 0.0
        %3663 = vmatprep.subr.mxu0 0.0
        %3664 = vmatpush1.msra.mxu0 %v3554
        %3665 = vmatprep.subr.mxu0 0.0
        %3666 = vmatpush1.msra.mxu0 %v3553
        %3667 = vmatprep.subr.mxu0 0.0
        %3668 = vmatpush2.msra.mxu0 0.0
        %3669 = vmatprep.subr.mxu0 0.0
        %3670 = vmatpush2.msra.mxu0 0.0
        %3671 = vmatprep.subr.mxu0 0.0
        %3672 = vmatpush2.msra.mxu0 0.0
        %3673 = vmatprep.subr.mxu0 0.0
        %3674 = vmatpush2.msra.mxu0 0.0
        %3675 = vmatprep.subr.mxu0 0.0
        %3676 = vmatpush2.msra.mxu0 0.0
        %3677 = vmatprep.subr.mxu0 0.0
        %3678 = vmatpush2.msra.mxu0 0.0
        %3679 = vmatprep.subr.mxu0 0.0
        %3680 = vmatpush2.msra.mxu0 0.0
        %3681 = vmatprep.subr.mxu0 0.0
        %3682 = vmatpush2.msra.mxu0 0.0
        %3683 = vmatprep.subr.mxu0 0.0
        %3684 = vmatpush2.msra.mxu0 0.0
        %3685 = vmatprep.subr.mxu0 0.0
        %3686 = vmatpush2.msra.mxu0 0.0
        %3687 = vmatprep.subr.mxu0 0.0
        %3688 = vmatpush2.msra.mxu0 0.0
        %3689 = vmatprep.subr.mxu0 0.0
        %3690 = vmatpush2.msra.mxu0 0.0
        %3691 = vmatprep.subr.mxu0 0.0
        %3692 = vmatpush2.msra.mxu0 0.0
        %3693 = vmatprep.subr.mxu0 0.0
        %3694 = vmatpush2.msra.mxu0 0.0
        %3695 = vmatprep.subr.mxu0 0.0
        %3696 = vmatpush2.msra.mxu0 0.0
        %3697 = vmatprep.subr.mxu0 0.0
        %3698 = vmatpush2.msra.mxu0 0.0
        %3699 = vmatprep.mubr.f32.mxu0 0.0
        %3700 = vmatmul.mubr.f32.gmra.mxu0 %v3633
        %v3701 = vpop.f32.mrf.mxu0
        %v3702 = vadd.f32 0.0, %v3701
        %v3703 = vpop.f32.mrf.mxu0
        %3704 = vdwg.mxu0
        %v3706 = vsel %vm2844, %v3536, 0
        %3708 = vmatprep.subr.mxu0 0.0
        %3709 = vmatpush1.msra.mxu0 0.0
        %3710 = vmatprep.subr.mxu0 0.0
        %3711 = vmatpush1.msra.mxu0 0.0
        %3712 = vmatprep.subr.mxu0 0.0
        %3713 = vmatpush1.msra.mxu0 0.0
        %3714 = vmatprep.subr.mxu0 0.0
        %3715 = vmatpush1.msra.mxu0 0.0
        %3716 = vmatprep.subr.mxu0 0.0
        %3717 = vmatpush1.msra.mxu0 0.0
        %3718 = vmatprep.subr.mxu0 0.0
        %3719 = vmatpush1.msra.mxu0 0.0
        %3720 = vmatprep.subr.mxu0 0.0
        %3721 = vmatpush1.msra.mxu0 0.0
        %3722 = vmatprep.subr.mxu0 0.0
        %3723 = vmatpush1.msra.mxu0 0.0
        %3724 = vmatprep.subr.mxu0 0.0
        %3725 = vmatpush1.msra.mxu0 0.0
        %3726 = vmatprep.subr.mxu0 0.0
        %3727 = vmatpush1.msra.mxu0 0.0
        %3728 = vmatprep.subr.mxu0 0.0
        %3729 = vmatpush1.msra.mxu0 0.0
        %3730 = vmatprep.subr.mxu0 0.0
        %3731 = vmatpush1.msra.mxu0 0.0
        %3732 = vmatprep.subr.mxu0 0.0
        %3733 = vmatpush1.msra.mxu0 0.0
        %3734 = vmatprep.subr.mxu0 0.0
        %3735 = vmatpush1.msra.mxu0 0.0
        %3736 = vmatprep.subr.mxu0 0.0
        %3737 = vmatpush1.msra.mxu0 %v3556
        %3738 = vmatprep.subr.mxu0 0.0
        %3739 = vmatpush1.msra.mxu0 %v3555
        %3740 = vmatprep.subr.mxu0 0.0
        %3741 = vmatpush2.msra.mxu0 0.0
        %3742 = vmatprep.subr.mxu0 0.0
        %3743 = vmatpush2.msra.mxu0 0.0
        %3744 = vmatprep.subr.mxu0 0.0
        %3745 = vmatpush2.msra.mxu0 0.0
        %3746 = vmatprep.subr.mxu0 0.0
        %3747 = vmatpush2.msra.mxu0 0.0
        %3748 = vmatprep.subr.mxu0 0.0
        %3749 = vmatpush2.msra.mxu0 0.0
        %3750 = vmatprep.subr.mxu0 0.0
        %3751 = vmatpush2.msra.mxu0 0.0
        %3752 = vmatprep.subr.mxu0 0.0
        %3753 = vmatpush2.msra.mxu0 0.0
        %3754 = vmatprep.subr.mxu0 0.0
        %3755 = vmatpush2.msra.mxu0 0.0
        %3756 = vmatprep.subr.mxu0 0.0
        %3757 = vmatpush2.msra.mxu0 0.0
        %3758 = vmatprep.subr.mxu0 0.0
        %3759 = vmatpush2.msra.mxu0 0.0
        %3760 = vmatprep.subr.mxu0 0.0
        %3761 = vmatpush2.msra.mxu0 0.0
        %3762 = vmatprep.subr.mxu0 0.0
        %3763 = vmatpush2.msra.mxu0 0.0
        %3764 = vmatprep.subr.mxu0 0.0
        %3765 = vmatpush2.msra.mxu0 0.0
        %3766 = vmatprep.subr.mxu0 0.0
        %3767 = vmatpush2.msra.mxu0 0.0
        %3768 = vmatprep.subr.mxu0 0.0
        %3769 = vmatpush2.msra.mxu0 0.0
        %3770 = vmatprep.subr.mxu0 0.0
        %3771 = vmatpush2.msra.mxu0 0.0
        %3772 = vmatprep.mubr.f32.mxu0 0.0
        %3773 = vmatmul.mubr.f32.gmra.mxu0 %v3706
        %v3774 = vpop.f32.mrf.mxu0
        %v3775 = vadd.f32 0.0, %v3774
        %v3776 = vpop.f32.mrf.mxu0
        %3777 = vdwg.mxu0
        %v3779 = vsel %vm2844, %v3538, 0
        %3781 = vmatprep.subr.mxu0 0.0
        %3782 = vmatpush1.msra.mxu0 0.0
        %3783 = vmatprep.subr.mxu0 0.0
        %3784 = vmatpush1.msra.mxu0 0.0
        %3785 = vmatprep.subr.mxu0 0.0
        %3786 = vmatpush1.msra.mxu0 0.0
        %3787 = vmatprep.subr.mxu0 0.0
        %3788 = vmatpush1.msra.mxu0 0.0
        %3789 = vmatprep.subr.mxu0 0.0
        %3790 = vmatpush1.msra.mxu0 0.0
        %3791 = vmatprep.subr.mxu0 0.0
        %3792 = vmatpush1.msra.mxu0 0.0
        %3793 = vmatprep.subr.mxu0 0.0
        %3794 = vmatpush1.msra.mxu0 0.0
        %3795 = vmatprep.subr.mxu0 0.0
        %3796 = vmatpush1.msra.mxu0 0.0
        %3797 = vmatprep.subr.mxu0 0.0
        %3798 = vmatpush1.msra.mxu0 0.0
        %3799 = vmatprep.subr.mxu0 0.0
        %3800 = vmatpush1.msra.mxu0 0.0
        %3801 = vmatprep.subr.mxu0 0.0
        %3802 = vmatpush1.msra.mxu0 0.0
        %3803 = vmatprep.subr.mxu0 0.0
        %3804 = vmatpush1.msra.mxu0 0.0
        %3805 = vmatprep.subr.mxu0 0.0
        %3806 = vmatpush1.msra.mxu0 0.0
        %3807 = vmatprep.subr.mxu0 0.0
        %3808 = vmatpush1.msra.mxu0 0.0
        %3809 = vmatprep.subr.mxu0 0.0
        %3810 = vmatpush1.msra.mxu0 %v3558
        %3811 = vmatprep.subr.mxu0 0.0
        %3812 = vmatpush1.msra.mxu0 %v3557
        %3813 = vmatprep.subr.mxu0 0.0
        %3814 = vmatpush2.msra.mxu0 0.0
        %3815 = vmatprep.subr.mxu0 0.0
        %3816 = vmatpush2.msra.mxu0 0.0
        %3817 = vmatprep.subr.mxu0 0.0
        %3818 = vmatpush2.msra.mxu0 0.0
        %3819 = vmatprep.subr.mxu0 0.0
        %3820 = vmatpush2.msra.mxu0 0.0
        %3821 = vmatprep.subr.mxu0 0.0
        %3822 = vmatpush2.msra.mxu0 0.0
        %3823 = vmatprep.subr.mxu0 0.0
        %3824 = vmatpush2.msra.mxu0 0.0
        %3825 = vmatprep.subr.mxu0 0.0
        %3826 = vmatpush2.msra.mxu0 0.0
        %3827 = vmatprep.subr.mxu0 0.0
        %3828 = vmatpush2.msra.mxu0 0.0
        %3829 = vmatprep.subr.mxu0 0.0
        %3830 = vmatpush2.msra.mxu0 0.0
        %3831 = vmatprep.subr.mxu0 0.0
        %3832 = vmatpush2.msra.mxu0 0.0
        %3833 = vmatprep.subr.mxu0 0.0
        %3834 = vmatpush2.msra.mxu0 0.0
        %3835 = vmatprep.subr.mxu0 0.0
        %3836 = vmatpush2.msra.mxu0 0.0
        %3837 = vmatprep.subr.mxu0 0.0
        %3838 = vmatpush2.msra.mxu0 0.0
        %3839 = vmatprep.subr.mxu0 0.0
        %3840 = vmatpush2.msra.mxu0 0.0
        %3841 = vmatprep.subr.mxu0 0.0
        %3842 = vmatpush2.msra.mxu0 0.0
        %3843 = vmatprep.subr.mxu0 0.0
        %3844 = vmatpush2.msra.mxu0 0.0
        %3845 = vmatprep.mubr.f32.mxu0 0.0
        %3846 = vmatmul.mubr.f32.gmra.mxu0 %v3779
        %v3847 = vpop.f32.mrf.mxu0
        %v3848 = vadd.f32 0.0, %v3847
        %v3849 = vpop.f32.mrf.mxu0
        %3850 = vdwg.mxu0
        %v3851 = vrcp.pop %v3541
        %v3852 = vrcp.pop %v3544
        %v3853 = vrcp.pop %v3547
        %v3854 = vrcp.pop %v3550
        %v3855 = vmul.f32 %v3629, %v3851
        %v3856 = vmul.f32 %v3702, %v3852
        %v3857 = vmul.f32 %v3775, %v3853
        %v3858 = vmul.f32 %v3848, %v3854
        %v3859 = vcombine.low %v3855, %v3857
        %v3860 = vcombine.high %v3855, %v3857
        %v3862 = vunpack.c.l.s4 1983009808
        %v3863 = vunpack.c.0.s8 %v3862
        %v3864 = vlaneseq
        %v3865 = vshrl.u32 %v3864, 7
        %v3866 = vsub.s32 %v3863, %v3865
        %v3867 = vrot.slane %v3859, %v3866
        %v3869 = vunpack.c.l.s4 1983009808
        %v3870 = vunpack.c.0.s8 %v3869
        %v3871 = vlaneseq
        %v3872 = vshrl.u32 %v3871, 7
        %v3873 = vsub.s32 %v3870, %v3872
        %v3874 = vrot.slane %v3860, %v3873
        %v3875 = vcombine.low %v3856, %v3858
        %v3876 = vcombine.high %v3856, %v3858
        %v3878 = vunpack.c.l.s4 1983009808
        %v3879 = vunpack.c.0.s8 %v3878
        %v3880 = vlaneseq
        %v3881 = vshrl.u32 %v3880, 7
        %v3882 = vsub.s32 %v3879, %v3881
        %v3883 = vrot.slane %v3875, %v3882
        %v3885 = vunpack.c.l.s4 1983009808
        %v3886 = vunpack.c.0.s8 %v3885
        %v3887 = vlaneseq
        %v3888 = vshrl.u32 %v3887, 7
        %v3889 = vsub.s32 %v3886, %v3888
        %v3890 = vrot.slane %v3876, %v3889
        %v3891 = vcombine.low %v3867, %v3883
        %v3892 = vcombine.high %v3867, %v3883
        %v3894 = vunpack.c.l.s4 1934713408
        %v3895 = vunpack.c.0.s8 %v3894
        %v3896 = vlaneseq
        %v3897 = vshrl.u32 %v3896, 7
        %v3898 = vsub.s32 %v3895, %v3897
        %v3899 = vrot.slane %v3891, %v3898
        %v3901 = vunpack.c.l.s4 1934713408
        %v3902 = vunpack.c.0.s8 %v3901
        %v3903 = vlaneseq
        %v3904 = vshrl.u32 %v3903, 7
        %v3905 = vsub.s32 %v3902, %v3904
        %v3906 = vrot.slane %v3892, %v3905
        %v3907 = vcombine.low %v3874, %v3890
        %v3908 = vcombine.high %v3874, %v3890
        %v3910 = vunpack.c.l.s4 1934713408
        %v3911 = vunpack.c.0.s8 %v3910
        %v3912 = vlaneseq
        %v3913 = vshrl.u32 %v3912, 7
        %v3914 = vsub.s32 %v3911, %v3913
        %v3915 = vrot.slane %v3907, %v3914
        %v3917 = vunpack.c.l.s4 1934713408
        %v3918 = vunpack.c.0.s8 %v3917
        %v3919 = vlaneseq
        %v3920 = vshrl.u32 %v3919, 7
        %v3921 = vsub.s32 %v3918, %v3920
        %v3922 = vrot.slane %v3908, %v3921
        %v3923 = vcombine.high %v3899, 0.0
        %v3924 = vcombine.high %v3906, 0.0
        %v3925 = vcombine.high %v3915, 0.0
        %v3926 = vcombine.high %v3922, 0.0
        %v3927 = vcombine.low %v3899, %v3906
        %v3929 = vunpack.c.l.s4 1983009808
        %v3930 = vunpack.c.0.s8 %v3929
        %v3931 = vlaneseq
        %v3932 = vshrl.u32 %v3931, 7
        %v3933 = vsub.s32 %v3930, %v3932
        %v3934 = vrot.slane %v3927, %v3933
        %v3935 = vcombine.low %v3923, %v3924
        %v3937 = vunpack.c.l.s4 1983009808
        %v3938 = vunpack.c.0.s8 %v3937
        %v3939 = vlaneseq
        %v3940 = vshrl.u32 %v3939, 7
        %v3941 = vsub.s32 %v3938, %v3940
        %v3942 = vrot.slane %v3935, %v3941
        %v3943 = vcombine.low %v3915, %v3922
        %v3945 = vunpack.c.l.s4 1983009808
        %v3946 = vunpack.c.0.s8 %v3945
        %v3947 = vlaneseq
        %v3948 = vshrl.u32 %v3947, 7
        %v3949 = vsub.s32 %v3946, %v3948
        %v3950 = vrot.slane %v3943, %v3949
        %v3951 = vcombine.low %v3925, %v3926
        %v3953 = vunpack.c.l.s4 1983009808
        %v3954 = vunpack.c.0.s8 %v3953
        %v3955 = vlaneseq
        %v3956 = vshrl.u32 %v3955, 7
        %v3957 = vsub.s32 %v3954, %v3956
        %v3958 = vrot.slane %v3951, %v3957
        %v3959 = vcombine.low %v3934, %v3942
        %v3960 = vcombine.high %v3934, %v3942
        %v3962 = vunpack.c.l.s4 1934713408
        %v3963 = vunpack.c.0.s8 %v3962
        %v3964 = vlaneseq
        %v3965 = vshrl.u32 %v3964, 7
        %v3966 = vsub.s32 %v3963, %v3965
        %v3967 = vrot.slane %v3959, %v3966
        %v3969 = vunpack.c.l.s4 1934713408
        %v3970 = vunpack.c.0.s8 %v3969
        %v3971 = vlaneseq
        %v3972 = vshrl.u32 %v3971, 7
        %v3973 = vsub.s32 %v3970, %v3972
        %v3974 = vrot.slane %v3960, %v3973
        %v3975 = vcombine.low %v3950, %v3958
        %v3976 = vcombine.high %v3950, %v3958
        %v3978 = vunpack.c.l.s4 1934713408
        %v3979 = vunpack.c.0.s8 %v3978
        %v3980 = vlaneseq
        %v3981 = vshrl.u32 %v3980, 7
        %v3982 = vsub.s32 %v3979, %v3981
        %v3983 = vrot.slane %v3975, %v3982
        %v3985 = vunpack.c.l.s4 1934713408
        %v3986 = vunpack.c.0.s8 %v3985
        %v3987 = vlaneseq
        %v3988 = vshrl.u32 %v3987, 7
        %v3989 = vsub.s32 %v3986, %v3988
        %v3990 = vrot.slane %v3976, %v3989
        %v3991 = vcombine.low %v3967, %v3983
        %v3992 = vcombine.high %v3967, %v3983
        %v3993 = vcombine.low %v3974, %v3990
        %v3994 = vcombine.high %v3974, %v3990
        %3996 = vrot.lane.b32.xlu0 %v3992, 8
        %v3997 = vpop.permute.xlu0 %3996
        %4000 = vrot.lane.b32.xlu0 %v3993, 16
        %v4001 = vpop.permute.xlu0 %4000
        %4004 = vrot.lane.b32.xlu0 %v3994, 24
        %v4005 = vpop.permute.xlu0 %4004
        %v4007 = vsel %vm2030, %v3991, %v3997
        %v4008 = vsel %vm2844, %v4007, %v4001
        %v4009 = vsel %vm2846, %v4008, %v4005
        %v4010 = vld [vmem:[#allocation18] sm:$0xff]
        %v4011 = vld [vmem:[#allocation18 + $0x8] sm:$0xff]
        %v4012 = vld [vmem:[#allocation18 + $0x10] sm:$0xff]
        %v4013 = vld [vmem:[#allocation18 + $0x18] sm:$0xff]
        %v4014 = vlaneseq
        %v4015 = vshrl.u32 %v4014, 7
        %v4016 = vsub.s32 7, %v4015
        %v4017 = vrot.slane %v612, %v4016
        %v4019 = vsel %vm1773, %v4009, 0
        %4021 = vmatprep.subr.mxu0 0.0
        %4022 = vmatpush1.msra.mxu0 0.0
        %4023 = vmatprep.subr.mxu0 0.0
        %4024 = vmatpush1.msra.mxu0 0.0
        %4025 = vmatprep.subr.mxu0 0.0
        %4026 = vmatpush1.msra.mxu0 0.0
        %4027 = vmatprep.subr.mxu0 0.0
        %4028 = vmatpush1.msra.mxu0 0.0
        %4029 = vmatprep.subr.mxu0 0.0
        %4030 = vmatpush1.msra.mxu0 0.0
        %4031 = vmatprep.subr.mxu0 0.0
        %4032 = vmatpush1.msra.mxu0 0.0
        %4033 = vmatprep.subr.mxu0 0.0
        %4034 = vmatpush1.msra.mxu0 0.0
        %4035 = vmatprep.subr.mxu0 0.0
        %4036 = vmatpush1.msra.mxu0 0.0
        %4037 = vmatprep.subr.mxu0 0.0
        %4038 = vmatpush1.msra.mxu0 0.0
        %4039 = vmatprep.subr.mxu0 0.0
        %4040 = vmatpush1.msra.mxu0 0.0
        %4041 = vmatprep.subr.mxu0 0.0
        %4042 = vmatpush1.msra.mxu0 0.0
        %4043 = vmatprep.subr.mxu0 0.0
        %4044 = vmatpush1.msra.mxu0 0.0
        %4045 = vmatprep.subr.mxu0 0.0
        %4046 = vmatpush1.msra.mxu0 %v4013
        %4047 = vmatprep.subr.mxu0 0.0
        %4048 = vmatpush1.msra.mxu0 %v4012
        %4049 = vmatprep.subr.mxu0 0.0
        %4050 = vmatpush1.msra.mxu0 %v4011
        %4051 = vmatprep.subr.mxu0 0.0
        %4052 = vmatpush1.msra.mxu0 %v4010
        %4053 = vmatprep.subr.mxu0 0.0
        %4054 = vmatpush2.msra.mxu0 0.0
        %4055 = vmatprep.subr.mxu0 0.0
        %4056 = vmatpush2.msra.mxu0 0.0
        %4057 = vmatprep.subr.mxu0 0.0
        %4058 = vmatpush2.msra.mxu0 0.0
        %4059 = vmatprep.subr.mxu0 0.0
        %4060 = vmatpush2.msra.mxu0 0.0
        %4061 = vmatprep.subr.mxu0 0.0
        %4062 = vmatpush2.msra.mxu0 0.0
        %4063 = vmatprep.subr.mxu0 0.0
        %4064 = vmatpush2.msra.mxu0 0.0
        %4065 = vmatprep.subr.mxu0 0.0
        %4066 = vmatpush2.msra.mxu0 0.0
        %4067 = vmatprep.subr.mxu0 0.0
        %4068 = vmatpush2.msra.mxu0 0.0
        %4069 = vmatprep.subr.mxu0 0.0
        %4070 = vmatpush2.msra.mxu0 0.0
        %4071 = vmatprep.subr.mxu0 0.0
        %4072 = vmatpush2.msra.mxu0 0.0
        %4073 = vmatprep.subr.mxu0 0.0
        %4074 = vmatpush2.msra.mxu0 0.0
        %4075 = vmatprep.subr.mxu0 0.0
        %4076 = vmatpush2.msra.mxu0 0.0
        %4077 = vmatprep.subr.mxu0 0.0
        %4078 = vmatpush2.msra.mxu0 0.0
        %4079 = vmatprep.subr.mxu0 0.0
        %4080 = vmatpush2.msra.mxu0 0.0
        %4081 = vmatprep.subr.mxu0 0.0
        %4082 = vmatpush2.msra.mxu0 0.0
        %4083 = vmatprep.subr.mxu0 0.0
        %4084 = vmatpush2.msra.mxu0 0.0
        %4085 = vmatprep.mubr.f32.mxu0 0.0
        %4086 = vmatmul.mubr.f32.gmra.mxu0 %v4019
        %v4087 = vpop.f32.mrf.mxu0
        %v4088 = vadd.f32 %v4017, %v4087
        %v4089 = vpop.f32.mrf.mxu0
        %4090 = vdwg.mxu0
        %v4091 = vadd.f32 %v2929, %v4088
        %v4092 = vsel %vm1773, %v4091, 0.0
        %4093 = vadd.xlane.f32.xlu0 %v4092
        %v4094 = vpop.xlane.xlu0 %4093
        %v4095 = vmul.f32 %v4094, %v1777
        %v4096 = vsub.f32 %v4091, %v4095
        %v4097 = vmul.f32 %v4096, %v4096
        %v4098 = vsel %vm1773, %v4097, 0.0
        %4099 = vadd.xlane.f32.xlu0 %v4098
        %v4100 = vpop.xlane.xlu0 %4099
        %v4101 = vmul.f32 %v4100, %v1777
        %v4102 = vadd.f32 %v4101, 1e-05
        %v4103 = vrsqrt.pop %v4102
        %v4104 = vmul.f32 %v4096, %v4103
        %v4105 = vlaneseq
        %v4106 = vshrl.u32 %v4105, 7
        %v4107 = vsub.s32 5, %v4106
        %v4108 = vrot.slane %v613, %v4107
        %v4109 = vmul.f32 %v4104, %v4108
        %v4110 = vlaneseq
        %v4111 = vshrl.u32 %v4110, 7
        %v4112 = vsub.s32 6, %v4111
        %v4113 = vrot.slane %v613, %v4112
        %v4114 = vadd.f32 %v4109, %v4113
        %v4115 = vld [vmem:[#allocation20] sm:$0xff]
        %v4116 = vld [vmem:[#allocation20 + $0x8] sm:$0xff]
        %v4117 = vld [vmem:[#allocation20 + $0x10] sm:$0xff]
        %v4118 = vld [vmem:[#allocation20 + $0x18] sm:$0xff]
        %v4119 = vlaneseq
        %v4120 = vshrl.u32 %v4119, 7
        %v4121 = vsub.s32 0, %v4120
        %v4122 = vrot.slane %v613, %v4121
        %v4124 = vsel %vm1773, %v4114, 0
        %4126 = vmatprep.subr.mxu0 0.0
        %4127 = vmatpush1.msra.mxu0 0.0
        %4128 = vmatprep.subr.mxu0 0.0
        %4129 = vmatpush1.msra.mxu0 0.0
        %4130 = vmatprep.subr.mxu0 0.0
        %4131 = vmatpush1.msra.mxu0 0.0
        %4132 = vmatprep.subr.mxu0 0.0
        %4133 = vmatpush1.msra.mxu0 0.0
        %4134 = vmatprep.subr.mxu0 0.0
        %4135 = vmatpush1.msra.mxu0 0.0
        %4136 = vmatprep.subr.mxu0 0.0
        %4137 = vmatpush1.msra.mxu0 0.0
        %4138 = vmatprep.subr.mxu0 0.0
        %4139 = vmatpush1.msra.mxu0 0.0
        %4140 = vmatprep.subr.mxu0 0.0
        %4141 = vmatpush1.msra.mxu0 0.0
        %4142 = vmatprep.subr.mxu0 0.0
        %4143 = vmatpush1.msra.mxu0 0.0
        %4144 = vmatprep.subr.mxu0 0.0
        %4145 = vmatpush1.msra.mxu0 0.0
        %4146 = vmatprep.subr.mxu0 0.0
        %4147 = vmatpush1.msra.mxu0 0.0
        %4148 = vmatprep.subr.mxu0 0.0
        %4149 = vmatpush1.msra.mxu0 0.0
        %4150 = vmatprep.subr.mxu0 0.0
        %4151 = vmatpush1.msra.mxu0 %v4118
        %4152 = vmatprep.subr.mxu0 0.0
        %4153 = vmatpush1.msra.mxu0 %v4117
        %4154 = vmatprep.subr.mxu0 0.0
        %4155 = vmatpush1.msra.mxu0 %v4116
        %4156 = vmatprep.subr.mxu0 0.0
        %4157 = vmatpush1.msra.mxu0 %v4115
        %4158 = vmatprep.subr.mxu0 0.0
        %4159 = vmatpush2.msra.mxu0 0.0
        %4160 = vmatprep.subr.mxu0 0.0
        %4161 = vmatpush2.msra.mxu0 0.0
        %4162 = vmatprep.subr.mxu0 0.0
        %4163 = vmatpush2.msra.mxu0 0.0
        %4164 = vmatprep.subr.mxu0 0.0
        %4165 = vmatpush2.msra.mxu0 0.0
        %4166 = vmatprep.subr.mxu0 0.0
        %4167 = vmatpush2.msra.mxu0 0.0
        %4168 = vmatprep.subr.mxu0 0.0
        %4169 = vmatpush2.msra.mxu0 0.0
        %4170 = vmatprep.subr.mxu0 0.0
        %4171 = vmatpush2.msra.mxu0 0.0
        %4172 = vmatprep.subr.mxu0 0.0
        %4173 = vmatpush2.msra.mxu0 0.0
        %4174 = vmatprep.subr.mxu0 0.0
        %4175 = vmatpush2.msra.mxu0 0.0
        %4176 = vmatprep.subr.mxu0 0.0
        %4177 = vmatpush2.msra.mxu0 0.0
        %4178 = vmatprep.subr.mxu0 0.0
        %4179 = vmatpush2.msra.mxu0 0.0
        %4180 = vmatprep.subr.mxu0 0.0
        %4181 = vmatpush2.msra.mxu0 0.0
        %4182 = vmatprep.subr.mxu0 0.0
        %4183 = vmatpush2.msra.mxu0 0.0
        %4184 = vmatprep.subr.mxu0 0.0
        %4185 = vmatpush2.msra.mxu0 0.0
        %4186 = vmatprep.subr.mxu0 0.0
        %4187 = vmatpush2.msra.mxu0 0.0
        %4188 = vmatprep.subr.mxu0 0.0
        %4189 = vmatpush2.msra.mxu0 0.0
        %4190 = vmatprep.mubr.f32.mxu0 0.0
        %4191 = vmatmul.mubr.f32.gmra.mxu0 %v4124
        %v4192 = vpop.f32.mrf.mxu0
        %v4193 = vadd.f32 %v4122, %v4192
        %v4194 = vpop.f32.mrf.mxu0
        %4195 = vdwg.mxu0
        %v4196 = vmax.f32 %v4193, 0.0
        %v4197 = vadd.f32 %v4091, %v4196
        %4198 = vst.msk [vmem:[%s605] sm:$0xff] %vm1773, %v4197
        %s4199 = sand.u32 %s329, 1
        %s4200 = scalar_lea.sflag [#allocation8], %s4199
        %s4201 = sand.u32 %s329, 1
        %s4202 = smul.addr %s4201, 8
        %s4203 = scalar_lea.vmem [#allocation21], %s4202
        // Predicated region
        $region109: #{tpu_custom_call.1} parent=67 // pred_check
          %p4204 = pneg %p339
        $region110: #{tpu_custom_call.1} parent=67 // pred_check_branch
          %4206 = sbr.rel (%p4204) target = $region112
        $region111: #{tpu_custom_call.1} parent=67 // pred_region
          %s4208 = ssub.s32 128, 128
          %4209 = vsyncadd %s4200, %s4208
          %s4210 = sadd.s32 %s40, %s39
          %s4211 = smul.addr %s4210, 128
          %s4212 = scalar_lea.hbm %s12, %s4211
          %s4214 = sshll.u32 %s4203, 4
          %s4215 = int_to_ptr.vmem [resolvable:$true] %s4214
          %4217 = dma.vmem_to_hbm [thread:$0]  %s4215, 128, %s4212, %s4200
        $region112: #{tpu_custom_call.1} parent=67 // pred_fallthru
          _
      $region68: #{tpu_custom_call.1} parent=5 // pred_fallthru
        _
      %p4218 = scmp.le.s32.totalorder 2, %s30
      // Predicated region
      $region113: #{tpu_custom_call.1} parent=5 // pred_check
        %p4219 = pneg %p4218
      $region114: #{tpu_custom_call.1} parent=5 // pred_check_branch
        %4221 = sbr.rel (%p4219) target = $region116
      $region115: #{tpu_custom_call.1} parent=5 // pred_region
        %s4222 = ssub.s32 %s30, 2
        // Predicated region
        $region117: #{tpu_custom_call.1} parent=115 // pred_check
          %p4223 = pneg %p345
        $region118: #{tpu_custom_call.1} parent=115 // pred_check_branch
          %4225 = sbr.rel (%p4223) target = $region120
        $region119: #{tpu_custom_call.1} parent=115 // pred_region
          %s4226 = sand.u32 %s330, 1
          %s4227 = scalar_lea.sflag [#allocation8], %s4226
          %s4228 = sand.u32 %s330, 1
          %s4229 = smul.addr %s4228, 8
          %s4230 = scalar_lea.vmem [#allocation21], %s4229
          %4231 = dma.done %s4227, 128
        $region120: #{tpu_custom_call.1} parent=115 // pred_fallthru
          _
      $region116: #{tpu_custom_call.1} parent=5 // pred_fallthru
        _
    $region6: #{tpu_custom_call.1} parent=1 // loop_footer
      %s34 = sadd.s32 1, %s30
    $region7: #{tpu_custom_call.1} parent=1 // loop_footer_branch
      %29 = sbr.rel target = $region3
    $region8: #{tpu_custom_call.1} parent=1 // loop_exit
      _
    %4232 = vsyncpa [#allocation7], 1
    %s4233 = scalar_lea.sflag [#allocation7], 1
    %4234 = vsyncpa %s4233, 1
    %4235 = vsyncpa [#allocation10], 1
    %s4236 = scalar_lea.sflag [#allocation10], 1
    %4237 = vsyncpa %s4236, 1
    %4238 = vsyncpa [#allocation13], 1
    %4239 = vsyncpa [#allocation16], 1
    %4240 = vsyncpa [#allocation19], 1
    %4241 = vsyncpa [#allocation8], 1
    %s4242 = scalar_lea.sflag [#allocation8], 1
    %4243 = vsyncpa %s4242, 1

// kernel: tpu_custom_call.1
$region0: #{tpu_custom_call.1}
  #allocation0 [shape = 'u32[]', space=smem, size = 0x4, offset = 0x4, fixed_abs, tag = 'smem constant byte address 0x4 - core index']
  #allocation1 [shape = 'u32[144,128]{1,0:T(1,128)}', space=vmem, size = 0x12000, scoped, tag = 'internal scratch']
  #allocation2 [shape = 'f32[4,8,8]{2,1,0:T(8,128)}', space=vmem, size = 0x4000, scoped, tag = 'scratch operand']
  #allocation3 [shape = 'f32[4,8,8]{2,1,0:T(8,128)}', space=vmem, size = 0x4000, scoped, tag = 'scratch operand']
  #allocation4 [shape = 'f32[4,16,8]{2,1,0:T(8,128)}', space=vmem, size = 0x8000, scoped, tag = 'scratch operand']
  #allocation5 [shape = 'f32[4,16,8]{2,1,0:T(8,128)}', space=vmem, size = 0x8000, scoped, tag = 'scratch operand']
  %s0 = inlined_call_operand.hbm [shape: f32[2,8,32], index: 0, kind: input, shape index: {}]
  %s1 = inlined_call_operand.hbm [shape: f32[2,16,32], index: 1, kind: input, shape index: {}]
  %s2 = inlined_call_operand.vmem [shape: f32[2,1,8], index: 2, kind: input, shape index: {}]
  %s3 = inlined_call_operand.vmem [shape: f32[2,1,16], index: 3, kind: input, shape index: {}]
  %s4 = inlined_call_operand.hbm [shape: f32[32,32], index: 4, kind: input, shape index: {}]
  %s5 = inlined_call_operand.hbm [shape: f32[32,64], index: 5, kind: input, shape index: {}]
  %s6 = inlined_call_operand.hbm [shape: f32[32,32], index: 6, kind: input, shape index: {}]
  %s7 = inlined_call_operand.hbm [shape: f32[32,32], index: 7, kind: input, shape index: {}]
  %s8 = inlined_call_operand.hbm [shape: f32[32,64], index: 8, kind: input, shape index: {}]
  %s9 = inlined_call_operand.hbm [shape: f32[32,32], index: 9, kind: input, shape index: {}]
  %s10 = inlined_call_operand.hbm [shape: f32[32,32], index: 10, kind: input, shape index: {}]
  %s11 = inlined_call_operand.vmem [shape: f32[16,32], index: 11, kind: input, shape index: {}]
  %s12 = inlined_call_operand.hbm [shape: f32[2,8,32], index: 12, kind: output, shape index: {}]
  %s13 = sld [smem:[#allocation0]]
  $region121: #{tpu_custom_call.1} parent=0
    _
  %s15 = ssub.s32 1, %s13
  %s16 = scalar_select 0, %s15, %s13
  $region1: #{tpu_custom_call.1} parent=0
    #allocation6 [shape = 'u8[8192]{0}', space=vmem, size = 0x2000, scoped, tag = 'input window, operand 0']
    #allocation7 [shape = 's32[2]{0}', space=sflag, size = 0x8, scoped, tag = 'scoped memory for tpu_custom_call.1']
    #allocation8 [shape = 's32[2]{0}', space=sflag, size = 0x8, scoped, tag = 'scoped memory for tpu_custom_call.1']
    #allocation9 [shape = 'u8[16384]{0}', space=vmem, size = 0x4000, scoped, tag = 'input window, operand 1']
    #allocation10 [shape = 's32[2]{0}', space=sflag, size = 0x8, scoped, tag = 'scoped memory for tpu_custom_call.1']
    #allocation11 [shape = 'u8[16384]{0}', space=vmem, size = 0x4000, scoped, tag = 'input window, operand 4, single buffered']
    #allocation12 [shape = 'u8[16384]{0}', space=vmem, size = 0x4000, scoped, tag = 'input window, operand 5, single buffered']
    #allocation13 [shape = 's32[1]{0}', space=sflag, size = 0x4, scoped, tag = 'scoped memory for tpu_custom_call.1']
    #allocation14 [shape = 'u8[16384]{0}', space=vmem, size = 0x4000, scoped, tag = 'input window, operand 6, single buffered']
    #allocation15 [shape = 'u8[16384]{0}', space=vmem, size = 0x4000, scoped, tag = 'input window, operand 7, single buffered']
    #allocation16 [shape = 's32[1]{0}', space=sflag, size = 0x4, scoped, tag = 'scoped memory for tpu_custom_call.1']
    #allocation17 [shape = 'u8[16384]{0}', space=vmem, size = 0x4000, scoped, tag = 'input window, operand 8, single buffered']
    #allocation18 [shape = 'u8[16384]{0}', space=vmem, size = 0x4000, scoped, tag = 'input window, operand 9, single buffered']
    #allocation19 [shape = 's32[1]{0}', space=sflag, size = 0x4, scoped, tag = 'scoped memory for tpu_custom_call.1']
    #allocation20 [shape = 'u8[16384]{0}', space=vmem, size = 0x4000, scoped, tag = 'input window, operand 10, single buffered']
    #allocation21 [shape = 'u8[8192]{0}', space=vmem, size = 0x2000, scoped, tag = 'output window, operand 0']
    %17 = vsyncpa [#allocation7], 0
    %s18 = scalar_lea.sflag [#allocation7], 1
    %19 = vsyncpa %s18, 0
    %20 = vsyncpa [#allocation10], 0
    %s21 = scalar_lea.sflag [#allocation10], 1
    %22 = vsyncpa %s21, 0
    %23 = vsyncpa [#allocation13], 0
    %24 = vsyncpa [#allocation16], 0
    %25 = vsyncpa [#allocation19], 0
    %26 = vsyncpa [#allocation8], 0
    %s27 = scalar_lea.sflag [#allocation8], 1
    %28 = vsyncpa %s27, 0
    loop: start=0, step=1, limit=4
    $region2: #{tpu_custom_call.1} parent=1 // loop_pre_header
      _
    $region3: #{tpu_custom_call.1} parent=1 // loop_header
      %s30 = sphi 0, %s34
      %p31 = scmp.ge.s32.totalorder %s30, 4
      %s37 = sphi 0, %s49
      %s38 = sphi 0, %s45
      %s39 = sphi 0, %s37
      %s40 = sphi 0, %s38
      %s41 = sphi 0, %s39
      %s42 = sphi 0, %s40
      %s52 = sphi 0, %s54
      %s55 = sphi 0, %s52
      %s56 = sphi 0, %s55
      %s72 = sphi 0, %s56
      %s78 = sphi 0, %s80
      %s81 = sphi 0, %s78
      %s82 = sphi 0, %s81
      %s98 = sphi 0, %s82
      %s104 = sphi 0, %s106
      %s107 = sphi 0, %s104
      %s108 = sphi 0, %s107
      %s124 = sphi 0, %s108
      %s130 = sphi 0, %s132
      %s133 = sphi 0, %s130
      %s134 = sphi 0, %s133
      %s150 = sphi 0, %s134
      %s154 = sphi 0, %s154
      %s156 = sphi 0, %s154
      %s157 = sphi 0, %s156
      %s171 = sphi 0, %s157
      %s175 = sphi 0, %s175
      %s177 = sphi 0, %s175
      %s178 = sphi 0, %s177
      %s192 = sphi 0, %s178
      %s196 = sphi 0, %s196
      %s198 = sphi 0, %s196
      %s199 = sphi 0, %s198
      %s213 = sphi 0, %s199
      %s217 = sphi 0, %s217
      %s219 = sphi 0, %s217
      %s220 = sphi 0, %s219
      %s234 = sphi 0, %s220
      %s238 = sphi 0, %s238
      %s240 = sphi 0, %s238
      %s241 = sphi 0, %s240
      %s255 = sphi 0, %s241
      %s259 = sphi 0, %s259
      %s261 = sphi 0, %s259
      %s262 = sphi 0, %s261
      %s276 = sphi 0, %s262
      %s280 = sphi 0, %s280
      %s282 = sphi 0, %s280
      %s283 = sphi 0, %s282
      %s297 = sphi 0, %s283
      %s301 = sphi 0, %s301
      %s303 = sphi 0, %s301
      %s304 = sphi 0, %s303
      %s318 = sphi 0, %s304
      %s326 = sphi 0, %s328
      %s329 = sphi 0, %s326
      %s330 = sphi 0, %s329
      %s346 = sphi 0, %s330
    $region4: #{tpu_custom_call.1} parent=1 // loop_header_branch
      %33 = sbr.rel (%p31) target = $region8
    $region5: #{tpu_custom_call.1} parent=1 // loop_body
      %s35 = ssub.s32 %s30, 1
      %s36 = ssub.s32 %s30, 2
      %s43 = sadd.s32 1, %s38
      %p44 = scmp.ge.s32.totalorder %s43, 1
      %s45 = scalar_select %p44, 0, %s43
      %s46 = sadd.s32 1, %s37
      %s47 = scalar_select %p44, %s46, %s37
      %p48 = scmp.ge.s32.totalorder %s47, 2
      %s49 = scalar_select %p48, 0, %s47
      %s50 = ssub.s32 %s37, %s49
      %p51 = scmp.eq.s32.totalorder %s50, 0
      %s53 = sadd.s32 %s52, 1
      %s54 = scalar_select %p51, %s52, %s53
      %p57 = pneg %p51
      %p58 = scmp.eq.s32.totalorder %s30, 1
      %p59 = por %p57, %p58
      %p60 = scmp.ne.s32.totalorder %s52, %s55
      %p61 = scmp.eq.s32.totalorder %s30, 0
      %p62 = por %p60, %p61
      %p63 = scmp.ne.s32.totalorder %s52, %s55
      %p64 = scmp.eq.s32.totalorder %s35, 1
      %p65 = por %p63, %p64
      %p66 = scmp.ne.s32.totalorder %s55, %s56
      %p67 = scmp.eq.s32.totalorder %s35, 0
      %p68 = por %p66, %p67
      %p69 = scmp.ne.s32.totalorder %s55, %s56
      %p70 = scmp.eq.s32.totalorder %s36, 1
      %p71 = por %p69, %p70
      %p73 = scmp.ne.s32.totalorder %s56, %s72
      %p74 = scmp.eq.s32.totalorder %s36, 0
      %p75 = por %p73, %p74
      %s76 = ssub.s32 %s37, %s49
      %p77 = scmp.eq.s32.totalorder %s76, 0
      %s79 = sadd.s32 %s78, 1
      %s80 = scalar_select %p77, %s78, %s79
      %p83 = pneg %p77
      %p84 = scmp.eq.s32.totalorder %s30, 1
      %p85 = por %p83, %p84
      %p86 = scmp.ne.s32.totalorder %s78, %s81
      %p87 = scmp.eq.s32.totalorder %s30, 0
      %p88 = por %p86, %p87
      %p89 = scmp.ne.s32.totalorder %s78, %s81
      %p90 = scmp.eq.s32.totalorder %s35, 1
      %p91 = por %p89, %p90
      %p92 = scmp.ne.s32.totalorder %s81, %s82
      %p93 = scmp.eq.s32.totalorder %s35, 0
      %p94 = por %p92, %p93
      %p95 = scmp.ne.s32.totalorder %s81, %s82
      %p96 = scmp.eq.s32.totalorder %s36, 1
      %p97 = por %p95, %p96
      %p99 = scmp.ne.s32.totalorder %s82, %s98
      %p100 = scmp.eq.s32.totalorder %s36, 0
      %p101 = por %p99, %p100
      %s102 = ssub.s32 %s37, %s49
      %p103 = scmp.eq.s32.totalorder %s102, 0
      %s105 = sadd.s32 %s104, 1
      %s106 = scalar_select %p103, %s104, %s105
      %p109 = pneg %p103
      %p110 = scmp.eq.s32.totalorder %s30, 1
      %p111 = por %p109, %p110
      %p112 = scmp.ne.s32.totalorder %s104, %s107
      %p113 = scmp.eq.s32.totalorder %s30, 0
      %p114 = por %p112, %p113
      %p115 = scmp.ne.s32.totalorder %s104, %s107
      %p116 = scmp.eq.s32.totalorder %s35, 1
      %p117 = por %p115, %p116
      %p118 = scmp.ne.s32.totalorder %s107, %s108
      %p119 = scmp.eq.s32.totalorder %s35, 0
      %p120 = por %p118, %p119
      %p121 = scmp.ne.s32.totalorder %s107, %s108
      %p122 = scmp.eq.s32.totalorder %s36, 1
      %p123 = por %p121, %p122
      %p125 = scmp.ne.s32.totalorder %s108, %s124
      %p126 = scmp.eq.s32.totalorder %s36, 0
      %p127 = por %p125, %p126
      %s128 = ssub.s32 %s37, %s49
      %p129 = scmp.eq.s32.totalorder %s128, 0
      %s131 = sadd.s32 %s130, 1
      %s132 = scalar_select %p129, %s130, %s131
      %p135 = pneg %p129
      %p136 = scmp.eq.s32.totalorder %s30, 1
      %p137 = por %p135, %p136
      %p138 = scmp.ne.s32.totalorder %s130, %s133
      %p139 = scmp.eq.s32.totalorder %s30, 0
      %p140 = por %p138, %p139
      %p141 = scmp.ne.s32.totalorder %s130, %s133
      %p142 = scmp.eq.s32.totalorder %s35, 1
      %p143 = por %p141, %p142
      %p144 = scmp.ne.s32.totalorder %s133, %s134
      %p145 = scmp.eq.s32.totalorder %s35, 0
      %p146 = por %p144, %p145
      %p147 = scmp.ne.s32.totalorder %s133, %s134
      %p148 = scmp.eq.s32.totalorder %s36, 1
      %p149 = por %p147, %p148
      %p151 = scmp.ne.s32.totalorder %s134, %s150
      %p152 = scmp.eq.s32.totalorder %s36, 0
      %p153 = por %p151, %p152
      %s155 = sadd.s32 %s154, 1
      %p158 = scmp.eq.s32.totalorder %s30, 1
      %p159 = scmp.ne.s32.totalorder %s154, %s156
      %p160 = scmp.eq.s32.totalorder %s30, 0
      %p161 = por %p159, %p160
      %p162 = scmp.ne.s32.totalorder %s154, %s156
      %p163 = scmp.eq.s32.totalorder %s35, 1
      %p164 = por %p162, %p163
      %p165 = scmp.ne.s32.totalorder %s156, %s157
      %p166 = scmp.eq.s32.totalorder %s35, 0
      %p167 = por %p165, %p166
      %p168 = scmp.ne.s32.totalorder %s156, %s157
      %p169 = scmp.eq.s32.totalorder %s36, 1
      %p170 = por %p168, %p169
      %p172 = scmp.ne.s32.totalorder %s157, %s171
      %p173 = scmp.eq.s32.totalorder %s36, 0
      %p174 = por %p172, %p173
      %s176 = sadd.s32 %s175, 1
      %p179 = scmp.eq.s32.totalorder %s30, 1
      %p180 = scmp.ne.s32.totalorder %s175, %s177
      %p181 = scmp.eq.s32.totalorder %s30, 0
      %p182 = por %p180, %p181
      %p183 = scmp.ne.s32.totalorder %s175, %s177
      %p184 = scmp.eq.s32.totalorder %s35, 1
      %p185 = por %p183, %p184
      %p186 = scmp.ne.s32.totalorder %s177, %s178
      %p187 = scmp.eq.s32.totalorder %s35, 0
      %p188 = por %p186, %p187
      %p189 = scmp.ne.s32.totalorder %s177, %s178
      %p190 = scmp.eq.s32.totalorder %s36, 1
      %p191 = por %p189, %p190
      %p193 = scmp.ne.s32.totalorder %s178, %s192
      %p194 = scmp.eq.s32.totalorder %s36, 0
      %p195 = por %p193, %p194
      %s197 = sadd.s32 %s196, 1
      %p200 = scmp.eq.s32.totalorder %s30, 1
      %p201 = scmp.ne.s32.totalorder %s196, %s198
      %p202 = scmp.eq.s32.totalorder %s30, 0
      %p203 = por %p201, %p202
      %p204 = scmp.ne.s32.totalorder %s196, %s198
      %p205 = scmp.eq.s32.totalorder %s35, 1
      %p206 = por %p204, %p205
      %p207 = scmp.ne.s32.totalorder %s198, %s199
      %p208 = scmp.eq.s32.totalorder %s35, 0
      %p209 = por %p207, %p208
      %p210 = scmp.ne.s32.totalorder %s198, %s199
      %p211 = scmp.eq.s32.totalorder %s36, 1
      %p212 = por %p210, %p211
      %p214 = scmp.ne.s32.totalorder %s199, %s213
      %p215 = scmp.eq.s32.totalorder %s36, 0
      %p216 = por %p214, %p215
      %s218 = sadd.s32 %s217, 1
      %p221 = scmp.eq.s32.totalorder %s30, 1
      %p222 = scmp.ne.s32.totalorder %s217, %s219
      %p223 = scmp.eq.s32.totalorder %s30, 0
      %p224 = por %p222, %p223
      %p225 = scmp.ne.s32.totalorder %s217, %s219
      %p226 = scmp.eq.s32.totalorder %s35, 1
      %p227 = por %p225, %p226
      %p228 = scmp.ne.s32.totalorder %s219, %s220
      %p229 = scmp.eq.s32.totalorder %s35, 0
      %p230 = por %p228, %p229
      %p231 = scmp.ne.s32.totalorder %s219, %s220
      %p232 = scmp.eq.s32.totalorder %s36, 1
      %p233 = por %p231, %p232
      %p235 = scmp.ne.s32.totalorder %s220, %s234
      %p236 = scmp.eq.s32.totalorder %s36, 0
      %p237 = por %p235, %p236
      %s239 = sadd.s32 %s238, 1
      %p242 = scmp.eq.s32.totalorder %s30, 1
      %p243 = scmp.ne.s32.totalorder %s238, %s240
      %p244 = scmp.eq.s32.totalorder %s30, 0
      %p245 = por %p243, %p244
      %p246 = scmp.ne.s32.totalorder %s238, %s240
      %p247 = scmp.eq.s32.totalorder %s35, 1
      %p248 = por %p246, %p247
      %p249 = scmp.ne.s32.totalorder %s240, %s241
      %p250 = scmp.eq.s32.totalorder %s35, 0
      %p251 = por %p249, %p250
      %p252 = scmp.ne.s32.totalorder %s240, %s241
      %p253 = scmp.eq.s32.totalorder %s36, 1
      %p254 = por %p252, %p253
      %p256 = scmp.ne.s32.totalorder %s241, %s255
      %p257 = scmp.eq.s32.totalorder %s36, 0
      %p258 = por %p256, %p257
      %s260 = sadd.s32 %s259, 1
      %p263 = scmp.eq.s32.totalorder %s30, 1
      %p264 = scmp.ne.s32.totalorder %s259, %s261
      %p265 = scmp.eq.s32.totalorder %s30, 0
      %p266 = por %p264, %p265
      %p267 = scmp.ne.s32.totalorder %s259, %s261
      %p268 = scmp.eq.s32.totalorder %s35, 1
      %p269 = por %p267, %p268
      %p270 = scmp.ne.s32.totalorder %s261, %s262
      %p271 = scmp.eq.s32.totalorder %s35, 0
      %p272 = por %p270, %p271
      %p273 = scmp.ne.s32.totalorder %s261, %s262
      %p274 = scmp.eq.s32.totalorder %s36, 1
      %p275 = por %p273, %p274
      %p277 = scmp.ne.s32.totalorder %s262, %s276
      %p278 = scmp.eq.s32.totalorder %s36, 0
      %p279 = por %p277, %p278
      %s281 = sadd.s32 %s280, 1
      %p284 = scmp.eq.s32.totalorder %s30, 1
      %p285 = scmp.ne.s32.totalorder %s280, %s282
      %p286 = scmp.eq.s32.totalorder %s30, 0
      %p287 = por %p285, %p286
      %p288 = scmp.ne.s32.totalorder %s280, %s282
      %p289 = scmp.eq.s32.totalorder %s35, 1
      %p290 = por %p288, %p289
      %p291 = scmp.ne.s32.totalorder %s282, %s283
      %p292 = scmp.eq.s32.totalorder %s35, 0
      %p293 = por %p291, %p292
      %p294 = scmp.ne.s32.totalorder %s282, %s283
      %p295 = scmp.eq.s32.totalorder %s36, 1
      %p296 = por %p294, %p295
      %p298 = scmp.ne.s32.totalorder %s283, %s297
      %p299 = scmp.eq.s32.totalorder %s36, 0
      %p300 = por %p298, %p299
      %s302 = sadd.s32 %s301, 1
      %p305 = scmp.eq.s32.totalorder %s30, 1
      %p306 = scmp.ne.s32.totalorder %s301, %s303
      %p307 = scmp.eq.s32.totalorder %s30, 0
      %p308 = por %p306, %p307
      %p309 = scmp.ne.s32.totalorder %s301, %s303
      %p310 = scmp.eq.s32.totalorder %s35, 1
      %p311 = por %p309, %p310
      %p312 = scmp.ne.s32.totalorder %s303, %s304
      %p313 = scmp.eq.s32.totalorder %s35, 0
      %p314 = por %p312, %p313
      %p315 = scmp.ne.s32.totalorder %s303, %s304
      %p316 = scmp.eq.s32.totalorder %s36, 1
      %p317 = por %p315, %p316
      %p319 = scmp.ne.s32.totalorder %s304, %s318
      %p320 = scmp.eq.s32.totalorder %s36, 0
      %p321 = por %p319, %p320
      %s322 = ssub.s32 %s37, %s49
      %s323 = ssub.s32 %s38, %s45
      %s324 = sor.u32 %s322, %s323
      %p325 = scmp.eq.s32.totalorder %s324, 0
      %s327 = sadd.s32 %s326, 1
      %s328 = scalar_select %p325, %s326, %s327
      %p331 = pneg %p325
      %p332 = scmp.eq.s32.totalorder %s30, 1
      %p333 = por %p331, %p332
      %p334 = scmp.ne.s32.totalorder %s326, %s329
      %p335 = scmp.eq.s32.totalorder %s30, 0
      %p336 = por %p334, %p335
      %p337 = scmp.ne.s32.totalorder %s326, %s329
      %p338 = scmp.eq.s32.totalorder %s35, 1
      %p339 = por %p337, %p338
      %p340 = scmp.ne.s32.totalorder %s329, %s330
      %p341 = scmp.eq.s32.totalorder %s35, 0
      %p342 = por %p340, %p341
      %p343 = scmp.ne.s32.totalorder %s329, %s330
      %p344 = scmp.eq.s32.totalorder %s36, 1
      %p345 = por %p343, %p344
      %p347 = scmp.ne.s32.totalorder %s330, %s346
      %p348 = scmp.eq.s32.totalorder %s36, 0
      %p349 = por %p347, %p348
      %p350 = scmp.le.s32.totalorder 1, %s30
      %p351 = scmp.lt.s32.totalorder %s30, 3
      %p352 = pnand %p350, %p351
      %p353 = pneg %p352
      // Predicated region
      $region9: #{tpu_custom_call.1} parent=5 // pred_check
        _
      $region10: #{tpu_custom_call.1} parent=5 // pred_check_branch
        %355 = sbr.rel (%p352) target = $region12
      $region11: #{tpu_custom_call.1} parent=5 // pred_region
        %s356 = ssub.s32 %s30, 1
        // Predicated region
        $region13: #{tpu_custom_call.1} parent=11 // pred_check
          %p357 = pneg %p167
        $region14: #{tpu_custom_call.1} parent=11 // pred_check_branch
          %359 = sbr.rel (%p357) target = $region16
        $region15: #{tpu_custom_call.1} parent=11 // pred_region
          %s361 = ssub.s32 512, 512
          %362 = vsyncadd [#allocation10], %s361
          %s363 = sshll.u32 [#allocation11], 4
          %s364 = int_to_ptr.vmem [resolvable:$true] %s363
          %369 = dma.hbm_to_vmem [thread:$0]  %s4, 512, %s364, [#allocation10], 128, 128, 8
        $region16: #{tpu_custom_call.1} parent=11 // pred_fallthru
          _
        // Predicated region
        $region17: #{tpu_custom_call.1} parent=11 // pred_check
          %p370 = pneg %p188
        $region18: #{tpu_custom_call.1} parent=11 // pred_check_branch
          %372 = sbr.rel (%p370) target = $region20
        $region19: #{tpu_custom_call.1} parent=11 // pred_region
          %s374 = ssub.s32 512, 512
          %375 = vsyncadd [#allocation13], %s374
          %s376 = sshll.u32 [#allocation12], 4
          %s377 = int_to_ptr.vmem [resolvable:$true] %s376
          %382 = dma.hbm_to_vmem [thread:$0]  %s5, 512, %s377, [#allocation13], 128, 128, 8
        $region20: #{tpu_custom_call.1} parent=11 // pred_fallthru
          _
        // Predicated region
        $region21: #{tpu_custom_call.1} parent=11 // pred_check
          %p383 = pneg %p209
        $region22: #{tpu_custom_call.1} parent=11 // pred_check_branch
          %385 = sbr.rel (%p383) target = $region24
        $region23: #{tpu_custom_call.1} parent=11 // pred_region
          %s387 = ssub.s32 512, 512
          %388 = vsyncadd [#allocation13], %s387
          %s389 = sshll.u32 [#allocation14], 4
          %s390 = int_to_ptr.vmem [resolvable:$true] %s389
          %395 = dma.hbm_to_vmem [thread:$0]  %s6, 512, %s390, [#allocation13], 128, 128, 8
        $region24: #{tpu_custom_call.1} parent=11 // pred_fallthru
          _
        // Predicated region
        $region25: #{tpu_custom_call.1} parent=11 // pred_check
          %p396 = pneg %p230
        $region26: #{tpu_custom_call.1} parent=11 // pred_check_branch
          %398 = sbr.rel (%p396) target = $region28
        $region27: #{tpu_custom_call.1} parent=11 // pred_region
          %s400 = ssub.s32 512, 512
          %401 = vsyncadd [#allocation16], %s400
          %s402 = sshll.u32 [#allocation15], 4
          %s403 = int_to_ptr.vmem [resolvable:$true] %s402
          %408 = dma.hbm_to_vmem [thread:$0]  %s7, 512, %s403, [#allocation16], 128, 128, 8
        $region28: #{tpu_custom_call.1} parent=11 // pred_fallthru
          _
        // Predicated region
        $region29: #{tpu_custom_call.1} parent=11 // pred_check
          %p409 = pneg %p251
        $region30: #{tpu_custom_call.1} parent=11 // pred_check_branch
          %411 = sbr.rel (%p409) target = $region32
        $region31: #{tpu_custom_call.1} parent=11 // pred_region
          %s413 = ssub.s32 512, 512
          %414 = vsyncadd [#allocation16], %s413
          %s415 = sshll.u32 [#allocation17], 4
          %s416 = int_to_ptr.vmem [resolvable:$true] %s415
          %421 = dma.hbm_to_vmem [thread:$0]  %s8, 512, %s416, [#allocation16], 128, 128, 8
        $region32: #{tpu_custom_call.1} parent=11 // pred_fallthru
          _
        // Predicated region
        $region33: #{tpu_custom_call.1} parent=11 // pred_check
          %p422 = pneg %p272
        $region34: #{tpu_custom_call.1} parent=11 // pred_check_branch
          %424 = sbr.rel (%p422) target = $region36
        $region35: #{tpu_custom_call.1} parent=11 // pred_region
          %s426 = ssub.s32 512, 512
          %427 = vsyncadd [#allocation19], %s426
          %s428 = sshll.u32 [#allocation18], 4
          %s429 = int_to_ptr.vmem [resolvable:$true] %s428
          %434 = dma.hbm_to_vmem [thread:$0]  %s9, 512, %s429, [#allocation19], 128, 128, 8
        $region36: #{tpu_custom_call.1} parent=11 // pred_fallthru
          _
        // Predicated region
        $region37: #{tpu_custom_call.1} parent=11 // pred_check
          %p435 = pneg %p293
        $region38: #{tpu_custom_call.1} parent=11 // pred_check_branch
          %437 = sbr.rel (%p435) target = $region40
        $region39: #{tpu_custom_call.1} parent=11 // pred_region
          %s439 = ssub.s32 512, 512
          %440 = vsyncadd [#allocation19], %s439
          %s441 = sshll.u32 [#allocation20], 4
          %s442 = int_to_ptr.vmem [resolvable:$true] %s441
          %447 = dma.hbm_to_vmem [thread:$0]  %s10, 512, %s442, [#allocation19], 128, 128, 8
        $region40: #{tpu_custom_call.1} parent=11 // pred_fallthru
          _
        // Predicated region
        $region41: #{tpu_custom_call.1} parent=11 // pred_check
          %p448 = pneg %p314
        $region42: #{tpu_custom_call.1} parent=11 // pred_check_branch
          %450 = sbr.rel (%p448) target = $region44
        $region43: #{tpu_custom_call.1} parent=11 // pred_region
          _
        $region44: #{tpu_custom_call.1} parent=11 // pred_fallthru
          _
      $region12: #{tpu_custom_call.1} parent=5 // pred_fallthru
        _
      %p451 = scmp.lt.s32.totalorder %s30, 2
      // Predicated region
      $region45: #{tpu_custom_call.1} parent=5 // pred_check
        %p452 = pneg %p451
      $region46: #{tpu_custom_call.1} parent=5 // pred_check_branch
        %454 = sbr.rel (%p452) target = $region48
      $region47: #{tpu_custom_call.1} parent=5 // pred_region
        // Predicated region
        $region49: #{tpu_custom_call.1} parent=47 // pred_check
          %p455 = pneg %p62
        $region50: #{tpu_custom_call.1} parent=47 // pred_check_branch
          %457 = sbr.rel (%p455) target = $region52
        $region51: #{tpu_custom_call.1} parent=47 // pred_region
          %s458 = sand.u32 %s52, 1
          %s459 = scalar_lea.sflag [#allocation7], %s458
          %s460 = sand.u32 %s52, 1
          %s461 = smul.addr %s460, 8
          %s462 = scalar_lea.vmem [#allocation6], %s461
          %s464 = ssub.s32 128, 128
          %465 = vsyncadd %s459, %s464
          %s466 = smul.addr %s37, 128
          %s467 = scalar_lea.hbm %s0, %s466
          %s469 = sshll.u32 %s462, 4
          %s470 = int_to_ptr.vmem [resolvable:$true] %s469
          %472 = dma.hbm_to_vmem [thread:$0]  %s467, 128, %s470, %s459
        $region52: #{tpu_custom_call.1} parent=47 // pred_fallthru
          _
        // Predicated region
        $region53: #{tpu_custom_call.1} parent=47 // pred_check
          %p473 = pneg %p88
        $region54: #{tpu_custom_call.1} parent=47 // pred_check_branch
          %475 = sbr.rel (%p473) target = $region56
        $region55: #{tpu_custom_call.1} parent=47 // pred_region
          %s476 = sand.u32 %s30, 1
          %s477 = scalar_lea.sflag [#allocation10], %s476
          %s478 = sand.u32 %s78, 1
          %s479 = smul.addr %s478, 16
          %s480 = scalar_lea.vmem [#allocation9], %s479
          %s482 = ssub.s32 256, 256
          %483 = vsyncadd %s477, %s482
          %s484 = smul.addr %s37, 2
          %s485 = smul.addr %s484, 128
          %s486 = scalar_lea.hbm %s1, %s485
          %s487 = sshll.u32 %s480, 4
          %s488 = int_to_ptr.vmem [resolvable:$true] %s487
          %493 = dma.hbm_to_vmem [thread:$0]  %s486, 256, %s488, %s477, 128, 128, 8
        $region56: #{tpu_custom_call.1} parent=47 // pred_fallthru
          _
        // Predicated region
        $region57: #{tpu_custom_call.1} parent=47 // pred_check
          %p494 = pneg %p114
        $region58: #{tpu_custom_call.1} parent=47 // pred_check_branch
          %496 = sbr.rel (%p494) target = $region60
        $region59: #{tpu_custom_call.1} parent=47 // pred_region
          %p497 = scmp.lt.s32.totalorder %s37, 1
          %s498 = scalar_select %p497, %s37, 1
          %s499 = scalar_lea.vmem %s2, %s498
        $region60: #{tpu_custom_call.1} parent=47 // pred_fallthru
          _
        // Predicated region
        $region61: #{tpu_custom_call.1} parent=47 // pred_check
          %p500 = pneg %p140
        $region62: #{tpu_custom_call.1} parent=47 // pred_check_branch
          %502 = sbr.rel (%p500) target = $region64
        $region63: #{tpu_custom_call.1} parent=47 // pred_region
          %p503 = scmp.lt.s32.totalorder %s37, 1
          %s504 = scalar_select %p503, %s37, 1
          %s505 = scalar_lea.vmem %s3, %s504
        $region64: #{tpu_custom_call.1} parent=47 // pred_fallthru
          _
      $region48: #{tpu_custom_call.1} parent=5 // pred_fallthru
        _
      %p506 = scmp.le.s32.totalorder 1, %s30
      %p507 = scmp.lt.s32.totalorder %s30, 3
      %p508 = pnand %p506, %p507
      %p509 = pneg %p508
      // Predicated region
      $region65: #{tpu_custom_call.1} parent=5 // pred_check
        _
      $region66: #{tpu_custom_call.1} parent=5 // pred_check_branch
        %511 = sbr.rel (%p508) target = $region68
      $region67: #{tpu_custom_call.1} parent=5 // pred_region
        %s512 = ssub.s32 %s30, 1
        %s513 = sand.u32 %s55, 1
        %s514 = scalar_lea.sflag [#allocation7], %s513
        %s515 = sand.u32 %s55, 1
        %s516 = smul.addr %s515, 8
        %s517 = scalar_lea.vmem [#allocation6], %s516
        // Predicated region
        $region69: #{tpu_custom_call.1} parent=67 // pred_check
          %p518 = pneg %p68
        $region70: #{tpu_custom_call.1} parent=67 // pred_check_branch
          %520 = sbr.rel (%p518) target = $region72
        $region71: #{tpu_custom_call.1} parent=67 // pred_region
          %521 = dma.done %s514, 128
        $region72: #{tpu_custom_call.1} parent=67 // pred_fallthru
          _
        %s522 = sand.u32 %s35, 1
        %s523 = scalar_lea.sflag [#allocation10], %s522
        %s524 = sand.u32 %s81, 1
        %s525 = smul.addr %s524, 16
        %s526 = scalar_lea.vmem [#allocation9], %s525
        // Predicated region
        $region73: #{tpu_custom_call.1} parent=67 // pred_check
          %p527 = pneg %p94
        $region74: #{tpu_custom_call.1} parent=67 // pred_check_branch
          %529 = sbr.rel (%p527) target = $region76
        $region75: #{tpu_custom_call.1} parent=67 // pred_region
          %530 = dma.done %s523, 256
        $region76: #{tpu_custom_call.1} parent=67 // pred_fallthru
          _
        // Predicated region
        $region77: #{tpu_custom_call.1} parent=67 // pred_check
          %p531 = pneg %p167
        $region78: #{tpu_custom_call.1} parent=67 // pred_check_branch
          %533 = sbr.rel (%p531) target = $region80
        $region79: #{tpu_custom_call.1} parent=67 // pred_region
          %534 = dma.done [#allocation10], 512
        $region80: #{tpu_custom_call.1} parent=67 // pred_fallthru
          _
        // Predicated region
        $region81: #{tpu_custom_call.1} parent=67 // pred_check
          %p535 = pneg %p188
        $region82: #{tpu_custom_call.1} parent=67 // pred_check_branch
          %537 = sbr.rel (%p535) target = $region84
        $region83: #{tpu_custom_call.1} parent=67 // pred_region
          %538 = dma.done [#allocation13], 512
        $region84: #{tpu_custom_call.1} parent=67 // pred_fallthru
          _
        // Predicated region
        $region85: #{tpu_custom_call.1} parent=67 // pred_check
          %p539 = pneg %p209
        $region86: #{tpu_custom_call.1} parent=67 // pred_check_branch
          %541 = sbr.rel (%p539) target = $region88
        $region87: #{tpu_custom_call.1} parent=67 // pred_region
          %542 = dma.done [#allocation13], 512
        $region88: #{tpu_custom_call.1} parent=67 // pred_fallthru
          _
        // Predicated region
        $region89: #{tpu_custom_call.1} parent=67 // pred_check
          %p543 = pneg %p230
        $region90: #{tpu_custom_call.1} parent=67 // pred_check_branch
          %545 = sbr.rel (%p543) target = $region92
        $region91: #{tpu_custom_call.1} parent=67 // pred_region
          %546 = dma.done [#allocation16], 512
        $region92: #{tpu_custom_call.1} parent=67 // pred_fallthru
          _
        // Predicated region
        $region93: #{tpu_custom_call.1} parent=67 // pred_check
          %p547 = pneg %p251
        $region94: #{tpu_custom_call.1} parent=67 // pred_check_branch
          %549 = sbr.rel (%p547) target = $region96
        $region95: #{tpu_custom_call.1} parent=67 // pred_region
          %550 = dma.done [#allocation16], 512
        $region96: #{tpu_custom_call.1} parent=67 // pred_fallthru
          _
        // Predicated region
        $region97: #{tpu_custom_call.1} parent=67 // pred_check
          %p551 = pneg %p272
        $region98: #{tpu_custom_call.1} parent=67 // pred_check_branch
          %553 = sbr.rel (%p551) target = $region100
        $region99: #{tpu_custom_call.1} parent=67 // pred_region
          %554 = dma.done [#allocation19], 512
        $region100: #{tpu_custom_call.1} parent=67 // pred_fallthru
          _
        // Predicated region
        $region101: #{tpu_custom_call.1} parent=67 // pred_check
          %p555 = pneg %p293
        $region102: #{tpu_custom_call.1} parent=67 // pred_check_branch
          %557 = sbr.rel (%p555) target = $region104
        $region103: #{tpu_custom_call.1} parent=67 // pred_region
          %558 = dma.done [#allocation19], 512
        $region104: #{tpu_custom_call.1} parent=67 // pred_fallthru
          _
        %s559 = sand.u32 %s55, 1
        %s560 = scalar_lea.sflag [#allocation7], %s559
        %s561 = sand.u32 %s55, 1
        %s562 = smul.addr %s561, 8
        %s563 = scalar_lea.vmem [#allocation6], %s562
        %p564 = pneg %p68
        %p565 = pneg %p65
        %s566 = sand.u32 %s35, 1
        %s567 = scalar_lea.sflag [#allocation10], %s566
        %s568 = sand.u32 %s81, 1
        %s569 = smul.addr %s568, 16
        %s570 = scalar_lea.vmem [#allocation9], %s569
        %p571 = pneg %p94
        %p572 = pneg %p91
        %p573 = scmp.lt.s32.totalorder %s39, 1
        %s574 = scalar_select %p573, %s39, 1
        %s575 = scalar_lea.vmem %s2, %s574
        %p576 = pneg %p120
        %p577 = pneg %p117
        %p578 = scmp.lt.s32.totalorder %s39, 1
        %s579 = scalar_select %p578, %s39, 1
        %s580 = scalar_lea.vmem %s3, %s579
        %p581 = pneg %p146
        %p582 = pneg %p143
        %p583 = pneg %p167
        %p584 = pneg %p164
        %p585 = pneg %p188
        %p586 = pneg %p185
        %p587 = pneg %p209
        %p588 = pneg %p206
        %p589 = pneg %p230
        %p590 = pneg %p227
        %p591 = pneg %p251
        %p592 = pneg %p248
        %p593 = pneg %p272
        %p594 = pneg %p269
        %p595 = pneg %p293
        %p596 = pneg %p290
        %p597 = pneg %p314
        %p598 = pneg %p311
        %p599 = pneg %p342
        %p600 = pneg %p339
        %s601 = sand.u32 %s329, 1
        %s602 = scalar_lea.sflag [#allocation8], %s601
        %s603 = sand.u32 %s329, 1
        %s604 = smul.addr %s603, 8
        %s605 = scalar_lea.vmem [#allocation21], %s604
        %p606 = scmp.lt.s32.totalorder %s39, 1
        %s607 = scalar_select %p606, %s39, 1
        %s608 = scalar_lea.vmem %s2, %s607
        %p609 = scmp.lt.s32.totalorder %s39, 1
        %s610 = scalar_select %p609, %s39, 1
        %s611 = scalar_lea.vmem %s3, %s610
        %v612 = vld [vmem:[%s11] sm:$0xff]
        %v613 = vld [vmem:[%s11 + $0x8] sm:$0xff]
        %p614 = scmp.eq.s32.totalorder %s40, 0
        // Predicated region
        $region105: #{tpu_custom_call.1} parent=67 // pred_check
          %p615 = pneg %p614
        $region106: #{tpu_custom_call.1} parent=67 // pred_check_branch
          %617 = sbr.rel (%p615) target = $region108
        $region107: #{tpu_custom_call.1} parent=67 // pred_region
          %v618 = vld [vmem:[%s517] sm:$0xff]
          %vm619 = vcmask 261120
          %v620 = vsel %vm619, %v618, 0.0
          %621 = vadd.xlane.f32.xlu0 %v620
          %v622 = vpop.xlane.xlu0 %621
          %v623 = vrcp.pop 32.0
          %v624 = vmul.f32 %v622, %v623
          %v625 = vsub.f32 %v618, %v624
          %v626 = vmul.f32 %v625, %v625
          %v627 = vsel %vm619, %v626, 0.0
          %628 = vadd.xlane.f32.xlu0 %v627
          %v629 = vpop.xlane.xlu0 %628
          %v630 = vmul.f32 %v629, %v623
          %v631 = vadd.f32 %v630, 1e-05
          %v632 = vrsqrt.pop %v631
          %v633 = vmul.f32 %v625, %v632
          %v634 = vlaneseq
          %v635 = vshrl.u32 %v634, 7
          %v636 = vsub.s32 1, %v635
          %v637 = vrot.slane %v613, %v636
          %v638 = vmul.f32 %v633, %v637
          %v639 = vlaneseq
          %v640 = vshrl.u32 %v639, 7
          %v641 = vsub.s32 2, %v640
          %v642 = vrot.slane %v613, %v641
          %v643 = vadd.f32 %v638, %v642
          %v644 = vld [vmem:[#allocation12] sm:$0xff]
          %v645 = vld [vmem:[#allocation12 + $0x8] sm:$0xff]
          %v646 = vld [vmem:[#allocation12 + $0x10] sm:$0xff]
          %v647 = vld [vmem:[#allocation12 + $0x18] sm:$0xff]
          %v649 = vsel %vm619, %v643, 0
          %651 = vmatprep.subr.mxu0 0.0
          %652 = vmatpush1.msra.mxu0 0.0
          %653 = vmatprep.subr.mxu0 0.0
          %654 = vmatpush1.msra.mxu0 0.0
          %655 = vmatprep.subr.mxu0 0.0
          %656 = vmatpush1.msra.mxu0 0.0
          %657 = vmatprep.subr.mxu0 0.0
          %658 = vmatpush1.msra.mxu0 0.0
          %659 = vmatprep.subr.mxu0 0.0
          %660 = vmatpush1.msra.mxu0 0.0
          %661 = vmatprep.subr.mxu0 0.0
          %662 = vmatpush1.msra.mxu0 0.0
          %663 = vmatprep.subr.mxu0 0.0
          %664 = vmatpush1.msra.mxu0 0.0
          %665 = vmatprep.subr.mxu0 0.0
          %666 = vmatpush1.msra.mxu0 0.0
          %667 = vmatprep.subr.mxu0 0.0
          %668 = vmatpush1.msra.mxu0 0.0
          %669 = vmatprep.subr.mxu0 0.0
          %670 = vmatpush1.msra.mxu0 0.0
          %671 = vmatprep.subr.mxu0 0.0
          %672 = vmatpush1.msra.mxu0 0.0
          %673 = vmatprep.subr.mxu0 0.0
          %674 = vmatpush1.msra.mxu0 0.0
          %675 = vmatprep.subr.mxu0 0.0
          %676 = vmatpush1.msra.mxu0 %v647
          %677 = vmatprep.subr.mxu0 0.0
          %678 = vmatpush1.msra.mxu0 %v646
          %679 = vmatprep.subr.mxu0 0.0
          %680 = vmatpush1.msra.mxu0 %v645
          %681 = vmatprep.subr.mxu0 0.0
          %682 = vmatpush1.msra.mxu0 %v644
          %683 = vmatprep.subr.mxu0 0.0
          %684 = vmatpush2.msra.mxu0 0.0
          %685 = vmatprep.subr.mxu0 0.0
          %686 = vmatpush2.msra.mxu0 0.0
          %687 = vmatprep.subr.mxu0 0.0
          %688 = vmatpush2.msra.mxu0 0.0
          %689 = vmatprep.subr.mxu0 0.0
          %690 = vmatpush2.msra.mxu0 0.0
          %691 = vmatprep.subr.mxu0 0.0
          %692 = vmatpush2.msra.mxu0 0.0
          %693 = vmatprep.subr.mxu0 0.0
          %694 = vmatpush2.msra.mxu0 0.0
          %695 = vmatprep.subr.mxu0 0.0
          %696 = vmatpush2.msra.mxu0 0.0
          %697 = vmatprep.subr.mxu0 0.0
          %698 = vmatpush2.msra.mxu0 0.0
          %699 = vmatprep.subr.mxu0 0.0
          %700 = vmatpush2.msra.mxu0 0.0
          %701 = vmatprep.subr.mxu0 0.0
          %702 = vmatpush2.msra.mxu0 0.0
          %703 = vmatprep.subr.mxu0 0.0
          %704 = vmatpush2.msra.mxu0 0.0
          %705 = vmatprep.subr.mxu0 0.0
          %706 = vmatpush2.msra.mxu0 0.0
          %707 = vmatprep.subr.mxu0 0.0
          %708 = vmatpush2.msra.mxu0 0.0
          %709 = vmatprep.subr.mxu0 0.0
          %710 = vmatpush2.msra.mxu0 0.0
          %711 = vmatprep.subr.mxu0 0.0
          %712 = vmatpush2.msra.mxu0 0.0
          %713 = vmatprep.subr.mxu0 0.0
          %714 = vmatpush2.msra.mxu0 0.0
          %715 = vmatprep.mubr.f32.mxu0 0.0
          %716 = vmatmul.mubr.f32.gmra.mxu0 %v649
          %v717 = vpop.f32.mrf.mxu0
          %v718 = vadd.f32 0.0, %v717
          %v719 = vpop.f32.mrf.mxu0
          %720 = vdwg.mxu0
          %v721 = vlaneseq
          %v722 = vshrl.u32 %v721, 7
          %v723 = vsub.s32 1, %v722
          %v724 = vrot.slane %v612, %v723
          %v725 = vadd.f32 %v718, %v724
          %727 = vrot.lane.b32.xlu0 %v725, 120
          %v728 = vpop.permute.xlu0 %727
          %730 = vrot.lane.b32.xlu0 %v725, 112
          %v731 = vpop.permute.xlu0 %730
          %733 = vrot.lane.b32.xlu0 %v725, 104
          %v734 = vpop.permute.xlu0 %733
          %v736 = vcombine.low %v725, %v731
          %v737 = vcombine.high %v725, %v731
          %v739 = vunpack.c.l.s4 1983009808
          %v740 = vunpack.c.0.s8 %v739
          %v741 = vlaneseq
          %v742 = vshrl.u32 %v741, 7
          %v743 = vsub.s32 %v740, %v742
          %v744 = vrot.slane %v736, %v743
          %v746 = vunpack.c.l.s4 1983009808
          %v747 = vunpack.c.0.s8 %v746
          %v748 = vlaneseq
          %v749 = vshrl.u32 %v748, 7
          %v750 = vsub.s32 %v747, %v749
          %v751 = vrot.slane %v737, %v750
          %v752 = vcombine.low %v728, %v734
          %v753 = vcombine.high %v728, %v734
          %v755 = vunpack.c.l.s4 1983009808
          %v756 = vunpack.c.0.s8 %v755
          %v757 = vlaneseq
          %v758 = vshrl.u32 %v757, 7
          %v759 = vsub.s32 %v756, %v758
          %v760 = vrot.slane %v752, %v759
          %v762 = vunpack.c.l.s4 1983009808
          %v763 = vunpack.c.0.s8 %v762
          %v764 = vlaneseq
          %v765 = vshrl.u32 %v764, 7
          %v766 = vsub.s32 %v763, %v765
          %v767 = vrot.slane %v753, %v766
          %v768 = vcombine.low %v744, %v760
          %v769 = vcombine.high %v744, %v760
          %v771 = vunpack.c.l.s4 1934713408
          %v772 = vunpack.c.0.s8 %v771
          %v773 = vlaneseq
          %v774 = vshrl.u32 %v773, 7
          %v775 = vsub.s32 %v772, %v774
          %v776 = vrot.slane %v768, %v775
          %v778 = vunpack.c.l.s4 1934713408
          %v779 = vunpack.c.0.s8 %v778
          %v780 = vlaneseq
          %v781 = vshrl.u32 %v780, 7
          %v782 = vsub.s32 %v779, %v781
          %v783 = vrot.slane %v769, %v782
          %v784 = vcombine.low %v751, %v767
          %v785 = vcombine.high %v751, %v767
          %v787 = vunpack.c.l.s4 1934713408
          %v788 = vunpack.c.0.s8 %v787
          %v789 = vlaneseq
          %v790 = vshrl.u32 %v789, 7
          %v791 = vsub.s32 %v788, %v790
          %v792 = vrot.slane %v784, %v791
          %v794 = vunpack.c.l.s4 1934713408
          %v795 = vunpack.c.0.s8 %v794
          %v796 = vlaneseq
          %v797 = vshrl.u32 %v796, 7
          %v798 = vsub.s32 %v795, %v797
          %v799 = vrot.slane %v785, %v798
          %v800 = vcombine.high %v776, 0.0
          %v801 = vcombine.high %v783, 0.0
          %v802 = vcombine.high %v792, 0.0
          %v803 = vcombine.high %v799, 0.0
          %v804 = vcombine.low %v776, %v783
          %v806 = vunpack.c.l.s4 1983009808
          %v807 = vunpack.c.0.s8 %v806
          %v808 = vlaneseq
          %v809 = vshrl.u32 %v808, 7
          %v810 = vsub.s32 %v807, %v809
          %v811 = vrot.slane %v804, %v810
          %v812 = vcombine.low %v800, %v801
          %v814 = vunpack.c.l.s4 1983009808
          %v815 = vunpack.c.0.s8 %v814
          %v816 = vlaneseq
          %v817 = vshrl.u32 %v816, 7
          %v818 = vsub.s32 %v815, %v817
          %v819 = vrot.slane %v812, %v818
          %v820 = vcombine.low %v792, %v799
          %v822 = vunpack.c.l.s4 1983009808
          %v823 = vunpack.c.0.s8 %v822
          %v824 = vlaneseq
          %v825 = vshrl.u32 %v824, 7
          %v826 = vsub.s32 %v823, %v825
          %v827 = vrot.slane %v820, %v826
          %v828 = vcombine.low %v802, %v803
          %v830 = vunpack.c.l.s4 1983009808
          %v831 = vunpack.c.0.s8 %v830
          %v832 = vlaneseq
          %v833 = vshrl.u32 %v832, 7
          %v834 = vsub.s32 %v831, %v833
          %v835 = vrot.slane %v828, %v834
          %v836 = vcombine.low %v811, %v819
          %v837 = vcombine.high %v811, %v819
          %v839 = vunpack.c.l.s4 1934713408
          %v840 = vunpack.c.0.s8 %v839
          %v841 = vlaneseq
          %v842 = vshrl.u32 %v841, 7
          %v843 = vsub.s32 %v840, %v842
          %v844 = vrot.slane %v836, %v843
          %v846 = vunpack.c.l.s4 1934713408
          %v847 = vunpack.c.0.s8 %v846
          %v848 = vlaneseq
          %v849 = vshrl.u32 %v848, 7
          %v850 = vsub.s32 %v847, %v849
          %v851 = vrot.slane %v837, %v850
          %v852 = vcombine.low %v827, %v835
          %v853 = vcombine.high %v827, %v835
          %v855 = vunpack.c.l.s4 1934713408
          %v856 = vunpack.c.0.s8 %v855
          %v857 = vlaneseq
          %v858 = vshrl.u32 %v857, 7
          %v859 = vsub.s32 %v856, %v858
          %v860 = vrot.slane %v852, %v859
          %v862 = vunpack.c.l.s4 1934713408
          %v863 = vunpack.c.0.s8 %v862
          %v864 = vlaneseq
          %v865 = vshrl.u32 %v864, 7
          %v866 = vsub.s32 %v863, %v865
          %v867 = vrot.slane %v853, %v866
          %v868 = vcombine.low %v844, %v860
          %v869 = vcombine.high %v844, %v860
          %v870 = vcombine.low %v851, %v867
          %v871 = vcombine.high %v851, %v867
          %vm872 = vcmask 64512
          %873 = vst.msk [vmem:[#allocation2] sm:$0xff] %vm872, %v868
          %874 = vst.msk [vmem:[#allocation2 + $0x8] sm:$0xff] %vm872, %v869
          %875 = vst.msk [vmem:[#allocation2 + $0x10] sm:$0xff] %vm872, %v870
          %876 = vst.msk [vmem:[#allocation2 + $0x18] sm:$0xff] %vm872, %v871
          %v877 = vlaneseq
          %v878 = vshrl.u32 %v877, 7
          %v879 = vsub.s32 2, %v878
          %v880 = vrot.slane %v612, %v879
          %882 = vrot.lane.b32.xlu0 %v880, 32
          %v883 = vpop.permute.xlu0 %882
          %v885 = vadd.f32 %v718, %v883
          %887 = vrot.lane.b32.xlu0 %v885, 120
          %v888 = vpop.permute.xlu0 %887
          %889 = vrot.lane.b32.xlu0 %v885, 112
          %v890 = vpop.permute.xlu0 %889
          %891 = vrot.lane.b32.xlu0 %v885, 104
          %v892 = vpop.permute.xlu0 %891
          %893 = vrot.lane.b32.xlu0 %v885, 96
          %v894 = vpop.permute.xlu0 %893
          %895 = vrot.lane.b32.xlu0 %v888, 96
          %v896 = vpop.permute.xlu0 %895
          %897 = vrot.lane.b32.xlu0 %v890, 96
          %v898 = vpop.permute.xlu0 %897
          %899 = vrot.lane.b32.xlu0 %v892, 96
          %v900 = vpop.permute.xlu0 %899
          %v905 = vcombine.low %v894, %v898
          %v906 = vcombine.high %v894, %v898
          %v908 = vunpack.c.l.s4 1983009808
          %v909 = vunpack.c.0.s8 %v908
          %v910 = vlaneseq
          %v911 = vshrl.u32 %v910, 7
          %v912 = vsub.s32 %v909, %v911
          %v913 = vrot.slane %v905, %v912
          %v915 = vunpack.c.l.s4 1983009808
          %v916 = vunpack.c.0.s8 %v915
          %v917 = vlaneseq
          %v918 = vshrl.u32 %v917, 7
          %v919 = vsub.s32 %v916, %v918
          %v920 = vrot.slane %v906, %v919
          %v921 = vcombine.low %v896, %v900
          %v922 = vcombine.high %v896, %v900
          %v924 = vunpack.c.l.s4 1983009808
          %v925 = vunpack.c.0.s8 %v924
          %v926 = vlaneseq
          %v927 = vshrl.u32 %v926, 7
          %v928 = vsub.s32 %v925, %v927
          %v929 = vrot.slane %v921, %v928
          %v931 = vunpack.c.l.s4 1983009808
          %v932 = vunpack.c.0.s8 %v931
          %v933 = vlaneseq
          %v934 = vshrl.u32 %v933, 7
          %v935 = vsub.s32 %v932, %v934
          %v936 = vrot.slane %v922, %v935
          %v937 = vcombine.low %v913, %v929
          %v938 = vcombine.high %v913, %v929
          %v940 = vunpack.c.l.s4 1934713408
          %v941 = vunpack.c.0.s8 %v940
          %v942 = vlaneseq
          %v943 = vshrl.u32 %v942, 7
          %v944 = vsub.s32 %v941, %v943
          %v945 = vrot.slane %v937, %v944
          %v947 = vunpack.c.l.s4 1934713408
          %v948 = vunpack.c.0.s8 %v947
          %v949 = vlaneseq
          %v950 = vshrl.u32 %v949, 7
          %v951 = vsub.s32 %v948, %v950
          %v952 = vrot.slane %v938, %v951
          %v953 = vcombine.low %v920, %v936
          %v954 = vcombine.high %v920, %v936
          %v956 = vunpack.c.l.s4 1934713408
          %v957 = vunpack.c.0.s8 %v956
          %v958 = vlaneseq
          %v959 = vshrl.u32 %v958, 7
          %v960 = vsub.s32 %v957, %v959
          %v961 = vrot.slane %v953, %v960
          %v963 = vunpack.c.l.s4 1934713408
          %v964 = vunpack.c.0.s8 %v963
          %v965 = vlaneseq
          %v966 = vshrl.u32 %v965, 7
          %v967 = vsub.s32 %v964, %v966
          %v968 = vrot.slane %v954, %v967
          %v969 = vcombine.high %v945, 0.0
          %v970 = vcombine.high %v952, 0.0
          %v971 = vcombine.high %v961, 0.0
          %v972 = vcombine.high %v968, 0.0
          %v973 = vcombine.low %v945, %v952
          %v975 = vunpack.c.l.s4 1983009808
          %v976 = vunpack.c.0.s8 %v975
          %v977 = vlaneseq
          %v978 = vshrl.u32 %v977, 7
          %v979 = vsub.s32 %v976, %v978
          %v980 = vrot.slane %v973, %v979
          %v981 = vcombine.low %v969, %v970
          %v983 = vunpack.c.l.s4 1983009808
          %v984 = vunpack.c.0.s8 %v983
          %v985 = vlaneseq
          %v986 = vshrl.u32 %v985, 7
          %v987 = vsub.s32 %v984, %v986
          %v988 = vrot.slane %v981, %v987
          %v989 = vcombine.low %v961, %v968
          %v991 = vunpack.c.l.s4 1983009808
          %v992 = vunpack.c.0.s8 %v991
          %v993 = vlaneseq
          %v994 = vshrl.u32 %v993, 7
          %v995 = vsub.s32 %v992, %v994
          %v996 = vrot.slane %v989, %v995
          %v997 = vcombine.low %v971, %v972
          %v999 = vunpack.c.l.s4 1983009808
          %v1000 = vunpack.c.0.s8 %v999
          %v1001 = vlaneseq
          %v1002 = vshrl.u32 %v1001, 7
          %v1003 = vsub.s32 %v1000, %v1002
          %v1004 = vrot.slane %v997, %v1003
          %v1005 = vcombine.low %v980, %v988
          %v1006 = vcombine.high %v980, %v988
          %v1008 = vunpack.c.l.s4 1934713408
          %v1009 = vunpack.c.0.s8 %v1008
          %v1010 = vlaneseq
          %v1011 = vshrl.u32 %v1010, 7
          %v1012 = vsub.s32 %v1009, %v1011
          %v1013 = vrot.slane %v1005, %v1012
          %v1015 = vunpack.c.l.s4 1934713408
          %v1016 = vunpack.c.0.s8 %v1015
          %v1017 = vlaneseq
          %v1018 = vshrl.u32 %v1017, 7
          %v1019 = vsub.s32 %v1016, %v1018
          %v1020 = vrot.slane %v1006, %v1019
          %v1021 = vcombine.low %v996, %v1004
          %v1022 = vcombine.high %v996, %v1004
          %v1024 = vunpack.c.l.s4 1934713408
          %v1025 = vunpack.c.0.s8 %v1024
          %v1026 = vlaneseq
          %v1027 = vshrl.u32 %v1026, 7
          %v1028 = vsub.s32 %v1025, %v1027
          %v1029 = vrot.slane %v1021, %v1028
          %v1031 = vunpack.c.l.s4 1934713408
          %v1032 = vunpack.c.0.s8 %v1031
          %v1033 = vlaneseq
          %v1034 = vshrl.u32 %v1033, 7
          %v1035 = vsub.s32 %v1032, %v1034
          %v1036 = vrot.slane %v1022, %v1035
          %v1037 = vcombine.low %v1013, %v1029
          %v1038 = vcombine.high %v1013, %v1029
          %v1039 = vcombine.low %v1020, %v1036
          %v1040 = vcombine.high %v1020, %v1036
          %1041 = vst.msk [vmem:[#allocation3] sm:$0xff] %vm872, %v1037
          %1042 = vst.msk [vmem:[#allocation3 + $0x8] sm:$0xff] %vm872, %v1038
          %1043 = vst.msk [vmem:[#allocation3 + $0x10] sm:$0xff] %vm872, %v1039
          %1044 = vst.msk [vmem:[#allocation3 + $0x18] sm:$0xff] %vm872, %v1040
          %v1045 = vld [vmem:[%s526] sm:$0xff]
          %v1046 = vld [vmem:[%s526 + $0x8] sm:$0xff]
          %v1047 = vld [vmem:[#allocation17] sm:$0xff]
          %v1048 = vld [vmem:[#allocation17 + $0x8] sm:$0xff]
          %v1049 = vld [vmem:[#allocation17 + $0x10] sm:$0xff]
          %v1050 = vld [vmem:[#allocation17 + $0x18] sm:$0xff]
          %v1052 = vsel %vm619, %v1045, 0
          %v1055 = vsel %vm619, %v1046, 0
          %1057 = vmatprep.subr.mxu0 0.0
          %1058 = vmatpush1.msra.mxu0 0.0
          %1059 = vmatprep.subr.mxu0 0.0
          %1060 = vmatpush1.msra.mxu0 0.0
          %1061 = vmatprep.subr.mxu0 0.0
          %1062 = vmatpush1.msra.mxu0 0.0
          %1063 = vmatprep.subr.mxu0 0.0
          %1064 = vmatpush1.msra.mxu0 0.0
          %1065 = vmatprep.subr.mxu0 0.0
          %1066 = vmatpush1.msra.mxu0 0.0
          %1067 = vmatprep.subr.mxu0 0.0
          %1068 = vmatpush1.msra.mxu0 0.0
          %1069 = vmatprep.subr.mxu0 0.0
          %1070 = vmatpush1.msra.mxu0 0.0
          %1071 = vmatprep.subr.mxu0 0.0
          %1072 = vmatpush1.msra.mxu0 0.0
          %1073 = vmatprep.subr.mxu0 0.0
          %1074 = vmatpush1.msra.mxu0 0.0
          %1075 = vmatprep.subr.mxu0 0.0
          %1076 = vmatpush1.msra.mxu0 0.0
          %1077 = vmatprep.subr.mxu0 0.0
          %1078 = vmatpush1.msra.mxu0 0.0
          %1079 = vmatprep.subr.mxu0 0.0
          %1080 = vmatpush1.msra.mxu0 0.0
          %1081 = vmatprep.subr.mxu0 0.0
          %1082 = vmatpush1.msra.mxu0 %v1050
          %1083 = vmatprep.subr.mxu0 0.0
          %1084 = vmatpush1.msra.mxu0 %v1049
          %1085 = vmatprep.subr.mxu0 0.0
          %1086 = vmatpush1.msra.mxu0 %v1048
          %1087 = vmatprep.subr.mxu0 0.0
          %1088 = vmatpush1.msra.mxu0 %v1047
          %1089 = vmatprep.subr.mxu0 0.0
          %1090 = vmatpush2.msra.mxu0 0.0
          %1091 = vmatprep.subr.mxu0 0.0
          %1092 = vmatpush2.msra.mxu0 0.0
          %1093 = vmatprep.subr.mxu0 0.0
          %1094 = vmatpush2.msra.mxu0 0.0
          %1095 = vmatprep.subr.mxu0 0.0
          %1096 = vmatpush2.msra.mxu0 0.0
          %1097 = vmatprep.subr.mxu0 0.0
          %1098 = vmatpush2.msra.mxu0 0.0
          %1099 = vmatprep.subr.mxu0 0.0
          %1100 = vmatpush2.msra.mxu0 0.0
          %1101 = vmatprep.subr.mxu0 0.0
          %1102 = vmatpush2.msra.mxu0 0.0
          %1103 = vmatprep.subr.mxu0 0.0
          %1104 = vmatpush2.msra.mxu0 0.0
          %1105 = vmatprep.subr.mxu0 0.0
          %1106 = vmatpush2.msra.mxu0 0.0
          %1107 = vmatprep.subr.mxu0 0.0
          %1108 = vmatpush2.msra.mxu0 0.0
          %1109 = vmatprep.subr.mxu0 0.0
          %1110 = vmatpush2.msra.mxu0 0.0
          %1111 = vmatprep.subr.mxu0 0.0
          %1112 = vmatpush2.msra.mxu0 0.0
          %1113 = vmatprep.subr.mxu0 0.0
          %1114 = vmatpush2.msra.mxu0 0.0
          %1115 = vmatprep.subr.mxu0 0.0
          %1116 = vmatpush2.msra.mxu0 0.0
          %1117 = vmatprep.subr.mxu0 0.0
          %1118 = vmatpush2.msra.mxu0 0.0
          %1119 = vmatprep.subr.mxu0 0.0
          %1120 = vmatpush2.msra.mxu0 0.0
          %1121 = vmatprep.mubr.f32.mxu0 0.0
          %1122 = vmatmul.mubr.f32.gmra.mxu0 %v1052
          %v1123 = vpop.f32.mrf.mxu0
          %v1124 = vadd.f32 0.0, %v1123
          %v1125 = vpop.f32.mrf.mxu0
          %1126 = vmatprep.mubr.f32.mxu0 0.0
          %1127 = vmatmul.mubr.f32.gmra.mxu0 %v1055
          %v1128 = vpop.f32.mrf.mxu0
          %v1129 = vadd.f32 0.0, %v1128
          %v1130 = vpop.f32.mrf.mxu0
          %1131 = vdwg.mxu0
          %v1132 = vlaneseq
          %v1133 = vshrl.u32 %v1132, 7
          %v1134 = vsub.s32 5, %v1133
          %v1135 = vrot.slane %v612, %v1134
          %v1136 = vadd.f32 %v1124, %v1135
          %v1137 = vadd.f32 %v1129, %v1135
          %1140 = vrot.lane.b32.xlu0 %v1136, 120
          %v1141 = vpop.permute.xlu0 %1140
          %1142 = vrot.lane.b32.xlu0 %v1137, 120
          %v1143 = vpop.permute.xlu0 %1142
          %1146 = vrot.lane.b32.xlu0 %v1136, 112
          %v1147 = vpop.permute.xlu0 %1146
          %1148 = vrot.lane.b32.xlu0 %v1137, 112
          %v1149 = vpop.permute.xlu0 %1148
          %1152 = vrot.lane.b32.xlu0 %v1136, 104
          %v1153 = vpop.permute.xlu0 %1152
          %1154 = vrot.lane.b32.xlu0 %v1137, 104
          %v1155 = vpop.permute.xlu0 %1154
          %v1158 = vcombine.low %v1136, %v1147
          %v1159 = vcombine.high %v1136, %v1147
          %v1161 = vunpack.c.l.s4 1983009808
          %v1162 = vunpack.c.0.s8 %v1161
          %v1163 = vlaneseq
          %v1164 = vshrl.u32 %v1163, 7
          %v1165 = vsub.s32 %v1162, %v1164
          %v1166 = vrot.slane %v1158, %v1165
          %v1168 = vunpack.c.l.s4 1983009808
          %v1169 = vunpack.c.0.s8 %v1168
          %v1170 = vlaneseq
          %v1171 = vshrl.u32 %v1170, 7
          %v1172 = vsub.s32 %v1169, %v1171
          %v1173 = vrot.slane %v1159, %v1172
          %v1174 = vcombine.low %v1141, %v1153
          %v1175 = vcombine.high %v1141, %v1153
          %v1177 = vunpack.c.l.s4 1983009808
          %v1178 = vunpack.c.0.s8 %v1177
          %v1179 = vlaneseq
          %v1180 = vshrl.u32 %v1179, 7
          %v1181 = vsub.s32 %v1178, %v1180
          %v1182 = vrot.slane %v1174, %v1181
          %v1184 = vunpack.c.l.s4 1983009808
          %v1185 = vunpack.c.0.s8 %v1184
          %v1186 = vlaneseq
          %v1187 = vshrl.u32 %v1186, 7
          %v1188 = vsub.s32 %v1185, %v1187
          %v1189 = vrot.slane %v1175, %v1188
          %v1190 = vcombine.low %v1166, %v1182
          %v1191 = vcombine.high %v1166, %v1182
          %v1193 = vunpack.c.l.s4 1934713408
          %v1194 = vunpack.c.0.s8 %v1193
          %v1195 = vlaneseq
          %v1196 = vshrl.u32 %v1195, 7
          %v1197 = vsub.s32 %v1194, %v1196
          %v1198 = vrot.slane %v1190, %v1197
          %v1200 = vunpack.c.l.s4 1934713408
          %v1201 = vunpack.c.0.s8 %v1200
          %v1202 = vlaneseq
          %v1203 = vshrl.u32 %v1202, 7
          %v1204 = vsub.s32 %v1201, %v1203
          %v1205 = vrot.slane %v1191, %v1204
          %v1206 = vcombine.low %v1173, %v1189
          %v1207 = vcombine.high %v1173, %v1189
          %v1209 = vunpack.c.l.s4 1934713408
          %v1210 = vunpack.c.0.s8 %v1209
          %v1211 = vlaneseq
          %v1212 = vshrl.u32 %v1211, 7
          %v1213 = vsub.s32 %v1210, %v1212
          %v1214 = vrot.slane %v1206, %v1213
          %v1216 = vunpack.c.l.s4 1934713408
          %v1217 = vunpack.c.0.s8 %v1216
          %v1218 = vlaneseq
          %v1219 = vshrl.u32 %v1218, 7
          %v1220 = vsub.s32 %v1217, %v1219
          %v1221 = vrot.slane %v1207, %v1220
          %v1222 = vcombine.high %v1198, 0.0
          %v1223 = vcombine.high %v1205, 0.0
          %v1224 = vcombine.high %v1214, 0.0
          %v1225 = vcombine.high %v1221, 0.0
          %v1226 = vcombine.low %v1137, %v1149
          %v1227 = vcombine.high %v1137, %v1149
          %v1229 = vunpack.c.l.s4 1983009808
          %v1230 = vunpack.c.0.s8 %v1229
          %v1231 = vlaneseq
          %v1232 = vshrl.u32 %v1231, 7
          %v1233 = vsub.s32 %v1230, %v1232
          %v1234 = vrot.slane %v1226, %v1233
          %v1236 = vunpack.c.l.s4 1983009808
          %v1237 = vunpack.c.0.s8 %v1236
          %v1238 = vlaneseq
          %v1239 = vshrl.u32 %v1238, 7
          %v1240 = vsub.s32 %v1237, %v1239
          %v1241 = vrot.slane %v1227, %v1240
          %v1242 = vcombine.low %v1143, %v1155
          %v1243 = vcombine.high %v1143, %v1155
          %v1245 = vunpack.c.l.s4 1983009808
          %v1246 = vunpack.c.0.s8 %v1245
          %v1247 = vlaneseq
          %v1248 = vshrl.u32 %v1247, 7
          %v1249 = vsub.s32 %v1246, %v1248
          %v1250 = vrot.slane %v1242, %v1249
          %v1252 = vunpack.c.l.s4 1983009808
          %v1253 = vunpack.c.0.s8 %v1252
          %v1254 = vlaneseq
          %v1255 = vshrl.u32 %v1254, 7
          %v1256 = vsub.s32 %v1253, %v1255
          %v1257 = vrot.slane %v1243, %v1256
          %v1258 = vcombine.low %v1234, %v1250
          %v1259 = vcombine.high %v1234, %v1250
          %v1261 = vunpack.c.l.s4 1934713408
          %v1262 = vunpack.c.0.s8 %v1261
          %v1263 = vlaneseq
          %v1264 = vshrl.u32 %v1263, 7
          %v1265 = vsub.s32 %v1262, %v1264
          %v1266 = vrot.slane %v1258, %v1265
          %v1268 = vunpack.c.l.s4 1934713408
          %v1269 = vunpack.c.0.s8 %v1268
          %v1270 = vlaneseq
          %v1271 = vshrl.u32 %v1270, 7
          %v1272 = vsub.s32 %v1269, %v1271
          %v1273 = vrot.slane %v1259, %v1272
          %v1274 = vcombine.low %v1241, %v1257
          %v1275 = vcombine.high %v1241, %v1257
          %v1277 = vunpack.c.l.s4 1934713408
          %v1278 = vunpack.c.0.s8 %v1277
          %v1279 = vlaneseq
          %v1280 = vshrl.u32 %v1279, 7
          %v1281 = vsub.s32 %v1278, %v1280
          %v1282 = vrot.slane %v1274, %v1281
          %v1284 = vunpack.c.l.s4 1934713408
          %v1285 = vunpack.c.0.s8 %v1284
          %v1286 = vlaneseq
          %v1287 = vshrl.u32 %v1286, 7
          %v1288 = vsub.s32 %v1285, %v1287
          %v1289 = vrot.slane %v1275, %v1288
          %v1290 = vcombine.high %v1266, 0.0
          %v1291 = vcombine.high %v1273, 0.0
          %v1292 = vcombine.high %v1282, 0.0
          %v1293 = vcombine.high %v1289, 0.0
          %v1294 = vcombine.low %v1198, %v1205
          %v1296 = vunpack.c.l.s4 1983009808
          %v1297 = vunpack.c.0.s8 %v1296
          %v1298 = vlaneseq
          %v1299 = vshrl.u32 %v1298, 7
          %v1300 = vsub.s32 %v1297, %v1299
          %v1301 = vrot.slane %v1294, %v1300
          %v1302 = vcombine.low %v1222, %v1223
          %v1304 = vunpack.c.l.s4 1983009808
          %v1305 = vunpack.c.0.s8 %v1304
          %v1306 = vlaneseq
          %v1307 = vshrl.u32 %v1306, 7
          %v1308 = vsub.s32 %v1305, %v1307
          %v1309 = vrot.slane %v1302, %v1308
          %v1310 = vcombine.low %v1214, %v1221
          %v1312 = vunpack.c.l.s4 1983009808
          %v1313 = vunpack.c.0.s8 %v1312
          %v1314 = vlaneseq
          %v1315 = vshrl.u32 %v1314, 7
          %v1316 = vsub.s32 %v1313, %v1315
          %v1317 = vrot.slane %v1310, %v1316
          %v1318 = vcombine.low %v1224, %v1225
          %v1320 = vunpack.c.l.s4 1983009808
          %v1321 = vunpack.c.0.s8 %v1320
          %v1322 = vlaneseq
          %v1323 = vshrl.u32 %v1322, 7
          %v1324 = vsub.s32 %v1321, %v1323
          %v1325 = vrot.slane %v1318, %v1324
          %v1326 = vcombine.low %v1301, %v1309
          %v1327 = vcombine.high %v1301, %v1309
          %v1329 = vunpack.c.l.s4 1934713408
          %v1330 = vunpack.c.0.s8 %v1329
          %v1331 = vlaneseq
          %v1332 = vshrl.u32 %v1331, 7
          %v1333 = vsub.s32 %v1330, %v1332
          %v1334 = vrot.slane %v1326, %v1333
          %v1336 = vunpack.c.l.s4 1934713408
          %v1337 = vunpack.c.0.s8 %v1336
          %v1338 = vlaneseq
          %v1339 = vshrl.u32 %v1338, 7
          %v1340 = vsub.s32 %v1337, %v1339
          %v1341 = vrot.slane %v1327, %v1340
          %v1342 = vcombine.low %v1317, %v1325
          %v1343 = vcombine.high %v1317, %v1325
          %v1345 = vunpack.c.l.s4 1934713408
          %v1346 = vunpack.c.0.s8 %v1345
          %v1347 = vlaneseq
          %v1348 = vshrl.u32 %v1347, 7
          %v1349 = vsub.s32 %v1346, %v1348
          %v1350 = vrot.slane %v1342, %v1349
          %v1352 = vunpack.c.l.s4 1934713408
          %v1353 = vunpack.c.0.s8 %v1352
          %v1354 = vlaneseq
          %v1355 = vshrl.u32 %v1354, 7
          %v1356 = vsub.s32 %v1353, %v1355
          %v1357 = vrot.slane %v1343, %v1356
          %v1358 = vcombine.low %v1334, %v1350
          %v1359 = vcombine.high %v1334, %v1350
          %v1360 = vcombine.low %v1341, %v1357
          %v1361 = vcombine.high %v1341, %v1357
          %v1362 = vcombine.low %v1266, %v1273
          %v1364 = vunpack.c.l.s4 1983009808
          %v1365 = vunpack.c.0.s8 %v1364
          %v1366 = vlaneseq
          %v1367 = vshrl.u32 %v1366, 7
          %v1368 = vsub.s32 %v1365, %v1367
          %v1369 = vrot.slane %v1362, %v1368
          %v1370 = vcombine.low %v1290, %v1291
          %v1372 = vunpack.c.l.s4 1983009808
          %v1373 = vunpack.c.0.s8 %v1372
          %v1374 = vlaneseq
          %v1375 = vshrl.u32 %v1374, 7
          %v1376 = vsub.s32 %v1373, %v1375
          %v1377 = vrot.slane %v1370, %v1376
          %v1378 = vcombine.low %v1282, %v1289
          %v1380 = vunpack.c.l.s4 1983009808
          %v1381 = vunpack.c.0.s8 %v1380
          %v1382 = vlaneseq
          %v1383 = vshrl.u32 %v1382, 7
          %v1384 = vsub.s32 %v1381, %v1383
          %v1385 = vrot.slane %v1378, %v1384
          %v1386 = vcombine.low %v1292, %v1293
          %v1388 = vunpack.c.l.s4 1983009808
          %v1389 = vunpack.c.0.s8 %v1388
          %v1390 = vlaneseq
          %v1391 = vshrl.u32 %v1390, 7
          %v1392 = vsub.s32 %v1389, %v1391
          %v1393 = vrot.slane %v1386, %v1392
          %v1394 = vcombine.low %v1369, %v1377
          %v1395 = vcombine.high %v1369, %v1377
          %v1397 = vunpack.c.l.s4 1934713408
          %v1398 = vunpack.c.0.s8 %v1397
          %v1399 = vlaneseq
          %v1400 = vshrl.u32 %v1399, 7
          %v1401 = vsub.s32 %v1398, %v1400
          %v1402 = vrot.slane %v1394, %v1401
          %v1404 = vunpack.c.l.s4 1934713408
          %v1405 = vunpack.c.0.s8 %v1404
          %v1406 = vlaneseq
          %v1407 = vshrl.u32 %v1406, 7
          %v1408 = vsub.s32 %v1405, %v1407
          %v1409 = vrot.slane %v1395, %v1408
          %v1410 = vcombine.low %v1385, %v1393
          %v1411 = vcombine.high %v1385, %v1393
          %v1413 = vunpack.c.l.s4 1934713408
          %v1414 = vunpack.c.0.s8 %v1413
          %v1415 = vlaneseq
          %v1416 = vshrl.u32 %v1415, 7
          %v1417 = vsub.s32 %v1414, %v1416
          %v1418 = vrot.slane %v1410, %v1417
          %v1420 = vunpack.c.l.s4 1934713408
          %v1421 = vunpack.c.0.s8 %v1420
          %v1422 = vlaneseq
          %v1423 = vshrl.u32 %v1422, 7
          %v1424 = vsub.s32 %v1421, %v1423
          %v1425 = vrot.slane %v1411, %v1424
          %v1426 = vcombine.low %v1402, %v1418
          %v1427 = vcombine.high %v1402, %v1418
          %v1428 = vcombine.low %v1409, %v1425
          %v1429 = vcombine.high %v1409, %v1425
          %1430 = vst.msk [vmem:[#allocation4] sm:$0xff] %vm872, %v1358
          %1431 = vst.msk [vmem:[#allocation4 + $0x8] sm:$0xff] %vm872, %v1426
          %1432 = vst.msk [vmem:[#allocation4 + $0x10] sm:$0xff] %vm872, %v1359
          %1433 = vst.msk [vmem:[#allocation4 + $0x18] sm:$0xff] %vm872, %v1427
          %1434 = vst.msk [vmem:[#allocation4 + $0x20] sm:$0xff] %vm872, %v1360
          %1435 = vst.msk [vmem:[#allocation4 + $0x28] sm:$0xff] %vm872, %v1428
          %1436 = vst.msk [vmem:[#allocation4 + $0x30] sm:$0xff] %vm872, %v1361
          %1437 = vst.msk [vmem:[#allocation4 + $0x38] sm:$0xff] %vm872, %v1429
          %v1438 = vlaneseq
          %v1439 = vshrl.u32 %v1438, 7
          %v1440 = vsub.s32 6, %v1439
          %v1441 = vrot.slane %v612, %v1440
          %1443 = vrot.lane.b32.xlu0 %v1441, 32
          %v1444 = vpop.permute.xlu0 %1443
          %v1446 = vadd.f32 %v1124, %v1444
          %v1447 = vadd.f32 %v1129, %v1444
          %1450 = vrot.lane.b32.xlu0 %v1446, 120
          %v1451 = vpop.permute.xlu0 %1450
          %1452 = vrot.lane.b32.xlu0 %v1447, 120
          %v1453 = vpop.permute.xlu0 %1452
          %1454 = vrot.lane.b32.xlu0 %v1446, 112
          %v1455 = vpop.permute.xlu0 %1454
          %1456 = vrot.lane.b32.xlu0 %v1447, 112
          %v1457 = vpop.permute.xlu0 %1456
          %1458 = vrot.lane.b32.xlu0 %v1446, 104
          %v1459 = vpop.permute.xlu0 %1458
          %1460 = vrot.lane.b32.xlu0 %v1447, 104
          %v1461 = vpop.permute.xlu0 %1460
          %1462 = vrot.lane.b32.xlu0 %v1446, 96
          %v1463 = vpop.permute.xlu0 %1462
          %1464 = vrot.lane.b32.xlu0 %v1447, 96
          %v1465 = vpop.permute.xlu0 %1464
          %1466 = vrot.lane.b32.xlu0 %v1451, 96
          %v1467 = vpop.permute.xlu0 %1466
          %1468 = vrot.lane.b32.xlu0 %v1453, 96
          %v1469 = vpop.permute.xlu0 %1468
          %1470 = vrot.lane.b32.xlu0 %v1455, 96
          %v1471 = vpop.permute.xlu0 %1470
          %1472 = vrot.lane.b32.xlu0 %v1457, 96
          %v1473 = vpop.permute.xlu0 %1472
          %1474 = vrot.lane.b32.xlu0 %v1459, 96
          %v1475 = vpop.permute.xlu0 %1474
          %1476 = vrot.lane.b32.xlu0 %v1461, 96
          %v1477 = vpop.permute.xlu0 %1476
          %v1486 = vcombine.low %v1463, %v1471
          %v1487 = vcombine.high %v1463, %v1471
          %v1489 = vunpack.c.l.s4 1983009808
          %v1490 = vunpack.c.0.s8 %v1489
          %v1491 = vlaneseq
          %v1492 = vshrl.u32 %v1491, 7
          %v1493 = vsub.s32 %v1490, %v1492
          %v1494 = vrot.slane %v1486, %v1493
          %v1496 = vunpack.c.l.s4 1983009808
          %v1497 = vunpack.c.0.s8 %v1496
          %v1498 = vlaneseq
          %v1499 = vshrl.u32 %v1498, 7
          %v1500 = vsub.s32 %v1497, %v1499
          %v1501 = vrot.slane %v1487, %v1500
          %v1502 = vcombine.low %v1467, %v1475
          %v1503 = vcombine.high %v1467, %v1475
          %v1505 = vunpack.c.l.s4 1983009808
          %v1506 = vunpack.c.0.s8 %v1505
          %v1507 = vlaneseq
          %v1508 = vshrl.u32 %v1507, 7
          %v1509 = vsub.s32 %v1506, %v1508
          %v1510 = vrot.slane %v1502, %v1509
          %v1512 = vunpack.c.l.s4 1983009808
          %v1513 = vunpack.c.0.s8 %v1512
          %v1514 = vlaneseq
          %v1515 = vshrl.u32 %v1514, 7
          %v1516 = vsub.s32 %v1513, %v1515
          %v1517 = vrot.slane %v1503, %v1516
          %v1518 = vcombine.low %v1494, %v1510
          %v1519 = vcombine.high %v1494, %v1510
          %v1521 = vunpack.c.l.s4 1934713408
          %v1522 = vunpack.c.0.s8 %v1521
          %v1523 = vlaneseq
          %v1524 = vshrl.u32 %v1523, 7
          %v1525 = vsub.s32 %v1522, %v1524
          %v1526 = vrot.slane %v1518, %v1525
          %v1528 = vunpack.c.l.s4 1934713408
          %v1529 = vunpack.c.0.s8 %v1528
          %v1530 = vlaneseq
          %v1531 = vshrl.u32 %v1530, 7
          %v1532 = vsub.s32 %v1529, %v1531
          %v1533 = vrot.slane %v1519, %v1532
          %v1534 = vcombine.low %v1501, %v1517
          %v1535 = vcombine.high %v1501, %v1517
          %v1537 = vunpack.c.l.s4 1934713408
          %v1538 = vunpack.c.0.s8 %v1537
          %v1539 = vlaneseq
          %v1540 = vshrl.u32 %v1539, 7
          %v1541 = vsub.s32 %v1538, %v1540
          %v1542 = vrot.slane %v1534, %v1541
          %v1544 = vunpack.c.l.s4 1934713408
          %v1545 = vunpack.c.0.s8 %v1544
          %v1546 = vlaneseq
          %v1547 = vshrl.u32 %v1546, 7
          %v1548 = vsub.s32 %v1545, %v1547
          %v1549 = vrot.slane %v1535, %v1548
          %v1550 = vcombine.high %v1526, 0.0
          %v1551 = vcombine.high %v1533, 0.0
          %v1552 = vcombine.high %v1542, 0.0
          %v1553 = vcombine.high %v1549, 0.0
          %v1554 = vcombine.low %v1465, %v1473
          %v1555 = vcombine.high %v1465, %v1473
          %v1557 = vunpack.c.l.s4 1983009808
          %v1558 = vunpack.c.0.s8 %v1557
          %v1559 = vlaneseq
          %v1560 = vshrl.u32 %v1559, 7
          %v1561 = vsub.s32 %v1558, %v1560
          %v1562 = vrot.slane %v1554, %v1561
          %v1564 = vunpack.c.l.s4 1983009808
          %v1565 = vunpack.c.0.s8 %v1564
          %v1566 = vlaneseq
          %v1567 = vshrl.u32 %v1566, 7
          %v1568 = vsub.s32 %v1565, %v1567
          %v1569 = vrot.slane %v1555, %v1568
          %v1570 = vcombine.low %v1469, %v1477
          %v1571 = vcombine.high %v1469, %v1477
          %v1573 = vunpack.c.l.s4 1983009808
          %v1574 = vunpack.c.0.s8 %v1573
          %v1575 = vlaneseq
          %v1576 = vshrl.u32 %v1575, 7
          %v1577 = vsub.s32 %v1574, %v1576
          %v1578 = vrot.slane %v1570, %v1577
          %v1580 = vunpack.c.l.s4 1983009808
          %v1581 = vunpack.c.0.s8 %v1580
          %v1582 = vlaneseq
          %v1583 = vshrl.u32 %v1582, 7
          %v1584 = vsub.s32 %v1581, %v1583
          %v1585 = vrot.slane %v1571, %v1584
          %v1586 = vcombine.low %v1562, %v1578
          %v1587 = vcombine.high %v1562, %v1578
          %v1589 = vunpack.c.l.s4 1934713408
          %v1590 = vunpack.c.0.s8 %v1589
          %v1591 = vlaneseq
          %v1592 = vshrl.u32 %v1591, 7
          %v1593 = vsub.s32 %v1590, %v1592
          %v1594 = vrot.slane %v1586, %v1593
          %v1596 = vunpack.c.l.s4 1934713408
          %v1597 = vunpack.c.0.s8 %v1596
          %v1598 = vlaneseq
          %v1599 = vshrl.u32 %v1598, 7
          %v1600 = vsub.s32 %v1597, %v1599
          %v1601 = vrot.slane %v1587, %v1600
          %v1602 = vcombine.low %v1569, %v1585
          %v1603 = vcombine.high %v1569, %v1585
          %v1605 = vunpack.c.l.s4 1934713408
          %v1606 = vunpack.c.0.s8 %v1605
          %v1607 = vlaneseq
          %v1608 = vshrl.u32 %v1607, 7
          %v1609 = vsub.s32 %v1606, %v1608
          %v1610 = vrot.slane %v1602, %v1609
          %v1612 = vunpack.c.l.s4 1934713408
          %v1613 = vunpack.c.0.s8 %v1612
          %v1614 = vlaneseq
          %v1615 = vshrl.u32 %v1614, 7
          %v1616 = vsub.s32 %v1613, %v1615
          %v1617 = vrot.slane %v1603, %v1616
          %v1618 = vcombine.high %v1594, 0.0
          %v1619 = vcombine.high %v1601, 0.0
          %v1620 = vcombine.high %v1610, 0.0
          %v1621 = vcombine.high %v1617, 0.0
          %v1622 = vcombine.low %v1526, %v1533
          %v1624 = vunpack.c.l.s4 1983009808
          %v1625 = vunpack.c.0.s8 %v1624
          %v1626 = vlaneseq
          %v1627 = vshrl.u32 %v1626, 7
          %v1628 = vsub.s32 %v1625, %v1627
          %v1629 = vrot.slane %v1622, %v1628
          %v1630 = vcombine.low %v1550, %v1551
          %v1632 = vunpack.c.l.s4 1983009808
          %v1633 = vunpack.c.0.s8 %v1632
          %v1634 = vlaneseq
          %v1635 = vshrl.u32 %v1634, 7
          %v1636 = vsub.s32 %v1633, %v1635
          %v1637 = vrot.slane %v1630, %v1636
          %v1638 = vcombine.low %v1542, %v1549
          %v1640 = vunpack.c.l.s4 1983009808
          %v1641 = vunpack.c.0.s8 %v1640
          %v1642 = vlaneseq
          %v1643 = vshrl.u32 %v1642, 7
          %v1644 = vsub.s32 %v1641, %v1643
          %v1645 = vrot.slane %v1638, %v1644
          %v1646 = vcombine.low %v1552, %v1553
          %v1648 = vunpack.c.l.s4 1983009808
          %v1649 = vunpack.c.0.s8 %v1648
          %v1650 = vlaneseq
          %v1651 = vshrl.u32 %v1650, 7
          %v1652 = vsub.s32 %v1649, %v1651
          %v1653 = vrot.slane %v1646, %v1652
          %v1654 = vcombine.low %v1629, %v1637
          %v1655 = vcombine.high %v1629, %v1637
          %v1657 = vunpack.c.l.s4 1934713408
          %v1658 = vunpack.c.0.s8 %v1657
          %v1659 = vlaneseq
          %v1660 = vshrl.u32 %v1659, 7
          %v1661 = vsub.s32 %v1658, %v1660
          %v1662 = vrot.slane %v1654, %v1661
          %v1664 = vunpack.c.l.s4 1934713408
          %v1665 = vunpack.c.0.s8 %v1664
          %v1666 = vlaneseq
          %v1667 = vshrl.u32 %v1666, 7
          %v1668 = vsub.s32 %v1665, %v1667
          %v1669 = vrot.slane %v1655, %v1668
          %v1670 = vcombine.low %v1645, %v1653
          %v1671 = vcombine.high %v1645, %v1653
          %v1673 = vunpack.c.l.s4 1934713408
          %v1674 = vunpack.c.0.s8 %v1673
          %v1675 = vlaneseq
          %v1676 = vshrl.u32 %v1675, 7
          %v1677 = vsub.s32 %v1674, %v1676
          %v1678 = vrot.slane %v1670, %v1677
          %v1680 = vunpack.c.l.s4 1934713408
          %v1681 = vunpack.c.0.s8 %v1680
          %v1682 = vlaneseq
          %v1683 = vshrl.u32 %v1682, 7
          %v1684 = vsub.s32 %v1681, %v1683
          %v1685 = vrot.slane %v1671, %v1684
          %v1686 = vcombine.low %v1662, %v1678
          %v1687 = vcombine.high %v1662, %v1678
          %v1688 = vcombine.low %v1669, %v1685
          %v1689 = vcombine.high %v1669, %v1685
          %v1690 = vcombine.low %v1594, %v1601
          %v1692 = vunpack.c.l.s4 1983009808
          %v1693 = vunpack.c.0.s8 %v1692
          %v1694 = vlaneseq
          %v1695 = vshrl.u32 %v1694, 7
          %v1696 = vsub.s32 %v1693, %v1695
          %v1697 = vrot.slane %v1690, %v1696
          %v1698 = vcombine.low %v1618, %v1619
          %v1700 = vunpack.c.l.s4 1983009808
          %v1701 = vunpack.c.0.s8 %v1700
          %v1702 = vlaneseq
          %v1703 = vshrl.u32 %v1702, 7
          %v1704 = vsub.s32 %v1701, %v1703
          %v1705 = vrot.slane %v1698, %v1704
          %v1706 = vcombine.low %v1610, %v1617
          %v1708 = vunpack.c.l.s4 1983009808
          %v1709 = vunpack.c.0.s8 %v1708
          %v1710 = vlaneseq
          %v1711 = vshrl.u32 %v1710, 7
          %v1712 = vsub.s32 %v1709, %v1711
          %v1713 = vrot.slane %v1706, %v1712
          %v1714 = vcombine.low %v1620, %v1621
          %v1716 = vunpack.c.l.s4 1983009808
          %v1717 = vunpack.c.0.s8 %v1716
          %v1718 = vlaneseq
          %v1719 = vshrl.u32 %v1718, 7
          %v1720 = vsub.s32 %v1717, %v1719
          %v1721 = vrot.slane %v1714, %v1720
          %v1722 = vcombine.low %v1697, %v1705
          %v1723 = vcombine.high %v1697, %v1705
          %v1725 = vunpack.c.l.s4 1934713408
          %v1726 = vunpack.c.0.s8 %v1725
          %v1727 = vlaneseq
          %v1728 = vshrl.u32 %v1727, 7
          %v1729 = vsub.s32 %v1726, %v1728
          %v1730 = vrot.slane %v1722, %v1729
          %v1732 = vunpack.c.l.s4 1934713408
          %v1733 = vunpack.c.0.s8 %v1732
          %v1734 = vlaneseq
          %v1735 = vshrl.u32 %v1734, 7
          %v1736 = vsub.s32 %v1733, %v1735
          %v1737 = vrot.slane %v1723, %v1736
          %v1738 = vcombine.low %v1713, %v1721
          %v1739 = vcombine.high %v1713, %v1721
          %v1741 = vunpack.c.l.s4 1934713408
          %v1742 = vunpack.c.0.s8 %v1741
          %v1743 = vlaneseq
          %v1744 = vshrl.u32 %v1743, 7
          %v1745 = vsub.s32 %v1742, %v1744
          %v1746 = vrot.slane %v1738, %v1745
          %v1748 = vunpack.c.l.s4 1934713408
          %v1749 = vunpack.c.0.s8 %v1748
          %v1750 = vlaneseq
          %v1751 = vshrl.u32 %v1750, 7
          %v1752 = vsub.s32 %v1749, %v1751
          %v1753 = vrot.slane %v1739, %v1752
          %v1754 = vcombine.low %v1730, %v1746
          %v1755 = vcombine.high %v1730, %v1746
          %v1756 = vcombine.low %v1737, %v1753
          %v1757 = vcombine.high %v1737, %v1753
          %1758 = vst.msk [vmem:[#allocation5] sm:$0xff] %vm872, %v1686
          %1759 = vst.msk [vmem:[#allocation5 + $0x8] sm:$0xff] %vm872, %v1754
          %1760 = vst.msk [vmem:[#allocation5 + $0x10] sm:$0xff] %vm872, %v1687
          %1761 = vst.msk [vmem:[#allocation5 + $0x18] sm:$0xff] %vm872, %v1755
          %1762 = vst.msk [vmem:[#allocation5 + $0x20] sm:$0xff] %vm872, %v1688
          %1763 = vst.msk [vmem:[#allocation5 + $0x28] sm:$0xff] %vm872, %v1756
          %1764 = vst.msk [vmem:[#allocation5 + $0x30] sm:$0xff] %vm872, %v1689
          %1765 = vst.msk [vmem:[#allocation5 + $0x38] sm:$0xff] %vm872, %v1757
        $region108: #{tpu_custom_call.1} parent=67 // pred_fallthru
          _
        %s1766 = smul.u32 %s40, 8
        %s1767 = scalar_lea.vmem %s517, %s1766 [#allocation6]
        %v1768 = vld [vmem:[%s1767] sm:$0xff]
        %v1769 = vld [vmem:[%s608] sm:$0x1]
        %vm1770 = vcmp.ne.f32.partialorder %v1769, 0.0
        %v1771 = vld [vmem:[%s611] sm:$0x1]
        %vm1772 = vcmp.ne.f32.partialorder %v1771, 0.0
        %vm1773 = vcmask 261120
        %v1774 = vsel %vm1773, %v1768, 0.0
        %1775 = vadd.xlane.f32.xlu0 %v1774
        %v1776 = vpop.xlane.xlu0 %1775
        %v1777 = vrcp.pop 32.0
        %v1778 = vmul.f32 %v1776, %v1777
        %v1779 = vsub.f32 %v1768, %v1778
        %v1780 = vmul.f32 %v1779, %v1779
        %v1781 = vsel %vm1773, %v1780, 0.0
        %1782 = vadd.xlane.f32.xlu0 %v1781
        %v1783 = vpop.xlane.xlu0 %1782
        %v1784 = vmul.f32 %v1783, %v1777
        %v1785 = vadd.f32 %v1784, 1e-05
        %v1786 = vrsqrt.pop %v1785
        %v1787 = vmul.f32 %v1779, %v1786
        %v1788 = vlaneseq
        %v1789 = vshrl.u32 %v1788, 7
        %v1790 = vsub.s32 1, %v1789
        %v1791 = vrot.slane %v613, %v1790
        %v1792 = vmul.f32 %v1787, %v1791
        %v1793 = vlaneseq
        %v1794 = vshrl.u32 %v1793, 7
        %v1795 = vsub.s32 2, %v1794
        %v1796 = vrot.slane %v613, %v1795
        %v1797 = vadd.f32 %v1792, %v1796
        %v1798 = vld [vmem:[#allocation11] sm:$0xff]
        %v1799 = vld [vmem:[#allocation11 + $0x8] sm:$0xff]
        %v1800 = vld [vmem:[#allocation11 + $0x10] sm:$0xff]
        %v1801 = vld [vmem:[#allocation11 + $0x18] sm:$0xff]
        %v1802 = vlaneseq
        %v1803 = vshrl.u32 %v1802, 7
        %v1804 = vsub.s32 0, %v1803
        %v1805 = vrot.slane %v612, %v1804
        %v1807 = vsel %vm1773, %v1797, 0
        %1809 = vmatprep.subr.mxu0 0.0
        %1810 = vmatpush1.msra.mxu0 0.0
        %1811 = vmatprep.subr.mxu0 0.0
        %1812 = vmatpush1.msra.mxu0 0.0
        %1813 = vmatprep.subr.mxu0 0.0
        %1814 = vmatpush1.msra.mxu0 0.0
        %1815 = vmatprep.subr.mxu0 0.0
        %1816 = vmatpush1.msra.mxu0 0.0
        %1817 = vmatprep.subr.mxu0 0.0
        %1818 = vmatpush1.msra.mxu0 0.0
        %1819 = vmatprep.subr.mxu0 0.0
        %1820 = vmatpush1.msra.mxu0 0.0
        %1821 = vmatprep.subr.mxu0 0.0
        %1822 = vmatpush1.msra.mxu0 0.0
        %1823 = vmatprep.subr.mxu0 0.0
        %1824 = vmatpush1.msra.mxu0 0.0
        %1825 = vmatprep.subr.mxu0 0.0
        %1826 = vmatpush1.msra.mxu0 0.0
        %1827 = vmatprep.subr.mxu0 0.0
        %1828 = vmatpush1.msra.mxu0 0.0
        %1829 = vmatprep.subr.mxu0 0.0
        %1830 = vmatpush1.msra.mxu0 0.0
        %1831 = vmatprep.subr.mxu0 0.0
        %1832 = vmatpush1.msra.mxu0 0.0
        %1833 = vmatprep.subr.mxu0 0.0
        %1834 = vmatpush1.msra.mxu0 %v1801
        %1835 = vmatprep.subr.mxu0 0.0
        %1836 = vmatpush1.msra.mxu0 %v1800
        %1837 = vmatprep.subr.mxu0 0.0
        %1838 = vmatpush1.msra.mxu0 %v1799
        %1839 = vmatprep.subr.mxu0 0.0
        %1840 = vmatpush1.msra.mxu0 %v1798
        %1841 = vmatprep.subr.mxu0 0.0
        %1842 = vmatpush2.msra.mxu0 0.0
        %1843 = vmatprep.subr.mxu0 0.0
        %1844 = vmatpush2.msra.mxu0 0.0
        %1845 = vmatprep.subr.mxu0 0.0
        %1846 = vmatpush2.msra.mxu0 0.0
        %1847 = vmatprep.subr.mxu0 0.0
        %1848 = vmatpush2.msra.mxu0 0.0
        %1849 = vmatprep.subr.mxu0 0.0
        %1850 = vmatpush2.msra.mxu0 0.0
        %1851 = vmatprep.subr.mxu0 0.0
        %1852 = vmatpush2.msra.mxu0 0.0
        %1853 = vmatprep.subr.mxu0 0.0
        %1854 = vmatpush2.msra.mxu0 0.0
        %1855 = vmatprep.subr.mxu0 0.0
        %1856 = vmatpush2.msra.mxu0 0.0
        %1857 = vmatprep.subr.mxu0 0.0
        %1858 = vmatpush2.msra.mxu0 0.0
        %1859 = vmatprep.subr.mxu0 0.0
        %1860 = vmatpush2.msra.mxu0 0.0
        %1861 = vmatprep.subr.mxu0 0.0
        %1862 = vmatpush2.msra.mxu0 0.0
        %1863 = vmatprep.subr.mxu0 0.0
        %1864 = vmatpush2.msra.mxu0 0.0
        %1865 = vmatprep.subr.mxu0 0.0
        %1866 = vmatpush2.msra.mxu0 0.0
        %1867 = vmatprep.subr.mxu0 0.0
        %1868 = vmatpush2.msra.mxu0 0.0
        %1869 = vmatprep.subr.mxu0 0.0
        %1870 = vmatpush2.msra.mxu0 0.0
        %1871 = vmatprep.subr.mxu0 0.0
        %1872 = vmatpush2.msra.mxu0 0.0
        %1873 = vmatprep.mubr.f32.mxu0 0.0
        %1874 = vmatmul.mubr.f32.gmra.mxu0 %v1807
        %v1875 = vpop.f32.mrf.mxu0
        %v1876 = vadd.f32 %v1805, %v1875
        %v1877 = vpop.f32.mrf.mxu0
        %1878 = vdwg.mxu0
        %v1879 = vmul.f32 %v1876, 0.35355338
        %1881 = vrot.lane.b32.xlu0 %v1879, 120
        %v1882 = vpop.permute.xlu0 %1881
        %1884 = vrot.lane.b32.xlu0 %v1879, 112
        %v1885 = vpop.permute.xlu0 %1884
        %1887 = vrot.lane.b32.xlu0 %v1879, 104
        %v1888 = vpop.permute.xlu0 %1887
        %v1890 = vcombine.low %v1879, %v1885
        %v1891 = vcombine.high %v1879, %v1885
        %v1893 = vunpack.c.l.s4 1983009808
        %v1894 = vunpack.c.0.s8 %v1893
        %v1895 = vlaneseq
        %v1896 = vshrl.u32 %v1895, 7
        %v1897 = vsub.s32 %v1894, %v1896
        %v1898 = vrot.slane %v1890, %v1897
        %v1900 = vunpack.c.l.s4 1983009808
        %v1901 = vunpack.c.0.s8 %v1900
        %v1902 = vlaneseq
        %v1903 = vshrl.u32 %v1902, 7
        %v1904 = vsub.s32 %v1901, %v1903
        %v1905 = vrot.slane %v1891, %v1904
        %v1906 = vcombine.low %v1882, %v1888
        %v1907 = vcombine.high %v1882, %v1888
        %v1909 = vunpack.c.l.s4 1983009808
        %v1910 = vunpack.c.0.s8 %v1909
        %v1911 = vlaneseq
        %v1912 = vshrl.u32 %v1911, 7
        %v1913 = vsub.s32 %v1910, %v1912
        %v1914 = vrot.slane %v1906, %v1913
        %v1916 = vunpack.c.l.s4 1983009808
        %v1917 = vunpack.c.0.s8 %v1916
        %v1918 = vlaneseq
        %v1919 = vshrl.u32 %v1918, 7
        %v1920 = vsub.s32 %v1917, %v1919
        %v1921 = vrot.slane %v1907, %v1920
        %v1922 = vcombine.low %v1898, %v1914
        %v1923 = vcombine.high %v1898, %v1914
        %v1925 = vunpack.c.l.s4 1934713408
        %v1926 = vunpack.c.0.s8 %v1925
        %v1927 = vlaneseq
        %v1928 = vshrl.u32 %v1927, 7
        %v1929 = vsub.s32 %v1926, %v1928
        %v1930 = vrot.slane %v1922, %v1929
        %v1932 = vunpack.c.l.s4 1934713408
        %v1933 = vunpack.c.0.s8 %v1932
        %v1934 = vlaneseq
        %v1935 = vshrl.u32 %v1934, 7
        %v1936 = vsub.s32 %v1933, %v1935
        %v1937 = vrot.slane %v1923, %v1936
        %v1938 = vcombine.low %v1905, %v1921
        %v1939 = vcombine.high %v1905, %v1921
        %v1941 = vunpack.c.l.s4 1934713408
        %v1942 = vunpack.c.0.s8 %v1941
        %v1943 = vlaneseq
        %v1944 = vshrl.u32 %v1943, 7
        %v1945 = vsub.s32 %v1942, %v1944
        %v1946 = vrot.slane %v1938, %v1945
        %v1948 = vunpack.c.l.s4 1934713408
        %v1949 = vunpack.c.0.s8 %v1948
        %v1950 = vlaneseq
        %v1951 = vshrl.u32 %v1950, 7
        %v1952 = vsub.s32 %v1949, %v1951
        %v1953 = vrot.slane %v1939, %v1952
        %v1954 = vcombine.high %v1930, 0.0
        %v1955 = vcombine.high %v1937, 0.0
        %v1956 = vcombine.high %v1946, 0.0
        %v1957 = vcombine.high %v1953, 0.0
        %v1958 = vcombine.low %v1930, %v1937
        %v1960 = vunpack.c.l.s4 1983009808
        %v1961 = vunpack.c.0.s8 %v1960
        %v1962 = vlaneseq
        %v1963 = vshrl.u32 %v1962, 7
        %v1964 = vsub.s32 %v1961, %v1963
        %v1965 = vrot.slane %v1958, %v1964
        %v1966 = vcombine.low %v1954, %v1955
        %v1968 = vunpack.c.l.s4 1983009808
        %v1969 = vunpack.c.0.s8 %v1968
        %v1970 = vlaneseq
        %v1971 = vshrl.u32 %v1970, 7
        %v1972 = vsub.s32 %v1969, %v1971
        %v1973 = vrot.slane %v1966, %v1972
        %v1974 = vcombine.low %v1946, %v1953
        %v1976 = vunpack.c.l.s4 1983009808
        %v1977 = vunpack.c.0.s8 %v1976
        %v1978 = vlaneseq
        %v1979 = vshrl.u32 %v1978, 7
        %v1980 = vsub.s32 %v1977, %v1979
        %v1981 = vrot.slane %v1974, %v1980
        %v1982 = vcombine.low %v1956, %v1957
        %v1984 = vunpack.c.l.s4 1983009808
        %v1985 = vunpack.c.0.s8 %v1984
        %v1986 = vlaneseq
        %v1987 = vshrl.u32 %v1986, 7
        %v1988 = vsub.s32 %v1985, %v1987
        %v1989 = vrot.slane %v1982, %v1988
        %v1990 = vcombine.low %v1965, %v1973
        %v1991 = vcombine.high %v1965, %v1973
        %v1993 = vunpack.c.l.s4 1934713408
        %v1994 = vunpack.c.0.s8 %v1993
        %v1995 = vlaneseq
        %v1996 = vshrl.u32 %v1995, 7
        %v1997 = vsub.s32 %v1994, %v1996
        %v1998 = vrot.slane %v1990, %v1997
        %v2000 = vunpack.c.l.s4 1934713408
        %v2001 = vunpack.c.0.s8 %v2000
        %v2002 = vlaneseq
        %v2003 = vshrl.u32 %v2002, 7
        %v2004 = vsub.s32 %v2001, %v2003
        %v2005 = vrot.slane %v1991, %v2004
        %v2006 = vcombine.low %v1981, %v1989
        %v2007 = vcombine.high %v1981, %v1989
        %v2009 = vunpack.c.l.s4 1934713408
        %v2010 = vunpack.c.0.s8 %v2009
        %v2011 = vlaneseq
        %v2012 = vshrl.u32 %v2011, 7
        %v2013 = vsub.s32 %v2010, %v2012
        %v2014 = vrot.slane %v2006, %v2013
        %v2016 = vunpack.c.l.s4 1934713408
        %v2017 = vunpack.c.0.s8 %v2016
        %v2018 = vlaneseq
        %v2019 = vshrl.u32 %v2018, 7
        %v2020 = vsub.s32 %v2017, %v2019
        %v2021 = vrot.slane %v2007, %v2020
        %v2022 = vcombine.low %v1998, %v2014
        %v2023 = vcombine.high %v1998, %v2014
        %v2024 = vcombine.low %v2005, %v2021
        %v2025 = vcombine.high %v2005, %v2021
        %v2026 = vld [vmem:[#allocation2] sm:$0xff]
        %v2027 = vld [vmem:[#allocation2 + $0x8] sm:$0xff]
        %v2028 = vld [vmem:[#allocation2 + $0x10] sm:$0xff]
        %v2029 = vld [vmem:[#allocation2 + $0x18] sm:$0xff]
        %vm2030 = vcmask 64512
        %v2032 = vsel %vm2030, %v2022, 0
        %v2035 = vsel %vm2030, %v2026, 0
        %2037 = vmatprep.subr.mxu0 0.0
        %2038 = vmatpush1.xpose.msra.mxu0 0.0
        %2039 = vmatprep.subr.mxu0 0.0
        %2040 = vmatpush1.xpose.msra.mxu0 0.0
        %2041 = vmatprep.subr.mxu0 0.0
        %2042 = vmatpush1.xpose.msra.mxu0 0.0
        %2043 = vmatprep.subr.mxu0 0.0
        %2044 = vmatpush1.xpose.msra.mxu0 0.0
        %2045 = vmatprep.subr.mxu0 0.0
        %2046 = vmatpush1.xpose.msra.mxu0 0.0
        %2047 = vmatprep.subr.mxu0 0.0
        %2048 = vmatpush1.xpose.msra.mxu0 0.0
        %2049 = vmatprep.subr.mxu0 0.0
        %2050 = vmatpush1.xpose.msra.mxu0 0.0
        %2051 = vmatprep.subr.mxu0 0.0
        %2052 = vmatpush1.xpose.msra.mxu0 0.0
        %2053 = vmatprep.subr.mxu0 0.0
        %2054 = vmatpush1.xpose.msra.mxu0 0.0
        %2055 = vmatprep.subr.mxu0 0.0
        %2056 = vmatpush1.xpose.msra.mxu0 0.0
        %2057 = vmatprep.subr.mxu0 0.0
        %2058 = vmatpush1.xpose.msra.mxu0 0.0
        %2059 = vmatprep.subr.mxu0 0.0
        %2060 = vmatpush1.xpose.msra.mxu0 0.0
        %2061 = vmatprep.subr.mxu0 0.0
        %2062 = vmatpush1.xpose.msra.mxu0 0.0
        %2063 = vmatprep.subr.mxu0 0.0
        %2064 = vmatpush1.xpose.msra.mxu0 0.0
        %2065 = vmatprep.subr.mxu0 0.0
        %2066 = vmatpush1.xpose.msra.mxu0 0.0
        %2067 = vmatprep.subr.mxu0 0.0
        %2068 = vmatpush1.xpose.msra.mxu0 %v2035
        %2069 = vmatprep.subr.mxu0 0.0
        %2070 = vmatpush2.xpose.msra.mxu0 0.0
        %2071 = vmatprep.subr.mxu0 0.0
        %2072 = vmatpush2.xpose.msra.mxu0 0.0
        %2073 = vmatprep.subr.mxu0 0.0
        %2074 = vmatpush2.xpose.msra.mxu0 0.0
        %2075 = vmatprep.subr.mxu0 0.0
        %2076 = vmatpush2.xpose.msra.mxu0 0.0
        %2077 = vmatprep.subr.mxu0 0.0
        %2078 = vmatpush2.xpose.msra.mxu0 0.0
        %2079 = vmatprep.subr.mxu0 0.0
        %2080 = vmatpush2.xpose.msra.mxu0 0.0
        %2081 = vmatprep.subr.mxu0 0.0
        %2082 = vmatpush2.xpose.msra.mxu0 0.0
        %2083 = vmatprep.subr.mxu0 0.0
        %2084 = vmatpush2.xpose.msra.mxu0 0.0
        %2085 = vmatprep.subr.mxu0 0.0
        %2086 = vmatpush2.xpose.msra.mxu0 0.0
        %2087 = vmatprep.subr.mxu0 0.0
        %2088 = vmatpush2.xpose.msra.mxu0 0.0
        %2089 = vmatprep.subr.mxu0 0.0
        %2090 = vmatpush2.xpose.msra.mxu0 0.0
        %2091 = vmatprep.subr.mxu0 0.0
        %2092 = vmatpush2.xpose.msra.mxu0 0.0
        %2093 = vmatprep.subr.mxu0 0.0
        %2094 = vmatpush2.xpose.msra.mxu0 0.0
        %2095 = vmatprep.subr.mxu0 0.0
        %2096 = vmatpush2.xpose.msra.mxu0 0.0
        %2097 = vmatprep.subr.mxu0 0.0
        %2098 = vmatpush2.xpose.msra.mxu0 0.0
        %2099 = vmatprep.subr.mxu0 0.0
        %2100 = vmatpush2.xpose.msra.mxu0 0.0
        %2101 = vmatprep.mubr.f32.mxu0 0.0
        %2102 = vmatmul.mubr.f32.gmra.mxu0 %v2032
        %v2103 = vpop.f32.mrf.mxu0
        %v2104 = vadd.f32 0.0, %v2103
        %v2105 = vpop.f32.mrf.mxu0
        %2106 = vdwg.mxu0
        %v2108 = vsel %vm2030, %v2023, 0
        %v2111 = vsel %vm2030, %v2027, 0
        %2113 = vmatprep.subr.mxu0 0.0
        %2114 = vmatpush1.xpose.msra.mxu0 0.0
        %2115 = vmatprep.subr.mxu0 0.0
        %2116 = vmatpush1.xpose.msra.mxu0 0.0
        %2117 = vmatprep.subr.mxu0 0.0
        %2118 = vmatpush1.xpose.msra.mxu0 0.0
        %2119 = vmatprep.subr.mxu0 0.0
        %2120 = vmatpush1.xpose.msra.mxu0 0.0
        %2121 = vmatprep.subr.mxu0 0.0
        %2122 = vmatpush1.xpose.msra.mxu0 0.0
        %2123 = vmatprep.subr.mxu0 0.0
        %2124 = vmatpush1.xpose.msra.mxu0 0.0
        %2125 = vmatprep.subr.mxu0 0.0
        %2126 = vmatpush1.xpose.msra.mxu0 0.0
        %2127 = vmatprep.subr.mxu0 0.0
        %2128 = vmatpush1.xpose.msra.mxu0 0.0
        %2129 = vmatprep.subr.mxu0 0.0
        %2130 = vmatpush1.xpose.msra.mxu0 0.0
        %2131 = vmatprep.subr.mxu0 0.0
        %2132 = vmatpush1.xpose.msra.mxu0 0.0
        %2133 = vmatprep.subr.mxu0 0.0
        %2134 = vmatpush1.xpose.msra.mxu0 0.0
        %2135 = vmatprep.subr.mxu0 0.0
        %2136 = vmatpush1.xpose.msra.mxu0 0.0
        %2137 = vmatprep.subr.mxu0 0.0
        %2138 = vmatpush1.xpose.msra.mxu0 0.0
        %2139 = vmatprep.subr.mxu0 0.0
        %2140 = vmatpush1.xpose.msra.mxu0 0.0
        %2141 = vmatprep.subr.mxu0 0.0
        %2142 = vmatpush1.xpose.msra.mxu0 0.0
        %2143 = vmatprep.subr.mxu0 0.0
        %2144 = vmatpush1.xpose.msra.mxu0 %v2111
        %2145 = vmatprep.subr.mxu0 0.0
        %2146 = vmatpush2.xpose.msra.mxu0 0.0
        %2147 = vmatprep.subr.mxu0 0.0
        %2148 = vmatpush2.xpose.msra.mxu0 0.0
        %2149 = vmatprep.subr.mxu0 0.0
        %2150 = vmatpush2.xpose.msra.mxu0 0.0
        %2151 = vmatprep.subr.mxu0 0.0
        %2152 = vmatpush2.xpose.msra.mxu0 0.0
        %2153 = vmatprep.subr.mxu0 0.0
        %2154 = vmatpush2.xpose.msra.mxu0 0.0
        %2155 = vmatprep.subr.mxu0 0.0
        %2156 = vmatpush2.xpose.msra.mxu0 0.0
        %2157 = vmatprep.subr.mxu0 0.0
        %2158 = vmatpush2.xpose.msra.mxu0 0.0
        %2159 = vmatprep.subr.mxu0 0.0
        %2160 = vmatpush2.xpose.msra.mxu0 0.0
        %2161 = vmatprep.subr.mxu0 0.0
        %2162 = vmatpush2.xpose.msra.mxu0 0.0
        %2163 = vmatprep.subr.mxu0 0.0
        %2164 = vmatpush2.xpose.msra.mxu0 0.0
        %2165 = vmatprep.subr.mxu0 0.0
        %2166 = vmatpush2.xpose.msra.mxu0 0.0
        %2167 = vmatprep.subr.mxu0 0.0
        %2168 = vmatpush2.xpose.msra.mxu0 0.0
        %2169 = vmatprep.subr.mxu0 0.0
        %2170 = vmatpush2.xpose.msra.mxu0 0.0
        %2171 = vmatprep.subr.mxu0 0.0
        %2172 = vmatpush2.xpose.msra.mxu0 0.0
        %2173 = vmatprep.subr.mxu0 0.0
        %2174 = vmatpush2.xpose.msra.mxu0 0.0
        %2175 = vmatprep.subr.mxu0 0.0
        %2176 = vmatpush2.xpose.msra.mxu0 0.0
        %2177 = vmatprep.mubr.f32.mxu0 0.0
        %2178 = vmatmul.mubr.f32.gmra.mxu0 %v2108
        %v2179 = vpop.f32.mrf.mxu0
        %v2180 = vadd.f32 0.0, %v2179
        %v2181 = vpop.f32.mrf.mxu0
        %2182 = vdwg.mxu0
        %v2184 = vsel %vm2030, %v2024, 0
        %v2187 = vsel %vm2030, %v2028, 0
        %2189 = vmatprep.subr.mxu0 0.0
        %2190 = vmatpush1.xpose.msra.mxu0 0.0
        %2191 = vmatprep.subr.mxu0 0.0
        %2192 = vmatpush1.xpose.msra.mxu0 0.0
        %2193 = vmatprep.subr.mxu0 0.0
        %2194 = vmatpush1.xpose.msra.mxu0 0.0
        %2195 = vmatprep.subr.mxu0 0.0
        %2196 = vmatpush1.xpose.msra.mxu0 0.0
        %2197 = vmatprep.subr.mxu0 0.0
        %2198 = vmatpush1.xpose.msra.mxu0 0.0
        %2199 = vmatprep.subr.mxu0 0.0
        %2200 = vmatpush1.xpose.msra.mxu0 0.0
        %2201 = vmatprep.subr.mxu0 0.0
        %2202 = vmatpush1.xpose.msra.mxu0 0.0
        %2203 = vmatprep.subr.mxu0 0.0
        %2204 = vmatpush1.xpose.msra.mxu0 0.0
        %2205 = vmatprep.subr.mxu0 0.0
        %2206 = vmatpush1.xpose.msra.mxu0 0.0
        %2207 = vmatprep.subr.mxu0 0.0
        %2208 = vmatpush1.xpose.msra.mxu0 0.0
        %2209 = vmatprep.subr.mxu0 0.0
        %2210 = vmatpush1.xpose.msra.mxu0 0.0
        %2211 = vmatprep.subr.mxu0 0.0
        %2212 = vmatpush1.xpose.msra.mxu0 0.0
        %2213 = vmatprep.subr.mxu0 0.0
        %2214 = vmatpush1.xpose.msra.mxu0 0.0
        %2215 = vmatprep.subr.mxu0 0.0
        %2216 = vmatpush1.xpose.msra.mxu0 0.0
        %2217 = vmatprep.subr.mxu0 0.0
        %2218 = vmatpush1.xpose.msra.mxu0 0.0
        %2219 = vmatprep.subr.mxu0 0.0
        %2220 = vmatpush1.xpose.msra.mxu0 %v2187
        %2221 = vmatprep.subr.mxu0 0.0
        %2222 = vmatpush2.xpose.msra.mxu0 0.0
        %2223 = vmatprep.subr.mxu0 0.0
        %2224 = vmatpush2.xpose.msra.mxu0 0.0
        %2225 = vmatprep.subr.mxu0 0.0
        %2226 = vmatpush2.xpose.msra.mxu0 0.0
        %2227 = vmatprep.subr.mxu0 0.0
        %2228 = vmatpush2.xpose.msra.mxu0 0.0
        %2229 = vmatprep.subr.mxu0 0.0
        %2230 = vmatpush2.xpose.msra.mxu0 0.0
        %2231 = vmatprep.subr.mxu0 0.0
        %2232 = vmatpush2.xpose.msra.mxu0 0.0
        %2233 = vmatprep.subr.mxu0 0.0
        %2234 = vmatpush2.xpose.msra.mxu0 0.0
        %2235 = vmatprep.subr.mxu0 0.0
        %2236 = vmatpush2.xpose.msra.mxu0 0.0
        %2237 = vmatprep.subr.mxu0 0.0
        %2238 = vmatpush2.xpose.msra.mxu0 0.0
        %2239 = vmatprep.subr.mxu0 0.0
        %2240 = vmatpush2.xpose.msra.mxu0 0.0
        %2241 = vmatprep.subr.mxu0 0.0
        %2242 = vmatpush2.xpose.msra.mxu0 0.0
        %2243 = vmatprep.subr.mxu0 0.0
        %2244 = vmatpush2.xpose.msra.mxu0 0.0
        %2245 = vmatprep.subr.mxu0 0.0
        %2246 = vmatpush2.xpose.msra.mxu0 0.0
        %2247 = vmatprep.subr.mxu0 0.0
        %2248 = vmatpush2.xpose.msra.mxu0 0.0
        %2249 = vmatprep.subr.mxu0 0.0
        %2250 = vmatpush2.xpose.msra.mxu0 0.0
        %2251 = vmatprep.subr.mxu0 0.0
        %2252 = vmatpush2.xpose.msra.mxu0 0.0
        %2253 = vmatprep.mubr.f32.mxu0 0.0
        %2254 = vmatmul.mubr.f32.gmra.mxu0 %v2184
        %v2255 = vpop.f32.mrf.mxu0
        %v2256 = vadd.f32 0.0, %v2255
        %v2257 = vpop.f32.mrf.mxu0
        %2258 = vdwg.mxu0
        %v2260 = vsel %vm2030, %v2025, 0
        %v2263 = vsel %vm2030, %v2029, 0
        %2265 = vmatprep.subr.mxu0 0.0
        %2266 = vmatpush1.xpose.msra.mxu0 0.0
        %2267 = vmatprep.subr.mxu0 0.0
        %2268 = vmatpush1.xpose.msra.mxu0 0.0
        %2269 = vmatprep.subr.mxu0 0.0
        %2270 = vmatpush1.xpose.msra.mxu0 0.0
        %2271 = vmatprep.subr.mxu0 0.0
        %2272 = vmatpush1.xpose.msra.mxu0 0.0
        %2273 = vmatprep.subr.mxu0 0.0
        %2274 = vmatpush1.xpose.msra.mxu0 0.0
        %2275 = vmatprep.subr.mxu0 0.0
        %2276 = vmatpush1.xpose.msra.mxu0 0.0
        %2277 = vmatprep.subr.mxu0 0.0
        %2278 = vmatpush1.xpose.msra.mxu0 0.0
        %2279 = vmatprep.subr.mxu0 0.0
        %2280 = vmatpush1.xpose.msra.mxu0 0.0
        %2281 = vmatprep.subr.mxu0 0.0
        %2282 = vmatpush1.xpose.msra.mxu0 0.0
        %2283 = vmatprep.subr.mxu0 0.0
        %2284 = vmatpush1.xpose.msra.mxu0 0.0
        %2285 = vmatprep.subr.mxu0 0.0
        %2286 = vmatpush1.xpose.msra.mxu0 0.0
        %2287 = vmatprep.subr.mxu0 0.0
        %2288 = vmatpush1.xpose.msra.mxu0 0.0
        %2289 = vmatprep.subr.mxu0 0.0
        %2290 = vmatpush1.xpose.msra.mxu0 0.0
        %2291 = vmatprep.subr.mxu0 0.0
        %2292 = vmatpush1.xpose.msra.mxu0 0.0
        %2293 = vmatprep.subr.mxu0 0.0
        %2294 = vmatpush1.xpose.msra.mxu0 0.0
        %2295 = vmatprep.subr.mxu0 0.0
        %2296 = vmatpush1.xpose.msra.mxu0 %v2263
        %2297 = vmatprep.subr.mxu0 0.0
        %2298 = vmatpush2.xpose.msra.mxu0 0.0
        %2299 = vmatprep.subr.mxu0 0.0
        %2300 = vmatpush2.xpose.msra.mxu0 0.0
        %2301 = vmatprep.subr.mxu0 0.0
        %2302 = vmatpush2.xpose.msra.mxu0 0.0
        %2303 = vmatprep.subr.mxu0 0.0
        %2304 = vmatpush2.xpose.msra.mxu0 0.0
        %2305 = vmatprep.subr.mxu0 0.0
        %2306 = vmatpush2.xpose.msra.mxu0 0.0
        %2307 = vmatprep.subr.mxu0 0.0
        %2308 = vmatpush2.xpose.msra.mxu0 0.0
        %2309 = vmatprep.subr.mxu0 0.0
        %2310 = vmatpush2.xpose.msra.mxu0 0.0
        %2311 = vmatprep.subr.mxu0 0.0
        %2312 = vmatpush2.xpose.msra.mxu0 0.0
        %2313 = vmatprep.subr.mxu0 0.0
        %2314 = vmatpush2.xpose.msra.mxu0 0.0
        %2315 = vmatprep.subr.mxu0 0.0
        %2316 = vmatpush2.xpose.msra.mxu0 0.0
        %2317 = vmatprep.subr.mxu0 0.0
        %2318 = vmatpush2.xpose.msra.mxu0 0.0
        %2319 = vmatprep.subr.mxu0 0.0
        %2320 = vmatpush2.xpose.msra.mxu0 0.0
        %2321 = vmatprep.subr.mxu0 0.0
        %2322 = vmatpush2.xpose.msra.mxu0 0.0
        %2323 = vmatprep.subr.mxu0 0.0
        %2324 = vmatpush2.xpose.msra.mxu0 0.0
        %2325 = vmatprep.subr.mxu0 0.0
        %2326 = vmatpush2.xpose.msra.mxu0 0.0
        %2327 = vmatprep.subr.mxu0 0.0
        %2328 = vmatpush2.xpose.msra.mxu0 0.0
        %2329 = vmatprep.mubr.f32.mxu0 0.0
        %2330 = vmatmul.mubr.f32.gmra.mxu0 %v2260
        %v2331 = vpop.f32.mrf.mxu0
        %v2332 = vadd.f32 0.0, %v2331
        %v2333 = vpop.f32.mrf.mxu0
        %2334 = vdwg.mxu0
        %v2335 = vlaneseq
        %v2336 = vshrl.u32 %v2335, 7
        %v2337 = vstv %s1766
        %v2338 = vadd.s32 %v2337, %v2336
        %v2339 = vlaneseq
        %v2340 = vand.u32 %v2339, 127
        %vm2341 = vcmp.le.s32.totalorder %v2340, %v2338
        %v2342 = vsel %vm1770, 1, 0
        %v2343 = vlaneseq
        %v2344 = vshrl.u32 %v2343, 7
        %v2345 = vsub.s32 0, %v2344
        %v2346 = vrot.slane %v2342, %v2345
        %vm2347 = vcmp.eq.s32.totalorder %v2346, 1
        %vm2348 = vmand %vm2347, %vm2341
        %v2349 = vsel %vm2348, 1, 0
        %vm2350 = vcmp.eq.s32.totalorder %v2349, 1
        %v2351 = vsel %vm2350, %v2104, -1e+09
        %v2352 = vsel %vm2350, %v2180, -1e+09
        %v2353 = vsel %vm2350, %v2256, -1e+09
        %v2354 = vsel %vm2350, %v2332, -1e+09
        %v2355 = vsel %vm2030, %v2351, -inf
        %2356 = vmax.xlane.f32.xlu0 %v2355
        %v2357 = vpop.xlane.xlu0 %2356
        %v2358 = vsel %vm2030, %v2352, -inf
        %2359 = vmax.xlane.f32.xlu0 %v2358
        %v2360 = vpop.xlane.xlu0 %2359
        %v2361 = vsel %vm2030, %v2353, -inf
        %2362 = vmax.xlane.f32.xlu0 %v2361
        %v2363 = vpop.xlane.xlu0 %2362
        %v2364 = vsel %vm2030, %v2354, -inf
        %2365 = vmax.xlane.f32.xlu0 %v2364
        %v2366 = vpop.xlane.xlu0 %2365
        %v2367 = vsub.f32 %v2351, %v2357
        %v2368 = vsub.f32 %v2352, %v2360
        %v2369 = vsub.f32 %v2353, %v2363
        %v2370 = vsub.f32 %v2354, %v2366
        %v2371 = vmul.f32 %v2367, 1.442695
        %v2372 = vpow.pop %v2371
        %v2373 = vmul.f32 %v2368, 1.442695
        %v2374 = vpow.pop %v2373
        %v2375 = vmul.f32 %v2369, 1.442695
        %v2376 = vpow.pop %v2375
        %v2377 = vmul.f32 %v2370, 1.442695
        %v2378 = vpow.pop %v2377
        %v2379 = vsel %vm2030, %v2372, 0.0
        %2380 = vadd.xlane.f32.xlu0 %v2379
        %v2381 = vpop.xlane.xlu0 %2380
        %v2382 = vsel %vm2030, %v2374, 0.0
        %2383 = vadd.xlane.f32.xlu0 %v2382
        %v2384 = vpop.xlane.xlu0 %2383
        %v2385 = vsel %vm2030, %v2376, 0.0
        %2386 = vadd.xlane.f32.xlu0 %v2385
        %v2387 = vpop.xlane.xlu0 %2386
        %v2388 = vsel %vm2030, %v2378, 0.0
        %2389 = vadd.xlane.f32.xlu0 %v2388
        %v2390 = vpop.xlane.xlu0 %2389
        %v2391 = vld [vmem:[#allocation3] sm:$0xff]
        %v2392 = vld [vmem:[#allocation3 + $0x8] sm:$0xff]
        %v2393 = vld [vmem:[#allocation3 + $0x10] sm:$0xff]
        %v2394 = vld [vmem:[#allocation3 + $0x18] sm:$0xff]
        %v2396 = vsel %vm2030, %v2372, 0
        %2398 = vmatprep.subr.mxu0 0.0
        %2399 = vmatpush1.msra.mxu0 0.0
        %2400 = vmatprep.subr.mxu0 0.0
        %2401 = vmatpush1.msra.mxu0 0.0
        %2402 = vmatprep.subr.mxu0 0.0
        %2403 = vmatpush1.msra.mxu0 0.0
        %2404 = vmatprep.subr.mxu0 0.0
        %2405 = vmatpush1.msra.mxu0 0.0
        %2406 = vmatprep.subr.mxu0 0.0
        %2407 = vmatpush1.msra.mxu0 0.0
        %2408 = vmatprep.subr.mxu0 0.0
        %2409 = vmatpush1.msra.mxu0 0.0
        %2410 = vmatprep.subr.mxu0 0.0
        %2411 = vmatpush1.msra.mxu0 0.0
        %2412 = vmatprep.subr.mxu0 0.0
        %2413 = vmatpush1.msra.mxu0 0.0
        %2414 = vmatprep.subr.mxu0 0.0
        %2415 = vmatpush1.msra.mxu0 0.0
        %2416 = vmatprep.subr.mxu0 0.0
        %2417 = vmatpush1.msra.mxu0 0.0
        %2418 = vmatprep.subr.mxu0 0.0
        %2419 = vmatpush1.msra.mxu0 0.0
        %2420 = vmatprep.subr.mxu0 0.0
        %2421 = vmatpush1.msra.mxu0 0.0
        %2422 = vmatprep.subr.mxu0 0.0
        %2423 = vmatpush1.msra.mxu0 0.0
        %2424 = vmatprep.subr.mxu0 0.0
        %2425 = vmatpush1.msra.mxu0 0.0
        %2426 = vmatprep.subr.mxu0 0.0
        %2427 = vmatpush1.msra.mxu0 0.0
        %2428 = vmatprep.subr.mxu0 0.0
        %2429 = vmatpush1.msra.mxu0 %v2391
        %2430 = vmatprep.subr.mxu0 0.0
        %2431 = vmatpush2.msra.mxu0 0.0
        %2432 = vmatprep.subr.mxu0 0.0
        %2433 = vmatpush2.msra.mxu0 0.0
        %2434 = vmatprep.subr.mxu0 0.0
        %2435 = vmatpush2.msra.mxu0 0.0
        %2436 = vmatprep.subr.mxu0 0.0
        %2437 = vmatpush2.msra.mxu0 0.0
        %2438 = vmatprep.subr.mxu0 0.0
        %2439 = vmatpush2.msra.mxu0 0.0
        %2440 = vmatprep.subr.mxu0 0.0
        %2441 = vmatpush2.msra.mxu0 0.0
        %2442 = vmatprep.subr.mxu0 0.0
        %2443 = vmatpush2.msra.mxu0 0.0
        %2444 = vmatprep.subr.mxu0 0.0
        %2445 = vmatpush2.msra.mxu0 0.0
        %2446 = vmatprep.subr.mxu0 0.0
        %2447 = vmatpush2.msra.mxu0 0.0
        %2448 = vmatprep.subr.mxu0 0.0
        %2449 = vmatpush2.msra.mxu0 0.0
        %2450 = vmatprep.subr.mxu0 0.0
        %2451 = vmatpush2.msra.mxu0 0.0
        %2452 = vmatprep.subr.mxu0 0.0
        %2453 = vmatpush2.msra.mxu0 0.0
        %2454 = vmatprep.subr.mxu0 0.0
        %2455 = vmatpush2.msra.mxu0 0.0
        %2456 = vmatprep.subr.mxu0 0.0
        %2457 = vmatpush2.msra.mxu0 0.0
        %2458 = vmatprep.subr.mxu0 0.0
        %2459 = vmatpush2.msra.mxu0 0.0
        %2460 = vmatprep.subr.mxu0 0.0
        %2461 = vmatpush2.msra.mxu0 0.0
        %2462 = vmatprep.mubr.f32.mxu0 0.0
        %2463 = vmatmul.mubr.f32.gmra.mxu0 %v2396
        %v2464 = vpop.f32.mrf.mxu0
        %v2465 = vadd.f32 0.0, %v2464
        %v2466 = vpop.f32.mrf.mxu0
        %2467 = vdwg.mxu0
        %v2469 = vsel %vm2030, %v2374, 0
        %2471 = vmatprep.subr.mxu0 0.0
        %2472 = vmatpush1.msra.mxu0 0.0
        %2473 = vmatprep.subr.mxu0 0.0
        %2474 = vmatpush1.msra.mxu0 0.0
        %2475 = vmatprep.subr.mxu0 0.0
        %2476 = vmatpush1.msra.mxu0 0.0
        %2477 = vmatprep.subr.mxu0 0.0
        %2478 = vmatpush1.msra.mxu0 0.0
        %2479 = vmatprep.subr.mxu0 0.0
        %2480 = vmatpush1.msra.mxu0 0.0
        %2481 = vmatprep.subr.mxu0 0.0
        %2482 = vmatpush1.msra.mxu0 0.0
        %2483 = vmatprep.subr.mxu0 0.0
        %2484 = vmatpush1.msra.mxu0 0.0
        %2485 = vmatprep.subr.mxu0 0.0
        %2486 = vmatpush1.msra.mxu0 0.0
        %2487 = vmatprep.subr.mxu0 0.0
        %2488 = vmatpush1.msra.mxu0 0.0
        %2489 = vmatprep.subr.mxu0 0.0
        %2490 = vmatpush1.msra.mxu0 0.0
        %2491 = vmatprep.subr.mxu0 0.0
        %2492 = vmatpush1.msra.mxu0 0.0
        %2493 = vmatprep.subr.mxu0 0.0
        %2494 = vmatpush1.msra.mxu0 0.0
        %2495 = vmatprep.subr.mxu0 0.0
        %2496 = vmatpush1.msra.mxu0 0.0
        %2497 = vmatprep.subr.mxu0 0.0
        %2498 = vmatpush1.msra.mxu0 0.0
        %2499 = vmatprep.subr.mxu0 0.0
        %2500 = vmatpush1.msra.mxu0 0.0
        %2501 = vmatprep.subr.mxu0 0.0
        %2502 = vmatpush1.msra.mxu0 %v2392
        %2503 = vmatprep.subr.mxu0 0.0
        %2504 = vmatpush2.msra.mxu0 0.0
        %2505 = vmatprep.subr.mxu0 0.0
        %2506 = vmatpush2.msra.mxu0 0.0
        %2507 = vmatprep.subr.mxu0 0.0
        %2508 = vmatpush2.msra.mxu0 0.0
        %2509 = vmatprep.subr.mxu0 0.0
        %2510 = vmatpush2.msra.mxu0 0.0
        %2511 = vmatprep.subr.mxu0 0.0
        %2512 = vmatpush2.msra.mxu0 0.0
        %2513 = vmatprep.subr.mxu0 0.0
        %2514 = vmatpush2.msra.mxu0 0.0
        %2515 = vmatprep.subr.mxu0 0.0
        %2516 = vmatpush2.msra.mxu0 0.0
        %2517 = vmatprep.subr.mxu0 0.0
        %2518 = vmatpush2.msra.mxu0 0.0
        %2519 = vmatprep.subr.mxu0 0.0
        %2520 = vmatpush2.msra.mxu0 0.0
        %2521 = vmatprep.subr.mxu0 0.0
        %2522 = vmatpush2.msra.mxu0 0.0
        %2523 = vmatprep.subr.mxu0 0.0
        %2524 = vmatpush2.msra.mxu0 0.0
        %2525 = vmatprep.subr.mxu0 0.0
        %2526 = vmatpush2.msra.mxu0 0.0
        %2527 = vmatprep.subr.mxu0 0.0
        %2528 = vmatpush2.msra.mxu0 0.0
        %2529 = vmatprep.subr.mxu0 0.0
        %2530 = vmatpush2.msra.mxu0 0.0
        %2531 = vmatprep.subr.mxu0 0.0
        %2532 = vmatpush2.msra.mxu0 0.0
        %2533 = vmatprep.subr.mxu0 0.0
        %2534 = vmatpush2.msra.mxu0 0.0
        %2535 = vmatprep.mubr.f32.mxu0 0.0
        %2536 = vmatmul.mubr.f32.gmra.mxu0 %v2469
        %v2537 = vpop.f32.mrf.mxu0
        %v2538 = vadd.f32 0.0, %v2537
        %v2539 = vpop.f32.mrf.mxu0
        %2540 = vdwg.mxu0
        %v2542 = vsel %vm2030, %v2376, 0
        %2544 = vmatprep.subr.mxu0 0.0
        %2545 = vmatpush1.msra.mxu0 0.0
        %2546 = vmatprep.subr.mxu0 0.0
        %2547 = vmatpush1.msra.mxu0 0.0
        %2548 = vmatprep.subr.mxu0 0.0
        %2549 = vmatpush1.msra.mxu0 0.0
        %2550 = vmatprep.subr.mxu0 0.0
        %2551 = vmatpush1.msra.mxu0 0.0
        %2552 = vmatprep.subr.mxu0 0.0
        %2553 = vmatpush1.msra.mxu0 0.0
        %2554 = vmatprep.subr.mxu0 0.0
        %2555 = vmatpush1.msra.mxu0 0.0
        %2556 = vmatprep.subr.mxu0 0.0
        %2557 = vmatpush1.msra.mxu0 0.0
        %2558 = vmatprep.subr.mxu0 0.0
        %2559 = vmatpush1.msra.mxu0 0.0
        %2560 = vmatprep.subr.mxu0 0.0
        %2561 = vmatpush1.msra.mxu0 0.0
        %2562 = vmatprep.subr.mxu0 0.0
        %2563 = vmatpush1.msra.mxu0 0.0
        %2564 = vmatprep.subr.mxu0 0.0
        %2565 = vmatpush1.msra.mxu0 0.0
        %2566 = vmatprep.subr.mxu0 0.0
        %2567 = vmatpush1.msra.mxu0 0.0
        %2568 = vmatprep.subr.mxu0 0.0
        %2569 = vmatpush1.msra.mxu0 0.0
        %2570 = vmatprep.subr.mxu0 0.0
        %2571 = vmatpush1.msra.mxu0 0.0
        %2572 = vmatprep.subr.mxu0 0.0
        %2573 = vmatpush1.msra.mxu0 0.0
        %2574 = vmatprep.subr.mxu0 0.0
        %2575 = vmatpush1.msra.mxu0 %v2393
        %2576 = vmatprep.subr.mxu0 0.0
        %2577 = vmatpush2.msra.mxu0 0.0
        %2578 = vmatprep.subr.mxu0 0.0
        %2579 = vmatpush2.msra.mxu0 0.0
        %2580 = vmatprep.subr.mxu0 0.0
        %2581 = vmatpush2.msra.mxu0 0.0
        %2582 = vmatprep.subr.mxu0 0.0
        %2583 = vmatpush2.msra.mxu0 0.0
        %2584 = vmatprep.subr.mxu0 0.0
        %2585 = vmatpush2.msra.mxu0 0.0
        %2586 = vmatprep.subr.mxu0 0.0
        %2587 = vmatpush2.msra.mxu0 0.0
        %2588 = vmatprep.subr.mxu0 0.0
        %2589 = vmatpush2.msra.mxu0 0.0
        %2590 = vmatprep.subr.mxu0 0.0
        %2591 = vmatpush2.msra.mxu0 0.0
        %2592 = vmatprep.subr.mxu0 0.0
        %2593 = vmatpush2.msra.mxu0 0.0
        %2594 = vmatprep.subr.mxu0 0.0
        %2595 = vmatpush2.msra.mxu0 0.0
        %2596 = vmatprep.subr.mxu0 0.0
        %2597 = vmatpush2.msra.mxu0 0.0
        %2598 = vmatprep.subr.mxu0 0.0
        %2599 = vmatpush2.msra.mxu0 0.0
        %2600 = vmatprep.subr.mxu0 0.0
        %2601 = vmatpush2.msra.mxu0 0.0
        %2602 = vmatprep.subr.mxu0 0.0
        %2603 = vmatpush2.msra.mxu0 0.0
        %2604 = vmatprep.subr.mxu0 0.0
        %2605 = vmatpush2.msra.mxu0 0.0
        %2606 = vmatprep.subr.mxu0 0.0
        %2607 = vmatpush2.msra.mxu0 0.0
        %2608 = vmatprep.mubr.f32.mxu0 0.0
        %2609 = vmatmul.mubr.f32.gmra.mxu0 %v2542
        %v2610 = vpop.f32.mrf.mxu0
        %v2611 = vadd.f32 0.0, %v2610
        %v2612 = vpop.f32.mrf.mxu0
        %2613 = vdwg.mxu0
        %v2615 = vsel %vm2030, %v2378, 0
        %2617 = vmatprep.subr.mxu0 0.0
        %2618 = vmatpush1.msra.mxu0 0.0
        %2619 = vmatprep.subr.mxu0 0.0
        %2620 = vmatpush1.msra.mxu0 0.0
        %2621 = vmatprep.subr.mxu0 0.0
        %2622 = vmatpush1.msra.mxu0 0.0
        %2623 = vmatprep.subr.mxu0 0.0
        %2624 = vmatpush1.msra.mxu0 0.0
        %2625 = vmatprep.subr.mxu0 0.0
        %2626 = vmatpush1.msra.mxu0 0.0
        %2627 = vmatprep.subr.mxu0 0.0
        %2628 = vmatpush1.msra.mxu0 0.0
        %2629 = vmatprep.subr.mxu0 0.0
        %2630 = vmatpush1.msra.mxu0 0.0
        %2631 = vmatprep.subr.mxu0 0.0
        %2632 = vmatpush1.msra.mxu0 0.0
        %2633 = vmatprep.subr.mxu0 0.0
        %2634 = vmatpush1.msra.mxu0 0.0
        %2635 = vmatprep.subr.mxu0 0.0
        %2636 = vmatpush1.msra.mxu0 0.0
        %2637 = vmatprep.subr.mxu0 0.0
        %2638 = vmatpush1.msra.mxu0 0.0
        %2639 = vmatprep.subr.mxu0 0.0
        %2640 = vmatpush1.msra.mxu0 0.0
        %2641 = vmatprep.subr.mxu0 0.0
        %2642 = vmatpush1.msra.mxu0 0.0
        %2643 = vmatprep.subr.mxu0 0.0
        %2644 = vmatpush1.msra.mxu0 0.0
        %2645 = vmatprep.subr.mxu0 0.0
        %2646 = vmatpush1.msra.mxu0 0.0
        %2647 = vmatprep.subr.mxu0 0.0
        %2648 = vmatpush1.msra.mxu0 %v2394
        %2649 = vmatprep.subr.mxu0 0.0
        %2650 = vmatpush2.msra.mxu0 0.0
        %2651 = vmatprep.subr.mxu0 0.0
        %2652 = vmatpush2.msra.mxu0 0.0
        %2653 = vmatprep.subr.mxu0 0.0
        %2654 = vmatpush2.msra.mxu0 0.0
        %2655 = vmatprep.subr.mxu0 0.0
        %2656 = vmatpush2.msra.mxu0 0.0
        %2657 = vmatprep.subr.mxu0 0.0
        %2658 = vmatpush2.msra.mxu0 0.0
        %2659 = vmatprep.subr.mxu0 0.0
        %2660 = vmatpush2.msra.mxu0 0.0
        %2661 = vmatprep.subr.mxu0 0.0
        %2662 = vmatpush2.msra.mxu0 0.0
        %2663 = vmatprep.subr.mxu0 0.0
        %2664 = vmatpush2.msra.mxu0 0.0
        %2665 = vmatprep.subr.mxu0 0.0
        %2666 = vmatpush2.msra.mxu0 0.0
        %2667 = vmatprep.subr.mxu0 0.0
        %2668 = vmatpush2.msra.mxu0 0.0
        %2669 = vmatprep.subr.mxu0 0.0
        %2670 = vmatpush2.msra.mxu0 0.0
        %2671 = vmatprep.subr.mxu0 0.0
        %2672 = vmatpush2.msra.mxu0 0.0
        %2673 = vmatprep.subr.mxu0 0.0
        %2674 = vmatpush2.msra.mxu0 0.0
        %2675 = vmatprep.subr.mxu0 0.0
        %2676 = vmatpush2.msra.mxu0 0.0
        %2677 = vmatprep.subr.mxu0 0.0
        %2678 = vmatpush2.msra.mxu0 0.0
        %2679 = vmatprep.subr.mxu0 0.0
        %2680 = vmatpush2.msra.mxu0 0.0
        %2681 = vmatprep.mubr.f32.mxu0 0.0
        %2682 = vmatmul.mubr.f32.gmra.mxu0 %v2615
        %v2683 = vpop.f32.mrf.mxu0
        %v2684 = vadd.f32 0.0, %v2683
        %v2685 = vpop.f32.mrf.mxu0
        %2686 = vdwg.mxu0
        %v2687 = vrcp.pop %v2381
        %v2688 = vrcp.pop %v2384
        %v2689 = vrcp.pop %v2387
        %v2690 = vrcp.pop %v2390
        %v2691 = vmul.f32 %v2465, %v2687
        %v2692 = vmul.f32 %v2538, %v2688
        %v2693 = vmul.f32 %v2611, %v2689
        %v2694 = vmul.f32 %v2684, %v2690
        %v2695 = vcombine.low %v2691, %v2693
        %v2696 = vcombine.high %v2691, %v2693
        %v2698 = vunpack.c.l.s4 1983009808
        %v2699 = vunpack.c.0.s8 %v2698
        %v2700 = vlaneseq
        %v2701 = vshrl.u32 %v2700, 7
        %v2702 = vsub.s32 %v2699, %v2701
        %v2703 = vrot.slane %v2695, %v2702
        %v2705 = vunpack.c.l.s4 1983009808
        %v2706 = vunpack.c.0.s8 %v2705
        %v2707 = vlaneseq
        %v2708 = vshrl.u32 %v2707, 7
        %v2709 = vsub.s32 %v2706, %v2708
        %v2710 = vrot.slane %v2696, %v2709
        %v2711 = vcombine.low %v2692, %v2694
        %v2712 = vcombine.high %v2692, %v2694
        %v2714 = vunpack.c.l.s4 1983009808
        %v2715 = vunpack.c.0.s8 %v2714
        %v2716 = vlaneseq
        %v2717 = vshrl.u32 %v2716, 7
        %v2718 = vsub.s32 %v2715, %v2717
        %v2719 = vrot.slane %v2711, %v2718
        %v2721 = vunpack.c.l.s4 1983009808
        %v2722 = vunpack.c.0.s8 %v2721
        %v2723 = vlaneseq
        %v2724 = vshrl.u32 %v2723, 7
        %v2725 = vsub.s32 %v2722, %v2724
        %v2726 = vrot.slane %v2712, %v2725
        %v2727 = vcombine.low %v2703, %v2719
        %v2728 = vcombine.high %v2703, %v2719
        %v2730 = vunpack.c.l.s4 1934713408
        %v2731 = vunpack.c.0.s8 %v2730
        %v2732 = vlaneseq
        %v2733 = vshrl.u32 %v2732, 7
        %v2734 = vsub.s32 %v2731, %v2733
        %v2735 = vrot.slane %v2727, %v2734
        %v2737 = vunpack.c.l.s4 1934713408
        %v2738 = vunpack.c.0.s8 %v2737
        %v2739 = vlaneseq
        %v2740 = vshrl.u32 %v2739, 7
        %v2741 = vsub.s32 %v2738, %v2740
        %v2742 = vrot.slane %v2728, %v2741
        %v2743 = vcombine.low %v2710, %v2726
        %v2744 = vcombine.high %v2710, %v2726
        %v2746 = vunpack.c.l.s4 1934713408
        %v2747 = vunpack.c.0.s8 %v2746
        %v2748 = vlaneseq
        %v2749 = vshrl.u32 %v2748, 7
        %v2750 = vsub.s32 %v2747, %v2749
        %v2751 = vrot.slane %v2743, %v2750
        %v2753 = vunpack.c.l.s4 1934713408
        %v2754 = vunpack.c.0.s8 %v2753
        %v2755 = vlaneseq
        %v2756 = vshrl.u32 %v2755, 7
        %v2757 = vsub.s32 %v2754, %v2756
        %v2758 = vrot.slane %v2744, %v2757
        %v2759 = vcombine.high %v2735, 0.0
        %v2760 = vcombine.high %v2742, 0.0
        %v2761 = vcombine.high %v2751, 0.0
        %v2762 = vcombine.high %v2758, 0.0
        %v2763 = vcombine.low %v2735, %v2742
        %v2765 = vunpack.c.l.s4 1983009808
        %v2766 = vunpack.c.0.s8 %v2765
        %v2767 = vlaneseq
        %v2768 = vshrl.u32 %v2767, 7
        %v2769 = vsub.s32 %v2766, %v2768
        %v2770 = vrot.slane %v2763, %v2769
        %v2771 = vcombine.low %v2759, %v2760
        %v2773 = vunpack.c.l.s4 1983009808
        %v2774 = vunpack.c.0.s8 %v2773
        %v2775 = vlaneseq
        %v2776 = vshrl.u32 %v2775, 7
        %v2777 = vsub.s32 %v2774, %v2776
        %v2778 = vrot.slane %v2771, %v2777
        %v2779 = vcombine.low %v2751, %v2758
        %v2781 = vunpack.c.l.s4 1983009808
        %v2782 = vunpack.c.0.s8 %v2781
        %v2783 = vlaneseq
        %v2784 = vshrl.u32 %v2783, 7
        %v2785 = vsub.s32 %v2782, %v2784
        %v2786 = vrot.slane %v2779, %v2785
        %v2787 = vcombine.low %v2761, %v2762
        %v2789 = vunpack.c.l.s4 1983009808
        %v2790 = vunpack.c.0.s8 %v2789
        %v2791 = vlaneseq
        %v2792 = vshrl.u32 %v2791, 7
        %v2793 = vsub.s32 %v2790, %v2792
        %v2794 = vrot.slane %v2787, %v2793
        %v2795 = vcombine.low %v2770, %v2778
        %v2796 = vcombine.high %v2770, %v2778
        %v2798 = vunpack.c.l.s4 1934713408
        %v2799 = vunpack.c.0.s8 %v2798
        %v2800 = vlaneseq
        %v2801 = vshrl.u32 %v2800, 7
        %v2802 = vsub.s32 %v2799, %v2801
        %v2803 = vrot.slane %v2795, %v2802
        %v2805 = vunpack.c.l.s4 1934713408
        %v2806 = vunpack.c.0.s8 %v2805
        %v2807 = vlaneseq
        %v2808 = vshrl.u32 %v2807, 7
        %v2809 = vsub.s32 %v2806, %v2808
        %v2810 = vrot.slane %v2796, %v2809
        %v2811 = vcombine.low %v2786, %v2794
        %v2812 = vcombine.high %v2786, %v2794
        %v2814 = vunpack.c.l.s4 1934713408
        %v2815 = vunpack.c.0.s8 %v2814
        %v2816 = vlaneseq
        %v2817 = vshrl.u32 %v2816, 7
        %v2818 = vsub.s32 %v2815, %v2817
        %v2819 = vrot.slane %v2811, %v2818
        %v2821 = vunpack.c.l.s4 1934713408
        %v2822 = vunpack.c.0.s8 %v2821
        %v2823 = vlaneseq
        %v2824 = vshrl.u32 %v2823, 7
        %v2825 = vsub.s32 %v2822, %v2824
        %v2826 = vrot.slane %v2812, %v2825
        %v2827 = vcombine.low %v2803, %v2819
        %v2828 = vcombine.high %v2803, %v2819
        %v2829 = vcombine.low %v2810, %v2826
        %v2830 = vcombine.high %v2810, %v2826
        %2832 = vrot.lane.b32.xlu0 %v2828, 8
        %v2833 = vpop.permute.xlu0 %2832
        %2836 = vrot.lane.b32.xlu0 %v2829, 16
        %v2837 = vpop.permute.xlu0 %2836
        %2840 = vrot.lane.b32.xlu0 %v2830, 24
        %v2841 = vpop.permute.xlu0 %2840
        %v2843 = vsel %vm2030, %v2827, %v2833
        %vm2844 = vcmask 130048
        %v2845 = vsel %vm2844, %v2843, %v2837
        %vm2846 = vcmask 195584
        %v2847 = vsel %vm2846, %v2845, %v2841
        %v2848 = vld [vmem:[#allocation14] sm:$0xff]
        %v2849 = vld [vmem:[#allocation14 + $0x8] sm:$0xff]
        %v2850 = vld [vmem:[#allocation14 + $0x10] sm:$0xff]
        %v2851 = vld [vmem:[#allocation14 + $0x18] sm:$0xff]
        %v2852 = vlaneseq
        %v2853 = vshrl.u32 %v2852, 7
        %v2854 = vsub.s32 3, %v2853
        %v2855 = vrot.slane %v612, %v2854
        %v2857 = vsel %vm1773, %v2847, 0
        %2859 = vmatprep.subr.mxu0 0.0
        %2860 = vmatpush1.msra.mxu0 0.0
        %2861 = vmatprep.subr.mxu0 0.0
        %2862 = vmatpush1.msra.mxu0 0.0
        %2863 = vmatprep.subr.mxu0 0.0
        %2864 = vmatpush1.msra.mxu0 0.0
        %2865 = vmatprep.subr.mxu0 0.0
        %2866 = vmatpush1.msra.mxu0 0.0
        %2867 = vmatprep.subr.mxu0 0.0
        %2868 = vmatpush1.msra.mxu0 0.0
        %2869 = vmatprep.subr.mxu0 0.0
        %2870 = vmatpush1.msra.mxu0 0.0
        %2871 = vmatprep.subr.mxu0 0.0
        %2872 = vmatpush1.msra.mxu0 0.0
        %2873 = vmatprep.subr.mxu0 0.0
        %2874 = vmatpush1.msra.mxu0 0.0
        %2875 = vmatprep.subr.mxu0 0.0
        %2876 = vmatpush1.msra.mxu0 0.0
        %2877 = vmatprep.subr.mxu0 0.0
        %2878 = vmatpush1.msra.mxu0 0.0
        %2879 = vmatprep.subr.mxu0 0.0
        %2880 = vmatpush1.msra.mxu0 0.0
        %2881 = vmatprep.subr.mxu0 0.0
        %2882 = vmatpush1.msra.mxu0 0.0
        %2883 = vmatprep.subr.mxu0 0.0
        %2884 = vmatpush1.msra.mxu0 %v2851
        %2885 = vmatprep.subr.mxu0 0.0
        %2886 = vmatpush1.msra.mxu0 %v2850
        %2887 = vmatprep.subr.mxu0 0.0
        %2888 = vmatpush1.msra.mxu0 %v2849
        %2889 = vmatprep.subr.mxu0 0.0
        %2890 = vmatpush1.msra.mxu0 %v2848
        %2891 = vmatprep.subr.mxu0 0.0
        %2892 = vmatpush2.msra.mxu0 0.0
        %2893 = vmatprep.subr.mxu0 0.0
        %2894 = vmatpush2.msra.mxu0 0.0
        %2895 = vmatprep.subr.mxu0 0.0
        %2896 = vmatpush2.msra.mxu0 0.0
        %2897 = vmatprep.subr.mxu0 0.0
        %2898 = vmatpush2.msra.mxu0 0.0
        %2899 = vmatprep.subr.mxu0 0.0
        %2900 = vmatpush2.msra.mxu0 0.0
        %2901 = vmatprep.subr.mxu0 0.0
        %2902 = vmatpush2.msra.mxu0 0.0
        %2903 = vmatprep.subr.mxu0 0.0
        %2904 = vmatpush2.msra.mxu0 0.0
        %2905 = vmatprep.subr.mxu0 0.0
        %2906 = vmatpush2.msra.mxu0 0.0
        %2907 = vmatprep.subr.mxu0 0.0
        %2908 = vmatpush2.msra.mxu0 0.0
        %2909 = vmatprep.subr.mxu0 0.0
        %2910 = vmatpush2.msra.mxu0 0.0
        %2911 = vmatprep.subr.mxu0 0.0
        %2912 = vmatpush2.msra.mxu0 0.0
        %2913 = vmatprep.subr.mxu0 0.0
        %2914 = vmatpush2.msra.mxu0 0.0
        %2915 = vmatprep.subr.mxu0 0.0
        %2916 = vmatpush2.msra.mxu0 0.0
        %2917 = vmatprep.subr.mxu0 0.0
        %2918 = vmatpush2.msra.mxu0 0.0
        %2919 = vmatprep.subr.mxu0 0.0
        %2920 = vmatpush2.msra.mxu0 0.0
        %2921 = vmatprep.subr.mxu0 0.0
        %2922 = vmatpush2.msra.mxu0 0.0
        %2923 = vmatprep.mubr.f32.mxu0 0.0
        %2924 = vmatmul.mubr.f32.gmra.mxu0 %v2857
        %v2925 = vpop.f32.mrf.mxu0
        %v2926 = vadd.f32 %v2855, %v2925
        %v2927 = vpop.f32.mrf.mxu0
        %2928 = vdwg.mxu0
        %v2929 = vadd.f32 %v1768, %v2926
        %v2930 = vsel %vm1773, %v2929, 0.0
        %2931 = vadd.xlane.f32.xlu0 %v2930
        %v2932 = vpop.xlane.xlu0 %2931
        %v2933 = vmul.f32 %v2932, %v1777
        %v2934 = vsub.f32 %v2929, %v2933
        %v2935 = vmul.f32 %v2934, %v2934
        %v2936 = vsel %vm1773, %v2935, 0.0
        %2937 = vadd.xlane.f32.xlu0 %v2936
        %v2938 = vpop.xlane.xlu0 %2937
        %v2939 = vmul.f32 %v2938, %v1777
        %v2940 = vadd.f32 %v2939, 1e-05
        %v2941 = vrsqrt.pop %v2940
        %v2942 = vmul.f32 %v2934, %v2941
        %v2943 = vlaneseq
        %v2944 = vshrl.u32 %v2943, 7
        %v2945 = vsub.s32 3, %v2944
        %v2946 = vrot.slane %v613, %v2945
        %v2947 = vmul.f32 %v2942, %v2946
        %v2948 = vlaneseq
        %v2949 = vshrl.u32 %v2948, 7
        %v2950 = vsub.s32 4, %v2949
        %v2951 = vrot.slane %v613, %v2950
        %v2952 = vadd.f32 %v2947, %v2951
        %v2953 = vld [vmem:[#allocation15] sm:$0xff]
        %v2954 = vld [vmem:[#allocation15 + $0x8] sm:$0xff]
        %v2955 = vld [vmem:[#allocation15 + $0x10] sm:$0xff]
        %v2956 = vld [vmem:[#allocation15 + $0x18] sm:$0xff]
        %v2957 = vlaneseq
        %v2958 = vshrl.u32 %v2957, 7
        %v2959 = vsub.s32 4, %v2958
        %v2960 = vrot.slane %v612, %v2959
        %v2962 = vsel %vm1773, %v2952, 0
        %2964 = vmatprep.subr.mxu0 0.0
        %2965 = vmatpush1.msra.mxu0 0.0
        %2966 = vmatprep.subr.mxu0 0.0
        %2967 = vmatpush1.msra.mxu0 0.0
        %2968 = vmatprep.subr.mxu0 0.0
        %2969 = vmatpush1.msra.mxu0 0.0
        %2970 = vmatprep.subr.mxu0 0.0
        %2971 = vmatpush1.msra.mxu0 0.0
        %2972 = vmatprep.subr.mxu0 0.0
        %2973 = vmatpush1.msra.mxu0 0.0
        %2974 = vmatprep.subr.mxu0 0.0
        %2975 = vmatpush1.msra.mxu0 0.0
        %2976 = vmatprep.subr.mxu0 0.0
        %2977 = vmatpush1.msra.mxu0 0.0
        %2978 = vmatprep.subr.mxu0 0.0
        %2979 = vmatpush1.msra.mxu0 0.0
        %2980 = vmatprep.subr.mxu0 0.0
        %2981 = vmatpush1.msra.mxu0 0.0
        %2982 = vmatprep.subr.mxu0 0.0
        %2983 = vmatpush1.msra.mxu0 0.0
        %2984 = vmatprep.subr.mxu0 0.0
        %2985 = vmatpush1.msra.mxu0 0.0
        %2986 = vmatprep.subr.mxu0 0.0
        %2987 = vmatpush1.msra.mxu0 0.0
        %2988 = vmatprep.subr.mxu0 0.0
        %2989 = vmatpush1.msra.mxu0 %v2956
        %2990 = vmatprep.subr.mxu0 0.0
        %2991 = vmatpush1.msra.mxu0 %v2955
        %2992 = vmatprep.subr.mxu0 0.0
        %2993 = vmatpush1.msra.mxu0 %v2954
        %2994 = vmatprep.subr.mxu0 0.0
        %2995 = vmatpush1.msra.mxu0 %v2953
        %2996 = vmatprep.subr.mxu0 0.0
        %2997 = vmatpush2.msra.mxu0 0.0
        %2998 = vmatprep.subr.mxu0 0.0
        %2999 = vmatpush2.msra.mxu0 0.0
        %3000 = vmatprep.subr.mxu0 0.0
        %3001 = vmatpush2.msra.mxu0 0.0
        %3002 = vmatprep.subr.mxu0 0.0
        %3003 = vmatpush2.msra.mxu0 0.0
        %3004 = vmatprep.subr.mxu0 0.0
        %3005 = vmatpush2.msra.mxu0 0.0
        %3006 = vmatprep.subr.mxu0 0.0
        %3007 = vmatpush2.msra.mxu0 0.0
        %3008 = vmatprep.subr.mxu0 0.0
        %3009 = vmatpush2.msra.mxu0 0.0
        %3010 = vmatprep.subr.mxu0 0.0
        %3011 = vmatpush2.msra.mxu0 0.0
        %3012 = vmatprep.subr.mxu0 0.0
        %3013 = vmatpush2.msra.mxu0 0.0
        %3014 = vmatprep.subr.mxu0 0.0
        %3015 = vmatpush2.msra.mxu0 0.0
        %3016 = vmatprep.subr.mxu0 0.0
        %3017 = vmatpush2.msra.mxu0 0.0
        %3018 = vmatprep.subr.mxu0 0.0
        %3019 = vmatpush2.msra.mxu0 0.0
        %3020 = vmatprep.subr.mxu0 0.0
        %3021 = vmatpush2.msra.mxu0 0.0
        %3022 = vmatprep.subr.mxu0 0.0
        %3023 = vmatpush2.msra.mxu0 0.0
        %3024 = vmatprep.subr.mxu0 0.0
        %3025 = vmatpush2.msra.mxu0 0.0
        %3026 = vmatprep.subr.mxu0 0.0
        %3027 = vmatpush2.msra.mxu0 0.0
        %3028 = vmatprep.mubr.f32.mxu0 0.0
        %3029 = vmatmul.mubr.f32.gmra.mxu0 %v2962
        %v3030 = vpop.f32.mrf.mxu0
        %v3031 = vadd.f32 %v2960, %v3030
        %v3032 = vpop.f32.mrf.mxu0
        %3033 = vdwg.mxu0
        %v3034 = vmul.f32 %v3031, 0.35355338
        %3036 = vrot.lane.b32.xlu0 %v3034, 120
        %v3037 = vpop.permute.xlu0 %3036
        %3039 = vrot.lane.b32.xlu0 %v3034, 112
        %v3040 = vpop.permute.xlu0 %3039
        %3042 = vrot.lane.b32.xlu0 %v3034, 104
        %v3043 = vpop.permute.xlu0 %3042
        %v3045 = vcombine.low %v3034, %v3040
        %v3046 = vcombine.high %v3034, %v3040
        %v3048 = vunpack.c.l.s4 1983009808
        %v3049 = vunpack.c.0.s8 %v3048
        %v3050 = vlaneseq
        %v3051 = vshrl.u32 %v3050, 7
        %v3052 = vsub.s32 %v3049, %v3051
        %v3053 = vrot.slane %v3045, %v3052
        %v3055 = vunpack.c.l.s4 1983009808
        %v3056 = vunpack.c.0.s8 %v3055
        %v3057 = vlaneseq
        %v3058 = vshrl.u32 %v3057, 7
        %v3059 = vsub.s32 %v3056, %v3058
        %v3060 = vrot.slane %v3046, %v3059
        %v3061 = vcombine.low %v3037, %v3043
        %v3062 = vcombine.high %v3037, %v3043
        %v3064 = vunpack.c.l.s4 1983009808
        %v3065 = vunpack.c.0.s8 %v3064
        %v3066 = vlaneseq
        %v3067 = vshrl.u32 %v3066, 7
        %v3068 = vsub.s32 %v3065, %v3067
        %v3069 = vrot.slane %v3061, %v3068
        %v3071 = vunpack.c.l.s4 1983009808
        %v3072 = vunpack.c.0.s8 %v3071
        %v3073 = vlaneseq
        %v3074 = vshrl.u32 %v3073, 7
        %v3075 = vsub.s32 %v3072, %v3074
        %v3076 = vrot.slane %v3062, %v3075
        %v3077 = vcombine.low %v3053, %v3069
        %v3078 = vcombine.high %v3053, %v3069
        %v3080 = vunpack.c.l.s4 1934713408
        %v3081 = vunpack.c.0.s8 %v3080
        %v3082 = vlaneseq
        %v3083 = vshrl.u32 %v3082, 7
        %v3084 = vsub.s32 %v3081, %v3083
        %v3085 = vrot.slane %v3077, %v3084
        %v3087 = vunpack.c.l.s4 1934713408
        %v3088 = vunpack.c.0.s8 %v3087
        %v3089 = vlaneseq
        %v3090 = vshrl.u32 %v3089, 7
        %v3091 = vsub.s32 %v3088, %v3090
        %v3092 = vrot.slane %v3078, %v3091
        %v3093 = vcombine.low %v3060, %v3076
        %v3094 = vcombine.high %v3060, %v3076
        %v3096 = vunpack.c.l.s4 1934713408
        %v3097 = vunpack.c.0.s8 %v3096
        %v3098 = vlaneseq
        %v3099 = vshrl.u32 %v3098, 7
        %v3100 = vsub.s32 %v3097, %v3099
        %v3101 = vrot.slane %v3093, %v3100
        %v3103 = vunpack.c.l.s4 1934713408
        %v3104 = vunpack.c.0.s8 %v3103
        %v3105 = vlaneseq
        %v3106 = vshrl.u32 %v3105, 7
        %v3107 = vsub.s32 %v3104, %v3106
        %v3108 = vrot.slane %v3094, %v3107
        %v3109 = vcombine.high %v3085, 0.0
        %v3110 = vcombine.high %v3092, 0.0
        %v3111 = vcombine.high %v3101, 0.0
        %v3112 = vcombine.high %v3108, 0.0
        %v3113 = vcombine.low %v3085, %v3092
        %v3115 = vunpack.c.l.s4 1983009808
        %v3116 = vunpack.c.0.s8 %v3115
        %v3117 = vlaneseq
        %v3118 = vshrl.u32 %v3117, 7
        %v3119 = vsub.s32 %v3116, %v3118
        %v3120 = vrot.slane %v3113, %v3119
        %v3121 = vcombine.low %v3109, %v3110
        %v3123 = vunpack.c.l.s4 1983009808
        %v3124 = vunpack.c.0.s8 %v3123
        %v3125 = vlaneseq
        %v3126 = vshrl.u32 %v3125, 7
        %v3127 = vsub.s32 %v3124, %v3126
        %v3128 = vrot.slane %v3121, %v3127
        %v3129 = vcombine.low %v3101, %v3108
        %v3131 = vunpack.c.l.s4 1983009808
        %v3132 = vunpack.c.0.s8 %v3131
        %v3133 = vlaneseq
        %v3134 = vshrl.u32 %v3133, 7
        %v3135 = vsub.s32 %v3132, %v3134
        %v3136 = vrot.slane %v3129, %v3135
        %v3137 = vcombine.low %v3111, %v3112
        %v3139 = vunpack.c.l.s4 1983009808
        %v3140 = vunpack.c.0.s8 %v3139
        %v3141 = vlaneseq
        %v3142 = vshrl.u32 %v3141, 7
        %v3143 = vsub.s32 %v3140, %v3142
        %v3144 = vrot.slane %v3137, %v3143
        %v3145 = vcombine.low %v3120, %v3128
        %v3146 = vcombine.high %v3120, %v3128
        %v3148 = vunpack.c.l.s4 1934713408
        %v3149 = vunpack.c.0.s8 %v3148
        %v3150 = vlaneseq
        %v3151 = vshrl.u32 %v3150, 7
        %v3152 = vsub.s32 %v3149, %v3151
        %v3153 = vrot.slane %v3145, %v3152
        %v3155 = vunpack.c.l.s4 1934713408
        %v3156 = vunpack.c.0.s8 %v3155
        %v3157 = vlaneseq
        %v3158 = vshrl.u32 %v3157, 7
        %v3159 = vsub.s32 %v3156, %v3158
        %v3160 = vrot.slane %v3146, %v3159
        %v3161 = vcombine.low %v3136, %v3144
        %v3162 = vcombine.high %v3136, %v3144
        %v3164 = vunpack.c.l.s4 1934713408
        %v3165 = vunpack.c.0.s8 %v3164
        %v3166 = vlaneseq
        %v3167 = vshrl.u32 %v3166, 7
        %v3168 = vsub.s32 %v3165, %v3167
        %v3169 = vrot.slane %v3161, %v3168
        %v3171 = vunpack.c.l.s4 1934713408
        %v3172 = vunpack.c.0.s8 %v3171
        %v3173 = vlaneseq
        %v3174 = vshrl.u32 %v3173, 7
        %v3175 = vsub.s32 %v3172, %v3174
        %v3176 = vrot.slane %v3162, %v3175
        %v3177 = vcombine.low %v3153, %v3169
        %v3178 = vcombine.high %v3153, %v3169
        %v3179 = vcombine.low %v3160, %v3176
        %v3180 = vcombine.high %v3160, %v3176
        %v3181 = vld [vmem:[#allocation4] sm:$0xff]
        %v3182 = vld [vmem:[#allocation4 + $0x8] sm:$0xff]
        %v3183 = vld [vmem:[#allocation4 + $0x10] sm:$0xff]
        %v3184 = vld [vmem:[#allocation4 + $0x18] sm:$0xff]
        %v3185 = vld [vmem:[#allocation4 + $0x20] sm:$0xff]
        %v3186 = vld [vmem:[#allocation4 + $0x28] sm:$0xff]
        %v3187 = vld [vmem:[#allocation4 + $0x30] sm:$0xff]
        %v3188 = vld [vmem:[#allocation4 + $0x38] sm:$0xff]
        %v3190 = vsel %vm2030, %v3177, 0
        %v3193 = vsel %vm2030, %v3181, 0
        %v3196 = vsel %vm2030, %v3182, 0
        %3198 = vmatprep.subr.mxu0 0.0
        %3199 = vmatpush1.xpose.msra.mxu0 0.0
        %3200 = vmatprep.subr.mxu0 0.0
        %3201 = vmatpush1.xpose.msra.mxu0 0.0
        %3202 = vmatprep.subr.mxu0 0.0
        %3203 = vmatpush1.xpose.msra.mxu0 0.0
        %3204 = vmatprep.subr.mxu0 0.0
        %3205 = vmatpush1.xpose.msra.mxu0 0.0
        %3206 = vmatprep.subr.mxu0 0.0
        %3207 = vmatpush1.xpose.msra.mxu0 0.0
        %3208 = vmatprep.subr.mxu0 0.0
        %3209 = vmatpush1.xpose.msra.mxu0 0.0
        %3210 = vmatprep.subr.mxu0 0.0
        %3211 = vmatpush1.xpose.msra.mxu0 0.0
        %3212 = vmatprep.subr.mxu0 0.0
        %3213 = vmatpush1.xpose.msra.mxu0 0.0
        %3214 = vmatprep.subr.mxu0 0.0
        %3215 = vmatpush1.xpose.msra.mxu0 0.0
        %3216 = vmatprep.subr.mxu0 0.0
        %3217 = vmatpush1.xpose.msra.mxu0 0.0
        %3218 = vmatprep.subr.mxu0 0.0
        %3219 = vmatpush1.xpose.msra.mxu0 0.0
        %3220 = vmatprep.subr.mxu0 0.0
        %3221 = vmatpush1.xpose.msra.mxu0 0.0
        %3222 = vmatprep.subr.mxu0 0.0
        %3223 = vmatpush1.xpose.msra.mxu0 0.0
        %3224 = vmatprep.subr.mxu0 0.0
        %3225 = vmatpush1.xpose.msra.mxu0 0.0
        %3226 = vmatprep.subr.mxu0 0.0
        %3227 = vmatpush1.xpose.msra.mxu0 %v3196
        %3228 = vmatprep.subr.mxu0 0.0
        %3229 = vmatpush1.xpose.msra.mxu0 %v3193
        %3230 = vmatprep.subr.mxu0 0.0
        %3231 = vmatpush2.xpose.msra.mxu0 0.0
        %3232 = vmatprep.subr.mxu0 0.0
        %3233 = vmatpush2.xpose.msra.mxu0 0.0
        %3234 = vmatprep.subr.mxu0 0.0
        %3235 = vmatpush2.xpose.msra.mxu0 0.0
        %3236 = vmatprep.subr.mxu0 0.0
        %3237 = vmatpush2.xpose.msra.mxu0 0.0
        %3238 = vmatprep.subr.mxu0 0.0
        %3239 = vmatpush2.xpose.msra.mxu0 0.0
        %3240 = vmatprep.subr.mxu0 0.0
        %3241 = vmatpush2.xpose.msra.mxu0 0.0
        %3242 = vmatprep.subr.mxu0 0.0
        %3243 = vmatpush2.xpose.msra.mxu0 0.0
        %3244 = vmatprep.subr.mxu0 0.0
        %3245 = vmatpush2.xpose.msra.mxu0 0.0
        %3246 = vmatprep.subr.mxu0 0.0
        %3247 = vmatpush2.xpose.msra.mxu0 0.0
        %3248 = vmatprep.subr.mxu0 0.0
        %3249 = vmatpush2.xpose.msra.mxu0 0.0
        %3250 = vmatprep.subr.mxu0 0.0
        %3251 = vmatpush2.xpose.msra.mxu0 0.0
        %3252 = vmatprep.subr.mxu0 0.0
        %3253 = vmatpush2.xpose.msra.mxu0 0.0
        %3254 = vmatprep.subr.mxu0 0.0
        %3255 = vmatpush2.xpose.msra.mxu0 0.0
        %3256 = vmatprep.subr.mxu0 0.0
        %3257 = vmatpush2.xpose.msra.mxu0 0.0
        %3258 = vmatprep.subr.mxu0 0.0
        %3259 = vmatpush2.xpose.msra.mxu0 0.0
        %3260 = vmatprep.subr.mxu0 0.0
        %3261 = vmatpush2.xpose.msra.mxu0 0.0
        %3262 = vmatprep.mubr.f32.mxu0 0.0
        %3263 = vmatmul.mubr.f32.gmra.mxu0 %v3190
        %v3264 = vpop.f32.mrf.mxu0
        %v3265 = vadd.f32 0.0, %v3264
        %v3266 = vpop.f32.mrf.mxu0
        %3267 = vdwg.mxu0
        %v3269 = vsel %vm2030, %v3178, 0
        %v3272 = vsel %vm2030, %v3183, 0
        %v3275 = vsel %vm2030, %v3184, 0
        %3277 = vmatprep.subr.mxu0 0.0
        %3278 = vmatpush1.xpose.msra.mxu0 0.0
        %3279 = vmatprep.subr.mxu0 0.0
        %3280 = vmatpush1.xpose.msra.mxu0 0.0
        %3281 = vmatprep.subr.mxu0 0.0
        %3282 = vmatpush1.xpose.msra.mxu0 0.0
        %3283 = vmatprep.subr.mxu0 0.0
        %3284 = vmatpush1.xpose.msra.mxu0 0.0
        %3285 = vmatprep.subr.mxu0 0.0
        %3286 = vmatpush1.xpose.msra.mxu0 0.0
        %3287 = vmatprep.subr.mxu0 0.0
        %3288 = vmatpush1.xpose.msra.mxu0 0.0
        %3289 = vmatprep.subr.mxu0 0.0
        %3290 = vmatpush1.xpose.msra.mxu0 0.0
        %3291 = vmatprep.subr.mxu0 0.0
        %3292 = vmatpush1.xpose.msra.mxu0 0.0
        %3293 = vmatprep.subr.mxu0 0.0
        %3294 = vmatpush1.xpose.msra.mxu0 0.0
        %3295 = vmatprep.subr.mxu0 0.0
        %3296 = vmatpush1.xpose.msra.mxu0 0.0
        %3297 = vmatprep.subr.mxu0 0.0
        %3298 = vmatpush1.xpose.msra.mxu0 0.0
        %3299 = vmatprep.subr.mxu0 0.0
        %3300 = vmatpush1.xpose.msra.mxu0 0.0
        %3301 = vmatprep.subr.mxu0 0.0
        %3302 = vmatpush1.xpose.msra.mxu0 0.0
        %3303 = vmatprep.subr.mxu0 0.0
        %3304 = vmatpush1.xpose.msra.mxu0 0.0
        %3305 = vmatprep.subr.mxu0 0.0
        %3306 = vmatpush1.xpose.msra.mxu0 %v3275
        %3307 = vmatprep.subr.mxu0 0.0
        %3308 = vmatpush1.xpose.msra.mxu0 %v3272
        %3309 = vmatprep.subr.mxu0 0.0
        %3310 = vmatpush2.xpose.msra.mxu0 0.0
        %3311 = vmatprep.subr.mxu0 0.0
        %3312 = vmatpush2.xpose.msra.mxu0 0.0
        %3313 = vmatprep.subr.mxu0 0.0
        %3314 = vmatpush2.xpose.msra.mxu0 0.0
        %3315 = vmatprep.subr.mxu0 0.0
        %3316 = vmatpush2.xpose.msra.mxu0 0.0
        %3317 = vmatprep.subr.mxu0 0.0
        %3318 = vmatpush2.xpose.msra.mxu0 0.0
        %3319 = vmatprep.subr.mxu0 0.0
        %3320 = vmatpush2.xpose.msra.mxu0 0.0
        %3321 = vmatprep.subr.mxu0 0.0
        %3322 = vmatpush2.xpose.msra.mxu0 0.0
        %3323 = vmatprep.subr.mxu0 0.0
        %3324 = vmatpush2.xpose.msra.mxu0 0.0
        %3325 = vmatprep.subr.mxu0 0.0
        %3326 = vmatpush2.xpose.msra.mxu0 0.0
        %3327 = vmatprep.subr.mxu0 0.0
        %3328 = vmatpush2.xpose.msra.mxu0 0.0
        %3329 = vmatprep.subr.mxu0 0.0
        %3330 = vmatpush2.xpose.msra.mxu0 0.0
        %3331 = vmatprep.subr.mxu0 0.0
        %3332 = vmatpush2.xpose.msra.mxu0 0.0
        %3333 = vmatprep.subr.mxu0 0.0
        %3334 = vmatpush2.xpose.msra.mxu0 0.0
        %3335 = vmatprep.subr.mxu0 0.0
        %3336 = vmatpush2.xpose.msra.mxu0 0.0
        %3337 = vmatprep.subr.mxu0 0.0
        %3338 = vmatpush2.xpose.msra.mxu0 0.0
        %3339 = vmatprep.subr.mxu0 0.0
        %3340 = vmatpush2.xpose.msra.mxu0 0.0
        %3341 = vmatprep.mubr.f32.mxu0 0.0
        %3342 = vmatmul.mubr.f32.gmra.mxu0 %v3269
        %v3343 = vpop.f32.mrf.mxu0
        %v3344 = vadd.f32 0.0, %v3343
        %v3345 = vpop.f32.mrf.mxu0
        %3346 = vdwg.mxu0
        %v3348 = vsel %vm2030, %v3179, 0
        %v3351 = vsel %vm2030, %v3185, 0
        %v3354 = vsel %vm2030, %v3186, 0
        %3356 = vmatprep.subr.mxu0 0.0
        %3357 = vmatpush1.xpose.msra.mxu0 0.0
        %3358 = vmatprep.subr.mxu0 0.0
        %3359 = vmatpush1.xpose.msra.mxu0 0.0
        %3360 = vmatprep.subr.mxu0 0.0
        %3361 = vmatpush1.xpose.msra.mxu0 0.0
        %3362 = vmatprep.subr.mxu0 0.0
        %3363 = vmatpush1.xpose.msra.mxu0 0.0
        %3364 = vmatprep.subr.mxu0 0.0
        %3365 = vmatpush1.xpose.msra.mxu0 0.0
        %3366 = vmatprep.subr.mxu0 0.0
        %3367 = vmatpush1.xpose.msra.mxu0 0.0
        %3368 = vmatprep.subr.mxu0 0.0
        %3369 = vmatpush1.xpose.msra.mxu0 0.0
        %3370 = vmatprep.subr.mxu0 0.0
        %3371 = vmatpush1.xpose.msra.mxu0 0.0
        %3372 = vmatprep.subr.mxu0 0.0
        %3373 = vmatpush1.xpose.msra.mxu0 0.0
        %3374 = vmatprep.subr.mxu0 0.0
        %3375 = vmatpush1.xpose.msra.mxu0 0.0
        %3376 = vmatprep.subr.mxu0 0.0
        %3377 = vmatpush1.xpose.msra.mxu0 0.0
        %3378 = vmatprep.subr.mxu0 0.0
        %3379 = vmatpush1.xpose.msra.mxu0 0.0
        %3380 = vmatprep.subr.mxu0 0.0
        %3381 = vmatpush1.xpose.msra.mxu0 0.0
        %3382 = vmatprep.subr.mxu0 0.0
        %3383 = vmatpush1.xpose.msra.mxu0 0.0
        %3384 = vmatprep.subr.mxu0 0.0
        %3385 = vmatpush1.xpose.msra.mxu0 %v3354
        %3386 = vmatprep.subr.mxu0 0.0
        %3387 = vmatpush1.xpose.msra.mxu0 %v3351
        %3388 = vmatprep.subr.mxu0 0.0
        %3389 = vmatpush2.xpose.msra.mxu0 0.0
        %3390 = vmatprep.subr.mxu0 0.0
        %3391 = vmatpush2.xpose.msra.mxu0 0.0
        %3392 = vmatprep.subr.mxu0 0.0
        %3393 = vmatpush2.xpose.msra.mxu0 0.0
        %3394 = vmatprep.subr.mxu0 0.0
        %3395 = vmatpush2.xpose.msra.mxu0 0.0
        %3396 = vmatprep.subr.mxu0 0.0
        %3397 = vmatpush2.xpose.msra.mxu0 0.0
        %3398 = vmatprep.subr.mxu0 0.0
        %3399 = vmatpush2.xpose.msra.mxu0 0.0
        %3400 = vmatprep.subr.mxu0 0.0
        %3401 = vmatpush2.xpose.msra.mxu0 0.0
        %3402 = vmatprep.subr.mxu0 0.0
        %3403 = vmatpush2.xpose.msra.mxu0 0.0
        %3404 = vmatprep.subr.mxu0 0.0
        %3405 = vmatpush2.xpose.msra.mxu0 0.0
        %3406 = vmatprep.subr.mxu0 0.0
        %3407 = vmatpush2.xpose.msra.mxu0 0.0
        %3408 = vmatprep.subr.mxu0 0.0
        %3409 = vmatpush2.xpose.msra.mxu0 0.0
        %3410 = vmatprep.subr.mxu0 0.0
        %3411 = vmatpush2.xpose.msra.mxu0 0.0
        %3412 = vmatprep.subr.mxu0 0.0
        %3413 = vmatpush2.xpose.msra.mxu0 0.0
        %3414 = vmatprep.subr.mxu0 0.0
        %3415 = vmatpush2.xpose.msra.mxu0 0.0
        %3416 = vmatprep.subr.mxu0 0.0
        %3417 = vmatpush2.xpose.msra.mxu0 0.0
        %3418 = vmatprep.subr.mxu0 0.0
        %3419 = vmatpush2.xpose.msra.mxu0 0.0
        %3420 = vmatprep.mubr.f32.mxu0 0.0
        %3421 = vmatmul.mubr.f32.gmra.mxu0 %v3348
        %v3422 = vpop.f32.mrf.mxu0
        %v3423 = vadd.f32 0.0, %v3422
        %v3424 = vpop.f32.mrf.mxu0
        %3425 = vdwg.mxu0
        %v3427 = vsel %vm2030, %v3180, 0
        %v3430 = vsel %vm2030, %v3187, 0
        %v3433 = vsel %vm2030, %v3188, 0
        %3435 = vmatprep.subr.mxu0 0.0
        %3436 = vmatpush1.xpose.msra.mxu0 0.0
        %3437 = vmatprep.subr.mxu0 0.0
        %3438 = vmatpush1.xpose.msra.mxu0 0.0
        %3439 = vmatprep.subr.mxu0 0.0
        %3440 = vmatpush1.xpose.msra.mxu0 0.0
        %3441 = vmatprep.subr.mxu0 0.0
        %3442 = vmatpush1.xpose.msra.mxu0 0.0
        %3443 = vmatprep.subr.mxu0 0.0
        %3444 = vmatpush1.xpose.msra.mxu0 0.0
        %3445 = vmatprep.subr.mxu0 0.0
        %3446 = vmatpush1.xpose.msra.mxu0 0.0
        %3447 = vmatprep.subr.mxu0 0.0
        %3448 = vmatpush1.xpose.msra.mxu0 0.0
        %3449 = vmatprep.subr.mxu0 0.0
        %3450 = vmatpush1.xpose.msra.mxu0 0.0
        %3451 = vmatprep.subr.mxu0 0.0
        %3452 = vmatpush1.xpose.msra.mxu0 0.0
        %3453 = vmatprep.subr.mxu0 0.0
        %3454 = vmatpush1.xpose.msra.mxu0 0.0
        %3455 = vmatprep.subr.mxu0 0.0
        %3456 = vmatpush1.xpose.msra.mxu0 0.0
        %3457 = vmatprep.subr.mxu0 0.0
        %3458 = vmatpush1.xpose.msra.mxu0 0.0
        %3459 = vmatprep.subr.mxu0 0.0
        %3460 = vmatpush1.xpose.msra.mxu0 0.0
        %3461 = vmatprep.subr.mxu0 0.0
        %3462 = vmatpush1.xpose.msra.mxu0 0.0
        %3463 = vmatprep.subr.mxu0 0.0
        %3464 = vmatpush1.xpose.msra.mxu0 %v3433
        %3465 = vmatprep.subr.mxu0 0.0
        %3466 = vmatpush1.xpose.msra.mxu0 %v3430
        %3467 = vmatprep.subr.mxu0 0.0
        %3468 = vmatpush2.xpose.msra.mxu0 0.0
        %3469 = vmatprep.subr.mxu0 0.0
        %3470 = vmatpush2.xpose.msra.mxu0 0.0
        %3471 = vmatprep.subr.mxu0 0.0
        %3472 = vmatpush2.xpose.msra.mxu0 0.0
        %3473 = vmatprep.subr.mxu0 0.0
        %3474 = vmatpush2.xpose.msra.mxu0 0.0
        %3475 = vmatprep.subr.mxu0 0.0
        %3476 = vmatpush2.xpose.msra.mxu0 0.0
        %3477 = vmatprep.subr.mxu0 0.0
        %3478 = vmatpush2.xpose.msra.mxu0 0.0
        %3479 = vmatprep.subr.mxu0 0.0
        %3480 = vmatpush2.xpose.msra.mxu0 0.0
        %3481 = vmatprep.subr.mxu0 0.0
        %3482 = vmatpush2.xpose.msra.mxu0 0.0
        %3483 = vmatprep.subr.mxu0 0.0
        %3484 = vmatpush2.xpose.msra.mxu0 0.0
        %3485 = vmatprep.subr.mxu0 0.0
        %3486 = vmatpush2.xpose.msra.mxu0 0.0
        %3487 = vmatprep.subr.mxu0 0.0
        %3488 = vmatpush2.xpose.msra.mxu0 0.0
        %3489 = vmatprep.subr.mxu0 0.0
        %3490 = vmatpush2.xpose.msra.mxu0 0.0
        %3491 = vmatprep.subr.mxu0 0.0
        %3492 = vmatpush2.xpose.msra.mxu0 0.0
        %3493 = vmatprep.subr.mxu0 0.0
        %3494 = vmatpush2.xpose.msra.mxu0 0.0
        %3495 = vmatprep.subr.mxu0 0.0
        %3496 = vmatpush2.xpose.msra.mxu0 0.0
        %3497 = vmatprep.subr.mxu0 0.0
        %3498 = vmatpush2.xpose.msra.mxu0 0.0
        %3499 = vmatprep.mubr.f32.mxu0 0.0
        %3500 = vmatmul.mubr.f32.gmra.mxu0 %v3427
        %v3501 = vpop.f32.mrf.mxu0
        %v3502 = vadd.f32 0.0, %v3501
        %v3503 = vpop.f32.mrf.mxu0
        %3504 = vdwg.mxu0
        %v3505 = vsel %vm1772, 1, 0
        %v3506 = vlaneseq
        %v3507 = vshrl.u32 %v3506, 7
        %v3508 = vsub.s32 0, %v3507
        %v3509 = vrot.slane %v3505, %v3508
        %vm3510 = vcmp.eq.s32.totalorder %v3509, 1
        %v3511 = vsel %vm3510, %v3265, -1e+09
        %v3512 = vsel %vm3510, %v3344, -1e+09
        %v3513 = vsel %vm3510, %v3423, -1e+09
        %v3514 = vsel %vm3510, %v3502, -1e+09
        %v3515 = vsel %vm2844, %v3511, -inf
        %3516 = vmax.xlane.f32.xlu0 %v3515
        %v3517 = vpop.xlane.xlu0 %3516
        %v3518 = vsel %vm2844, %v3512, -inf
        %3519 = vmax.xlane.f32.xlu0 %v3518
        %v3520 = vpop.xlane.xlu0 %3519
        %v3521 = vsel %vm2844, %v3513, -inf
        %3522 = vmax.xlane.f32.xlu0 %v3521
        %v3523 = vpop.xlane.xlu0 %3522
        %v3524 = vsel %vm2844, %v3514, -inf
        %3525 = vmax.xlane.f32.xlu0 %v3524
        %v3526 = vpop.xlane.xlu0 %3525
        %v3527 = vsub.f32 %v3511, %v3517
        %v3528 = vsub.f32 %v3512, %v3520
        %v3529 = vsub.f32 %v3513, %v3523
        %v3530 = vsub.f32 %v3514, %v3526
        %v3531 = vmul.f32 %v3527, 1.442695
        %v3532 = vpow.pop %v3531
        %v3533 = vmul.f32 %v3528, 1.442695
        %v3534 = vpow.pop %v3533
        %v3535 = vmul.f32 %v3529, 1.442695
        %v3536 = vpow.pop %v3535
        %v3537 = vmul.f32 %v3530, 1.442695
        %v3538 = vpow.pop %v3537
        %v3539 = vsel %vm2844, %v3532, 0.0
        %3540 = vadd.xlane.f32.xlu0 %v3539
        %v3541 = vpop.xlane.xlu0 %3540
        %v3542 = vsel %vm2844, %v3534, 0.0
        %3543 = vadd.xlane.f32.xlu0 %v3542
        %v3544 = vpop.xlane.xlu0 %3543
        %v3545 = vsel %vm2844, %v3536, 0.0
        %3546 = vadd.xlane.f32.xlu0 %v3545
        %v3547 = vpop.xlane.xlu0 %3546
        %v3548 = vsel %vm2844, %v3538, 0.0
        %3549 = vadd.xlane.f32.xlu0 %v3548
        %v3550 = vpop.xlane.xlu0 %3549
        %v3551 = vld [vmem:[#allocation5] sm:$0xff]
        %v3552 = vld [vmem:[#allocation5 + $0x8] sm:$0xff]
        %v3553 = vld [vmem:[#allocation5 + $0x10] sm:$0xff]
        %v3554 = vld [vmem:[#allocation5 + $0x18] sm:$0xff]
        %v3555 = vld [vmem:[#allocation5 + $0x20] sm:$0xff]
        %v3556 = vld [vmem:[#allocation5 + $0x28] sm:$0xff]
        %v3557 = vld [vmem:[#allocation5 + $0x30] sm:$0xff]
        %v3558 = vld [vmem:[#allocation5 + $0x38] sm:$0xff]
        %v3560 = vsel %vm2844, %v3532, 0
        %3562 = vmatprep.subr.mxu0 0.0
        %3563 = vmatpush1.msra.mxu0 0.0
        %3564 = vmatprep.subr.mxu0 0.0
        %3565 = vmatpush1.msra.mxu0 0.0
        %3566 = vmatprep.subr.mxu0 0.0
        %3567 = vmatpush1.msra.mxu0 0.0
        %3568 = vmatprep.subr.mxu0 0.0
        %3569 = vmatpush1.msra.mxu0 0.0
        %3570 = vmatprep.subr.mxu0 0.0
        %3571 = vmatpush1.msra.mxu0 0.0
        %3572 = vmatprep.subr.mxu0 0.0
        %3573 = vmatpush1.msra.mxu0 0.0
        %3574 = vmatprep.subr.mxu0 0.0
        %3575 = vmatpush1.msra.mxu0 0.0
        %3576 = vmatprep.subr.mxu0 0.0
        %3577 = vmatpush1.msra.mxu0 0.0
        %3578 = vmatprep.subr.mxu0 0.0
        %3579 = vmatpush1.msra.mxu0 0.0
        %3580 = vmatprep.subr.mxu0 0.0
        %3581 = vmatpush1.msra.mxu0 0.0
        %3582 = vmatprep.subr.mxu0 0.0
        %3583 = vmatpush1.msra.mxu0 0.0
        %3584 = vmatprep.subr.mxu0 0.0
        %3585 = vmatpush1.msra.mxu0 0.0
        %3586 = vmatprep.subr.mxu0 0.0
        %3587 = vmatpush1.msra.mxu0 0.0
        %3588 = vmatprep.subr.mxu0 0.0
        %3589 = vmatpush1.msra.mxu0 0.0
        %3590 = vmatprep.subr.mxu0 0.0
        %3591 = vmatpush1.msra.mxu0 %v3552
        %3592 = vmatprep.subr.mxu0 0.0
        %3593 = vmatpush1.msra.mxu0 %v3551
        %3594 = vmatprep.subr.mxu0 0.0
        %3595 = vmatpush2.msra.mxu0 0.0
        %3596 = vmatprep.subr.mxu0 0.0
        %3597 = vmatpush2.msra.mxu0 0.0
        %3598 = vmatprep.subr.mxu0 0.0
        %3599 = vmatpush2.msra.mxu0 0.0
        %3600 = vmatprep.subr.mxu0 0.0
        %3601 = vmatpush2.msra.mxu0 0.0
        %3602 = vmatprep.subr.mxu0 0.0
        %3603 = vmatpush2.msra.mxu0 0.0
        %3604 = vmatprep.subr.mxu0 0.0
        %3605 = vmatpush2.msra.mxu0 0.0
        %3606 = vmatprep.subr.mxu0 0.0
        %3607 = vmatpush2.msra.mxu0 0.0
        %3608 = vmatprep.subr.mxu0 0.0
        %3609 = vmatpush2.msra.mxu0 0.0
        %3610 = vmatprep.subr.mxu0 0.0
        %3611 = vmatpush2.msra.mxu0 0.0
        %3612 = vmatprep.subr.mxu0 0.0
        %3613 = vmatpush2.msra.mxu0 0.0
        %3614 = vmatprep.subr.mxu0 0.0
        %3615 = vmatpush2.msra.mxu0 0.0
        %3616 = vmatprep.subr.mxu0 0.0
        %3617 = vmatpush2.msra.mxu0 0.0
        %3618 = vmatprep.subr.mxu0 0.0
        %3619 = vmatpush2.msra.mxu0 0.0
        %3620 = vmatprep.subr.mxu0 0.0
        %3621 = vmatpush2.msra.mxu0 0.0
        %3622 = vmatprep.subr.mxu0 0.0
        %3623 = vmatpush2.msra.mxu0 0.0
        %3624 = vmatprep.subr.mxu0 0.0
        %3625 = vmatpush2.msra.mxu0 0.0
        %3626 = vmatprep.mubr.f32.mxu0 0.0
        %3627 = vmatmul.mubr.f32.gmra.mxu0 %v3560
        %v3628 = vpop.f32.mrf.mxu0
        %v3629 = vadd.f32 0.0, %v3628
        %v3630 = vpop.f32.mrf.mxu0
        %3631 = vdwg.mxu0
        %v3633 = vsel %vm2844, %v3534, 0
        %3635 = vmatprep.subr.mxu0 0.0
        %3636 = vmatpush1.msra.mxu0 0.0
        %3637 = vmatprep.subr.mxu0 0.0
        %3638 = vmatpush1.msra.mxu0 0.0
        %3639 = vmatprep.subr.mxu0 0.0
        %3640 = vmatpush1.msra.mxu0 0.0
        %3641 = vmatprep.subr.mxu0 0.0
        %3642 = vmatpush1.msra.mxu0 0.0
        %3643 = vmatprep.subr.mxu0 0.0
        %3644 = vmatpush1.msra.mxu0 0.0
        %3645 = vmatprep.subr.mxu0 0.0
        %3646 = vmatpush1.msra.mxu0 0.0
        %3647 = vmatprep.subr.mxu0 0.0
        %3648 = vmatpush1.msra.mxu0 0.0
        %3649 = vmatprep.subr.mxu0 0.0
        %3650 = vmatpush1.msra.mxu0 0.0
        %3651 = vmatprep.subr.mxu0 0.0
        %3652 = vmatpush1.msra.mxu0 0.0
        %3653 = vmatprep.subr.mxu0 0.0
        %3654 = vmatpush1.msra.mxu0 0.0
        %3655 = vmatprep.subr.mxu0 0.0
        %3656 = vmatpush1.msra.mxu0 0.0
        %3657 = vmatprep.subr.mxu0 0.0
        %3658 = vmatpush1.msra.mxu0 0.0
        %3659 = vmatprep.subr.mxu0 0.0
        %3660 = vmatpush1.msra.mxu0 0.0
        %3661 = vmatprep.subr.mxu0 0.0
        %3662 = vmatpush1.msra.mxu0 0.0
        %3663 = vmatprep.subr.mxu0 0.0
        %3664 = vmatpush1.msra.mxu0 %v3554
        %3665 = vmatprep.subr.mxu0 0.0
        %3666 = vmatpush1.msra.mxu0 %v3553
        %3667 = vmatprep.subr.mxu0 0.0
        %3668 = vmatpush2.msra.mxu0 0.0
        %3669 = vmatprep.subr.mxu0 0.0
        %3670 = vmatpush2.msra.mxu0 0.0
        %3671 = vmatprep.subr.mxu0 0.0
        %3672 = vmatpush2.msra.mxu0 0.0
        %3673 = vmatprep.subr.mxu0 0.0
        %3674 = vmatpush2.msra.mxu0 0.0
        %3675 = vmatprep.subr.mxu0 0.0
        %3676 = vmatpush2.msra.mxu0 0.0
        %3677 = vmatprep.subr.mxu0 0.0
        %3678 = vmatpush2.msra.mxu0 0.0
        %3679 = vmatprep.subr.mxu0 0.0
        %3680 = vmatpush2.msra.mxu0 0.0
        %3681 = vmatprep.subr.mxu0 0.0
        %3682 = vmatpush2.msra.mxu0 0.0
        %3683 = vmatprep.subr.mxu0 0.0
        %3684 = vmatpush2.msra.mxu0 0.0
        %3685 = vmatprep.subr.mxu0 0.0
        %3686 = vmatpush2.msra.mxu0 0.0
        %3687 = vmatprep.subr.mxu0 0.0
        %3688 = vmatpush2.msra.mxu0 0.0
        %3689 = vmatprep.subr.mxu0 0.0
        %3690 = vmatpush2.msra.mxu0 0.0
        %3691 = vmatprep.subr.mxu0 0.0
        %3692 = vmatpush2.msra.mxu0 0.0
        %3693 = vmatprep.subr.mxu0 0.0
        %3694 = vmatpush2.msra.mxu0 0.0
        %3695 = vmatprep.subr.mxu0 0.0
        %3696 = vmatpush2.msra.mxu0 0.0
        %3697 = vmatprep.subr.mxu0 0.0
        %3698 = vmatpush2.msra.mxu0 0.0
        %3699 = vmatprep.mubr.f32.mxu0 0.0
        %3700 = vmatmul.mubr.f32.gmra.mxu0 %v3633
        %v3701 = vpop.f32.mrf.mxu0
        %v3702 = vadd.f32 0.0, %v3701
        %v3703 = vpop.f32.mrf.mxu0
        %3704 = vdwg.mxu0
        %v3706 = vsel %vm2844, %v3536, 0
        %3708 = vmatprep.subr.mxu0 0.0
        %3709 = vmatpush1.msra.mxu0 0.0
        %3710 = vmatprep.subr.mxu0 0.0
        %3711 = vmatpush1.msra.mxu0 0.0
        %3712 = vmatprep.subr.mxu0 0.0
        %3713 = vmatpush1.msra.mxu0 0.0
        %3714 = vmatprep.subr.mxu0 0.0
        %3715 = vmatpush1.msra.mxu0 0.0
        %3716 = vmatprep.subr.mxu0 0.0
        %3717 = vmatpush1.msra.mxu0 0.0
        %3718 = vmatprep.subr.mxu0 0.0
        %3719 = vmatpush1.msra.mxu0 0.0
        %3720 = vmatprep.subr.mxu0 0.0
        %3721 = vmatpush1.msra.mxu0 0.0
        %3722 = vmatprep.subr.mxu0 0.0
        %3723 = vmatpush1.msra.mxu0 0.0
        %3724 = vmatprep.subr.mxu0 0.0
        %3725 = vmatpush1.msra.mxu0 0.0
        %3726 = vmatprep.subr.mxu0 0.0
        %3727 = vmatpush1.msra.mxu0 0.0
        %3728 = vmatprep.subr.mxu0 0.0
        %3729 = vmatpush1.msra.mxu0 0.0
        %3730 = vmatprep.subr.mxu0 0.0
        %3731 = vmatpush1.msra.mxu0 0.0
        %3732 = vmatprep.subr.mxu0 0.0
        %3733 = vmatpush1.msra.mxu0 0.0
        %3734 = vmatprep.subr.mxu0 0.0
        %3735 = vmatpush1.msra.mxu0 0.0
        %3736 = vmatprep.subr.mxu0 0.0
        %3737 = vmatpush1.msra.mxu0 %v3556
        %3738 = vmatprep.subr.mxu0 0.0
        %3739 = vmatpush1.msra.mxu0 %v3555
        %3740 = vmatprep.subr.mxu0 0.0
        %3741 = vmatpush2.msra.mxu0 0.0
        %3742 = vmatprep.subr.mxu0 0.0
        %3743 = vmatpush2.msra.mxu0 0.0
        %3744 = vmatprep.subr.mxu0 0.0
        %3745 = vmatpush2.msra.mxu0 0.0
        %3746 = vmatprep.subr.mxu0 0.0
        %3747 = vmatpush2.msra.mxu0 0.0
        %3748 = vmatprep.subr.mxu0 0.0
        %3749 = vmatpush2.msra.mxu0 0.0
        %3750 = vmatprep.subr.mxu0 0.0
        %3751 = vmatpush2.msra.mxu0 0.0
        %3752 = vmatprep.subr.mxu0 0.0
        %3753 = vmatpush2.msra.mxu0 0.0
        %3754 = vmatprep.subr.mxu0 0.0
        %3755 = vmatpush2.msra.mxu0 0.0
        %3756 = vmatprep.subr.mxu0 0.0
        %3757 = vmatpush2.msra.mxu0 0.0
        %3758 = vmatprep.subr.mxu0 0.0
        %3759 = vmatpush2.msra.mxu0 0.0
        %3760 = vmatprep.subr.mxu0 0.0
        %3761 = vmatpush2.msra.mxu0 0.0
        %3762 = vmatprep.subr.mxu0 0.0
        %3763 = vmatpush2.msra.mxu0 0.0
        %3764 = vmatprep.subr.mxu0 0.0
        %3765 = vmatpush2.msra.mxu0 0.0
        %3766 = vmatprep.subr.mxu0 0.0
        %3767 = vmatpush2.msra.mxu0 0.0
        %3768 = vmatprep.subr.mxu0 0.0
        %3769 = vmatpush2.msra.mxu0 0.0
        %3770 = vmatprep.subr.mxu0 0.0
        %3771 = vmatpush2.msra.mxu0 0.0
        %3772 = vmatprep.mubr.f32.mxu0 0.0
        %3773 = vmatmul.mubr.f32.gmra.mxu0 %v3706
        %v3774 = vpop.f32.mrf.mxu0
        %v3775 = vadd.f32 0.0, %v3774
        %v3776 = vpop.f32.mrf.mxu0
        %3777 = vdwg.mxu0
        %v3779 = vsel %vm2844, %v3538, 0
        %3781 = vmatprep.subr.mxu0 0.0
        %3782 = vmatpush1.msra.mxu0 0.0
        %3783 = vmatprep.subr.mxu0 0.0
        %3784 = vmatpush1.msra.mxu0 0.0
        %3785 = vmatprep.subr.mxu0 0.0
        %3786 = vmatpush1.msra.mxu0 0.0
        %3787 = vmatprep.subr.mxu0 0.0
        %3788 = vmatpush1.msra.mxu0 0.0
        %3789 = vmatprep.subr.mxu0 0.0
        %3790 = vmatpush1.msra.mxu0 0.0
        %3791 = vmatprep.subr.mxu0 0.0
        %3792 = vmatpush1.msra.mxu0 0.0
        %3793 = vmatprep.subr.mxu0 0.0
        %3794 = vmatpush1.msra.mxu0 0.0
        %3795 = vmatprep.subr.mxu0 0.0
        %3796 = vmatpush1.msra.mxu0 0.0
        %3797 = vmatprep.subr.mxu0 0.0
        %3798 = vmatpush1.msra.mxu0 0.0
        %3799 = vmatprep.subr.mxu0 0.0
        %3800 = vmatpush1.msra.mxu0 0.0
        %3801 = vmatprep.subr.mxu0 0.0
        %3802 = vmatpush1.msra.mxu0 0.0
        %3803 = vmatprep.subr.mxu0 0.0
        %3804 = vmatpush1.msra.mxu0 0.0
        %3805 = vmatprep.subr.mxu0 0.0
        %3806 = vmatpush1.msra.mxu0 0.0
        %3807 = vmatprep.subr.mxu0 0.0
        %3808 = vmatpush1.msra.mxu0 0.0
        %3809 = vmatprep.subr.mxu0 0.0
        %3810 = vmatpush1.msra.mxu0 %v3558
        %3811 = vmatprep.subr.mxu0 0.0
        %3812 = vmatpush1.msra.mxu0 %v3557
        %3813 = vmatprep.subr.mxu0 0.0
        %3814 = vmatpush2.msra.mxu0 0.0
        %3815 = vmatprep.subr.mxu0 0.0
        %3816 = vmatpush2.msra.mxu0 0.0
        %3817 = vmatprep.subr.mxu0 0.0
        %3818 = vmatpush2.msra.mxu0 0.0
        %3819 = vmatprep.subr.mxu0 0.0
        %3820 = vmatpush2.msra.mxu0 0.0
        %3821 = vmatprep.subr.mxu0 0.0
        %3822 = vmatpush2.msra.mxu0 0.0
        %3823 = vmatprep.subr.mxu0 0.0
        %3824 = vmatpush2.msra.mxu0 0.0
        %3825 = vmatprep.subr.mxu0 0.0
        %3826 = vmatpush2.msra.mxu0 0.0
        %3827 = vmatprep.subr.mxu0 0.0
        %3828 = vmatpush2.msra.mxu0 0.0
        %3829 = vmatprep.subr.mxu0 0.0
        %3830 = vmatpush2.msra.mxu0 0.0
        %3831 = vmatprep.subr.mxu0 0.0
        %3832 = vmatpush2.msra.mxu0 0.0
        %3833 = vmatprep.subr.mxu0 0.0
        %3834 = vmatpush2.msra.mxu0 0.0
        %3835 = vmatprep.subr.mxu0 0.0
        %3836 = vmatpush2.msra.mxu0 0.0
        %3837 = vmatprep.subr.mxu0 0.0
        %3838 = vmatpush2.msra.mxu0 0.0
        %3839 = vmatprep.subr.mxu0 0.0
        %3840 = vmatpush2.msra.mxu0 0.0
        %3841 = vmatprep.subr.mxu0 0.0
        %3842 = vmatpush2.msra.mxu0 0.0
        %3843 = vmatprep.subr.mxu0 0.0
        %3844 = vmatpush2.msra.mxu0 0.0
        %3845 = vmatprep.mubr.f32.mxu0 0.0
        %3846 = vmatmul.mubr.f32.gmra.mxu0 %v3779
        %v3847 = vpop.f32.mrf.mxu0
        %v3848 = vadd.f32 0.0, %v3847
        %v3849 = vpop.f32.mrf.mxu0
        %3850 = vdwg.mxu0
        %v3851 = vrcp.pop %v3541
        %v3852 = vrcp.pop %v3544
        %v3853 = vrcp.pop %v3547
        %v3854 = vrcp.pop %v3550
        %v3855 = vmul.f32 %v3629, %v3851
        %v3856 = vmul.f32 %v3702, %v3852
        %v3857 = vmul.f32 %v3775, %v3853
        %v3858 = vmul.f32 %v3848, %v3854
        %v3859 = vcombine.low %v3855, %v3857
        %v3860 = vcombine.high %v3855, %v3857
        %v3862 = vunpack.c.l.s4 1983009808
        %v3863 = vunpack.c.0.s8 %v3862
        %v3864 = vlaneseq
        %v3865 = vshrl.u32 %v3864, 7
        %v3866 = vsub.s32 %v3863, %v3865
        %v3867 = vrot.slane %v3859, %v3866
        %v3869 = vunpack.c.l.s4 1983009808
        %v3870 = vunpack.c.0.s8 %v3869
        %v3871 = vlaneseq
        %v3872 = vshrl.u32 %v3871, 7
        %v3873 = vsub.s32 %v3870, %v3872
        %v3874 = vrot.slane %v3860, %v3873
        %v3875 = vcombine.low %v3856, %v3858
        %v3876 = vcombine.high %v3856, %v3858
        %v3878 = vunpack.c.l.s4 1983009808
        %v3879 = vunpack.c.0.s8 %v3878
        %v3880 = vlaneseq
        %v3881 = vshrl.u32 %v3880, 7
        %v3882 = vsub.s32 %v3879, %v3881
        %v3883 = vrot.slane %v3875, %v3882
        %v3885 = vunpack.c.l.s4 1983009808
        %v3886 = vunpack.c.0.s8 %v3885
        %v3887 = vlaneseq
        %v3888 = vshrl.u32 %v3887, 7
        %v3889 = vsub.s32 %v3886, %v3888
        %v3890 = vrot.slane %v3876, %v3889
        %v3891 = vcombine.low %v3867, %v3883
        %v3892 = vcombine.high %v3867, %v3883
        %v3894 = vunpack.c.l.s4 1934713408
        %v3895 = vunpack.c.0.s8 %v3894
        %v3896 = vlaneseq
        %v3897 = vshrl.u32 %v3896, 7
        %v3898 = vsub.s32 %v3895, %v3897
        %v3899 = vrot.slane %v3891, %v3898
        %v3901 = vunpack.c.l.s4 1934713408
        %v3902 = vunpack.c.0.s8 %v3901
        %v3903 = vlaneseq
        %v3904 = vshrl.u32 %v3903, 7
        %v3905 = vsub.s32 %v3902, %v3904
        %v3906 = vrot.slane %v3892, %v3905
        %v3907 = vcombine.low %v3874, %v3890
        %v3908 = vcombine.high %v3874, %v3890
        %v3910 = vunpack.c.l.s4 1934713408
        %v3911 = vunpack.c.0.s8 %v3910
        %v3912 = vlaneseq
        %v3913 = vshrl.u32 %v3912, 7
        %v3914 = vsub.s32 %v3911, %v3913
        %v3915 = vrot.slane %v3907, %v3914
        %v3917 = vunpack.c.l.s4 1934713408
        %v3918 = vunpack.c.0.s8 %v3917
        %v3919 = vlaneseq
        %v3920 = vshrl.u32 %v3919, 7
        %v3921 = vsub.s32 %v3918, %v3920
        %v3922 = vrot.slane %v3908, %v3921
        %v3923 = vcombine.high %v3899, 0.0
        %v3924 = vcombine.high %v3906, 0.0
        %v3925 = vcombine.high %v3915, 0.0
        %v3926 = vcombine.high %v3922, 0.0
        %v3927 = vcombine.low %v3899, %v3906
        %v3929 = vunpack.c.l.s4 1983009808
        %v3930 = vunpack.c.0.s8 %v3929
        %v3931 = vlaneseq
        %v3932 = vshrl.u32 %v3931, 7
        %v3933 = vsub.s32 %v3930, %v3932
        %v3934 = vrot.slane %v3927, %v3933
        %v3935 = vcombine.low %v3923, %v3924
        %v3937 = vunpack.c.l.s4 1983009808
        %v3938 = vunpack.c.0.s8 %v3937
        %v3939 = vlaneseq
        %v3940 = vshrl.u32 %v3939, 7
        %v3941 = vsub.s32 %v3938, %v3940
        %v3942 = vrot.slane %v3935, %v3941
        %v3943 = vcombine.low %v3915, %v3922
        %v3945 = vunpack.c.l.s4 1983009808
        %v3946 = vunpack.c.0.s8 %v3945
        %v3947 = vlaneseq
        %v3948 = vshrl.u32 %v3947, 7
        %v3949 = vsub.s32 %v3946, %v3948
        %v3950 = vrot.slane %v3943, %v3949
        %v3951 = vcombine.low %v3925, %v3926
        %v3953 = vunpack.c.l.s4 1983009808
        %v3954 = vunpack.c.0.s8 %v3953
        %v3955 = vlaneseq
        %v3956 = vshrl.u32 %v3955, 7
        %v3957 = vsub.s32 %v3954, %v3956
        %v3958 = vrot.slane %v3951, %v3957
        %v3959 = vcombine.low %v3934, %v3942
        %v3960 = vcombine.high %v3934, %v3942
        %v3962 = vunpack.c.l.s4 1934713408
        %v3963 = vunpack.c.0.s8 %v3962
        %v3964 = vlaneseq
        %v3965 = vshrl.u32 %v3964, 7
        %v3966 = vsub.s32 %v3963, %v3965
        %v3967 = vrot.slane %v3959, %v3966
        %v3969 = vunpack.c.l.s4 1934713408
        %v3970 = vunpack.c.0.s8 %v3969
        %v3971 = vlaneseq
        %v3972 = vshrl.u32 %v3971, 7
        %v3973 = vsub.s32 %v3970, %v3972
        %v3974 = vrot.slane %v3960, %v3973
        %v3975 = vcombine.low %v3950, %v3958
        %v3976 = vcombine.high %v3950, %v3958
        %v3978 = vunpack.c.l.s4 1934713408
        %v3979 = vunpack.c.0.s8 %v3978
        %v3980 = vlaneseq
        %v3981 = vshrl.u32 %v3980, 7
        %v3982 = vsub.s32 %v3979, %v3981
        %v3983 = vrot.slane %v3975, %v3982
        %v3985 = vunpack.c.l.s4 1934713408
        %v3986 = vunpack.c.0.s8 %v3985
        %v3987 = vlaneseq
        %v3988 = vshrl.u32 %v3987, 7
        %v3989 = vsub.s32 %v3986, %v3988
        %v3990 = vrot.slane %v3976, %v3989
        %v3991 = vcombine.low %v3967, %v3983
        %v3992 = vcombine.high %v3967, %v3983
        %v3993 = vcombine.low %v3974, %v3990
        %v3994 = vcombine.high %v3974, %v3990
        %3996 = vrot.lane.b32.xlu0 %v3992, 8
        %v3997 = vpop.permute.xlu0 %3996
        %4000 = vrot.lane.b32.xlu0 %v3993, 16
        %v4001 = vpop.permute.xlu0 %4000
        %4004 = vrot.lane.b32.xlu0 %v3994, 24
        %v4005 = vpop.permute.xlu0 %4004
        %v4007 = vsel %vm2030, %v3991, %v3997
        %v4008 = vsel %vm2844, %v4007, %v4001
        %v4009 = vsel %vm2846, %v4008, %v4005
        %v4010 = vld [vmem:[#allocation18] sm:$0xff]
        %v4011 = vld [vmem:[#allocation18 + $0x8] sm:$0xff]
        %v4012 = vld [vmem:[#allocation18 + $0x10] sm:$0xff]
        %v4013 = vld [vmem:[#allocation18 + $0x18] sm:$0xff]
        %v4014 = vlaneseq
        %v4015 = vshrl.u32 %v4014, 7
        %v4016 = vsub.s32 7, %v4015
        %v4017 = vrot.slane %v612, %v4016
        %v4019 = vsel %vm1773, %v4009, 0
        %4021 = vmatprep.subr.mxu0 0.0
        %4022 = vmatpush1.msra.mxu0 0.0
        %4023 = vmatprep.subr.mxu0 0.0
        %4024 = vmatpush1.msra.mxu0 0.0
        %4025 = vmatprep.subr.mxu0 0.0
        %4026 = vmatpush1.msra.mxu0 0.0
        %4027 = vmatprep.subr.mxu0 0.0
        %4028 = vmatpush1.msra.mxu0 0.0
        %4029 = vmatprep.subr.mxu0 0.0
        %4030 = vmatpush1.msra.mxu0 0.0
        %4031 = vmatprep.subr.mxu0 0.0
        %4032 = vmatpush1.msra.mxu0 0.0
        %4033 = vmatprep.subr.mxu0 0.0
        %4034 = vmatpush1.msra.mxu0 0.0
        %4035 = vmatprep.subr.mxu0 0.0
        %4036 = vmatpush1.msra.mxu0 0.0
        %4037 = vmatprep.subr.mxu0 0.0
        %4038 = vmatpush1.msra.mxu0 0.0
        %4039 = vmatprep.subr.mxu0 0.0
        %4040 = vmatpush1.msra.mxu0 0.0
        %4041 = vmatprep.subr.mxu0 0.0
        %4042 = vmatpush1.msra.mxu0 0.0
        %4043 = vmatprep.subr.mxu0 0.0
        %4044 = vmatpush1.msra.mxu0 0.0
        %4045 = vmatprep.subr.mxu0 0.0
        %4046 = vmatpush1.msra.mxu0 %v4013
        %4047 = vmatprep.subr.mxu0 0.0
        %4048 = vmatpush1.msra.mxu0 %v4012
        %4049 = vmatprep.subr.mxu0 0.0
        %4050 = vmatpush1.msra.mxu0 %v4011
        %4051 = vmatprep.subr.mxu0 0.0
        %4052 = vmatpush1.msra.mxu0 %v4010
        %4053 = vmatprep.subr.mxu0 0.0
        %4054 = vmatpush2.msra.mxu0 0.0
        %4055 = vmatprep.subr.mxu0 0.0
        %4056 = vmatpush2.msra.mxu0 0.0
        %4057 = vmatprep.subr.mxu0 0.0
        %4058 = vmatpush2.msra.mxu0 0.0
        %4059 = vmatprep.subr.mxu0 0.0
        %4060 = vmatpush2.msra.mxu0 0.0
        %4061 = vmatprep.subr.mxu0 0.0
        %4062 = vmatpush2.msra.mxu0 0.0
        %4063 = vmatprep.subr.mxu0 0.0
        %4064 = vmatpush2.msra.mxu0 0.0
        %4065 = vmatprep.subr.mxu0 0.0
        %4066 = vmatpush2.msra.mxu0 0.0
        %4067 = vmatprep.subr.mxu0 0.0
        %4068 = vmatpush2.msra.mxu0 0.0
        %4069 = vmatprep.subr.mxu0 0.0
        %4070 = vmatpush2.msra.mxu0 0.0
        %4071 = vmatprep.subr.mxu0 0.0
        %4072 = vmatpush2.msra.mxu0 0.0
        %4073 = vmatprep.subr.mxu0 0.0
        %4074 = vmatpush2.msra.mxu0 0.0
        %4075 = vmatprep.subr.mxu0 0.0
        %4076 = vmatpush2.msra.mxu0 0.0
        %4077 = vmatprep.subr.mxu0 0.0
        %4078 = vmatpush2.msra.mxu0 0.0
        %4079 = vmatprep.subr.mxu0 0.0
        %4080 = vmatpush2.msra.mxu0 0.0
        %4081 = vmatprep.subr.mxu0 0.0
        %4082 = vmatpush2.msra.mxu0 0.0
        %4083 = vmatprep.subr.mxu0 0.0
        %4084 = vmatpush2.msra.mxu0 0.0
        %4085 = vmatprep.mubr.f32.mxu0 0.0
        %4086 = vmatmul.mubr.f32.gmra.mxu0 %v4019
        %v4087 = vpop.f32.mrf.mxu0
        %v4088 = vadd.f32 %v4017, %v4087
        %v4089 = vpop.f32.mrf.mxu0
        %4090 = vdwg.mxu0
        %v4091 = vadd.f32 %v2929, %v4088
        %v4092 = vsel %vm1773, %v4091, 0.0
        %4093 = vadd.xlane.f32.xlu0 %v4092
        %v4094 = vpop.xlane.xlu0 %4093
        %v4095 = vmul.f32 %v4094, %v1777
        %v4096 = vsub.f32 %v4091, %v4095
        %v4097 = vmul.f32 %v4096, %v4096
        %v4098 = vsel %vm1773, %v4097, 0.0
        %4099 = vadd.xlane.f32.xlu0 %v4098
        %v4100 = vpop.xlane.xlu0 %4099
        %v4101 = vmul.f32 %v4100, %v1777
        %v4102 = vadd.f32 %v4101, 1e-05
        %v4103 = vrsqrt.pop %v4102
        %v4104 = vmul.f32 %v4096, %v4103
        %v4105 = vlaneseq
        %v4106 = vshrl.u32 %v4105, 7
        %v4107 = vsub.s32 5, %v4106
        %v4108 = vrot.slane %v613, %v4107
        %v4109 = vmul.f32 %v4104, %v4108
        %v4110 = vlaneseq
        %v4111 = vshrl.u32 %v4110, 7
        %v4112 = vsub.s32 6, %v4111
        %v4113 = vrot.slane %v613, %v4112
        %v4114 = vadd.f32 %v4109, %v4113
        %v4115 = vld [vmem:[#allocation20] sm:$0xff]
        %v4116 = vld [vmem:[#allocation20 + $0x8] sm:$0xff]
        %v4117 = vld [vmem:[#allocation20 + $0x10] sm:$0xff]
        %v4118 = vld [vmem:[#allocation20 + $0x18] sm:$0xff]
        %v4119 = vlaneseq
        %v4120 = vshrl.u32 %v4119, 7
        %v4121 = vsub.s32 0, %v4120
        %v4122 = vrot.slane %v613, %v4121
        %v4124 = vsel %vm1773, %v4114, 0
        %4126 = vmatprep.subr.mxu0 0.0
        %4127 = vmatpush1.msra.mxu0 0.0
        %4128 = vmatprep.subr.mxu0 0.0
        %4129 = vmatpush1.msra.mxu0 0.0
        %4130 = vmatprep.subr.mxu0 0.0
        %4131 = vmatpush1.msra.mxu0 0.0
        %4132 = vmatprep.subr.mxu0 0.0
        %4133 = vmatpush1.msra.mxu0 0.0
        %4134 = vmatprep.subr.mxu0 0.0
        %4135 = vmatpush1.msra.mxu0 0.0
        %4136 = vmatprep.subr.mxu0 0.0
        %4137 = vmatpush1.msra.mxu0 0.0
        %4138 = vmatprep.subr.mxu0 0.0
        %4139 = vmatpush1.msra.mxu0 0.0
        %4140 = vmatprep.subr.mxu0 0.0
        %4141 = vmatpush1.msra.mxu0 0.0
        %4142 = vmatprep.subr.mxu0 0.0
        %4143 = vmatpush1.msra.mxu0 0.0
        %4144 = vmatprep.subr.mxu0 0.0
        %4145 = vmatpush1.msra.mxu0 0.0
        %4146 = vmatprep.subr.mxu0 0.0
        %4147 = vmatpush1.msra.mxu0 0.0
        %4148 = vmatprep.subr.mxu0 0.0
        %4149 = vmatpush1.msra.mxu0 0.0
        %4150 = vmatprep.subr.mxu0 0.0
        %4151 = vmatpush1.msra.mxu0 %v4118
        %4152 = vmatprep.subr.mxu0 0.0
        %4153 = vmatpush1.msra.mxu0 %v4117
        %4154 = vmatprep.subr.mxu0 0.0
        %4155 = vmatpush1.msra.mxu0 %v4116
        %4156 = vmatprep.subr.mxu0 0.0
        %4157 = vmatpush1.msra.mxu0 %v4115
        %4158 = vmatprep.subr.mxu0 0.0
        %4159 = vmatpush2.msra.mxu0 0.0
        %4160 = vmatprep.subr.mxu0 0.0
        %4161 = vmatpush2.msra.mxu0 0.0
        %4162 = vmatprep.subr.mxu0 0.0
        %4163 = vmatpush2.msra.mxu0 0.0
        %4164 = vmatprep.subr.mxu0 0.0
        %4165 = vmatpush2.msra.mxu0 0.0
        %4166 = vmatprep.subr.mxu0 0.0
        %4167 = vmatpush2.msra.mxu0 0.0
        %4168 = vmatprep.subr.mxu0 0.0
        %4169 = vmatpush2.msra.mxu0 0.0
        %4170 = vmatprep.subr.mxu0 0.0
        %4171 = vmatpush2.msra.mxu0 0.0
        %4172 = vmatprep.subr.mxu0 0.0
        %4173 = vmatpush2.msra.mxu0 0.0
        %4174 = vmatprep.subr.mxu0 0.0
        %4175 = vmatpush2.msra.mxu0 0.0
        %4176 = vmatprep.subr.mxu0 0.0
        %4177 = vmatpush2.msra.mxu0 0.0
        %4178 = vmatprep.subr.mxu0 0.0
        %4179 = vmatpush2.msra.mxu0 0.0
        %4180 = vmatprep.subr.mxu0 0.0
        %4181 = vmatpush2.msra.mxu0 0.0
        %4182 = vmatprep.subr.mxu0 0.0
        %4183 = vmatpush2.msra.mxu0 0.0
        %4184 = vmatprep.subr.mxu0 0.0
        %4185 = vmatpush2.msra.mxu0 0.0
        %4186 = vmatprep.subr.mxu0 0.0
        %4187 = vmatpush2.msra.mxu0 0.0
        %4188 = vmatprep.subr.mxu0 0.0
        %4189 = vmatpush2.msra.mxu0 0.0
        %4190 = vmatprep.mubr.f32.mxu0 0.0
        %4191 = vmatmul.mubr.f32.gmra.mxu0 %v4124
        %v4192 = vpop.f32.mrf.mxu0
        %v4193 = vadd.f32 %v4122, %v4192
        %v4194 = vpop.f32.mrf.mxu0
        %4195 = vdwg.mxu0
        %v4196 = vmax.f32 %v4193, 0.0
        %v4197 = vadd.f32 %v4091, %v4196
        %4198 = vst.msk [vmem:[%s605] sm:$0xff] %vm1773, %v4197
        %s4199 = sand.u32 %s329, 1
        %s4200 = scalar_lea.sflag [#allocation8], %s4199
        %s4201 = sand.u32 %s329, 1
        %s4202 = smul.addr %s4201, 8
        %s4203 = scalar_lea.vmem [#allocation21], %s4202
        // Predicated region
        $region109: #{tpu_custom_call.1} parent=67 // pred_check
          %p4204 = pneg %p339
        $region110: #{tpu_custom_call.1} parent=67 // pred_check_branch
          %4206 = sbr.rel (%p4204) target = $region112
        $region111: #{tpu_custom_call.1} parent=67 // pred_region
          %s4208 = ssub.s32 128, 128
          %4209 = vsyncadd %s4200, %s4208
          %s4210 = sadd.s32 %s40, %s39
          %s4211 = smul.addr %s4210, 128
          %s4212 = scalar_lea.hbm %s12, %s4211
          %s4214 = sshll.u32 %s4203, 4
          %s4215 = int_to_ptr.vmem [resolvable:$true] %s4214
          %4217 = dma.vmem_to_hbm [thread:$0]  %s4215, 128, %s4212, %s4200
        $region112: #{tpu_custom_call.1} parent=67 // pred_fallthru
          _
      $region68: #{tpu_custom_call.1} parent=5 // pred_fallthru
        _
      %p4218 = scmp.le.s32.totalorder 2, %s30
      // Predicated region
      $region113: #{tpu_custom_call.1} parent=5 // pred_check
        %p4219 = pneg %p4218
      $region114: #{tpu_custom_call.1} parent=5 // pred_check_branch
        %4221 = sbr.rel (%p4219) target = $region116
      $region115: #{tpu_custom_call.1} parent=5 // pred_region
        %s4222 = ssub.s32 %s30, 2
        // Predicated region
        $region117: #{tpu_custom_call.1} parent=115 // pred_check
          %p4223 = pneg %p345
        $region118: #{tpu_custom_call.1} parent=115 // pred_check_branch
          %4225 = sbr.rel (%p4223) target = $region120
        $region119: #{tpu_custom_call.1} parent=115 // pred_region
          %s4226 = sand.u32 %s330, 1
          %s4227 = scalar_lea.sflag [#allocation8], %s4226
          %s4228 = sand.u32 %s330, 1
          %s4229 = smul.addr %s4228, 8
          %s4230 = scalar_lea.vmem [#allocation21], %s4229
          %4231 = dma.done %s4227, 128
        $region120: #{tpu_custom_call.1} parent=115 // pred_fallthru
          _
      $region116: #{tpu_custom_call.1} parent=5 // pred_fallthru
        _
    $region6: #{tpu_custom_call.1} parent=1 // loop_footer
      %s34 = sadd.s32 1, %s30
    $region7: #{tpu_custom_call.1} parent=1 // loop_footer_branch
      %29 = sbr.rel target = $region3
    $region8: #{tpu_custom_call.1} parent=1 // loop_exit
      _
    %4232 = vsyncpa [#allocation7], 1
    %s4233 = scalar_lea.sflag [#allocation7], 1
    %4234 = vsyncpa %s4233, 1
    %4235 = vsyncpa [#allocation10], 1
    %s4236 = scalar_lea.sflag [#allocation10], 1
    %4237 = vsyncpa %s4236, 1
    %4238 = vsyncpa [#allocation13], 1
    %4239 = vsyncpa [#allocation16], 1
    %4240 = vsyncpa [#allocation19], 1
    %4241 = vsyncpa [#allocation8], 1
    %s4242 = scalar_lea.sflag [#allocation8], 1
    %4243 = vsyncpa %s4242, 1

</llo_original>
